<compile_context>
chip_gen: v7x
topology: tpu7x:2x2x1
jax: 0.10.0
libtpu: 0.0.40
codegen_flags: <defaults>
</compile_context>

<pallas_src>
import functools

import jax
import jax.numpy as jnp
from jax.experimental import pallas as pl
from jax.experimental.pallas import tpu as pltpu


# ----------------------------------------------------------------------------
# Kernel 1: EdgeConv (per graph).  message(i,j) = MLP(cat(x_i, x_j - x_i)),
# out_i = max_{j in N(i)} message(i,j), 0 if no neighbours.
# Layer-1 split: cat(x_i, x_j-x_i) @ W1 = x_i @ (W1a - W1b) + x_j @ W1b.
# BN(eval) + Lin bias folded into per-feature (scale, shift).
# ----------------------------------------------------------------------------
def edgeconv_kernel(x_ref, adj_ref, w1m_ref, w1b_ref, s1_ref, d1_ref,
                    w2_ref, s2_ref, d2_ref, w3_ref, s3_ref, d3_ref, out_ref):
    x = x_ref[...].astype(jnp.bfloat16)                 # (N, F)
    adj = adj_ref[...]                                  # (N, N)  [target, source]
    n = adj.shape[0]
    a = jnp.dot(x, w1m_ref[...], preferred_element_type=jnp.float32)   # target term
    b = jnp.dot(x, w1b_ref[...], preferred_element_type=jnp.float32)   # source term
    c1 = a.shape[1]
    # all-pairs messages, flattened to (N*N, 64) for MXU-friendly matmuls
    pre = (a[:, None, :] + b[None, :, :]).reshape(n * n, c1)
    h1 = jnp.maximum(pre * s1_ref[...] + d1_ref[...], 0.0)
    h2 = jnp.maximum(
        jnp.dot(h1.astype(jnp.bfloat16), w2_ref[...],
                preferred_element_type=jnp.float32) * s2_ref[...] + d2_ref[...], 0.0)
    h3 = jnp.maximum(
        jnp.dot(h2.astype(jnp.bfloat16), w3_ref[...],
                preferred_element_type=jnp.float32) * s3_ref[...] + d3_ref[...], 0.0)
    h3 = h3.reshape(n, n, h3.shape[1])
    # arithmetic masking (h3 >= 0, so -1e30 never beats a real edge message)
    masked = h3 + (adj[:, :, None] - 1.0) * 1e30
    mx = jnp.max(masked, axis=1)                        # (N, 64) max over sources j
    has_nb = jnp.minimum(jnp.sum(adj, axis=1, keepdims=True), 1.0)   # 0 if isolated
    out_ref[...] = mx * has_nb


# ----------------------------------------------------------------------------
# Kernel 2: four fused (GATConv heads=8 concat + parallel Linear) layers.
# grid = (graph, layer); activation h carried in VMEM scratch across layers.
#   big     = h @ [W | Wlin | W@Asrc | W@Adst]          (one wide bf16 matmul)
#   e_ij    = leaky_relu(a_dst_i + a_src_j), masked softmax over sources j
#   x_l     = concat_h(attn_h @ xp_h) + (gat_bias + lin_bias) + lin_out
#   out[:, l*256:(l+1)*256] = x_l ;  h <- relu(x_l)     (ReLU fused for next layer)
# ----------------------------------------------------------------------------
def gat4_kernel(x0_ref, adj_ref, wbig_ref, bias_ref, out_ref, h_ref):
    layer = pl.program_id(1)

    @pl.when(layer == 0)
    def _():
        h_ref[...] = x0_ref[...]                        # x0 zero-padded to 256 cols

    h = h_ref[...].astype(jnp.bfloat16)                 # (N, 256)
    big = jnp.dot(h, wbig_ref[...], preferred_element_type=jnp.float32)   # (N, 528)

    hidden = bias_ref.shape[-1]                         # 256
    heads = (big.shape[1] - 2 * hidden) // 2            # 8
    csz = hidden // heads                               # 32
    xp = big[:, 0:hidden]                               # GAT projection (head-major cols)
    lin_out = big[:, hidden:2 * hidden]                 # parallel Linear branch
    a_src = big[:, 2 * hidden:2 * hidden + heads]       # (N, H) per-head source logits
    a_dst = big[:, 2 * hidden + heads:2 * hidden + 2 * heads]

    adj = adj_ref[...]                                  # (N, N) incl. self loops
    mask = adj > 0.5
    a_src_t = a_src.T                                   # single XLU transpose, hoisted

    outs = []
    for hd in range(heads):                             # static unroll over heads
        e = a_dst[:, hd:hd + 1] + a_src_t[hd:hd + 1, :]             # (N, N): e[i, j]
        e = jnp.where(e > 0, e, 0.2 * e)                            # LeakyReLU(0.2)
        e = jnp.where(mask, e, -1e30)
        m = jnp.max(e, axis=1, keepdims=True)
        p = jnp.exp(e - m)                              # exp(-1e30 - m) == 0 -> no maskf mul
        denom = jnp.sum(p, axis=1, keepdims=True)
        attn = p * pl.reciprocal(denom, approx=True)
        outs.append(jnp.dot(attn.astype(jnp.bfloat16),
                            xp[:, hd * csz:(hd + 1) * csz].astype(jnp.bfloat16),
                            preferred_element_type=jnp.float32))
    xl = jnp.concatenate(outs, axis=1) + lin_out + bias_ref[...]
    out_ref[...] = xl                                   # this layer's 256-wide slice
    h_ref[...] = jnp.maximum(xl, 0.0)                   # fused ReLU -> next layer input


# ----------------------------------------------------------------------------
# Kernel 3: per-graph max+mean pooling, 3-layer MLP head, log_softmax.
# ----------------------------------------------------------------------------
def head_kernel(xb_ref, w1_ref, b1_ref, w2_ref, b2_ref, w3_ref, b3_ref, out_ref):
    xb = xb_ref[...]                                    # (B, N, 1024)
    inv_n = 1.0 / xb.shape[1]
    mx = jnp.max(xb, axis=1)                            # global_max_pool
    mn = jnp.sum(xb, axis=1) * inv_n                    # global_mean_pool
    pooled = jnp.concatenate([mx, mn], axis=1).astype(jnp.bfloat16)   # (B, 2048)
    h1 = jnp.dot(pooled, w1_ref[...], preferred_element_type=jnp.float32) + b1_ref[...]
    h2 = jnp.dot(h1.astype(jnp.bfloat16), w2_ref[...],
                 preferred_element_type=jnp.float32) + b2_ref[...]
    logits = jnp.dot(h2.astype(jnp.bfloat16), w3_ref[...],
                     preferred_element_type=jnp.float32) + b3_ref[...]
    z = logits - jnp.max(logits, axis=1, keepdims=True)
    lse = jnp.log(jnp.sum(jnp.exp(z), axis=1, keepdims=True))
    out_ref[...] = z - lse


# ----------------------------------------------------------------------------
# Wrappers (pallas_call plumbing: per-graph grids, resident weight specs).
# ----------------------------------------------------------------------------
_VMEM_SPEC = pl.BlockSpec(memory_space=pltpu.MemorySpace.VMEM)
_VMEM_LIMIT = 32 * 1024 * 1024     # fits the 32 MiB scoped default on all chips


def _resident_spec(arr):
    """Full-array block that stays resident across all grid steps."""
    nd = arr.ndim
    return pl.BlockSpec(arr.shape, lambda *_, nd=nd: (0,) * nd)


def edgeconv(x, adj_b, ep, batch_size, node_size):
    nt, f_in = x.shape
    args = (x, adj_b, ep['w1m'], ep['w1b'], ep['s1'], ep['d1'],
            ep['w2'], ep['s2'], ep['d2'], ep['w3'], ep['s3'], ep['d3'])
    in_specs = [
        pl.BlockSpec((node_size, f_in), lambda g: (g, 0)),
        pl.BlockSpec((None, node_size, node_size), lambda g: (g, 0, 0)),
    ] + [_resident_spec(a) for a in args[2:]]
    out_spec = pl.BlockSpec((node_size, 64), lambda g: (g, 0))

    n = node_size
    flops = batch_size * (4 * n * f_in * 64 + 4 * n * n * 64 * 64 + 8 * n * n * 64)
    bytes_acc = batch_size * (n * f_in * 4 + n * n * 4 + n * 64 * 4)
    bytes_acc += sum(int(a.size) * a.dtype.itemsize for a in args[2:])

    return pl.pallas_call(
        edgeconv_kernel,
        out_shape=jax.ShapeDtypeStruct((nt, 64), jnp.float32),
        grid_spec=pltpu.PrefetchScalarGridSpec(
            num_scalar_prefetch=0, grid=(batch_size,),
            in_specs=in_specs, out_specs=out_spec),
        compiler_params=pltpu.CompilerParams(
            dimension_semantics=("parallel",),
            vmem_limit_bytes=_VMEM_LIMIT),
        cost_estimate=pl.CostEstimate(flops=int(flops), transcendentals=0,
                                      bytes_accessed=int(bytes_acc)),
    )(*args)


def gat4(x0p, adj_sl_b, fused, batch_size, node_size):
    wbig, bias = fused                       # (4, 256, 528) bf16, (4, 1, 256) f32
    n_layers, hidden = wbig.shape[0], bias.shape[-1]
    nt = batch_size * node_size
    in_specs = [
        pl.BlockSpec((node_size, hidden), lambda g, l: (g, 0)),            # x0 (padded)
        pl.BlockSpec((None, node_size, node_size), lambda g, l: (g, 0, 0)),  # adj block
        pl.BlockSpec((None,) + wbig.shape[1:], lambda g, l: (l, 0, 0)),     # layer weights
        pl.BlockSpec((None,) + bias.shape[1:], lambda g, l: (l, 0, 0)),     # layer bias
    ]
    out_spec = pl.BlockSpec((node_size, hidden), lambda g, l: (g, l))       # concat slice

    n, steps = node_size, batch_size * n_layers
    flops = steps * (2 * n * hidden * wbig.shape[-1]
                     + 8 * (2 * n * n * (hidden // 8) + 6 * n * n))
    trans = steps * 8 * n * n
    bytes_acc = steps * (wbig.shape[1] * wbig.shape[2] * 2
                         + n * n * 4 + 2 * n * hidden * 4 + hidden * 4)

    return pl.pallas_call(
        gat4_kernel,
        out_shape=jax.ShapeDtypeStruct((nt, n_layers * hidden), jnp.float32),
        grid_spec=pltpu.PrefetchScalarGridSpec(
            num_scalar_prefetch=0,
            grid=(batch_size, n_layers),
            in_specs=in_specs,
            out_specs=out_spec,
            scratch_shapes=[pltpu.VMEM((node_size, hidden), jnp.float32)]),
        compiler_params=pltpu.CompilerParams(
            dimension_semantics=("parallel", "arbitrary"),
            vmem_limit_bytes=_VMEM_LIMIT),
        cost_estimate=pl.CostEstimate(flops=int(flops), transcendentals=int(trans),
                                      bytes_accessed=int(bytes_acc)),
    )(x0p, adj_sl_b, wbig, bias)


def mlp_head(x_b, head_p):
    (w1, b1), (w2, b2), (w3, b3) = head_p
    bsz, ncls = x_b.shape[0], w3.shape[1]
    args = (x_b, w1, b1, w2, b2, w3, b3)
    return pl.pallas_call(
        head_kernel,
        out_shape=jax.ShapeDtypeStruct((bsz, ncls), jnp.float32),
        in_specs=[_VMEM_SPEC] * len(args),
        out_specs=_VMEM_SPEC,
        compiler_params=pltpu.CompilerParams(vmem_limit_bytes=_VMEM_LIMIT),
    )(*args)


# ----------------------------------------------------------------------------
# Deterministic parameter initialization (synthetic weights; no checkpoint).
# ----------------------------------------------------------------------------
def init_params(key, input_feature, num_classes, hidden=256, heads=8):
    head_size = hidden // heads
    keys = iter(jax.random.split(key, 128))

    def nrm(shape, scale=0.1):
        return jax.random.normal(next(keys), shape, jnp.float32) * scale

    params = {}

    # EdgeConv MLP [2F,64,64,64]; fold Lin bias + BatchNorm1d(eval) into (scale, shift)
    dims = [2 * input_feature, 64, 64, 64]
    mlp = []
    for layer in range(1, 4):
        w = nrm((dims[layer - 1], dims[layer]))
        b = nrm((dims[layer],))
        gamma = 1.0 + nrm((dims[layer],))
        beta = nrm((dims[layer],))
        run_mean = nrm((dims[layer],))
        run_var = jnp.abs(1.0 + nrm((dims[layer],)))
        s = gamma / jnp.sqrt(run_var + 1e-5)
        t = beta - run_mean * s
        mlp.append((w, s, b * s + t))
    (w1, s1, d1), (w2, s2, d2), (w3, s3, d3) = mlp
    f_in = input_feature
    w1a, w1b = w1[:f_in], w1[f_in:]
    params['edge_mlp'] = dict(
        w1m=(w1a - w1b).astype(jnp.bfloat16), w1b=w1b.astype(jnp.bfloat16),
        s1=s1.reshape(1, -1), d1=d1.reshape(1, -1),
        w2=w2.astype(jnp.bfloat16), s2=s2.reshape(1, -1), d2=d2.reshape(1, -1),
        w3=w3.astype(jnp.bfloat16), s3=s3.reshape(1, -1), d3=d3.reshape(1, -1))

    # 4 x (GATConv + Linear) blocks, folded: Wbig = [W | Wlin | W@Asrc | W@Adst],
    # rows zero-padded to `hidden`; gat_bias + lin_bias combined.
    gat_in = [64, hidden, hidden, hidden]
    eye_h = jnp.eye(heads, dtype=jnp.float32)
    wbig_list, bias_list = [], []
    for layer in range(4):
        fin = gat_in[layer]
        w = nrm((fin, hidden))
        att_src = nrm((heads, head_size))
        att_dst = nrm((heads, head_size))
        gbias = nrm((hidden,))
        wl = nrm((fin, hidden))
        bl = nrm((hidden,))
        # block-diagonal head maps: asrc_mat[h*C + c, h] = att_src[h, c]
        asrc_mat = (att_src[:, :, None] * eye_h[:, None, :]).reshape(hidden, heads)
        adst_mat = (att_dst[:, :, None] * eye_h[:, None, :]).reshape(hidden, heads)
        wbig_l = jnp.concatenate([w, wl, w @ asrc_mat, w @ adst_mat], axis=1)
        wbig_l = jnp.pad(wbig_l, ((0, hidden - fin), (0, 0)))
        wbig_list.append(wbig_l)
        bias_list.append((gbias + bl).reshape(1, hidden))
    params['gat_fused'] = (jnp.stack(wbig_list).astype(jnp.bfloat16),   # (4,256,528)
                           jnp.stack(bias_list))                        # (4,1,256)

    # Head MLP: 2048 -> 512 -> 256 -> num_classes (Dropout = identity in eval)
    params['head'] = [
        (nrm((4 * hidden * 2, 512)).astype(jnp.bfloat16), nrm((512,)).reshape(1, -1)),
        (nrm((512, 256)).astype(jnp.bfloat16), nrm((256,)).reshape(1, -1)),
        (nrm((256, num_classes)).astype(jnp.bfloat16),
         nrm((num_classes,)).reshape(1, -1)),
    ]
    return params


# ----------------------------------------------------------------------------
# Full forward pass.
# ----------------------------------------------------------------------------
def netgat_forward(x, adj_b, adj_sl_b, params, batch_size, node_per_graph):
    x0 = edgeconv(x, adj_b, params['edge_mlp'], batch_size, node_per_graph)   # (NT, 64)
    hidden = params['gat_fused'][1].shape[-1]
    x0p = jnp.pad(x0, ((0, 0), (0, hidden - x0.shape[1])))                    # pad to 256
    x_cat = gat4(x0p, adj_sl_b, params['gat_fused'],
                 batch_size, node_per_graph)                                  # (NT, 1024)
    x_b = x_cat.reshape(batch_size, node_per_graph, x_cat.shape[1])
    return mlp_head(x_b, params['head'])                                      # (B, C)


# ----------------------------------------------------------------------------
# Example run.
# ----------------------------------------------------------------------------
if __name__ == "__main__":
    node_size = 16          # nodes per graph (assumed multiple of 8)
    input_feature = 4       # per-node input features
    num_classes = 10
    batch_size = 2
    num_nodes = batch_size * node_size

    key = jax.random.PRNGKey(0)
    key_x, key_p = jax.random.split(key)

    # Node features.
    x = jax.random.normal(key_x, (num_nodes, input_feature), jnp.float32)

    # Deterministic per-graph ring-style edge_index (2, E); src = row 0, dst = row 1.
    src_list, dst_list = [], []
    for g in range(batch_size):
        base = g * node_size
        for n in range(node_size):
            for d in (1, 2, 5):
                a = base + n
                b = base + (n + d) % node_size
                src_list += [a, b]
                dst_list += [b, a]
    edge_index = jnp.array([src_list, dst_list], dtype=jnp.int32)

    # Dense adjacency [target, source]; graphs are disjoint, so extract the
    # per-graph diagonal blocks (GAT layers additionally use self loops).
    adj = jnp.zeros((num_nodes, num_nodes), jnp.float32)
    adj = adj.at[edge_index[1], edge_index[0]].set(1.0)
    adj4 = adj.reshape(batch_size, node_size, batch_size, node_size)
    gidx = jnp.arange(batch_size)
    adj_b = adj4[gidx, :, gidx, :]                                   # (B, N, N)
    adj_sl_b = jnp.maximum(adj_b, jnp.eye(node_size, dtype=jnp.float32)[None])

    params = init_params(key_p, input_feature, num_classes)

    fwd = jax.jit(functools.partial(netgat_forward,
                                    batch_size=batch_size,
                                    node_per_graph=node_size))
    out = fwd(x, adj_b, adj_sl_b, params)
    out = jax.block_until_ready(out)

    assert out.shape == (batch_size, num_classes)
    assert bool(jnp.all(jnp.isfinite(out)))
    # log_softmax rows must exponentiate-sum to 1
    assert bool(jnp.allclose(jnp.exp(out).sum(axis=-1), 1.0, atol=1e-3))

    print("KERNEL_OK")
</pallas_src>

<mosaic_0001>
module attributes {stable_mosaic.version = 11 : i64} {
  func.func @edgeconv_kernel(%arg0: i32, %arg1: memref<16x4xf32, #tpu.memory_space<vmem>>, %arg2: memref<1x16x16xf32, #tpu.memory_space<vmem>>, %arg3: memref<4x64xbf16, #tpu.memory_space<vmem>>, %arg4: memref<4x64xbf16, #tpu.memory_space<vmem>>, %arg5: memref<1x64xf32, #tpu.memory_space<vmem>>, %arg6: memref<1x64xf32, #tpu.memory_space<vmem>>, %arg7: memref<64x64xbf16, #tpu.memory_space<vmem>>, %arg8: memref<1x64xf32, #tpu.memory_space<vmem>>, %arg9: memref<1x64xf32, #tpu.memory_space<vmem>>, %arg10: memref<64x64xbf16, #tpu.memory_space<vmem>>, %arg11: memref<1x64xf32, #tpu.memory_space<vmem>>, %arg12: memref<1x64xf32, #tpu.memory_space<vmem>>, %arg13: memref<16x64xf32, #tpu.memory_space<vmem>>) attributes {dimension_semantics = [#tpu.dimension_semantics<parallel>], iteration_bounds = array<i64: 2>, scalar_prefetch = 0 : i64, scratch_operands = 0 : i64, tpu.core_type = #tpu.core_type<tc>, window_params = [{transform_indices = @transform_0, window_bounds = array<i64: 16, 4>}, {transform_indices = @transform_1, window_bounds = array<i64: 1, 16, 16>}, {pipeline_mode = #tpu.pipeline_mode<synchronous>, transform_indices = @transform_2, window_bounds = array<i64: 4, 64>}, {pipeline_mode = #tpu.pipeline_mode<synchronous>, transform_indices = @transform_3, window_bounds = array<i64: 4, 64>}, {pipeline_mode = #tpu.pipeline_mode<synchronous>, transform_indices = @transform_4, window_bounds = array<i64: 1, 64>}, {pipeline_mode = #tpu.pipeline_mode<synchronous>, transform_indices = @transform_5, window_bounds = array<i64: 1, 64>}, {pipeline_mode = #tpu.pipeline_mode<synchronous>, transform_indices = @transform_6, window_bounds = array<i64: 64, 64>}, {pipeline_mode = #tpu.pipeline_mode<synchronous>, transform_indices = @transform_7, window_bounds = array<i64: 1, 64>}, {pipeline_mode = #tpu.pipeline_mode<synchronous>, transform_indices = @transform_8, window_bounds = array<i64: 1, 64>}, {pipeline_mode = #tpu.pipeline_mode<synchronous>, transform_indices = @transform_9, window_bounds = array<i64: 64, 64>}, {pipeline_mode = #tpu.pipeline_mode<synchronous>, transform_indices = @transform_10, window_bounds = array<i64: 1, 64>}, {pipeline_mode = #tpu.pipeline_mode<synchronous>, transform_indices = @transform_11, window_bounds = array<i64: 1, 64>}, {transform_indices = @transform_12, window_bounds = array<i64: 16, 64>}]} {
    %c0 = arith.constant 0 : index
    %c0_0 = arith.constant 0 : index
    %0 = vector.load %arg1[%c0, %c0_0] : memref<16x4xf32, #tpu.memory_space<vmem>>, vector<16x4xf32>
    %1 = arith.truncf %0 : vector<16x4xf32> to vector<16x4xbf16>
    %c0_1 = arith.constant 0 : index
    %c0_2 = arith.constant 0 : index
    %c0_3 = arith.constant 0 : index
    %2 = vector.load %arg2[%c0_1, %c0_2, %c0_3] : memref<1x16x16xf32, #tpu.memory_space<vmem>>, vector<1x16x16xf32>
    %3 = vector.shape_cast %2 : vector<1x16x16xf32> to vector<16x16xf32>
    %c0_4 = arith.constant 0 : index
    %c0_5 = arith.constant 0 : index
    %4 = vector.load %arg3[%c0_4, %c0_5] : memref<4x64xbf16, #tpu.memory_space<vmem>>, vector<4x64xbf16>
    %cst = arith.constant dense<0.000000e+00> : vector<16x64xf32>
    %5 = tpu.matmul %1, %4, %cst {dimension_numbers = #tpu.dot_dimension_numbers<[1], [0], [0], [1], [0, 0, 1, 1], [], []>} : vector<16x4xbf16>, vector<4x64xbf16>, vector<16x64xf32> -> vector<16x64xf32>
    %c0_6 = arith.constant 0 : index
    %c0_7 = arith.constant 0 : index
    %6 = vector.load %arg4[%c0_6, %c0_7] : memref<4x64xbf16, #tpu.memory_space<vmem>>, vector<4x64xbf16>
    %cst_8 = arith.constant dense<0.000000e+00> : vector<16x64xf32>
    %7 = tpu.matmul %1, %6, %cst_8 {dimension_numbers = #tpu.dot_dimension_numbers<[1], [0], [0], [1], [0, 0, 1, 1], [], []>} : vector<16x4xbf16>, vector<4x64xbf16>, vector<16x64xf32> -> vector<16x64xf32>
    %8 = vector.shape_cast %5 : vector<16x64xf32> to vector<16x1x64xf32>
    %9 = vector.shape_cast %7 : vector<16x64xf32> to vector<1x16x64xf32>
    %10 = vector.broadcast %8 : vector<16x1x64xf32> to vector<16x16x64xf32>
    %11 = vector.broadcast %9 : vector<1x16x64xf32> to vector<16x16x64xf32>
    %12 = arith.addf %10, %11 : vector<16x16x64xf32>
    %13 = vector.shape_cast %12 : vector<16x16x64xf32> to vector<256x64xf32>
    %c0_9 = arith.constant 0 : index
    %c0_10 = arith.constant 0 : index
    %14 = vector.load %arg5[%c0_9, %c0_10] : memref<1x64xf32, #tpu.memory_space<vmem>>, vector<1x64xf32>
    %15 = vector.broadcast %14 : vector<1x64xf32> to vector<256x64xf32>
    %16 = arith.mulf %13, %15 : vector<256x64xf32>
    %c0_11 = arith.constant 0 : index
    %c0_12 = arith.constant 0 : index
    %17 = vector.load %arg6[%c0_11, %c0_12] : memref<1x64xf32, #tpu.memory_space<vmem>>, vector<1x64xf32>
    %18 = vector.broadcast %17 : vector<1x64xf32> to vector<256x64xf32>
    %19 = arith.addf %16, %18 : vector<256x64xf32>
    %cst_13 = arith.constant 0.000000e+00 : f32
    %20 = vector.broadcast %cst_13 : f32 to vector<256x64xf32>
    %21 = arith.maximumf %19, %20 : vector<256x64xf32>
    %22 = arith.truncf %21 : vector<256x64xf32> to vector<256x64xbf16>
    %c0_14 = arith.constant 0 : index
    %c0_15 = arith.constant 0 : index
    %23 = vector.load %arg7[%c0_14, %c0_15] : memref<64x64xbf16, #tpu.memory_space<vmem>>, vector<64x64xbf16>
    %cst_16 = arith.constant dense<0.000000e+00> : vector<256x64xf32>
    %24 = tpu.matmul %22, %23, %cst_16 {dimension_numbers = #tpu.dot_dimension_numbers<[1], [0], [0], [1], [0, 0, 1, 1], [], []>} : vector<256x64xbf16>, vector<64x64xbf16>, vector<256x64xf32> -> vector<256x64xf32>
    %c0_17 = arith.constant 0 : index
    %c0_18 = arith.constant 0 : index
    %25 = vector.load %arg8[%c0_17, %c0_18] : memref<1x64xf32, #tpu.memory_space<vmem>>, vector<1x64xf32>
    %26 = vector.broadcast %25 : vector<1x64xf32> to vector<256x64xf32>
    %27 = arith.mulf %24, %26 : vector<256x64xf32>
    %c0_19 = arith.constant 0 : index
    %c0_20 = arith.constant 0 : index
    %28 = vector.load %arg9[%c0_19, %c0_20] : memref<1x64xf32, #tpu.memory_space<vmem>>, vector<1x64xf32>
    %29 = vector.broadcast %28 : vector<1x64xf32> to vector<256x64xf32>
    %30 = arith.addf %27, %29 : vector<256x64xf32>
    %cst_21 = arith.constant 0.000000e+00 : f32
    %31 = vector.broadcast %cst_21 : f32 to vector<256x64xf32>
    %32 = arith.maximumf %30, %31 : vector<256x64xf32>
    %33 = arith.truncf %32 : vector<256x64xf32> to vector<256x64xbf16>
    %c0_22 = arith.constant 0 : index
    %c0_23 = arith.constant 0 : index
    %34 = vector.load %arg10[%c0_22, %c0_23] : memref<64x64xbf16, #tpu.memory_space<vmem>>, vector<64x64xbf16>
    %cst_24 = arith.constant dense<0.000000e+00> : vector<256x64xf32>
    %35 = tpu.matmul %33, %34, %cst_24 {dimension_numbers = #tpu.dot_dimension_numbers<[1], [0], [0], [1], [0, 0, 1, 1], [], []>} : vector<256x64xbf16>, vector<64x64xbf16>, vector<256x64xf32> -> vector<256x64xf32>
    %c0_25 = arith.constant 0 : index
    %c0_26 = arith.constant 0 : index
    %36 = vector.load %arg11[%c0_25, %c0_26] : memref<1x64xf32, #tpu.memory_space<vmem>>, vector<1x64xf32>
    %37 = vector.broadcast %36 : vector<1x64xf32> to vector<256x64xf32>
    %38 = arith.mulf %35, %37 : vector<256x64xf32>
    %c0_27 = arith.constant 0 : index
    %c0_28 = arith.constant 0 : index
    %39 = vector.load %arg12[%c0_27, %c0_28] : memref<1x64xf32, #tpu.memory_space<vmem>>, vector<1x64xf32>
    %40 = vector.broadcast %39 : vector<1x64xf32> to vector<256x64xf32>
    %41 = arith.addf %38, %40 : vector<256x64xf32>
    %cst_29 = arith.constant 0.000000e+00 : f32
    %42 = vector.broadcast %cst_29 : f32 to vector<256x64xf32>
    %43 = arith.maximumf %41, %42 : vector<256x64xf32>
    %44 = vector.shape_cast %43 : vector<256x64xf32> to vector<16x16x64xf32>
    %45 = vector.shape_cast %3 : vector<16x16xf32> to vector<16x16x1xf32>
    %cst_30 = arith.constant 1.000000e+00 : f32
    %46 = vector.broadcast %cst_30 : f32 to vector<16x16x1xf32>
    %47 = arith.subf %45, %46 : vector<16x16x1xf32>
    %cst_31 = arith.constant 1.000000e+30 : f32
    %48 = vector.broadcast %cst_31 : f32 to vector<16x16x1xf32>
    %49 = arith.mulf %47, %48 : vector<16x16x1xf32>
    %50 = vector.broadcast %49 : vector<16x16x1xf32> to vector<16x16x64xf32>
    %51 = arith.addf %44, %50 : vector<16x16x64xf32>
    %cst_32 = arith.constant dense<0xFF800000> : vector<16x64xf32>
    %52 = vector.multi_reduction <maximumf>, %51, %cst_32 [1] : vector<16x16x64xf32> to vector<16x64xf32>
    %cst_33 = arith.constant dense<0.000000e+00> : vector<16xf32>
    %53 = vector.multi_reduction <add>, %3, %cst_33 [1] : vector<16x16xf32> to vector<16xf32>
    %54 = vector.shape_cast %53 : vector<16xf32> to vector<16x1xf32>
    %cst_34 = arith.constant 1.000000e+00 : f32
    %55 = vector.broadcast %cst_34 : f32 to vector<16x1xf32>
    %56 = arith.minimumf %54, %55 : vector<16x1xf32>
    %57 = vector.broadcast %56 : vector<16x1xf32> to vector<16x64xf32>
    %58 = arith.mulf %52, %57 : vector<16x64xf32>
    %c0_35 = arith.constant 0 : index
    %c0_36 = arith.constant 0 : index
    %59 = vector.load %arg13[%c0_35, %c0_36] : memref<16x64xf32, #tpu.memory_space<vmem>>, vector<16x64xf32>
    tpu.vector_store %arg13[%c0_35, %c0_36], %58 {strides = array<i32>} : memref<16x64xf32, #tpu.memory_space<vmem>>, vector<16x64xf32>,
    return
  }
  func.func @transform_0(%arg0: i32) -> (i32, i32) {
    %c0_i32 = arith.constant 0 : i32
    %c0_i32_0 = arith.constant 0 : i32
    return %arg0, %c0_i32 : i32, i32
  }
  func.func @transform_1(%arg0: i32) -> (i32, i32, i32) {
    %c0_i32 = arith.constant 0 : i32
    %c0_i32_0 = arith.constant 0 : i32
    %c0_i32_1 = arith.constant 0 : i32
    return %arg0, %c0_i32, %c0_i32_0 : i32, i32, i32
  }
  func.func @transform_2(%arg0: i32) -> (i32, i32) {
    %c0_i32 = arith.constant 0 : i32
    %c0_i32_0 = arith.constant 0 : i32
    %c0_i32_1 = arith.constant 0 : i32
    return %c0_i32, %c0_i32_0 : i32, i32
  }
  func.func @transform_3(%arg0: i32) -> (i32, i32) {
    %c0_i32 = arith.constant 0 : i32
    %c0_i32_0 = arith.constant 0 : i32
    %c0_i32_1 = arith.constant 0 : i32
    return %c0_i32, %c0_i32_0 : i32, i32
  }
  func.func @transform_4(%arg0: i32) -> (i32, i32) {
    %c0_i32 = arith.constant 0 : i32
    %c0_i32_0 = arith.constant 0 : i32
    %c0_i32_1 = arith.constant 0 : i32
    return %c0_i32, %c0_i32_0 : i32, i32
  }
  func.func @transform_5(%arg0: i32) -> (i32, i32) {
    %c0_i32 = arith.constant 0 : i32
    %c0_i32_0 = arith.constant 0 : i32
    %c0_i32_1 = arith.constant 0 : i32
    return %c0_i32, %c0_i32_0 : i32, i32
  }
  func.func @transform_6(%arg0: i32) -> (i32, i32) {
    %c0_i32 = arith.constant 0 : i32
    %c0_i32_0 = arith.constant 0 : i32
    %c0_i32_1 = arith.constant 0 : i32
    return %c0_i32, %c0_i32_0 : i32, i32
  }
  func.func @transform_7(%arg0: i32) -> (i32, i32) {
    %c0_i32 = arith.constant 0 : i32
    %c0_i32_0 = arith.constant 0 : i32
    %c0_i32_1 = arith.constant 0 : i32
    return %c0_i32, %c0_i32_0 : i32, i32
  }
  func.func @transform_8(%arg0: i32) -> (i32, i32) {
    %c0_i32 = arith.constant 0 : i32
    %c0_i32_0 = arith.constant 0 : i32
    %c0_i32_1 = arith.constant 0 : i32
    return %c0_i32, %c0_i32_0 : i32, i32
  }
  func.func @transform_9(%arg0: i32) -> (i32, i32) {
    %c0_i32 = arith.constant 0 : i32
    %c0_i32_0 = arith.constant 0 : i32
    %c0_i32_1 = arith.constant 0 : i32
    return %c0_i32, %c0_i32_0 : i32, i32
  }
  func.func @transform_10(%arg0: i32) -> (i32, i32) {
    %c0_i32 = arith.constant 0 : i32
    %c0_i32_0 = arith.constant 0 : i32
    %c0_i32_1 = arith.constant 0 : i32
    return %c0_i32, %c0_i32_0 : i32, i32
  }
  func.func @transform_11(%arg0: i32) -> (i32, i32) {
    %c0_i32 = arith.constant 0 : i32
    %c0_i32_0 = arith.constant 0 : i32
    %c0_i32_1 = arith.constant 0 : i32
    return %c0_i32, %c0_i32_0 : i32, i32
  }
  func.func @transform_12(%arg0: i32) -> (i32, i32) {
    %c0_i32 = arith.constant 0 : i32
    %c0_i32_0 = arith.constant 0 : i32
    return %arg0, %c0_i32 : i32, i32
  }
}

module attributes {stable_mosaic.version = 11 : i64} {
  func.func @gat4_kernel(%arg0: i32, %arg1: i32, %arg2: memref<16x256xf32, #tpu.memory_space<vmem>>, %arg3: memref<1x16x16xf32, #tpu.memory_space<vmem>>, %arg4: memref<1x256x528xbf16, #tpu.memory_space<vmem>>, %arg5: memref<1x1x256xf32, #tpu.memory_space<vmem>>, %arg6: memref<16x256xf32, #tpu.memory_space<vmem>>, %arg7: memref<16x256xf32, #tpu.memory_space<vmem>>) attributes {dimension_semantics = [#tpu.dimension_semantics<parallel>, #tpu.dimension_semantics<arbitrary>], iteration_bounds = array<i64: 2, 4>, scalar_prefetch = 0 : i64, scratch_operands = 1 : i64, tpu.core_type = #tpu.core_type<tc>, window_params = [{transform_indices = @transform_0, window_bounds = array<i64: 16, 256>}, {transform_indices = @transform_1, window_bounds = array<i64: 1, 16, 16>}, {transform_indices = @transform_2, window_bounds = array<i64: 1, 256, 528>}, {transform_indices = @transform_3, window_bounds = array<i64: 1, 1, 256>}, {transform_indices = @transform_4, window_bounds = array<i64: 16, 256>}]} {
    %c0_i32 = arith.constant 0 : i32
    %0 = arith.cmpi eq, %arg1, %c0_i32 : i32
    %1 = arith.extui %0 : i1 to i32
    %c0_i32_0 = arith.constant 0 : i32
    %2 = arith.cmpi ne, %1, %c0_i32_0 : i32
    scf.if %2 {
      %c0_65 = arith.constant 0 : index
      %c0_66 = arith.constant 0 : index
      %235 = vector.load %arg2[%c0_65, %c0_66] : memref<16x256xf32, #tpu.memory_space<vmem>>, vector<16x256xf32>
      %c0_67 = arith.constant 0 : index
      %c0_68 = arith.constant 0 : index
      %236 = vector.load %arg7[%c0_67, %c0_68] : memref<16x256xf32, #tpu.memory_space<vmem>>, vector<16x256xf32>
      tpu.vector_store %arg7[%c0_67, %c0_68], %235 {strides = array<i32>} : memref<16x256xf32, #tpu.memory_space<vmem>>, vector<16x256xf32>,
    } else {
    }
    %c0 = arith.constant 0 : index
    %c0_1 = arith.constant 0 : index
    %3 = vector.load %arg7[%c0, %c0_1] : memref<16x256xf32, #tpu.memory_space<vmem>>, vector<16x256xf32>
    %4 = arith.truncf %3 : vector<16x256xf32> to vector<16x256xbf16>
    %c0_2 = arith.constant 0 : index
    %c0_3 = arith.constant 0 : index
    %c0_4 = arith.constant 0 : index
    %5 = vector.load %arg4[%c0_2, %c0_3, %c0_4] : memref<1x256x528xbf16, #tpu.memory_space<vmem>>, vector<1x256x528xbf16>
    %6 = vector.shape_cast %5 : vector<1x256x528xbf16> to vector<256x528xbf16>
    %cst = arith.constant dense<0.000000e+00> : vector<16x528xf32>
    %7 = tpu.matmul %4, %6, %cst {dimension_numbers = #tpu.dot_dimension_numbers<[1], [0], [0], [1], [0, 0, 1, 1], [], []>} : vector<16x256xbf16>, vector<256x528xbf16>, vector<16x528xf32> -> vector<16x528xf32>
    %8 = vector.extract_strided_slice %7 {offsets = [0, 0], sizes = [16, 256], strides = [1, 1]} : vector<16x528xf32> to vector<16x256xf32>
    %9 = vector.extract_strided_slice %7 {offsets = [0, 256], sizes = [16, 256], strides = [1, 1]} : vector<16x528xf32> to vector<16x256xf32>
    %10 = vector.extract_strided_slice %7 {offsets = [0, 512], sizes = [16, 8], strides = [1, 1]} : vector<16x528xf32> to vector<16x8xf32>
    %11 = vector.extract_strided_slice %7 {offsets = [0, 520], sizes = [16, 8], strides = [1, 1]} : vector<16x528xf32> to vector<16x8xf32>
    %c0_5 = arith.constant 0 : index
    %c0_6 = arith.constant 0 : index
    %c0_7 = arith.constant 0 : index
    %12 = vector.load %arg3[%c0_5, %c0_6, %c0_7] : memref<1x16x16xf32, #tpu.memory_space<vmem>>, vector<1x16x16xf32>
    %13 = vector.shape_cast %12 : vector<1x16x16xf32> to vector<16x16xf32>
    %cst_8 = arith.constant 5.000000e-01 : f32
    %14 = vector.broadcast %cst_8 : f32 to vector<16x16xf32>
    %15 = arith.cmpf ogt, %13, %14 : vector<16x16xf32>
    %16 = tpu.transpose %10, [1, 0] : vector<16x8xf32> -> vector<8x16xf32>
    %17 = vector.extract_strided_slice %11 {offsets = [0, 0], sizes = [16, 1], strides = [1, 1]} : vector<16x8xf32> to vector<16x1xf32>
    %18 = vector.extract_strided_slice %16 {offsets = [0, 0], sizes = [1, 16], strides = [1, 1]} : vector<8x16xf32> to vector<1x16xf32>
    %19 = vector.broadcast %17 : vector<16x1xf32> to vector<16x16xf32>
    %20 = vector.broadcast %18 : vector<1x16xf32> to vector<16x16xf32>
    %21 = arith.addf %19, %20 : vector<16x16xf32>
    %cst_9 = arith.constant 0.000000e+00 : f32
    %22 = vector.broadcast %cst_9 : f32 to vector<16x16xf32>
    %23 = arith.cmpf ogt, %21, %22 : vector<16x16xf32>
    %cst_10 = arith.constant 2.000000e-01 : f32
    %24 = vector.broadcast %cst_10 : f32 to vector<16x16xf32>
    %25 = arith.mulf %24, %21 : vector<16x16xf32>
    %26 = arith.select %23, %21, %25 : vector<16x16xi1>, vector<16x16xf32>
    %cst_11 = arith.constant -1.000000e+30 : f32
    %27 = vector.broadcast %cst_11 : f32 to vector<16x16xf32>
    %28 = arith.select %15, %26, %27 : vector<16x16xi1>, vector<16x16xf32>
    %cst_12 = arith.constant dense<0xFF800000> : vector<16xf32>
    %29 = vector.multi_reduction <maximumf>, %28, %cst_12 [1] : vector<16x16xf32> to vector<16xf32>
    %30 = vector.shape_cast %29 : vector<16xf32> to vector<16x1xf32>
    %31 = vector.broadcast %30 : vector<16x1xf32> to vector<16x16xf32>
    %32 = arith.subf %28, %31 : vector<16x16xf32>
    %33 = math.exp %32 : vector<16x16xf32>
    %cst_13 = arith.constant dense<0.000000e+00> : vector<16xf32>
    %34 = vector.multi_reduction <add>, %33, %cst_13 [1] : vector<16x16xf32> to vector<16xf32>
    %35 = vector.shape_cast %34 : vector<16xf32> to vector<16x1xf32>
    %36 = tpu.reciprocal %35 {approx = true} : vector<16x1xf32> -> vector<16x1xf32>
    %37 = vector.broadcast %36 : vector<16x1xf32> to vector<16x16xf32>
    %38 = arith.mulf %33, %37 : vector<16x16xf32>
    %39 = arith.truncf %38 : vector<16x16xf32> to vector<16x16xbf16>
    %40 = vector.extract_strided_slice %8 {offsets = [0, 0], sizes = [16, 32], strides = [1, 1]} : vector<16x256xf32> to vector<16x32xf32>
    %41 = arith.truncf %40 : vector<16x32xf32> to vector<16x32xbf16>
    %cst_14 = arith.constant dense<0.000000e+00> : vector<16x32xf32>
    %42 = tpu.matmul %39, %41, %cst_14 {dimension_numbers = #tpu.dot_dimension_numbers<[1], [0], [0], [1], [0, 0, 1, 1], [], []>} : vector<16x16xbf16>, vector<16x32xbf16>, vector<16x32xf32> -> vector<16x32xf32>
    %43 = vector.extract_strided_slice %11 {offsets = [0, 1], sizes = [16, 1], strides = [1, 1]} : vector<16x8xf32> to vector<16x1xf32>
    %44 = vector.extract_strided_slice %16 {offsets = [1, 0], sizes = [1, 16], strides = [1, 1]} : vector<8x16xf32> to vector<1x16xf32>
    %45 = vector.broadcast %43 : vector<16x1xf32> to vector<16x16xf32>
    %46 = vector.broadcast %44 : vector<1x16xf32> to vector<16x16xf32>
    %47 = arith.addf %45, %46 : vector<16x16xf32>
    %cst_15 = arith.constant 0.000000e+00 : f32
    %48 = vector.broadcast %cst_15 : f32 to vector<16x16xf32>
    %49 = arith.cmpf ogt, %47, %48 : vector<16x16xf32>
    %cst_16 = arith.constant 2.000000e-01 : f32
    %50 = vector.broadcast %cst_16 : f32 to vector<16x16xf32>
    %51 = arith.mulf %50, %47 : vector<16x16xf32>
    %52 = arith.select %49, %47, %51 : vector<16x16xi1>, vector<16x16xf32>
    %cst_17 = arith.constant -1.000000e+30 : f32
    %53 = vector.broadcast %cst_17 : f32 to vector<16x16xf32>
    %54 = arith.select %15, %52, %53 : vector<16x16xi1>, vector<16x16xf32>
    %cst_18 = arith.constant dense<0xFF800000> : vector<16xf32>
    %55 = vector.multi_reduction <maximumf>, %54, %cst_18 [1] : vector<16x16xf32> to vector<16xf32>
    %56 = vector.shape_cast %55 : vector<16xf32> to vector<16x1xf32>
    %57 = vector.broadcast %56 : vector<16x1xf32> to vector<16x16xf32>
    %58 = arith.subf %54, %57 : vector<16x16xf32>
    %59 = math.exp %58 : vector<16x16xf32>
    %cst_19 = arith.constant dense<0.000000e+00> : vector<16xf32>
    %60 = vector.multi_reduction <add>, %59, %cst_19 [1] : vector<16x16xf32> to vector<16xf32>
    %61 = vector.shape_cast %60 : vector<16xf32> to vector<16x1xf32>
    %62 = tpu.reciprocal %61 {approx = true} : vector<16x1xf32> -> vector<16x1xf32>
    %63 = vector.broadcast %62 : vector<16x1xf32> to vector<16x16xf32>
    %64 = arith.mulf %59, %63 : vector<16x16xf32>
    %65 = arith.truncf %64 : vector<16x16xf32> to vector<16x16xbf16>
    %66 = vector.extract_strided_slice %8 {offsets = [0, 32], sizes = [16, 32], strides = [1, 1]} : vector<16x256xf32> to vector<16x32xf32>
    %67 = arith.truncf %66 : vector<16x32xf32> to vector<16x32xbf16>
    %cst_20 = arith.constant dense<0.000000e+00> : vector<16x32xf32>
    %68 = tpu.matmul %65, %67, %cst_20 {dimension_numbers = #tpu.dot_dimension_numbers<[1], [0], [0], [1], [0, 0, 1, 1], [], []>} : vector<16x16xbf16>, vector<16x32xbf16>, vector<16x32xf32> -> vector<16x32xf32>
    %69 = vector.extract_strided_slice %11 {offsets = [0, 2], sizes = [16, 1], strides = [1, 1]} : vector<16x8xf32> to vector<16x1xf32>
    %70 = vector.extract_strided_slice %16 {offsets = [2, 0], sizes = [1, 16], strides = [1, 1]} : vector<8x16xf32> to vector<1x16xf32>
    %71 = vector.broadcast %69 : vector<16x1xf32> to vector<16x16xf32>
    %72 = vector.broadcast %70 : vector<1x16xf32> to vector<16x16xf32>
    %73 = arith.addf %71, %72 : vector<16x16xf32>
    %cst_21 = arith.constant 0.000000e+00 : f32
    %74 = vector.broadcast %cst_21 : f32 to vector<16x16xf32>
    %75 = arith.cmpf ogt, %73, %74 : vector<16x16xf32>
    %cst_22 = arith.constant 2.000000e-01 : f32
    %76 = vector.broadcast %cst_22 : f32 to vector<16x16xf32>
    %77 = arith.mulf %76, %73 : vector<16x16xf32>
    %78 = arith.select %75, %73, %77 : vector<16x16xi1>, vector<16x16xf32>
    %cst_23 = arith.constant -1.000000e+30 : f32
    %79 = vector.broadcast %cst_23 : f32 to vector<16x16xf32>
    %80 = arith.select %15, %78, %79 : vector<16x16xi1>, vector<16x16xf32>
    %cst_24 = arith.constant dense<0xFF800000> : vector<16xf32>
    %81 = vector.multi_reduction <maximumf>, %80, %cst_24 [1] : vector<16x16xf32> to vector<16xf32>
    %82 = vector.shape_cast %81 : vector<16xf32> to vector<16x1xf32>
    %83 = vector.broadcast %82 : vector<16x1xf32> to vector<16x16xf32>
    %84 = arith.subf %80, %83 : vector<16x16xf32>
    %85 = math.exp %84 : vector<16x16xf32>
    %cst_25 = arith.constant dense<0.000000e+00> : vector<16xf32>
    %86 = vector.multi_reduction <add>, %85, %cst_25 [1] : vector<16x16xf32> to vector<16xf32>
    %87 = vector.shape_cast %86 : vector<16xf32> to vector<16x1xf32>
    %88 = tpu.reciprocal %87 {approx = true} : vector<16x1xf32> -> vector<16x1xf32>
    %89 = vector.broadcast %88 : vector<16x1xf32> to vector<16x16xf32>
    %90 = arith.mulf %85, %89 : vector<16x16xf32>
    %91 = arith.truncf %90 : vector<16x16xf32> to vector<16x16xbf16>
    %92 = vector.extract_strided_slice %8 {offsets = [0, 64], sizes = [16, 32], strides = [1, 1]} : vector<16x256xf32> to vector<16x32xf32>
    %93 = arith.truncf %92 : vector<16x32xf32> to vector<16x32xbf16>
    %cst_26 = arith.constant dense<0.000000e+00> : vector<16x32xf32>
    %94 = tpu.matmul %91, %93, %cst_26 {dimension_numbers = #tpu.dot_dimension_numbers<[1], [0], [0], [1], [0, 0, 1, 1], [], []>} : vector<16x16xbf16>, vector<16x32xbf16>, vector<16x32xf32> -> vector<16x32xf32>
    %95 = vector.extract_strided_slice %11 {offsets = [0, 3], sizes = [16, 1], strides = [1, 1]} : vector<16x8xf32> to vector<16x1xf32>
    %96 = vector.extract_strided_slice %16 {offsets = [3, 0], sizes = [1, 16], strides = [1, 1]} : vector<8x16xf32> to vector<1x16xf32>
    %97 = vector.broadcast %95 : vector<16x1xf32> to vector<16x16xf32>
    %98 = vector.broadcast %96 : vector<1x16xf32> to vector<16x16xf32>
    %99 = arith.addf %97, %98 : vector<16x16xf32>
    %cst_27 = arith.constant 0.000000e+00 : f32
    %100 = vector.broadcast %cst_27 : f32 to vector<16x16xf32>
    %101 = arith.cmpf ogt, %99, %100 : vector<16x16xf32>
    %cst_28 = arith.constant 2.000000e-01 : f32
    %102 = vector.broadcast %cst_28 : f32 to vector<16x16xf32>
    %103 = arith.mulf %102, %99 : vector<16x16xf32>
    %104 = arith.select %101, %99, %103 : vector<16x16xi1>, vector<16x16xf32>
    %cst_29 = arith.constant -1.000000e+30 : f32
    %105 = vector.broadcast %cst_29 : f32 to vector<16x16xf32>
    %106 = arith.select %15, %104, %105 : vector<16x16xi1>, vector<16x16xf32>
    %cst_30 = arith.constant dense<0xFF800000> : vector<16xf32>
    %107 = vector.multi_reduction <maximumf>, %106, %cst_30 [1] : vector<16x16xf32> to vector<16xf32>
    %108 = vector.shape_cast %107 : vector<16xf32> to vector<16x1xf32>
    %109 = vector.broadcast %108 : vector<16x1xf32> to vector<16x16xf32>
    %110 = arith.subf %106, %109 : vector<16x16xf32>
    %111 = math.exp %110 : vector<16x16xf32>
    %cst_31 = arith.constant dense<0.000000e+00> : vector<16xf32>
    %112 = vector.multi_reduction <add>, %111, %cst_31 [1] : vector<16x16xf32> to vector<16xf32>
    %113 = vector.shape_cast %112 : vector<16xf32> to vector<16x1xf32>
    %114 = tpu.reciprocal %113 {approx = true} : vector<16x1xf32> -> vector<16x1xf32>
    %115 = vector.broadcast %114 : vector<16x1xf32> to vector<16x16xf32>
    %116 = arith.mulf %111, %115 : vector<16x16xf32>
    %117 = arith.truncf %116 : vector<16x16xf32> to vector<16x16xbf16>
    %118 = vector.extract_strided_slice %8 {offsets = [0, 96], sizes = [16, 32], strides = [1, 1]} : vector<16x256xf32> to vector<16x32xf32>
    %119 = arith.truncf %118 : vector<16x32xf32> to vector<16x32xbf16>
    %cst_32 = arith.constant dense<0.000000e+00> : vector<16x32xf32>
    %120 = tpu.matmul %117, %119, %cst_32 {dimension_numbers = #tpu.dot_dimension_numbers<[1], [0], [0], [1], [0, 0, 1, 1], [], []>} : vector<16x16xbf16>, vector<16x32xbf16>, vector<16x32xf32> -> vector<16x32xf32>
    %121 = vector.extract_strided_slice %11 {offsets = [0, 4], sizes = [16, 1], strides = [1, 1]} : vector<16x8xf32> to vector<16x1xf32>
    %122 = vector.extract_strided_slice %16 {offsets = [4, 0], sizes = [1, 16], strides = [1, 1]} : vector<8x16xf32> to vector<1x16xf32>
    %123 = vector.broadcast %121 : vector<16x1xf32> to vector<16x16xf32>
    %124 = vector.broadcast %122 : vector<1x16xf32> to vector<16x16xf32>
    %125 = arith.addf %123, %124 : vector<16x16xf32>
    %cst_33 = arith.constant 0.000000e+00 : f32
    %126 = vector.broadcast %cst_33 : f32 to vector<16x16xf32>
    %127 = arith.cmpf ogt, %125, %126 : vector<16x16xf32>
    %cst_34 = arith.constant 2.000000e-01 : f32
    %128 = vector.broadcast %cst_34 : f32 to vector<16x16xf32>
    %129 = arith.mulf %128, %125 : vector<16x16xf32>
    %130 = arith.select %127, %125, %129 : vector<16x16xi1>, vector<16x16xf32>
    %cst_35 = arith.constant -1.000000e+30 : f32
    %131 = vector.broadcast %cst_35 : f32 to vector<16x16xf32>
    %132 = arith.select %15, %130, %131 : vector<16x16xi1>, vector<16x16xf32>
    %cst_36 = arith.constant dense<0xFF800000> : vector<16xf32>
    %133 = vector.multi_reduction <maximumf>, %132, %cst_36 [1] : vector<16x16xf32> to vector<16xf32>
    %134 = vector.shape_cast %133 : vector<16xf32> to vector<16x1xf32>
    %135 = vector.broadcast %134 : vector<16x1xf32> to vector<16x16xf32>
    %136 = arith.subf %132, %135 : vector<16x16xf32>
    %137 = math.exp %136 : vector<16x16xf32>
    %cst_37 = arith.constant dense<0.000000e+00> : vector<16xf32>
    %138 = vector.multi_reduction <add>, %137, %cst_37 [1] : vector<16x16xf32> to vector<16xf32>
    %139 = vector.shape_cast %138 : vector<16xf32> to vector<16x1xf32>
    %140 = tpu.reciprocal %139 {approx = true} : vector<16x1xf32> -> vector<16x1xf32>
    %141 = vector.broadcast %140 : vector<16x1xf32> to vector<16x16xf32>
    %142 = arith.mulf %137, %141 : vector<16x16xf32>
    %143 = arith.truncf %142 : vector<16x16xf32> to vector<16x16xbf16>
    %144 = vector.extract_strided_slice %8 {offsets = [0, 128], sizes = [16, 32], strides = [1, 1]} : vector<16x256xf32> to vector<16x32xf32>
    %145 = arith.truncf %144 : vector<16x32xf32> to vector<16x32xbf16>
    %cst_38 = arith.constant dense<0.000000e+00> : vector<16x32xf32>
    %146 = tpu.matmul %143, %145, %cst_38 {dimension_numbers = #tpu.dot_dimension_numbers<[1], [0], [0], [1], [0, 0, 1, 1], [], []>} : vector<16x16xbf16>, vector<16x32xbf16>, vector<16x32xf32> -> vector<16x32xf32>
    %147 = vector.extract_strided_slice %11 {offsets = [0, 5], sizes = [16, 1], strides = [1, 1]} : vector<16x8xf32> to vector<16x1xf32>
    %148 = vector.extract_strided_slice %16 {offsets = [5, 0], sizes = [1, 16], strides = [1, 1]} : vector<8x16xf32> to vector<1x16xf32>
    %149 = vector.broadcast %147 : vector<16x1xf32> to vector<16x16xf32>
    %150 = vector.broadcast %148 : vector<1x16xf32> to vector<16x16xf32>
    %151 = arith.addf %149, %150 : vector<16x16xf32>
    %cst_39 = arith.constant 0.000000e+00 : f32
    %152 = vector.broadcast %cst_39 : f32 to vector<16x16xf32>
    %153 = arith.cmpf ogt, %151, %152 : vector<16x16xf32>
    %cst_40 = arith.constant 2.000000e-01 : f32
    %154 = vector.broadcast %cst_40 : f32 to vector<16x16xf32>
    %155 = arith.mulf %154, %151 : vector<16x16xf32>
    %156 = arith.select %153, %151, %155 : vector<16x16xi1>, vector<16x16xf32>
    %cst_41 = arith.constant -1.000000e+30 : f32
    %157 = vector.broadcast %cst_41 : f32 to vector<16x16xf32>
    %158 = arith.select %15, %156, %157 : vector<16x16xi1>, vector<16x16xf32>
    %cst_42 = arith.constant dense<0xFF800000> : vector<16xf32>
    %159 = vector.multi_reduction <maximumf>, %158, %cst_42 [1] : vector<16x16xf32> to vector<16xf32>
    %160 = vector.shape_cast %159 : vector<16xf32> to vector<16x1xf32>
    %161 = vector.broadcast %160 : vector<16x1xf32> to vector<16x16xf32>
    %162 = arith.subf %158, %161 : vector<16x16xf32>
    %163 = math.exp %162 : vector<16x16xf32>
    %cst_43 = arith.constant dense<0.000000e+00> : vector<16xf32>
    %164 = vector.multi_reduction <add>, %163, %cst_43 [1] : vector<16x16xf32> to vector<16xf32>
    %165 = vector.shape_cast %164 : vector<16xf32> to vector<16x1xf32>
    %166 = tpu.reciprocal %165 {approx = true} : vector<16x1xf32> -> vector<16x1xf32>
    %167 = vector.broadcast %166 : vector<16x1xf32> to vector<16x16xf32>
    %168 = arith.mulf %163, %167 : vector<16x16xf32>
    %169 = arith.truncf %168 : vector<16x16xf32> to vector<16x16xbf16>
    %170 = vector.extract_strided_slice %8 {offsets = [0, 160], sizes = [16, 32], strides = [1, 1]} : vector<16x256xf32> to vector<16x32xf32>
    %171 = arith.truncf %170 : vector<16x32xf32> to vector<16x32xbf16>
    %cst_44 = arith.constant dense<0.000000e+00> : vector<16x32xf32>
    %172 = tpu.matmul %169, %171, %cst_44 {dimension_numbers = #tpu.dot_dimension_numbers<[1], [0], [0], [1], [0, 0, 1, 1], [], []>} : vector<16x16xbf16>, vector<16x32xbf16>, vector<16x32xf32> -> vector<16x32xf32>
    %173 = vector.extract_strided_slice %11 {offsets = [0, 6], sizes = [16, 1], strides = [1, 1]} : vector<16x8xf32> to vector<16x1xf32>
    %174 = vector.extract_strided_slice %16 {offsets = [6, 0], sizes = [1, 16], strides = [1, 1]} : vector<8x16xf32> to vector<1x16xf32>
    %175 = vector.broadcast %173 : vector<16x1xf32> to vector<16x16xf32>
    %176 = vector.broadcast %174 : vector<1x16xf32> to vector<16x16xf32>
    %177 = arith.addf %175, %176 : vector<16x16xf32>
    %cst_45 = arith.constant 0.000000e+00 : f32
    %178 = vector.broadcast %cst_45 : f32 to vector<16x16xf32>
    %179 = arith.cmpf ogt, %177, %178 : vector<16x16xf32>
    %cst_46 = arith.constant 2.000000e-01 : f32
    %180 = vector.broadcast %cst_46 : f32 to vector<16x16xf32>
    %181 = arith.mulf %180, %177 : vector<16x16xf32>
    %182 = arith.select %179, %177, %181 : vector<16x16xi1>, vector<16x16xf32>
    %cst_47 = arith.constant -1.000000e+30 : f32
    %183 = vector.broadcast %cst_47 : f32 to vector<16x16xf32>
    %184 = arith.select %15, %182, %183 : vector<16x16xi1>, vector<16x16xf32>
    %cst_48 = arith.constant dense<0xFF800000> : vector<16xf32>
    %185 = vector.multi_reduction <maximumf>, %184, %cst_48 [1] : vector<16x16xf32> to vector<16xf32>
    %186 = vector.shape_cast %185 : vector<16xf32> to vector<16x1xf32>
    %187 = vector.broadcast %186 : vector<16x1xf32> to vector<16x16xf32>
    %188 = arith.subf %184, %187 : vector<16x16xf32>
    %189 = math.exp %188 : vector<16x16xf32>
    %cst_49 = arith.constant dense<0.000000e+00> : vector<16xf32>
    %190 = vector.multi_reduction <add>, %189, %cst_49 [1] : vector<16x16xf32> to vector<16xf32>
    %191 = vector.shape_cast %190 : vector<16xf32> to vector<16x1xf32>
    %192 = tpu.reciprocal %191 {approx = true} : vector<16x1xf32> -> vector<16x1xf32>
    %193 = vector.broadcast %192 : vector<16x1xf32> to vector<16x16xf32>
    %194 = arith.mulf %189, %193 : vector<16x16xf32>
    %195 = arith.truncf %194 : vector<16x16xf32> to vector<16x16xbf16>
    %196 = vector.extract_strided_slice %8 {offsets = [0, 192], sizes = [16, 32], strides = [1, 1]} : vector<16x256xf32> to vector<16x32xf32>
    %197 = arith.truncf %196 : vector<16x32xf32> to vector<16x32xbf16>
    %cst_50 = arith.constant dense<0.000000e+00> : vector<16x32xf32>
    %198 = tpu.matmul %195, %197, %cst_50 {dimension_numbers = #tpu.dot_dimension_numbers<[1], [0], [0], [1], [0, 0, 1, 1], [], []>} : vector<16x16xbf16>, vector<16x32xbf16>, vector<16x32xf32> -> vector<16x32xf32>
    %199 = vector.extract_strided_slice %11 {offsets = [0, 7], sizes = [16, 1], strides = [1, 1]} : vector<16x8xf32> to vector<16x1xf32>
    %200 = vector.extract_strided_slice %16 {offsets = [7, 0], sizes = [1, 16], strides = [1, 1]} : vector<8x16xf32> to vector<1x16xf32>
    %201 = vector.broadcast %199 : vector<16x1xf32> to vector<16x16xf32>
    %202 = vector.broadcast %200 : vector<1x16xf32> to vector<16x16xf32>
    %203 = arith.addf %201, %202 : vector<16x16xf32>
    %cst_51 = arith.constant 0.000000e+00 : f32
    %204 = vector.broadcast %cst_51 : f32 to vector<16x16xf32>
    %205 = arith.cmpf ogt, %203, %204 : vector<16x16xf32>
    %cst_52 = arith.constant 2.000000e-01 : f32
    %206 = vector.broadcast %cst_52 : f32 to vector<16x16xf32>
    %207 = arith.mulf %206, %203 : vector<16x16xf32>
    %208 = arith.select %205, %203, %207 : vector<16x16xi1>, vector<16x16xf32>
    %cst_53 = arith.constant -1.000000e+30 : f32
    %209 = vector.broadcast %cst_53 : f32 to vector<16x16xf32>
    %210 = arith.select %15, %208, %209 : vector<16x16xi1>, vector<16x16xf32>
    %cst_54 = arith.constant dense<0xFF800000> : vector<16xf32>
    %211 = vector.multi_reduction <maximumf>, %210, %cst_54 [1] : vector<16x16xf32> to vector<16xf32>
    %212 = vector.shape_cast %211 : vector<16xf32> to vector<16x1xf32>
    %213 = vector.broadcast %212 : vector<16x1xf32> to vector<16x16xf32>
    %214 = arith.subf %210, %213 : vector<16x16xf32>
    %215 = math.exp %214 : vector<16x16xf32>
    %cst_55 = arith.constant dense<0.000000e+00> : vector<16xf32>
    %216 = vector.multi_reduction <add>, %215, %cst_55 [1] : vector<16x16xf32> to vector<16xf32>
    %217 = vector.shape_cast %216 : vector<16xf32> to vector<16x1xf32>
    %218 = tpu.reciprocal %217 {approx = true} : vector<16x1xf32> -> vector<16x1xf32>
    %219 = vector.broadcast %218 : vector<16x1xf32> to vector<16x16xf32>
    %220 = arith.mulf %215, %219 : vector<16x16xf32>
    %221 = arith.truncf %220 : vector<16x16xf32> to vector<16x16xbf16>
    %222 = vector.extract_strided_slice %8 {offsets = [0, 224], sizes = [16, 32], strides = [1, 1]} : vector<16x256xf32> to vector<16x32xf32>
    %223 = arith.truncf %222 : vector<16x32xf32> to vector<16x32xbf16>
    %cst_56 = arith.constant dense<0.000000e+00> : vector<16x32xf32>
    %224 = tpu.matmul %221, %223, %cst_56 {dimension_numbers = #tpu.dot_dimension_numbers<[1], [0], [0], [1], [0, 0, 1, 1], [], []>} : vector<16x16xbf16>, vector<16x32xbf16>, vector<16x32xf32> -> vector<16x32xf32>
    %225 = tpu.concatenate %42, %68, %94, %120, %146, %172, %198, %224 in 1 : vector<16x32xf32>, vector<16x32xf32>, vector<16x32xf32>, vector<16x32xf32>, vector<16x32xf32>, vector<16x32xf32>, vector<16x32xf32>, vector<16x32xf32> -> vector<16x256xf32>
    %226 = arith.addf %225, %9 : vector<16x256xf32>
    %c0_57 = arith.constant 0 : index
    %c0_58 = arith.constant 0 : index
    %c0_59 = arith.constant 0 : index
    %227 = vector.load %arg5[%c0_57, %c0_58, %c0_59] : memref<1x1x256xf32, #tpu.memory_space<vmem>>, vector<1x1x256xf32>
    %228 = vector.shape_cast %227 : vector<1x1x256xf32> to vector<1x256xf32>
    %229 = vector.broadcast %228 : vector<1x256xf32> to vector<16x256xf32>
    %230 = arith.addf %226, %229 : vector<16x256xf32>
    %c0_60 = arith.constant 0 : index
    %c0_61 = arith.constant 0 : index
    %231 = vector.load %arg6[%c0_60, %c0_61] : memref<16x256xf32, #tpu.memory_space<vmem>>, vector<16x256xf32>
    tpu.vector_store %arg6[%c0_60, %c0_61], %230 {strides = array<i32>} : memref<16x256xf32, #tpu.memory_space<vmem>>, vector<16x256xf32>,
    %cst_62 = arith.constant 0.000000e+00 : f32
    %232 = vector.broadcast %cst_62 : f32 to vector<16x256xf32>
    %233 = arith.maximumf %230, %232 : vector<16x256xf32>
    %c0_63 = arith.constant 0 : index
    %c0_64 = arith.constant 0 : index
    %234 = vector.load %arg7[%c0_63, %c0_64] : memref<16x256xf32, #tpu.memory_space<vmem>>, vector<16x256xf32>
    tpu.vector_store %arg7[%c0_63, %c0_64], %233 {strides = array<i32>} : memref<16x256xf32, #tpu.memory_space<vmem>>, vector<16x256xf32>,
    return
  }
  func.func @transform_0(%arg0: i32, %arg1: i32) -> (i32, i32) {
    %c0_i32 = arith.constant 0 : i32
    %c0_i32_0 = arith.constant 0 : i32
    return %arg0, %c0_i32 : i32, i32
  }
  func.func @transform_1(%arg0: i32, %arg1: i32) -> (i32, i32, i32) {
    %c0_i32 = arith.constant 0 : i32
    %c0_i32_0 = arith.constant 0 : i32
    %c0_i32_1 = arith.constant 0 : i32
    return %arg0, %c0_i32, %c0_i32_0 : i32, i32, i32
  }
  func.func @transform_2(%arg0: i32, %arg1: i32) -> (i32, i32, i32) {
    %c0_i32 = arith.constant 0 : i32
    %c0_i32_0 = arith.constant 0 : i32
    %c0_i32_1 = arith.constant 0 : i32
    return %arg1, %c0_i32, %c0_i32_0 : i32, i32, i32
  }
  func.func @transform_3(%arg0: i32, %arg1: i32) -> (i32, i32, i32) {
    %c0_i32 = arith.constant 0 : i32
    %c0_i32_0 = arith.constant 0 : i32
    %c0_i32_1 = arith.constant 0 : i32
    return %arg1, %c0_i32, %c0_i32_0 : i32, i32, i32
  }
  func.func @transform_4(%arg0: i32, %arg1: i32) -> (i32, i32) {
    %c0_i32 = arith.constant 0 : i32
    return %arg0, %arg1 : i32, i32
  }
}

module attributes {stable_mosaic.version = 11 : i64} {
  func.func @head_kernel(%arg0: memref<2x16x1024xf32, #tpu.memory_space<vmem>>, %arg1: memref<2048x512xbf16, #tpu.memory_space<vmem>>, %arg2: memref<1x512xf32, #tpu.memory_space<vmem>>, %arg3: memref<512x256xbf16, #tpu.memory_space<vmem>>, %arg4: memref<1x256xf32, #tpu.memory_space<vmem>>, %arg5: memref<256x10xbf16, #tpu.memory_space<vmem>>, %arg6: memref<1x10xf32, #tpu.memory_space<vmem>>, %arg7: memref<2x10xf32, #tpu.memory_space<vmem>>) attributes {dimension_semantics = [], scalar_prefetch = 0 : i64, scratch_operands = 0 : i64, tpu.core_type = #tpu.core_type<tc>} {
    %c0 = arith.constant 0 : index
    %c0_0 = arith.constant 0 : index
    %c0_1 = arith.constant 0 : index
    %0 = vector.load %arg0[%c0, %c0_0, %c0_1] : memref<2x16x1024xf32, #tpu.memory_space<vmem>>, vector<2x16x1024xf32>
    %cst = arith.constant dense<0xFF800000> : vector<2x1024xf32>
    %1 = vector.multi_reduction <maximumf>, %0, %cst [1] : vector<2x16x1024xf32> to vector<2x1024xf32>
    %cst_2 = arith.constant dense<0.000000e+00> : vector<2x1024xf32>
    %2 = vector.multi_reduction <add>, %0, %cst_2 [1] : vector<2x16x1024xf32> to vector<2x1024xf32>
    %cst_3 = arith.constant 6.250000e-02 : f32
    %3 = vector.broadcast %cst_3 : f32 to vector<2x1024xf32>
    %4 = arith.mulf %2, %3 : vector<2x1024xf32>
    %5 = tpu.concatenate %1, %4 in 1 : vector<2x1024xf32>, vector<2x1024xf32> -> vector<2x2048xf32>
    %6 = arith.truncf %5 : vector<2x2048xf32> to vector<2x2048xbf16>
    %c0_4 = arith.constant 0 : index
    %c0_5 = arith.constant 0 : index
    %7 = vector.load %arg1[%c0_4, %c0_5] : memref<2048x512xbf16, #tpu.memory_space<vmem>>, vector<2048x512xbf16>
    %cst_6 = arith.constant dense<0.000000e+00> : vector<2x512xf32>
    %8 = tpu.matmul %6, %7, %cst_6 {dimension_numbers = #tpu.dot_dimension_numbers<[1], [0], [0], [1], [0, 0, 1, 1], [], []>} : vector<2x2048xbf16>, vector<2048x512xbf16>, vector<2x512xf32> -> vector<2x512xf32>
    %c0_7 = arith.constant 0 : index
    %c0_8 = arith.constant 0 : index
    %9 = vector.load %arg2[%c0_7, %c0_8] : memref<1x512xf32, #tpu.memory_space<vmem>>, vector<1x512xf32>
    %10 = vector.broadcast %9 : vector<1x512xf32> to vector<2x512xf32>
    %11 = arith.addf %8, %10 : vector<2x512xf32>
    %12 = arith.truncf %11 : vector<2x512xf32> to vector<2x512xbf16>
    %c0_9 = arith.constant 0 : index
    %c0_10 = arith.constant 0 : index
    %13 = vector.load %arg3[%c0_9, %c0_10] : memref<512x256xbf16, #tpu.memory_space<vmem>>, vector<512x256xbf16>
    %cst_11 = arith.constant dense<0.000000e+00> : vector<2x256xf32>
    %14 = tpu.matmul %12, %13, %cst_11 {dimension_numbers = #tpu.dot_dimension_numbers<[1], [0], [0], [1], [0, 0, 1, 1], [], []>} : vector<2x512xbf16>, vector<512x256xbf16>, vector<2x256xf32> -> vector<2x256xf32>
    %c0_12 = arith.constant 0 : index
    %c0_13 = arith.constant 0 : index
    %15 = vector.load %arg4[%c0_12, %c0_13] : memref<1x256xf32, #tpu.memory_space<vmem>>, vector<1x256xf32>
    %16 = vector.broadcast %15 : vector<1x256xf32> to vector<2x256xf32>
    %17 = arith.addf %14, %16 : vector<2x256xf32>
    %18 = arith.truncf %17 : vector<2x256xf32> to vector<2x256xbf16>
    %c0_14 = arith.constant 0 : index
    %c0_15 = arith.constant 0 : index
    %19 = vector.load %arg5[%c0_14, %c0_15] : memref<256x10xbf16, #tpu.memory_space<vmem>>, vector<256x10xbf16>
    %cst_16 = arith.constant dense<0.000000e+00> : vector<2x10xf32>
    %20 = tpu.matmul %18, %19, %cst_16 {dimension_numbers = #tpu.dot_dimension_numbers<[1], [0], [0], [1], [0, 0, 1, 1], [], []>} : vector<2x256xbf16>, vector<256x10xbf16>, vector<2x10xf32> -> vector<2x10xf32>
    %c0_17 = arith.constant 0 : index
    %c0_18 = arith.constant 0 : index
    %21 = vector.load %arg6[%c0_17, %c0_18] : memref<1x10xf32, #tpu.memory_space<vmem>>, vector<1x10xf32>
    %22 = vector.broadcast %21 : vector<1x10xf32> to vector<2x10xf32>
    %23 = arith.addf %20, %22 : vector<2x10xf32>
    %cst_19 = arith.constant dense<0xFF800000> : vector<2xf32>
    %24 = vector.multi_reduction <maximumf>, %23, %cst_19 [1] : vector<2x10xf32> to vector<2xf32>
    %25 = vector.shape_cast %24 : vector<2xf32> to vector<2x1xf32>
    %26 = vector.broadcast %25 : vector<2x1xf32> to vector<2x10xf32>
    %27 = arith.subf %23, %26 : vector<2x10xf32>
    %28 = math.exp %27 : vector<2x10xf32>
    %cst_20 = arith.constant dense<0.000000e+00> : vector<2xf32>
    %29 = vector.multi_reduction <add>, %28, %cst_20 [1] : vector<2x10xf32> to vector<2xf32>
    %30 = vector.shape_cast %29 : vector<2xf32> to vector<2x1xf32>
    %31 = math.log %30 : vector<2x1xf32>
    %32 = vector.broadcast %31 : vector<2x1xf32> to vector<2x10xf32>
    %33 = arith.subf %27, %32 : vector<2x10xf32>
    %c0_21 = arith.constant 0 : index
    %c0_22 = arith.constant 0 : index
    %34 = vector.load %arg7[%c0_21, %c0_22] : memref<2x10xf32, #tpu.memory_space<vmem>>, vector<2x10xf32>
    tpu.vector_store %arg7[%c0_21, %c0_22], %33 {strides = array<i32>} : memref<2x10xf32, #tpu.memory_space<vmem>>, vector<2x10xf32>,
    return
  }
}

</mosaic_0001>

<llo_original>
// kernel: netgat_forward.3
$region0: #{netgat_forward.3}
  #allocation0 [shape = 'u32[]', space=smem, size = 0x4, offset = 0x4, fixed_abs, tag = 'smem constant byte address 0x4 - core index']
  #allocation1 [shape = 'u32[144,128]{1,0:T(1,128)}', space=vmem, size = 0x12000, scoped, tag = 'internal scratch']
  %s0 = inlined_call_operand.vmem [shape: f32[32,4], index: 0, kind: input, shape index: {}]
  %s1 = inlined_call_operand.vmem [shape: f32[2,16,16], index: 1, kind: input, shape index: {}]
  %s2 = inlined_call_operand.vmem [shape: bf16[4,64], index: 2, kind: input, shape index: {}]
  %s3 = inlined_call_operand.vmem [shape: bf16[4,64], index: 3, kind: input, shape index: {}]
  %s4 = inlined_call_operand.vmem [shape: f32[1,64], index: 4, kind: input, shape index: {}]
  %s5 = inlined_call_operand.vmem [shape: f32[1,64], index: 5, kind: input, shape index: {}]
  %s6 = inlined_call_operand.vmem [shape: bf16[64,64], index: 6, kind: input, shape index: {}]
  %s7 = inlined_call_operand.vmem [shape: f32[1,64], index: 7, kind: input, shape index: {}]
  %s8 = inlined_call_operand.vmem [shape: f32[1,64], index: 8, kind: input, shape index: {}]
  %s9 = inlined_call_operand.vmem [shape: bf16[64,64], index: 9, kind: input, shape index: {}]
  %s10 = inlined_call_operand.vmem [shape: f32[1,64], index: 10, kind: input, shape index: {}]
  %s11 = inlined_call_operand.vmem [shape: f32[1,64], index: 11, kind: input, shape index: {}]
  %s12 = inlined_call_operand.vmem [shape: f32[32,64], index: 12, kind: output, shape index: {}]
  %s13 = sld [smem:[#allocation0]]
  $region81: #{netgat_forward.3} parent=0
    _
  %s15 = ssub.s32 1, %s13
  %s16 = scalar_select 0, %s15, %s13
  loop: start=0, step=1, limit=4
  $region2: #{netgat_forward.3} parent=0 // loop_pre_header
    _
  $region3: #{netgat_forward.3} parent=0 // loop_header
    %s18 = sphi 0, %s22
    %p19 = scmp.ge.s32.totalorder %s18, 4
    %s28 = sphi 0, %s30
    %s31 = sphi 0, %s28
    %s32 = sphi 0, %s31
    %s48 = sphi 0, %s32
    %s54 = sphi 0, %s56
    %s57 = sphi 0, %s54
    %s58 = sphi 0, %s57
    %s74 = sphi 0, %s58
    %s78 = sphi 0, %s78
    %s80 = sphi 0, %s78
    %s81 = sphi 0, %s80
    %s95 = sphi 0, %s81
    %s99 = sphi 0, %s99
    %s101 = sphi 0, %s99
    %s102 = sphi 0, %s101
    %s116 = sphi 0, %s102
    %s120 = sphi 0, %s120
    %s122 = sphi 0, %s120
    %s123 = sphi 0, %s122
    %s137 = sphi 0, %s123
    %s141 = sphi 0, %s141
    %s143 = sphi 0, %s141
    %s144 = sphi 0, %s143
    %s158 = sphi 0, %s144
    %s162 = sphi 0, %s162
    %s164 = sphi 0, %s162
    %s165 = sphi 0, %s164
    %s179 = sphi 0, %s165
    %s183 = sphi 0, %s183
    %s185 = sphi 0, %s183
    %s186 = sphi 0, %s185
    %s200 = sphi 0, %s186
    %s204 = sphi 0, %s204
    %s206 = sphi 0, %s204
    %s207 = sphi 0, %s206
    %s221 = sphi 0, %s207
    %s225 = sphi 0, %s225
    %s227 = sphi 0, %s225
    %s228 = sphi 0, %s227
    %s242 = sphi 0, %s228
    %s246 = sphi 0, %s246
    %s248 = sphi 0, %s246
    %s249 = sphi 0, %s248
    %s263 = sphi 0, %s249
    %s267 = sphi 0, %s267
    %s269 = sphi 0, %s267
    %s270 = sphi 0, %s269
    %s284 = sphi 0, %s270
    %s290 = sphi 0, %s292
    %s293 = sphi 0, %s290
    %s294 = sphi 0, %s293
    %s310 = sphi 0, %s294
  $region4: #{netgat_forward.3} parent=0 // loop_header_branch
    %21 = sbr.rel (%p19) target = $region8
  $region5: #{netgat_forward.3} parent=0 // loop_body
    %s23 = ssub.s32 %s18, 1
    %s24 = ssub.s32 %s18, 2
    %s25 = sadd.s32 %s18, 1
    %s26 = ssub.s32 %s18, %s25
    %p27 = scmp.eq.s32.totalorder %s26, 0
    %s29 = sadd.s32 %s28, 1
    %s30 = scalar_select %p27, %s28, %s29
    %p33 = pneg %p27
    %p34 = scmp.eq.s32.totalorder %s18, 1
    %p35 = por %p33, %p34
    %p36 = scmp.ne.s32.totalorder %s28, %s31
    %p37 = scmp.eq.s32.totalorder %s18, 0
    %p38 = por %p36, %p37
    %p39 = scmp.ne.s32.totalorder %s28, %s31
    %p40 = scmp.eq.s32.totalorder %s23, 1
    %p41 = por %p39, %p40
    %p42 = scmp.ne.s32.totalorder %s31, %s32
    %p43 = scmp.eq.s32.totalorder %s23, 0
    %p44 = por %p42, %p43
    %p45 = scmp.ne.s32.totalorder %s31, %s32
    %p46 = scmp.eq.s32.totalorder %s24, 1
    %p47 = por %p45, %p46
    %p49 = scmp.ne.s32.totalorder %s32, %s48
    %p50 = scmp.eq.s32.totalorder %s24, 0
    %p51 = por %p49, %p50
    %s52 = ssub.s32 %s18, %s25
    %p53 = scmp.eq.s32.totalorder %s52, 0
    %s55 = sadd.s32 %s54, 1
    %s56 = scalar_select %p53, %s54, %s55
    %p59 = pneg %p53
    %p60 = scmp.eq.s32.totalorder %s18, 1
    %p61 = por %p59, %p60
    %p62 = scmp.ne.s32.totalorder %s54, %s57
    %p63 = scmp.eq.s32.totalorder %s18, 0
    %p64 = por %p62, %p63
    %p65 = scmp.ne.s32.totalorder %s54, %s57
    %p66 = scmp.eq.s32.totalorder %s23, 1
    %p67 = por %p65, %p66
    %p68 = scmp.ne.s32.totalorder %s57, %s58
    %p69 = scmp.eq.s32.totalorder %s23, 0
    %p70 = por %p68, %p69
    %p71 = scmp.ne.s32.totalorder %s57, %s58
    %p72 = scmp.eq.s32.totalorder %s24, 1
    %p73 = por %p71, %p72
    %p75 = scmp.ne.s32.totalorder %s58, %s74
    %p76 = scmp.eq.s32.totalorder %s24, 0
    %p77 = por %p75, %p76
    %s79 = sadd.s32 %s78, 1
    %p82 = scmp.eq.s32.totalorder %s18, 1
    %p83 = scmp.ne.s32.totalorder %s78, %s80
    %p84 = scmp.eq.s32.totalorder %s18, 0
    %p85 = por %p83, %p84
    %p86 = scmp.ne.s32.totalorder %s78, %s80
    %p87 = scmp.eq.s32.totalorder %s23, 1
    %p88 = por %p86, %p87
    %p89 = scmp.ne.s32.totalorder %s80, %s81
    %p90 = scmp.eq.s32.totalorder %s23, 0
    %p91 = por %p89, %p90
    %p92 = scmp.ne.s32.totalorder %s80, %s81
    %p93 = scmp.eq.s32.totalorder %s24, 1
    %p94 = por %p92, %p93
    %p96 = scmp.ne.s32.totalorder %s81, %s95
    %p97 = scmp.eq.s32.totalorder %s24, 0
    %p98 = por %p96, %p97
    %s100 = sadd.s32 %s99, 1
    %p103 = scmp.eq.s32.totalorder %s18, 1
    %p104 = scmp.ne.s32.totalorder %s99, %s101
    %p105 = scmp.eq.s32.totalorder %s18, 0
    %p106 = por %p104, %p105
    %p107 = scmp.ne.s32.totalorder %s99, %s101
    %p108 = scmp.eq.s32.totalorder %s23, 1
    %p109 = por %p107, %p108
    %p110 = scmp.ne.s32.totalorder %s101, %s102
    %p111 = scmp.eq.s32.totalorder %s23, 0
    %p112 = por %p110, %p111
    %p113 = scmp.ne.s32.totalorder %s101, %s102
    %p114 = scmp.eq.s32.totalorder %s24, 1
    %p115 = por %p113, %p114
    %p117 = scmp.ne.s32.totalorder %s102, %s116
    %p118 = scmp.eq.s32.totalorder %s24, 0
    %p119 = por %p117, %p118
    %s121 = sadd.s32 %s120, 1
    %p124 = scmp.eq.s32.totalorder %s18, 1
    %p125 = scmp.ne.s32.totalorder %s120, %s122
    %p126 = scmp.eq.s32.totalorder %s18, 0
    %p127 = por %p125, %p126
    %p128 = scmp.ne.s32.totalorder %s120, %s122
    %p129 = scmp.eq.s32.totalorder %s23, 1
    %p130 = por %p128, %p129
    %p131 = scmp.ne.s32.totalorder %s122, %s123
    %p132 = scmp.eq.s32.totalorder %s23, 0
    %p133 = por %p131, %p132
    %p134 = scmp.ne.s32.totalorder %s122, %s123
    %p135 = scmp.eq.s32.totalorder %s24, 1
    %p136 = por %p134, %p135
    %p138 = scmp.ne.s32.totalorder %s123, %s137
    %p139 = scmp.eq.s32.totalorder %s24, 0
    %p140 = por %p138, %p139
    %s142 = sadd.s32 %s141, 1
    %p145 = scmp.eq.s32.totalorder %s18, 1
    %p146 = scmp.ne.s32.totalorder %s141, %s143
    %p147 = scmp.eq.s32.totalorder %s18, 0
    %p148 = por %p146, %p147
    %p149 = scmp.ne.s32.totalorder %s141, %s143
    %p150 = scmp.eq.s32.totalorder %s23, 1
    %p151 = por %p149, %p150
    %p152 = scmp.ne.s32.totalorder %s143, %s144
    %p153 = scmp.eq.s32.totalorder %s23, 0
    %p154 = por %p152, %p153
    %p155 = scmp.ne.s32.totalorder %s143, %s144
    %p156 = scmp.eq.s32.totalorder %s24, 1
    %p157 = por %p155, %p156
    %p159 = scmp.ne.s32.totalorder %s144, %s158
    %p160 = scmp.eq.s32.totalorder %s24, 0
    %p161 = por %p159, %p160
    %s163 = sadd.s32 %s162, 1
    %p166 = scmp.eq.s32.totalorder %s18, 1
    %p167 = scmp.ne.s32.totalorder %s162, %s164
    %p168 = scmp.eq.s32.totalorder %s18, 0
    %p169 = por %p167, %p168
    %p170 = scmp.ne.s32.totalorder %s162, %s164
    %p171 = scmp.eq.s32.totalorder %s23, 1
    %p172 = por %p170, %p171
    %p173 = scmp.ne.s32.totalorder %s164, %s165
    %p174 = scmp.eq.s32.totalorder %s23, 0
    %p175 = por %p173, %p174
    %p176 = scmp.ne.s32.totalorder %s164, %s165
    %p177 = scmp.eq.s32.totalorder %s24, 1
    %p178 = por %p176, %p177
    %p180 = scmp.ne.s32.totalorder %s165, %s179
    %p181 = scmp.eq.s32.totalorder %s24, 0
    %p182 = por %p180, %p181
    %s184 = sadd.s32 %s183, 1
    %p187 = scmp.eq.s32.totalorder %s18, 1
    %p188 = scmp.ne.s32.totalorder %s183, %s185
    %p189 = scmp.eq.s32.totalorder %s18, 0
    %p190 = por %p188, %p189
    %p191 = scmp.ne.s32.totalorder %s183, %s185
    %p192 = scmp.eq.s32.totalorder %s23, 1
    %p193 = por %p191, %p192
    %p194 = scmp.ne.s32.totalorder %s185, %s186
    %p195 = scmp.eq.s32.totalorder %s23, 0
    %p196 = por %p194, %p195
    %p197 = scmp.ne.s32.totalorder %s185, %s186
    %p198 = scmp.eq.s32.totalorder %s24, 1
    %p199 = por %p197, %p198
    %p201 = scmp.ne.s32.totalorder %s186, %s200
    %p202 = scmp.eq.s32.totalorder %s24, 0
    %p203 = por %p201, %p202
    %s205 = sadd.s32 %s204, 1
    %p208 = scmp.eq.s32.totalorder %s18, 1
    %p209 = scmp.ne.s32.totalorder %s204, %s206
    %p210 = scmp.eq.s32.totalorder %s18, 0
    %p211 = por %p209, %p210
    %p212 = scmp.ne.s32.totalorder %s204, %s206
    %p213 = scmp.eq.s32.totalorder %s23, 1
    %p214 = por %p212, %p213
    %p215 = scmp.ne.s32.totalorder %s206, %s207
    %p216 = scmp.eq.s32.totalorder %s23, 0
    %p217 = por %p215, %p216
    %p218 = scmp.ne.s32.totalorder %s206, %s207
    %p219 = scmp.eq.s32.totalorder %s24, 1
    %p220 = por %p218, %p219
    %p222 = scmp.ne.s32.totalorder %s207, %s221
    %p223 = scmp.eq.s32.totalorder %s24, 0
    %p224 = por %p222, %p223
    %s226 = sadd.s32 %s225, 1
    %p229 = scmp.eq.s32.totalorder %s18, 1
    %p230 = scmp.ne.s32.totalorder %s225, %s227
    %p231 = scmp.eq.s32.totalorder %s18, 0
    %p232 = por %p230, %p231
    %p233 = scmp.ne.s32.totalorder %s225, %s227
    %p234 = scmp.eq.s32.totalorder %s23, 1
    %p235 = por %p233, %p234
    %p236 = scmp.ne.s32.totalorder %s227, %s228
    %p237 = scmp.eq.s32.totalorder %s23, 0
    %p238 = por %p236, %p237
    %p239 = scmp.ne.s32.totalorder %s227, %s228
    %p240 = scmp.eq.s32.totalorder %s24, 1
    %p241 = por %p239, %p240
    %p243 = scmp.ne.s32.totalorder %s228, %s242
    %p244 = scmp.eq.s32.totalorder %s24, 0
    %p245 = por %p243, %p244
    %s247 = sadd.s32 %s246, 1
    %p250 = scmp.eq.s32.totalorder %s18, 1
    %p251 = scmp.ne.s32.totalorder %s246, %s248
    %p252 = scmp.eq.s32.totalorder %s18, 0
    %p253 = por %p251, %p252
    %p254 = scmp.ne.s32.totalorder %s246, %s248
    %p255 = scmp.eq.s32.totalorder %s23, 1
    %p256 = por %p254, %p255
    %p257 = scmp.ne.s32.totalorder %s248, %s249
    %p258 = scmp.eq.s32.totalorder %s23, 0
    %p259 = por %p257, %p258
    %p260 = scmp.ne.s32.totalorder %s248, %s249
    %p261 = scmp.eq.s32.totalorder %s24, 1
    %p262 = por %p260, %p261
    %p264 = scmp.ne.s32.totalorder %s249, %s263
    %p265 = scmp.eq.s32.totalorder %s24, 0
    %p266 = por %p264, %p265
    %s268 = sadd.s32 %s267, 1
    %p271 = scmp.eq.s32.totalorder %s18, 1
    %p272 = scmp.ne.s32.totalorder %s267, %s269
    %p273 = scmp.eq.s32.totalorder %s18, 0
    %p274 = por %p272, %p273
    %p275 = scmp.ne.s32.totalorder %s267, %s269
    %p276 = scmp.eq.s32.totalorder %s23, 1
    %p277 = por %p275, %p276
    %p278 = scmp.ne.s32.totalorder %s269, %s270
    %p279 = scmp.eq.s32.totalorder %s23, 0
    %p280 = por %p278, %p279
    %p281 = scmp.ne.s32.totalorder %s269, %s270
    %p282 = scmp.eq.s32.totalorder %s24, 1
    %p283 = por %p281, %p282
    %p285 = scmp.ne.s32.totalorder %s270, %s284
    %p286 = scmp.eq.s32.totalorder %s24, 0
    %p287 = por %p285, %p286
    %s288 = ssub.s32 %s18, %s25
    %p289 = scmp.eq.s32.totalorder %s288, 0
    %s291 = sadd.s32 %s290, 1
    %s292 = scalar_select %p289, %s290, %s291
    %p295 = pneg %p289
    %p296 = scmp.eq.s32.totalorder %s18, 1
    %p297 = por %p295, %p296
    %p298 = scmp.ne.s32.totalorder %s290, %s293
    %p299 = scmp.eq.s32.totalorder %s18, 0
    %p300 = por %p298, %p299
    %p301 = scmp.ne.s32.totalorder %s290, %s293
    %p302 = scmp.eq.s32.totalorder %s23, 1
    %p303 = por %p301, %p302
    %p304 = scmp.ne.s32.totalorder %s293, %s294
    %p305 = scmp.eq.s32.totalorder %s23, 0
    %p306 = por %p304, %p305
    %p307 = scmp.ne.s32.totalorder %s293, %s294
    %p308 = scmp.eq.s32.totalorder %s24, 1
    %p309 = por %p307, %p308
    %p311 = scmp.ne.s32.totalorder %s294, %s310
    %p312 = scmp.eq.s32.totalorder %s24, 0
    %p313 = por %p311, %p312
    %p314 = scmp.le.s32.totalorder 1, %s18
    %p315 = scmp.lt.s32.totalorder %s18, 3
    %p316 = pnand %p314, %p315
    %p317 = pneg %p316
    // Predicated region
    $region9: #{netgat_forward.3} parent=5 // pred_check
      _
    $region10: #{netgat_forward.3} parent=5 // pred_check_branch
      %319 = sbr.rel (%p316) target = $region12
    $region11: #{netgat_forward.3} parent=5 // pred_region
      %s320 = ssub.s32 %s18, 1
      // Predicated region
      $region13: #{netgat_forward.3} parent=11 // pred_check
        %p321 = pneg %p91
      $region14: #{netgat_forward.3} parent=11 // pred_check_branch
        %323 = sbr.rel (%p321) target = $region16
      $region15: #{netgat_forward.3} parent=11 // pred_region
        _
      $region16: #{netgat_forward.3} parent=11 // pred_fallthru
        _
      // Predicated region
      $region17: #{netgat_forward.3} parent=11 // pred_check
        %p324 = pneg %p112
      $region18: #{netgat_forward.3} parent=11 // pred_check_branch
        %326 = sbr.rel (%p324) target = $region20
      $region19: #{netgat_forward.3} parent=11 // pred_region
        _
      $region20: #{netgat_forward.3} parent=11 // pred_fallthru
        _
      // Predicated region
      $region21: #{netgat_forward.3} parent=11 // pred_check
        %p327 = pneg %p133
      $region22: #{netgat_forward.3} parent=11 // pred_check_branch
        %329 = sbr.rel (%p327) target = $region24
      $region23: #{netgat_forward.3} parent=11 // pred_region
        _
      $region24: #{netgat_forward.3} parent=11 // pred_fallthru
        _
      // Predicated region
      $region25: #{netgat_forward.3} parent=11 // pred_check
        %p330 = pneg %p154
      $region26: #{netgat_forward.3} parent=11 // pred_check_branch
        %332 = sbr.rel (%p330) target = $region28
      $region27: #{netgat_forward.3} parent=11 // pred_region
        _
      $region28: #{netgat_forward.3} parent=11 // pred_fallthru
        _
      // Predicated region
      $region29: #{netgat_forward.3} parent=11 // pred_check
        %p333 = pneg %p175
      $region30: #{netgat_forward.3} parent=11 // pred_check_branch
        %335 = sbr.rel (%p333) target = $region32
      $region31: #{netgat_forward.3} parent=11 // pred_region
        _
      $region32: #{netgat_forward.3} parent=11 // pred_fallthru
        _
      // Predicated region
      $region33: #{netgat_forward.3} parent=11 // pred_check
        %p336 = pneg %p196
      $region34: #{netgat_forward.3} parent=11 // pred_check_branch
        %338 = sbr.rel (%p336) target = $region36
      $region35: #{netgat_forward.3} parent=11 // pred_region
        _
      $region36: #{netgat_forward.3} parent=11 // pred_fallthru
        _
      // Predicated region
      $region37: #{netgat_forward.3} parent=11 // pred_check
        %p339 = pneg %p217
      $region38: #{netgat_forward.3} parent=11 // pred_check_branch
        %341 = sbr.rel (%p339) target = $region40
      $region39: #{netgat_forward.3} parent=11 // pred_region
        _
      $region40: #{netgat_forward.3} parent=11 // pred_fallthru
        _
      // Predicated region
      $region41: #{netgat_forward.3} parent=11 // pred_check
        %p342 = pneg %p238
      $region42: #{netgat_forward.3} parent=11 // pred_check_branch
        %344 = sbr.rel (%p342) target = $region44
      $region43: #{netgat_forward.3} parent=11 // pred_region
        _
      $region44: #{netgat_forward.3} parent=11 // pred_fallthru
        _
      // Predicated region
      $region45: #{netgat_forward.3} parent=11 // pred_check
        %p345 = pneg %p259
      $region46: #{netgat_forward.3} parent=11 // pred_check_branch
        %347 = sbr.rel (%p345) target = $region48
      $region47: #{netgat_forward.3} parent=11 // pred_region
        _
      $region48: #{netgat_forward.3} parent=11 // pred_fallthru
        _
      // Predicated region
      $region49: #{netgat_forward.3} parent=11 // pred_check
        %p348 = pneg %p280
      $region50: #{netgat_forward.3} parent=11 // pred_check_branch
        %350 = sbr.rel (%p348) target = $region52
      $region51: #{netgat_forward.3} parent=11 // pred_region
        _
      $region52: #{netgat_forward.3} parent=11 // pred_fallthru
        _
    $region12: #{netgat_forward.3} parent=5 // pred_fallthru
      _
    %p351 = scmp.lt.s32.totalorder %s18, 2
    // Predicated region
    $region53: #{netgat_forward.3} parent=5 // pred_check
      %p352 = pneg %p351
    $region54: #{netgat_forward.3} parent=5 // pred_check_branch
      %354 = sbr.rel (%p352) target = $region56
    $region55: #{netgat_forward.3} parent=5 // pred_region
      // Predicated region
      $region57: #{netgat_forward.3} parent=55 // pred_check
        %p355 = pneg %p38
      $region58: #{netgat_forward.3} parent=55 // pred_check_branch
        %357 = sbr.rel (%p355) target = $region60
      $region59: #{netgat_forward.3} parent=55 // pred_region
        %s358 = smul.u32 2, %s18
        %p359 = scmp.lt.s32.totalorder %s358, 3
        %s360 = scalar_select %p359, %s358, 3
        %s361 = smul.addr %s360, 8
        %s362 = scalar_lea.vmem %s0, %s361
        %s363 = smul.u32 2, %s18
      $region60: #{netgat_forward.3} parent=55 // pred_fallthru
        _
      // Predicated region
      $region61: #{netgat_forward.3} parent=55 // pred_check
        %p364 = pneg %p64
      $region62: #{netgat_forward.3} parent=55 // pred_check_branch
        %366 = sbr.rel (%p364) target = $region64
      $region63: #{netgat_forward.3} parent=55 // pred_region
        %p367 = scmp.lt.s32.totalorder %s18, 1
        %s368 = scalar_select %p367, %s18, 1
        %s369 = smul.addr %s368, 2
        %s370 = smul.addr %s369, 8
        %s371 = scalar_lea.vmem %s1, %s370
      $region64: #{netgat_forward.3} parent=55 // pred_fallthru
        _
    $region56: #{netgat_forward.3} parent=5 // pred_fallthru
      _
    %p372 = scmp.le.s32.totalorder 1, %s18
    %p373 = scmp.lt.s32.totalorder %s18, 3
    %p374 = pnand %p372, %p373
    %p375 = pneg %p374
    // Predicated region
    $region65: #{netgat_forward.3} parent=5 // pred_check
      _
    $region66: #{netgat_forward.3} parent=5 // pred_check_branch
      %377 = sbr.rel (%p374) target = $region68
    $region67: #{netgat_forward.3} parent=5 // pred_region
      %s378 = ssub.s32 %s18, 1
      %s379 = smul.u32 2, %s23
      %p380 = scmp.lt.s32.totalorder %s379, 3
      %s381 = scalar_select %p380, %s379, 3
      %s382 = smul.addr %s381, 8
      %s383 = scalar_lea.vmem %s0, %s382
      %p384 = pneg %p44
      %p385 = pneg %p41
      %p386 = scmp.lt.s32.totalorder %s23, 1
      %s387 = scalar_select %p386, %s23, 1
      %s388 = smul.addr %s387, 2
      %s389 = smul.addr %s388, 8
      %s390 = scalar_lea.vmem %s1, %s389
      %p391 = pneg %p70
      %p392 = pneg %p67
      %p393 = pneg %p91
      %p394 = pneg %p88
      %p395 = pneg %p112
      %p396 = pneg %p109
      %p397 = pneg %p133
      %p398 = pneg %p130
      %p399 = pneg %p154
      %p400 = pneg %p151
      %p401 = pneg %p175
      %p402 = pneg %p172
      %p403 = pneg %p196
      %p404 = pneg %p193
      %p405 = pneg %p217
      %p406 = pneg %p214
      %p407 = pneg %p238
      %p408 = pneg %p235
      %p409 = pneg %p259
      %p410 = pneg %p256
      %p411 = pneg %p280
      %p412 = pneg %p277
      %p413 = pneg %p306
      %p414 = pneg %p303
      %s415 = smul.u32 2, %s23
      %p416 = scmp.lt.s32.totalorder %s415, 3
      %s417 = scalar_select %p416, %s415, 3
      %s418 = smul.addr %s417, 8
      %s419 = scalar_lea.vmem %s12, %s418
      %s420 = smul.u32 2, %s23
      %p421 = scmp.lt.s32.totalorder %s420, 3
      %s422 = scalar_select %p421, %s420, 3
      %s423 = smul.addr %s422, 8
      %s424 = scalar_lea.vmem %s0, %s423
      %s425 = smul.u32 2, %s23
      %p426 = scmp.lt.s32.totalorder %s23, 1
      %s427 = scalar_select %p426, %s23, 1
      %s428 = smul.addr %s427, 2
      %s429 = smul.addr %s428, 8
      %s430 = scalar_lea.vmem %s1, %s429
      %s431 = smul.u32 2, %s23
      %p432 = scmp.lt.s32.totalorder %s431, 3
      %s433 = scalar_select %p432, %s431, 3
      %s434 = smul.addr %s433, 8
      %s435 = scalar_lea.vmem %s12, %s434
      %s436 = smul.u32 2, %s23
      %v438 = vld [vmem:[%s424] sm:$0xff]
      %v439 = vld [vmem:[%s424 + $0x8] sm:$0xff]
      %v440 = vpack.c.bf16 %v439, %v438
      %v441 = vld [vmem:[%s430] sm:$0xff]
      %v442 = vld [vmem:[%s430 + $0x8] sm:$0xff]
      %v443 = vld [vmem:[%s2] sm:$0x3]
      %vm444 = vcmask 31744
      %v446 = vsel %vm444, %v440, 0
      %vm448 = vcmask 1041408
      %v450 = vsel %vm448, %v443, 0
      %452 = vmatprep.subr.bf16.mxu0 0
      %453 = vmatpush1.bf16.msra.mxu0 %v450
      %454 = vmatprep.subr.bf16.mxu0 0
      %455 = vmatpush1.bf16.msra.mxu0 0
      %456 = vmatprep.subr.bf16.mxu0 0
      %457 = vmatpush1.bf16.msra.mxu0 0
      %458 = vmatprep.subr.bf16.mxu0 0
      %459 = vmatpush1.bf16.msra.mxu0 0
      %460 = vmatprep.subr.bf16.mxu0 0
      %461 = vmatpush1.bf16.msra.mxu0 0
      %462 = vmatprep.subr.bf16.mxu0 0
      %463 = vmatpush1.bf16.msra.mxu0 0
      %464 = vmatprep.subr.bf16.mxu0 0
      %465 = vmatpush1.bf16.msra.mxu0 0
      %466 = vmatprep.subr.bf16.mxu0 0
      %467 = vmatpush1.bf16.msra.mxu0 0
      %468 = vmatprep.subr.bf16.mxu0 0
      %469 = vmatpush1.bf16.msra.mxu0 0
      %470 = vmatprep.subr.bf16.mxu0 0
      %471 = vmatpush1.bf16.msra.mxu0 0
      %472 = vmatprep.subr.bf16.mxu0 0
      %473 = vmatpush1.bf16.msra.mxu0 0
      %474 = vmatprep.subr.bf16.mxu0 0
      %475 = vmatpush1.bf16.msra.mxu0 0
      %476 = vmatprep.subr.bf16.mxu0 0
      %477 = vmatpush1.bf16.msra.mxu0 0
      %478 = vmatprep.subr.bf16.mxu0 0
      %479 = vmatpush1.bf16.msra.mxu0 0
      %480 = vmatprep.subr.bf16.mxu0 0
      %481 = vmatpush1.bf16.msra.mxu0 0
      %482 = vmatprep.subr.bf16.mxu0 0
      %483 = vmatpush1.bf16.msra.mxu0 0
      %484 = vmatprep.mubr.bf16.mxu0 0
      %485 = vmatmul.mubr.bf16.gmra.mrb[0].mxu0 %v446
      %v486 = vpop.f32.mrb[0].mxu0
      %v487 = vadd.f32 0.0, %v486
      %v488 = vpop.f32.mrb[0].mxu0
      %v489 = vpop.f32.mrb[0].mxu0
      %v490 = vadd.f32 0.0, %v489
      %v491 = vpop.f32.mrb[0].mxu0
      %492 = vdwg.mxu0
      %v493 = vld [vmem:[%s3] sm:$0x3]
      %v495 = vsel %vm448, %v493, 0
      %497 = vmatprep.subr.bf16.mxu0 0
      %498 = vmatpush1.bf16.msra.mxu0 %v495
      %499 = vmatprep.subr.bf16.mxu0 0
      %500 = vmatpush1.bf16.msra.mxu0 0
      %501 = vmatprep.subr.bf16.mxu0 0
      %502 = vmatpush1.bf16.msra.mxu0 0
      %503 = vmatprep.subr.bf16.mxu0 0
      %504 = vmatpush1.bf16.msra.mxu0 0
      %505 = vmatprep.subr.bf16.mxu0 0
      %506 = vmatpush1.bf16.msra.mxu0 0
      %507 = vmatprep.subr.bf16.mxu0 0
      %508 = vmatpush1.bf16.msra.mxu0 0
      %509 = vmatprep.subr.bf16.mxu0 0
      %510 = vmatpush1.bf16.msra.mxu0 0
      %511 = vmatprep.subr.bf16.mxu0 0
      %512 = vmatpush1.bf16.msra.mxu0 0
      %513 = vmatprep.subr.bf16.mxu0 0
      %514 = vmatpush1.bf16.msra.mxu0 0
      %515 = vmatprep.subr.bf16.mxu0 0
      %516 = vmatpush1.bf16.msra.mxu0 0
      %517 = vmatprep.subr.bf16.mxu0 0
      %518 = vmatpush1.bf16.msra.mxu0 0
      %519 = vmatprep.subr.bf16.mxu0 0
      %520 = vmatpush1.bf16.msra.mxu0 0
      %521 = vmatprep.subr.bf16.mxu0 0
      %522 = vmatpush1.bf16.msra.mxu0 0
      %523 = vmatprep.subr.bf16.mxu0 0
      %524 = vmatpush1.bf16.msra.mxu0 0
      %525 = vmatprep.subr.bf16.mxu0 0
      %526 = vmatpush1.bf16.msra.mxu0 0
      %527 = vmatprep.subr.bf16.mxu0 0
      %528 = vmatpush1.bf16.msra.mxu0 0
      %529 = vmatprep.mubr.bf16.mxu0 0
      %530 = vmatmul.mubr.bf16.gmra.mrb[0].mxu0 %v446
      %v531 = vpop.f32.mrb[0].mxu0
      %v532 = vadd.f32 0.0, %v531
      %v533 = vpop.f32.mrb[0].mxu0
      %v534 = vpop.f32.mrb[0].mxu0
      %v535 = vadd.f32 0.0, %v534
      %v536 = vpop.f32.mrb[0].mxu0
      %537 = vdwg.mxu0
      %v540 = vcombine.high %v487, %v487
      %v542 = vunpack.c.l.s4 1966171168
      %v543 = vunpack.c.0.s8 %v542
      %v544 = vlaneseq
      %v545 = vshrl.u32 %v544, 7
      %v546 = vsub.s32 %v543, %v545
      %v547 = vrot.slane %v487, %v546
      %v549 = vunpack.c.l.s4 1966171168
      %v550 = vunpack.c.0.s8 %v549
      %v551 = vlaneseq
      %v552 = vshrl.u32 %v551, 7
      %v553 = vsub.s32 %v550, %v552
      %v554 = vrot.slane %v540, %v553
      %v555 = vcombine.high %v547, %v547
      %v556 = vcombine.high %v554, %v554
      %v558 = vunpack.c.l.s4 1966171168
      %v559 = vunpack.c.0.s8 %v558
      %v560 = vlaneseq
      %v561 = vshrl.u32 %v560, 7
      %v562 = vsub.s32 %v559, %v561
      %v563 = vrot.slane %v547, %v562
      %v565 = vunpack.c.l.s4 1966171168
      %v566 = vunpack.c.0.s8 %v565
      %v567 = vlaneseq
      %v568 = vshrl.u32 %v567, 7
      %v569 = vsub.s32 %v566, %v568
      %v570 = vrot.slane %v554, %v569
      %v572 = vunpack.c.l.s4 1966171168
      %v573 = vunpack.c.0.s8 %v572
      %v574 = vlaneseq
      %v575 = vshrl.u32 %v574, 7
      %v576 = vsub.s32 %v573, %v575
      %v577 = vrot.slane %v555, %v576
      %v579 = vunpack.c.l.s4 1966171168
      %v580 = vunpack.c.0.s8 %v579
      %v581 = vlaneseq
      %v582 = vshrl.u32 %v581, 7
      %v583 = vsub.s32 %v580, %v582
      %v584 = vrot.slane %v556, %v583
      %v585 = vcombine.high %v563, %v563
      %v586 = vcombine.high %v570, %v570
      %v587 = vcombine.high %v577, %v577
      %v588 = vcombine.high %v584, %v584
      %v589 = vcombine.high %v490, %v490
      %v591 = vunpack.c.l.s4 1966171168
      %v592 = vunpack.c.0.s8 %v591
      %v593 = vlaneseq
      %v594 = vshrl.u32 %v593, 7
      %v595 = vsub.s32 %v592, %v594
      %v596 = vrot.slane %v490, %v595
      %v598 = vunpack.c.l.s4 1966171168
      %v599 = vunpack.c.0.s8 %v598
      %v600 = vlaneseq
      %v601 = vshrl.u32 %v600, 7
      %v602 = vsub.s32 %v599, %v601
      %v603 = vrot.slane %v589, %v602
      %v604 = vcombine.high %v596, %v596
      %v605 = vcombine.high %v603, %v603
      %v607 = vunpack.c.l.s4 1966171168
      %v608 = vunpack.c.0.s8 %v607
      %v609 = vlaneseq
      %v610 = vshrl.u32 %v609, 7
      %v611 = vsub.s32 %v608, %v610
      %v612 = vrot.slane %v596, %v611
      %v614 = vunpack.c.l.s4 1966171168
      %v615 = vunpack.c.0.s8 %v614
      %v616 = vlaneseq
      %v617 = vshrl.u32 %v616, 7
      %v618 = vsub.s32 %v615, %v617
      %v619 = vrot.slane %v603, %v618
      %v621 = vunpack.c.l.s4 1966171168
      %v622 = vunpack.c.0.s8 %v621
      %v623 = vlaneseq
      %v624 = vshrl.u32 %v623, 7
      %v625 = vsub.s32 %v622, %v624
      %v626 = vrot.slane %v604, %v625
      %v628 = vunpack.c.l.s4 1966171168
      %v629 = vunpack.c.0.s8 %v628
      %v630 = vlaneseq
      %v631 = vshrl.u32 %v630, 7
      %v632 = vsub.s32 %v629, %v631
      %v633 = vrot.slane %v605, %v632
      %v634 = vcombine.high %v612, %v612
      %v635 = vcombine.high %v619, %v619
      %v636 = vcombine.high %v626, %v626
      %v637 = vcombine.high %v633, %v633
      %v638 = vlaneseq
      %v639 = vshrl.u32 %v638, 7
      %v640 = vsub.s32 0, %v639
      %v641 = vrot.slane %v563, %v640
      %v642 = vlaneseq
      %v643 = vshrl.u32 %v642, 7
      %v644 = vsub.s32 0, %v643
      %v645 = vrot.slane %v577, %v644
      %v646 = vlaneseq
      %v647 = vshrl.u32 %v646, 7
      %v648 = vsub.s32 0, %v647
      %v649 = vrot.slane %v585, %v648
      %v650 = vlaneseq
      %v651 = vshrl.u32 %v650, 7
      %v652 = vsub.s32 0, %v651
      %v653 = vrot.slane %v587, %v652
      %v654 = vlaneseq
      %v655 = vshrl.u32 %v654, 7
      %v656 = vsub.s32 0, %v655
      %v657 = vrot.slane %v570, %v656
      %v658 = vlaneseq
      %v659 = vshrl.u32 %v658, 7
      %v660 = vsub.s32 0, %v659
      %v661 = vrot.slane %v584, %v660
      %v662 = vlaneseq
      %v663 = vshrl.u32 %v662, 7
      %v664 = vsub.s32 0, %v663
      %v665 = vrot.slane %v586, %v664
      %v666 = vlaneseq
      %v667 = vshrl.u32 %v666, 7
      %v668 = vsub.s32 0, %v667
      %v669 = vrot.slane %v588, %v668
      %v670 = vlaneseq
      %v671 = vshrl.u32 %v670, 7
      %v672 = vsub.s32 0, %v671
      %v673 = vrot.slane %v612, %v672
      %v674 = vlaneseq
      %v675 = vshrl.u32 %v674, 7
      %v676 = vsub.s32 0, %v675
      %v677 = vrot.slane %v626, %v676
      %v678 = vlaneseq
      %v679 = vshrl.u32 %v678, 7
      %v680 = vsub.s32 0, %v679
      %v681 = vrot.slane %v634, %v680
      %v682 = vlaneseq
      %v683 = vshrl.u32 %v682, 7
      %v684 = vsub.s32 0, %v683
      %v685 = vrot.slane %v636, %v684
      %v686 = vlaneseq
      %v687 = vshrl.u32 %v686, 7
      %v688 = vsub.s32 0, %v687
      %v689 = vrot.slane %v619, %v688
      %v690 = vlaneseq
      %v691 = vshrl.u32 %v690, 7
      %v692 = vsub.s32 0, %v691
      %v693 = vrot.slane %v633, %v692
      %v694 = vlaneseq
      %v695 = vshrl.u32 %v694, 7
      %v696 = vsub.s32 0, %v695
      %v697 = vrot.slane %v635, %v696
      %v698 = vlaneseq
      %v699 = vshrl.u32 %v698, 7
      %v700 = vsub.s32 0, %v699
      %v701 = vrot.slane %v637, %v700
      %v718 = vadd.f32 %v641, %v532
      %v719 = vadd.f32 %v641, %v535
      %v720 = vadd.f32 %v645, %v532
      %v721 = vadd.f32 %v645, %v535
      %v722 = vadd.f32 %v649, %v532
      %v723 = vadd.f32 %v649, %v535
      %v724 = vadd.f32 %v653, %v532
      %v725 = vadd.f32 %v653, %v535
      %v726 = vadd.f32 %v657, %v532
      %v727 = vadd.f32 %v657, %v535
      %v728 = vadd.f32 %v661, %v532
      %v729 = vadd.f32 %v661, %v535
      %v730 = vadd.f32 %v665, %v532
      %v731 = vadd.f32 %v665, %v535
      %v732 = vadd.f32 %v669, %v532
      %v733 = vadd.f32 %v669, %v535
      %v734 = vadd.f32 %v673, %v532
      %v735 = vadd.f32 %v673, %v535
      %v736 = vadd.f32 %v677, %v532
      %v737 = vadd.f32 %v677, %v535
      %v738 = vadd.f32 %v681, %v532
      %v739 = vadd.f32 %v681, %v535
      %v740 = vadd.f32 %v685, %v532
      %v741 = vadd.f32 %v685, %v535
      %v742 = vadd.f32 %v689, %v532
      %v743 = vadd.f32 %v689, %v535
      %v744 = vadd.f32 %v693, %v532
      %v745 = vadd.f32 %v693, %v535
      %v746 = vadd.f32 %v697, %v532
      %v747 = vadd.f32 %v697, %v535
      %v748 = vadd.f32 %v701, %v532
      %v749 = vadd.f32 %v701, %v535
      %v750 = vld [vmem:[%s4] sm:$0x1]
      %v752 = vlaneseq
      %v753 = vshrl.u32 %v752, 7
      %v754 = vsub.s32 0, %v753
      %v755 = vrot.slane %v750, %v754
      %v757 = vmul.f32 %v718, %v755
      %v758 = vmul.f32 %v719, %v755
      %v759 = vmul.f32 %v720, %v755
      %v760 = vmul.f32 %v721, %v755
      %v761 = vmul.f32 %v722, %v755
      %v762 = vmul.f32 %v723, %v755
      %v763 = vmul.f32 %v724, %v755
      %v764 = vmul.f32 %v725, %v755
      %v765 = vmul.f32 %v726, %v755
      %v766 = vmul.f32 %v727, %v755
      %v767 = vmul.f32 %v728, %v755
      %v768 = vmul.f32 %v729, %v755
      %v769 = vmul.f32 %v730, %v755
      %v770 = vmul.f32 %v731, %v755
      %v771 = vmul.f32 %v732, %v755
      %v772 = vmul.f32 %v733, %v755
      %v773 = vmul.f32 %v734, %v755
      %v774 = vmul.f32 %v735, %v755
      %v775 = vmul.f32 %v736, %v755
      %v776 = vmul.f32 %v737, %v755
      %v777 = vmul.f32 %v738, %v755
      %v778 = vmul.f32 %v739, %v755
      %v779 = vmul.f32 %v740, %v755
      %v780 = vmul.f32 %v741, %v755
      %v781 = vmul.f32 %v742, %v755
      %v782 = vmul.f32 %v743, %v755
      %v783 = vmul.f32 %v744, %v755
      %v784 = vmul.f32 %v745, %v755
      %v785 = vmul.f32 %v746, %v755
      %v786 = vmul.f32 %v747, %v755
      %v787 = vmul.f32 %v748, %v755
      %v788 = vmul.f32 %v749, %v755
      %v789 = vld [vmem:[%s5] sm:$0x1]
      %v791 = vlaneseq
      %v792 = vshrl.u32 %v791, 7
      %v793 = vsub.s32 0, %v792
      %v794 = vrot.slane %v789, %v793
      %v796 = vadd.f32 %v757, %v794
      %v797 = vadd.f32 %v758, %v794
      %v798 = vadd.f32 %v759, %v794
      %v799 = vadd.f32 %v760, %v794
      %v800 = vadd.f32 %v761, %v794
      %v801 = vadd.f32 %v762, %v794
      %v802 = vadd.f32 %v763, %v794
      %v803 = vadd.f32 %v764, %v794
      %v804 = vadd.f32 %v765, %v794
      %v805 = vadd.f32 %v766, %v794
      %v806 = vadd.f32 %v767, %v794
      %v807 = vadd.f32 %v768, %v794
      %v808 = vadd.f32 %v769, %v794
      %v809 = vadd.f32 %v770, %v794
      %v810 = vadd.f32 %v771, %v794
      %v811 = vadd.f32 %v772, %v794
      %v812 = vadd.f32 %v773, %v794
      %v813 = vadd.f32 %v774, %v794
      %v814 = vadd.f32 %v775, %v794
      %v815 = vadd.f32 %v776, %v794
      %v816 = vadd.f32 %v777, %v794
      %v817 = vadd.f32 %v778, %v794
      %v818 = vadd.f32 %v779, %v794
      %v819 = vadd.f32 %v780, %v794
      %v820 = vadd.f32 %v781, %v794
      %v821 = vadd.f32 %v782, %v794
      %v822 = vadd.f32 %v783, %v794
      %v823 = vadd.f32 %v784, %v794
      %v824 = vadd.f32 %v785, %v794
      %v825 = vadd.f32 %v786, %v794
      %v826 = vadd.f32 %v787, %v794
      %v827 = vadd.f32 %v788, %v794
      %v828 = vmax.f32 %v796, 0.0
      %v829 = vmax.f32 %v797, 0.0
      %v830 = vmax.f32 %v798, 0.0
      %v831 = vmax.f32 %v799, 0.0
      %v832 = vmax.f32 %v800, 0.0
      %v833 = vmax.f32 %v801, 0.0
      %v834 = vmax.f32 %v802, 0.0
      %v835 = vmax.f32 %v803, 0.0
      %v836 = vmax.f32 %v804, 0.0
      %v837 = vmax.f32 %v805, 0.0
      %v838 = vmax.f32 %v806, 0.0
      %v839 = vmax.f32 %v807, 0.0
      %v840 = vmax.f32 %v808, 0.0
      %v841 = vmax.f32 %v809, 0.0
      %v842 = vmax.f32 %v810, 0.0
      %v843 = vmax.f32 %v811, 0.0
      %v844 = vmax.f32 %v812, 0.0
      %v845 = vmax.f32 %v813, 0.0
      %v846 = vmax.f32 %v814, 0.0
      %v847 = vmax.f32 %v815, 0.0
      %v848 = vmax.f32 %v816, 0.0
      %v849 = vmax.f32 %v817, 0.0
      %v850 = vmax.f32 %v818, 0.0
      %v851 = vmax.f32 %v819, 0.0
      %v852 = vmax.f32 %v820, 0.0
      %v853 = vmax.f32 %v821, 0.0
      %v854 = vmax.f32 %v822, 0.0
      %v855 = vmax.f32 %v823, 0.0
      %v856 = vmax.f32 %v824, 0.0
      %v857 = vmax.f32 %v825, 0.0
      %v858 = vmax.f32 %v826, 0.0
      %v859 = vmax.f32 %v827, 0.0
      %v860 = vpack.c.bf16 %v829, %v828
      %v861 = vpack.c.bf16 %v831, %v830
      %v862 = vpack.c.bf16 %v833, %v832
      %v863 = vpack.c.bf16 %v835, %v834
      %v864 = vpack.c.bf16 %v837, %v836
      %v865 = vpack.c.bf16 %v839, %v838
      %v866 = vpack.c.bf16 %v841, %v840
      %v867 = vpack.c.bf16 %v843, %v842
      %v868 = vpack.c.bf16 %v845, %v844
      %v869 = vpack.c.bf16 %v847, %v846
      %v870 = vpack.c.bf16 %v849, %v848
      %v871 = vpack.c.bf16 %v851, %v850
      %v872 = vpack.c.bf16 %v853, %v852
      %v873 = vpack.c.bf16 %v855, %v854
      %v874 = vpack.c.bf16 %v857, %v856
      %v875 = vpack.c.bf16 %v859, %v858
      %v876 = vld [vmem:[%s6] sm:$0xf]
      %v877 = vld [vmem:[%s6 + $0x4] sm:$0xf]
      %v878 = vld [vmem:[%s6 + $0x8] sm:$0xf]
      %v879 = vld [vmem:[%s6 + $0xc] sm:$0xf]
      %v880 = vld [vmem:[%s6 + $0x10] sm:$0xf]
      %v881 = vld [vmem:[%s6 + $0x14] sm:$0xf]
      %v882 = vld [vmem:[%s6 + $0x18] sm:$0xf]
      %v883 = vld [vmem:[%s6 + $0x1c] sm:$0xf]
      %v892 = vunpack.c.l.b16 %v876
      %v893 = vunpack.c.l.b16 %v877
      %v894 = vunpack.c.l.b16 %v878
      %v895 = vunpack.c.l.b16 %v879
      %v896 = vunpack.c.l.b16 %v880
      %v897 = vunpack.c.l.b16 %v881
      %v898 = vunpack.c.l.b16 %v882
      %v899 = vunpack.c.l.b16 %v883
      %v900 = vpack.c.b16 %v893, %v892
      %v901 = vpack.c.b16 %v895, %v894
      %v902 = vpack.c.b16 %v897, %v896
      %v903 = vpack.c.b16 %v899, %v898
      %vm908 = vcmask 523264
      %v910 = vsel %vm908, %v860, 0
      %v913 = vsel %vm908, %v861, 0
      %v916 = vsel %vm908, %v862, 0
      %v919 = vsel %vm908, %v863, 0
      %v922 = vsel %vm908, %v864, 0
      %v925 = vsel %vm908, %v865, 0
      %v928 = vsel %vm908, %v866, 0
      %v931 = vsel %vm908, %v867, 0
      %v934 = vsel %vm908, %v868, 0
      %v937 = vsel %vm908, %v869, 0
      %v940 = vsel %vm908, %v870, 0
      %v943 = vsel %vm908, %v871, 0
      %v946 = vsel %vm908, %v872, 0
      %v949 = vsel %vm908, %v873, 0
      %v952 = vsel %vm908, %v874, 0
      %v955 = vsel %vm908, %v875, 0
      %957 = vmatprep.subr.bf16.mxu0 0
      %958 = vmatpush1.bf16.msra.mxu0 %v900
      %959 = vmatprep.subr.bf16.mxu0 0
      %960 = vmatpush1.bf16.msra.mxu0 %v901
      %961 = vmatprep.subr.bf16.mxu0 0
      %962 = vmatpush1.bf16.msra.mxu0 %v902
      %963 = vmatprep.subr.bf16.mxu0 0
      %964 = vmatpush1.bf16.msra.mxu0 %v903
      %965 = vmatprep.subr.bf16.mxu0 0
      %966 = vmatpush1.bf16.msra.mxu0 0
      %967 = vmatprep.subr.bf16.mxu0 0
      %968 = vmatpush1.bf16.msra.mxu0 0
      %969 = vmatprep.subr.bf16.mxu0 0
      %970 = vmatpush1.bf16.msra.mxu0 0
      %971 = vmatprep.subr.bf16.mxu0 0
      %972 = vmatpush1.bf16.msra.mxu0 0
      %973 = vmatprep.subr.bf16.mxu0 0
      %974 = vmatpush1.bf16.msra.mxu0 0
      %975 = vmatprep.subr.bf16.mxu0 0
      %976 = vmatpush1.bf16.msra.mxu0 0
      %977 = vmatprep.subr.bf16.mxu0 0
      %978 = vmatpush1.bf16.msra.mxu0 0
      %979 = vmatprep.subr.bf16.mxu0 0
      %980 = vmatpush1.bf16.msra.mxu0 0
      %981 = vmatprep.subr.bf16.mxu0 0
      %982 = vmatpush1.bf16.msra.mxu0 0
      %983 = vmatprep.subr.bf16.mxu0 0
      %984 = vmatpush1.bf16.msra.mxu0 0
      %985 = vmatprep.subr.bf16.mxu0 0
      %986 = vmatpush1.bf16.msra.mxu0 0
      %987 = vmatprep.subr.bf16.mxu0 0
      %988 = vmatpush1.bf16.msra.mxu0 0
      %989 = vmatprep.mubr.bf16.mxu0 0
      %990 = vmatmul.mubr.bf16.gmra.mrb[0].mxu0 %v910
      %v991 = vpop.f32.mrb[0].mxu0
      %v992 = vadd.f32 0.0, %v991
      %v993 = vpop.f32.mrb[0].mxu0
      %v994 = vpop.f32.mrb[0].mxu0
      %v995 = vadd.f32 0.0, %v994
      %v996 = vpop.f32.mrb[0].mxu0
      %997 = vmatprep.mubr.bf16.mxu0 0
      %998 = vmatmul.mubr.bf16.gmra.mrb[0].mxu0 %v913
      %v999 = vpop.f32.mrb[0].mxu0
      %v1000 = vadd.f32 0.0, %v999
      %v1001 = vpop.f32.mrb[0].mxu0
      %v1002 = vpop.f32.mrb[0].mxu0
      %v1003 = vadd.f32 0.0, %v1002
      %v1004 = vpop.f32.mrb[0].mxu0
      %1005 = vmatprep.mubr.bf16.mxu0 0
      %1006 = vmatmul.mubr.bf16.gmra.mrb[0].mxu0 %v916
      %v1007 = vpop.f32.mrb[0].mxu0
      %v1008 = vadd.f32 0.0, %v1007
      %v1009 = vpop.f32.mrb[0].mxu0
      %v1010 = vpop.f32.mrb[0].mxu0
      %v1011 = vadd.f32 0.0, %v1010
      %v1012 = vpop.f32.mrb[0].mxu0
      %1013 = vmatprep.mubr.bf16.mxu0 0
      %1014 = vmatmul.mubr.bf16.gmra.mrb[0].mxu0 %v919
      %v1015 = vpop.f32.mrb[0].mxu0
      %v1016 = vadd.f32 0.0, %v1015
      %v1017 = vpop.f32.mrb[0].mxu0
      %v1018 = vpop.f32.mrb[0].mxu0
      %v1019 = vadd.f32 0.0, %v1018
      %v1020 = vpop.f32.mrb[0].mxu0
      %1021 = vmatprep.mubr.bf16.mxu0 0
      %1022 = vmatmul.mubr.bf16.gmra.mrb[0].mxu0 %v922
      %v1023 = vpop.f32.mrb[0].mxu0
      %v1024 = vadd.f32 0.0, %v1023
      %v1025 = vpop.f32.mrb[0].mxu0
      %v1026 = vpop.f32.mrb[0].mxu0
      %v1027 = vadd.f32 0.0, %v1026
      %v1028 = vpop.f32.mrb[0].mxu0
      %1029 = vmatprep.mubr.bf16.mxu0 0
      %1030 = vmatmul.mubr.bf16.gmra.mrb[0].mxu0 %v925
      %v1031 = vpop.f32.mrb[0].mxu0
      %v1032 = vadd.f32 0.0, %v1031
      %v1033 = vpop.f32.mrb[0].mxu0
      %v1034 = vpop.f32.mrb[0].mxu0
      %v1035 = vadd.f32 0.0, %v1034
      %v1036 = vpop.f32.mrb[0].mxu0
      %1037 = vmatprep.mubr.bf16.mxu0 0
      %1038 = vmatmul.mubr.bf16.gmra.mrb[0].mxu0 %v928
      %v1039 = vpop.f32.mrb[0].mxu0
      %v1040 = vadd.f32 0.0, %v1039
      %v1041 = vpop.f32.mrb[0].mxu0
      %v1042 = vpop.f32.mrb[0].mxu0
      %v1043 = vadd.f32 0.0, %v1042
      %v1044 = vpop.f32.mrb[0].mxu0
      %1045 = vmatprep.mubr.bf16.mxu0 0
      %1046 = vmatmul.mubr.bf16.gmra.mrb[0].mxu0 %v931
      %v1047 = vpop.f32.mrb[0].mxu0
      %v1048 = vadd.f32 0.0, %v1047
      %v1049 = vpop.f32.mrb[0].mxu0
      %v1050 = vpop.f32.mrb[0].mxu0
      %v1051 = vadd.f32 0.0, %v1050
      %v1052 = vpop.f32.mrb[0].mxu0
      %1053 = vmatprep.mubr.bf16.mxu0 0
      %1054 = vmatmul.mubr.bf16.gmra.mrb[0].mxu0 %v934
      %v1055 = vpop.f32.mrb[0].mxu0
      %v1056 = vadd.f32 0.0, %v1055
      %v1057 = vpop.f32.mrb[0].mxu0
      %v1058 = vpop.f32.mrb[0].mxu0
      %v1059 = vadd.f32 0.0, %v1058
      %v1060 = vpop.f32.mrb[0].mxu0
      %1061 = vmatprep.mubr.bf16.mxu0 0
      %1062 = vmatmul.mubr.bf16.gmra.mrb[0].mxu0 %v937
      %v1063 = vpop.f32.mrb[0].mxu0
      %v1064 = vadd.f32 0.0, %v1063
      %v1065 = vpop.f32.mrb[0].mxu0
      %v1066 = vpop.f32.mrb[0].mxu0
      %v1067 = vadd.f32 0.0, %v1066
      %v1068 = vpop.f32.mrb[0].mxu0
      %1069 = vmatprep.mubr.bf16.mxu0 0
      %1070 = vmatmul.mubr.bf16.gmra.mrb[0].mxu0 %v940
      %v1071 = vpop.f32.mrb[0].mxu0
      %v1072 = vadd.f32 0.0, %v1071
      %v1073 = vpop.f32.mrb[0].mxu0
      %v1074 = vpop.f32.mrb[0].mxu0
      %v1075 = vadd.f32 0.0, %v1074
      %v1076 = vpop.f32.mrb[0].mxu0
      %1077 = vmatprep.mubr.bf16.mxu0 0
      %1078 = vmatmul.mubr.bf16.gmra.mrb[0].mxu0 %v943
      %v1079 = vpop.f32.mrb[0].mxu0
      %v1080 = vadd.f32 0.0, %v1079
      %v1081 = vpop.f32.mrb[0].mxu0
      %v1082 = vpop.f32.mrb[0].mxu0
      %v1083 = vadd.f32 0.0, %v1082
      %v1084 = vpop.f32.mrb[0].mxu0
      %1085 = vmatprep.mubr.bf16.mxu0 0
      %1086 = vmatmul.mubr.bf16.gmra.mrb[0].mxu0 %v946
      %v1087 = vpop.f32.mrb[0].mxu0
      %v1088 = vadd.f32 0.0, %v1087
      %v1089 = vpop.f32.mrb[0].mxu0
      %v1090 = vpop.f32.mrb[0].mxu0
      %v1091 = vadd.f32 0.0, %v1090
      %v1092 = vpop.f32.mrb[0].mxu0
      %1093 = vmatprep.mubr.bf16.mxu0 0
      %1094 = vmatmul.mubr.bf16.gmra.mrb[0].mxu0 %v949
      %v1095 = vpop.f32.mrb[0].mxu0
      %v1096 = vadd.f32 0.0, %v1095
      %v1097 = vpop.f32.mrb[0].mxu0
      %v1098 = vpop.f32.mrb[0].mxu0
      %v1099 = vadd.f32 0.0, %v1098
      %v1100 = vpop.f32.mrb[0].mxu0
      %1101 = vmatprep.mubr.bf16.mxu0 0
      %1102 = vmatmul.mubr.bf16.gmra.mrb[0].mxu0 %v952
      %v1103 = vpop.f32.mrb[0].mxu0
      %v1104 = vadd.f32 0.0, %v1103
      %v1105 = vpop.f32.mrb[0].mxu0
      %v1106 = vpop.f32.mrb[0].mxu0
      %v1107 = vadd.f32 0.0, %v1106
      %v1108 = vpop.f32.mrb[0].mxu0
      %1109 = vmatprep.mubr.bf16.mxu0 0
      %1110 = vmatmul.mubr.bf16.gmra.mrb[0].mxu0 %v955
      %v1111 = vpop.f32.mrb[0].mxu0
      %v1112 = vadd.f32 0.0, %v1111
      %v1113 = vpop.f32.mrb[0].mxu0
      %v1114 = vpop.f32.mrb[0].mxu0
      %v1115 = vadd.f32 0.0, %v1114
      %v1116 = vpop.f32.mrb[0].mxu0
      %1117 = vdwg.mxu0
      %v1118 = vld [vmem:[%s7] sm:$0x1]
      %v1120 = vlaneseq
      %v1121 = vshrl.u32 %v1120, 7
      %v1122 = vsub.s32 0, %v1121
      %v1123 = vrot.slane %v1118, %v1122
      %v1125 = vmul.f32 %v992, %v1123
      %v1126 = vmul.f32 %v995, %v1123
      %v1127 = vmul.f32 %v1000, %v1123
      %v1128 = vmul.f32 %v1003, %v1123
      %v1129 = vmul.f32 %v1008, %v1123
      %v1130 = vmul.f32 %v1011, %v1123
      %v1131 = vmul.f32 %v1016, %v1123
      %v1132 = vmul.f32 %v1019, %v1123
      %v1133 = vmul.f32 %v1024, %v1123
      %v1134 = vmul.f32 %v1027, %v1123
      %v1135 = vmul.f32 %v1032, %v1123
      %v1136 = vmul.f32 %v1035, %v1123
      %v1137 = vmul.f32 %v1040, %v1123
      %v1138 = vmul.f32 %v1043, %v1123
      %v1139 = vmul.f32 %v1048, %v1123
      %v1140 = vmul.f32 %v1051, %v1123
      %v1141 = vmul.f32 %v1056, %v1123
      %v1142 = vmul.f32 %v1059, %v1123
      %v1143 = vmul.f32 %v1064, %v1123
      %v1144 = vmul.f32 %v1067, %v1123
      %v1145 = vmul.f32 %v1072, %v1123
      %v1146 = vmul.f32 %v1075, %v1123
      %v1147 = vmul.f32 %v1080, %v1123
      %v1148 = vmul.f32 %v1083, %v1123
      %v1149 = vmul.f32 %v1088, %v1123
      %v1150 = vmul.f32 %v1091, %v1123
      %v1151 = vmul.f32 %v1096, %v1123
      %v1152 = vmul.f32 %v1099, %v1123
      %v1153 = vmul.f32 %v1104, %v1123
      %v1154 = vmul.f32 %v1107, %v1123
      %v1155 = vmul.f32 %v1112, %v1123
      %v1156 = vmul.f32 %v1115, %v1123
      %v1157 = vld [vmem:[%s8] sm:$0x1]
      %v1159 = vlaneseq
      %v1160 = vshrl.u32 %v1159, 7
      %v1161 = vsub.s32 0, %v1160
      %v1162 = vrot.slane %v1157, %v1161
      %v1164 = vadd.f32 %v1125, %v1162
      %v1165 = vadd.f32 %v1126, %v1162
      %v1166 = vadd.f32 %v1127, %v1162
      %v1167 = vadd.f32 %v1128, %v1162
      %v1168 = vadd.f32 %v1129, %v1162
      %v1169 = vadd.f32 %v1130, %v1162
      %v1170 = vadd.f32 %v1131, %v1162
      %v1171 = vadd.f32 %v1132, %v1162
      %v1172 = vadd.f32 %v1133, %v1162
      %v1173 = vadd.f32 %v1134, %v1162
      %v1174 = vadd.f32 %v1135, %v1162
      %v1175 = vadd.f32 %v1136, %v1162
      %v1176 = vadd.f32 %v1137, %v1162
      %v1177 = vadd.f32 %v1138, %v1162
      %v1178 = vadd.f32 %v1139, %v1162
      %v1179 = vadd.f32 %v1140, %v1162
      %v1180 = vadd.f32 %v1141, %v1162
      %v1181 = vadd.f32 %v1142, %v1162
      %v1182 = vadd.f32 %v1143, %v1162
      %v1183 = vadd.f32 %v1144, %v1162
      %v1184 = vadd.f32 %v1145, %v1162
      %v1185 = vadd.f32 %v1146, %v1162
      %v1186 = vadd.f32 %v1147, %v1162
      %v1187 = vadd.f32 %v1148, %v1162
      %v1188 = vadd.f32 %v1149, %v1162
      %v1189 = vadd.f32 %v1150, %v1162
      %v1190 = vadd.f32 %v1151, %v1162
      %v1191 = vadd.f32 %v1152, %v1162
      %v1192 = vadd.f32 %v1153, %v1162
      %v1193 = vadd.f32 %v1154, %v1162
      %v1194 = vadd.f32 %v1155, %v1162
      %v1195 = vadd.f32 %v1156, %v1162
      %v1196 = vmax.f32 %v1164, 0.0
      %v1197 = vmax.f32 %v1165, 0.0
      %v1198 = vmax.f32 %v1166, 0.0
      %v1199 = vmax.f32 %v1167, 0.0
      %v1200 = vmax.f32 %v1168, 0.0
      %v1201 = vmax.f32 %v1169, 0.0
      %v1202 = vmax.f32 %v1170, 0.0
      %v1203 = vmax.f32 %v1171, 0.0
      %v1204 = vmax.f32 %v1172, 0.0
      %v1205 = vmax.f32 %v1173, 0.0
      %v1206 = vmax.f32 %v1174, 0.0
      %v1207 = vmax.f32 %v1175, 0.0
      %v1208 = vmax.f32 %v1176, 0.0
      %v1209 = vmax.f32 %v1177, 0.0
      %v1210 = vmax.f32 %v1178, 0.0
      %v1211 = vmax.f32 %v1179, 0.0
      %v1212 = vmax.f32 %v1180, 0.0
      %v1213 = vmax.f32 %v1181, 0.0
      %v1214 = vmax.f32 %v1182, 0.0
      %v1215 = vmax.f32 %v1183, 0.0
      %v1216 = vmax.f32 %v1184, 0.0
      %v1217 = vmax.f32 %v1185, 0.0
      %v1218 = vmax.f32 %v1186, 0.0
      %v1219 = vmax.f32 %v1187, 0.0
      %v1220 = vmax.f32 %v1188, 0.0
      %v1221 = vmax.f32 %v1189, 0.0
      %v1222 = vmax.f32 %v1190, 0.0
      %v1223 = vmax.f32 %v1191, 0.0
      %v1224 = vmax.f32 %v1192, 0.0
      %v1225 = vmax.f32 %v1193, 0.0
      %v1226 = vmax.f32 %v1194, 0.0
      %v1227 = vmax.f32 %v1195, 0.0
      %v1228 = vpack.c.bf16 %v1197, %v1196
      %v1229 = vpack.c.bf16 %v1199, %v1198
      %v1230 = vpack.c.bf16 %v1201, %v1200
      %v1231 = vpack.c.bf16 %v1203, %v1202
      %v1232 = vpack.c.bf16 %v1205, %v1204
      %v1233 = vpack.c.bf16 %v1207, %v1206
      %v1234 = vpack.c.bf16 %v1209, %v1208
      %v1235 = vpack.c.bf16 %v1211, %v1210
      %v1236 = vpack.c.bf16 %v1213, %v1212
      %v1237 = vpack.c.bf16 %v1215, %v1214
      %v1238 = vpack.c.bf16 %v1217, %v1216
      %v1239 = vpack.c.bf16 %v1219, %v1218
      %v1240 = vpack.c.bf16 %v1221, %v1220
      %v1241 = vpack.c.bf16 %v1223, %v1222
      %v1242 = vpack.c.bf16 %v1225, %v1224
      %v1243 = vpack.c.bf16 %v1227, %v1226
      %v1244 = vld [vmem:[%s9] sm:$0xf]
      %v1245 = vld [vmem:[%s9 + $0x4] sm:$0xf]
      %v1246 = vld [vmem:[%s9 + $0x8] sm:$0xf]
      %v1247 = vld [vmem:[%s9 + $0xc] sm:$0xf]
      %v1248 = vld [vmem:[%s9 + $0x10] sm:$0xf]
      %v1249 = vld [vmem:[%s9 + $0x14] sm:$0xf]
      %v1250 = vld [vmem:[%s9 + $0x18] sm:$0xf]
      %v1251 = vld [vmem:[%s9 + $0x1c] sm:$0xf]
      %v1260 = vunpack.c.l.b16 %v1244
      %v1261 = vunpack.c.l.b16 %v1245
      %v1262 = vunpack.c.l.b16 %v1246
      %v1263 = vunpack.c.l.b16 %v1247
      %v1264 = vunpack.c.l.b16 %v1248
      %v1265 = vunpack.c.l.b16 %v1249
      %v1266 = vunpack.c.l.b16 %v1250
      %v1267 = vunpack.c.l.b16 %v1251
      %v1268 = vpack.c.b16 %v1261, %v1260
      %v1269 = vpack.c.b16 %v1263, %v1262
      %v1270 = vpack.c.b16 %v1265, %v1264
      %v1271 = vpack.c.b16 %v1267, %v1266
      %v1277 = vsel %vm908, %v1228, 0
      %v1280 = vsel %vm908, %v1229, 0
      %v1283 = vsel %vm908, %v1230, 0
      %v1286 = vsel %vm908, %v1231, 0
      %v1289 = vsel %vm908, %v1232, 0
      %v1292 = vsel %vm908, %v1233, 0
      %v1295 = vsel %vm908, %v1234, 0
      %v1298 = vsel %vm908, %v1235, 0
      %v1301 = vsel %vm908, %v1236, 0
      %v1304 = vsel %vm908, %v1237, 0
      %v1307 = vsel %vm908, %v1238, 0
      %v1310 = vsel %vm908, %v1239, 0
      %v1313 = vsel %vm908, %v1240, 0
      %v1316 = vsel %vm908, %v1241, 0
      %v1319 = vsel %vm908, %v1242, 0
      %v1322 = vsel %vm908, %v1243, 0
      %1324 = vmatprep.subr.bf16.mxu0 0
      %1325 = vmatpush1.bf16.msra.mxu0 %v1268
      %1326 = vmatprep.subr.bf16.mxu0 0
      %1327 = vmatpush1.bf16.msra.mxu0 %v1269
      %1328 = vmatprep.subr.bf16.mxu0 0
      %1329 = vmatpush1.bf16.msra.mxu0 %v1270
      %1330 = vmatprep.subr.bf16.mxu0 0
      %1331 = vmatpush1.bf16.msra.mxu0 %v1271
      %1332 = vmatprep.subr.bf16.mxu0 0
      %1333 = vmatpush1.bf16.msra.mxu0 0
      %1334 = vmatprep.subr.bf16.mxu0 0
      %1335 = vmatpush1.bf16.msra.mxu0 0
      %1336 = vmatprep.subr.bf16.mxu0 0
      %1337 = vmatpush1.bf16.msra.mxu0 0
      %1338 = vmatprep.subr.bf16.mxu0 0
      %1339 = vmatpush1.bf16.msra.mxu0 0
      %1340 = vmatprep.subr.bf16.mxu0 0
      %1341 = vmatpush1.bf16.msra.mxu0 0
      %1342 = vmatprep.subr.bf16.mxu0 0
      %1343 = vmatpush1.bf16.msra.mxu0 0
      %1344 = vmatprep.subr.bf16.mxu0 0
      %1345 = vmatpush1.bf16.msra.mxu0 0
      %1346 = vmatprep.subr.bf16.mxu0 0
      %1347 = vmatpush1.bf16.msra.mxu0 0
      %1348 = vmatprep.subr.bf16.mxu0 0
      %1349 = vmatpush1.bf16.msra.mxu0 0
      %1350 = vmatprep.subr.bf16.mxu0 0
      %1351 = vmatpush1.bf16.msra.mxu0 0
      %1352 = vmatprep.subr.bf16.mxu0 0
      %1353 = vmatpush1.bf16.msra.mxu0 0
      %1354 = vmatprep.subr.bf16.mxu0 0
      %1355 = vmatpush1.bf16.msra.mxu0 0
      %1356 = vmatprep.mubr.bf16.mxu0 0
      %1357 = vmatmul.mubr.bf16.gmra.mrb[0].mxu0 %v1277
      %v1358 = vpop.f32.mrb[0].mxu0
      %v1359 = vadd.f32 0.0, %v1358
      %v1360 = vpop.f32.mrb[0].mxu0
      %v1361 = vpop.f32.mrb[0].mxu0
      %v1362 = vadd.f32 0.0, %v1361
      %v1363 = vpop.f32.mrb[0].mxu0
      %1364 = vmatprep.mubr.bf16.mxu0 0
      %1365 = vmatmul.mubr.bf16.gmra.mrb[0].mxu0 %v1280
      %v1366 = vpop.f32.mrb[0].mxu0
      %v1367 = vadd.f32 0.0, %v1366
      %v1368 = vpop.f32.mrb[0].mxu0
      %v1369 = vpop.f32.mrb[0].mxu0
      %v1370 = vadd.f32 0.0, %v1369
      %v1371 = vpop.f32.mrb[0].mxu0
      %1372 = vmatprep.mubr.bf16.mxu0 0
      %1373 = vmatmul.mubr.bf16.gmra.mrb[0].mxu0 %v1283
      %v1374 = vpop.f32.mrb[0].mxu0
      %v1375 = vadd.f32 0.0, %v1374
      %v1376 = vpop.f32.mrb[0].mxu0
      %v1377 = vpop.f32.mrb[0].mxu0
      %v1378 = vadd.f32 0.0, %v1377
      %v1379 = vpop.f32.mrb[0].mxu0
      %1380 = vmatprep.mubr.bf16.mxu0 0
      %1381 = vmatmul.mubr.bf16.gmra.mrb[0].mxu0 %v1286
      %v1382 = vpop.f32.mrb[0].mxu0
      %v1383 = vadd.f32 0.0, %v1382
      %v1384 = vpop.f32.mrb[0].mxu0
      %v1385 = vpop.f32.mrb[0].mxu0
      %v1386 = vadd.f32 0.0, %v1385
      %v1387 = vpop.f32.mrb[0].mxu0
      %1388 = vmatprep.mubr.bf16.mxu0 0
      %1389 = vmatmul.mubr.bf16.gmra.mrb[0].mxu0 %v1289
      %v1390 = vpop.f32.mrb[0].mxu0
      %v1391 = vadd.f32 0.0, %v1390
      %v1392 = vpop.f32.mrb[0].mxu0
      %v1393 = vpop.f32.mrb[0].mxu0
      %v1394 = vadd.f32 0.0, %v1393
      %v1395 = vpop.f32.mrb[0].mxu0
      %1396 = vmatprep.mubr.bf16.mxu0 0
      %1397 = vmatmul.mubr.bf16.gmra.mrb[0].mxu0 %v1292
      %v1398 = vpop.f32.mrb[0].mxu0
      %v1399 = vadd.f32 0.0, %v1398
      %v1400 = vpop.f32.mrb[0].mxu0
      %v1401 = vpop.f32.mrb[0].mxu0
      %v1402 = vadd.f32 0.0, %v1401
      %v1403 = vpop.f32.mrb[0].mxu0
      %1404 = vmatprep.mubr.bf16.mxu0 0
      %1405 = vmatmul.mubr.bf16.gmra.mrb[0].mxu0 %v1295
      %v1406 = vpop.f32.mrb[0].mxu0
      %v1407 = vadd.f32 0.0, %v1406
      %v1408 = vpop.f32.mrb[0].mxu0
      %v1409 = vpop.f32.mrb[0].mxu0
      %v1410 = vadd.f32 0.0, %v1409
      %v1411 = vpop.f32.mrb[0].mxu0
      %1412 = vmatprep.mubr.bf16.mxu0 0
      %1413 = vmatmul.mubr.bf16.gmra.mrb[0].mxu0 %v1298
      %v1414 = vpop.f32.mrb[0].mxu0
      %v1415 = vadd.f32 0.0, %v1414
      %v1416 = vpop.f32.mrb[0].mxu0
      %v1417 = vpop.f32.mrb[0].mxu0
      %v1418 = vadd.f32 0.0, %v1417
      %v1419 = vpop.f32.mrb[0].mxu0
      %1420 = vmatprep.mubr.bf16.mxu0 0
      %1421 = vmatmul.mubr.bf16.gmra.mrb[0].mxu0 %v1301
      %v1422 = vpop.f32.mrb[0].mxu0
      %v1423 = vadd.f32 0.0, %v1422
      %v1424 = vpop.f32.mrb[0].mxu0
      %v1425 = vpop.f32.mrb[0].mxu0
      %v1426 = vadd.f32 0.0, %v1425
      %v1427 = vpop.f32.mrb[0].mxu0
      %1428 = vmatprep.mubr.bf16.mxu0 0
      %1429 = vmatmul.mubr.bf16.gmra.mrb[0].mxu0 %v1304
      %v1430 = vpop.f32.mrb[0].mxu0
      %v1431 = vadd.f32 0.0, %v1430
      %v1432 = vpop.f32.mrb[0].mxu0
      %v1433 = vpop.f32.mrb[0].mxu0
      %v1434 = vadd.f32 0.0, %v1433
      %v1435 = vpop.f32.mrb[0].mxu0
      %1436 = vmatprep.mubr.bf16.mxu0 0
      %1437 = vmatmul.mubr.bf16.gmra.mrb[0].mxu0 %v1307
      %v1438 = vpop.f32.mrb[0].mxu0
      %v1439 = vadd.f32 0.0, %v1438
      %v1440 = vpop.f32.mrb[0].mxu0
      %v1441 = vpop.f32.mrb[0].mxu0
      %v1442 = vadd.f32 0.0, %v1441
      %v1443 = vpop.f32.mrb[0].mxu0
      %1444 = vmatprep.mubr.bf16.mxu0 0
      %1445 = vmatmul.mubr.bf16.gmra.mrb[0].mxu0 %v1310
      %v1446 = vpop.f32.mrb[0].mxu0
      %v1447 = vadd.f32 0.0, %v1446
      %v1448 = vpop.f32.mrb[0].mxu0
      %v1449 = vpop.f32.mrb[0].mxu0
      %v1450 = vadd.f32 0.0, %v1449
      %v1451 = vpop.f32.mrb[0].mxu0
      %1452 = vmatprep.mubr.bf16.mxu0 0
      %1453 = vmatmul.mubr.bf16.gmra.mrb[0].mxu0 %v1313
      %v1454 = vpop.f32.mrb[0].mxu0
      %v1455 = vadd.f32 0.0, %v1454
      %v1456 = vpop.f32.mrb[0].mxu0
      %v1457 = vpop.f32.mrb[0].mxu0
      %v1458 = vadd.f32 0.0, %v1457
      %v1459 = vpop.f32.mrb[0].mxu0
      %1460 = vmatprep.mubr.bf16.mxu0 0
      %1461 = vmatmul.mubr.bf16.gmra.mrb[0].mxu0 %v1316
      %v1462 = vpop.f32.mrb[0].mxu0
      %v1463 = vadd.f32 0.0, %v1462
      %v1464 = vpop.f32.mrb[0].mxu0
      %v1465 = vpop.f32.mrb[0].mxu0
      %v1466 = vadd.f32 0.0, %v1465
      %v1467 = vpop.f32.mrb[0].mxu0
      %1468 = vmatprep.mubr.bf16.mxu0 0
      %1469 = vmatmul.mubr.bf16.gmra.mrb[0].mxu0 %v1319
      %v1470 = vpop.f32.mrb[0].mxu0
      %v1471 = vadd.f32 0.0, %v1470
      %v1472 = vpop.f32.mrb[0].mxu0
      %v1473 = vpop.f32.mrb[0].mxu0
      %v1474 = vadd.f32 0.0, %v1473
      %v1475 = vpop.f32.mrb[0].mxu0
      %1476 = vmatprep.mubr.bf16.mxu0 0
      %1477 = vmatmul.mubr.bf16.gmra.mrb[0].mxu0 %v1322
      %v1478 = vpop.f32.mrb[0].mxu0
      %v1479 = vadd.f32 0.0, %v1478
      %v1480 = vpop.f32.mrb[0].mxu0
      %v1481 = vpop.f32.mrb[0].mxu0
      %v1482 = vadd.f32 0.0, %v1481
      %v1483 = vpop.f32.mrb[0].mxu0
      %1484 = vdwg.mxu0
      %v1485 = vld [vmem:[%s10] sm:$0x1]
      %v1487 = vlaneseq
      %v1488 = vshrl.u32 %v1487, 7
      %v1489 = vsub.s32 0, %v1488
      %v1490 = vrot.slane %v1485, %v1489
      %v1492 = vmul.f32 %v1359, %v1490
      %v1493 = vmul.f32 %v1362, %v1490
      %v1494 = vmul.f32 %v1367, %v1490
      %v1495 = vmul.f32 %v1370, %v1490
      %v1496 = vmul.f32 %v1375, %v1490
      %v1497 = vmul.f32 %v1378, %v1490
      %v1498 = vmul.f32 %v1383, %v1490
      %v1499 = vmul.f32 %v1386, %v1490
      %v1500 = vmul.f32 %v1391, %v1490
      %v1501 = vmul.f32 %v1394, %v1490
      %v1502 = vmul.f32 %v1399, %v1490
      %v1503 = vmul.f32 %v1402, %v1490
      %v1504 = vmul.f32 %v1407, %v1490
      %v1505 = vmul.f32 %v1410, %v1490
      %v1506 = vmul.f32 %v1415, %v1490
      %v1507 = vmul.f32 %v1418, %v1490
      %v1508 = vmul.f32 %v1423, %v1490
      %v1509 = vmul.f32 %v1426, %v1490
      %v1510 = vmul.f32 %v1431, %v1490
      %v1511 = vmul.f32 %v1434, %v1490
      %v1512 = vmul.f32 %v1439, %v1490
      %v1513 = vmul.f32 %v1442, %v1490
      %v1514 = vmul.f32 %v1447, %v1490
      %v1515 = vmul.f32 %v1450, %v1490
      %v1516 = vmul.f32 %v1455, %v1490
      %v1517 = vmul.f32 %v1458, %v1490
      %v1518 = vmul.f32 %v1463, %v1490
      %v1519 = vmul.f32 %v1466, %v1490
      %v1520 = vmul.f32 %v1471, %v1490
      %v1521 = vmul.f32 %v1474, %v1490
      %v1522 = vmul.f32 %v1479, %v1490
      %v1523 = vmul.f32 %v1482, %v1490
      %v1524 = vld [vmem:[%s11] sm:$0x1]
      %v1526 = vlaneseq
      %v1527 = vshrl.u32 %v1526, 7
      %v1528 = vsub.s32 0, %v1527
      %v1529 = vrot.slane %v1524, %v1528
      %v1531 = vadd.f32 %v1492, %v1529
      %v1532 = vadd.f32 %v1493, %v1529
      %v1533 = vadd.f32 %v1494, %v1529
      %v1534 = vadd.f32 %v1495, %v1529
      %v1535 = vadd.f32 %v1496, %v1529
      %v1536 = vadd.f32 %v1497, %v1529
      %v1537 = vadd.f32 %v1498, %v1529
      %v1538 = vadd.f32 %v1499, %v1529
      %v1539 = vadd.f32 %v1500, %v1529
      %v1540 = vadd.f32 %v1501, %v1529
      %v1541 = vadd.f32 %v1502, %v1529
      %v1542 = vadd.f32 %v1503, %v1529
      %v1543 = vadd.f32 %v1504, %v1529
      %v1544 = vadd.f32 %v1505, %v1529
      %v1545 = vadd.f32 %v1506, %v1529
      %v1546 = vadd.f32 %v1507, %v1529
      %v1547 = vadd.f32 %v1508, %v1529
      %v1548 = vadd.f32 %v1509, %v1529
      %v1549 = vadd.f32 %v1510, %v1529
      %v1550 = vadd.f32 %v1511, %v1529
      %v1551 = vadd.f32 %v1512, %v1529
      %v1552 = vadd.f32 %v1513, %v1529
      %v1553 = vadd.f32 %v1514, %v1529
      %v1554 = vadd.f32 %v1515, %v1529
      %v1555 = vadd.f32 %v1516, %v1529
      %v1556 = vadd.f32 %v1517, %v1529
      %v1557 = vadd.f32 %v1518, %v1529
      %v1558 = vadd.f32 %v1519, %v1529
      %v1559 = vadd.f32 %v1520, %v1529
      %v1560 = vadd.f32 %v1521, %v1529
      %v1561 = vadd.f32 %v1522, %v1529
      %v1562 = vadd.f32 %v1523, %v1529
      %v1563 = vmax.f32 %v1531, 0.0
      %v1564 = vmax.f32 %v1532, 0.0
      %v1565 = vmax.f32 %v1533, 0.0
      %v1566 = vmax.f32 %v1534, 0.0
      %v1567 = vmax.f32 %v1535, 0.0
      %v1568 = vmax.f32 %v1536, 0.0
      %v1569 = vmax.f32 %v1537, 0.0
      %v1570 = vmax.f32 %v1538, 0.0
      %v1571 = vmax.f32 %v1539, 0.0
      %v1572 = vmax.f32 %v1540, 0.0
      %v1573 = vmax.f32 %v1541, 0.0
      %v1574 = vmax.f32 %v1542, 0.0
      %v1575 = vmax.f32 %v1543, 0.0
      %v1576 = vmax.f32 %v1544, 0.0
      %v1577 = vmax.f32 %v1545, 0.0
      %v1578 = vmax.f32 %v1546, 0.0
      %v1579 = vmax.f32 %v1547, 0.0
      %v1580 = vmax.f32 %v1548, 0.0
      %v1581 = vmax.f32 %v1549, 0.0
      %v1582 = vmax.f32 %v1550, 0.0
      %v1583 = vmax.f32 %v1551, 0.0
      %v1584 = vmax.f32 %v1552, 0.0
      %v1585 = vmax.f32 %v1553, 0.0
      %v1586 = vmax.f32 %v1554, 0.0
      %v1587 = vmax.f32 %v1555, 0.0
      %v1588 = vmax.f32 %v1556, 0.0
      %v1589 = vmax.f32 %v1557, 0.0
      %v1590 = vmax.f32 %v1558, 0.0
      %v1591 = vmax.f32 %v1559, 0.0
      %v1592 = vmax.f32 %v1560, 0.0
      %v1593 = vmax.f32 %v1561, 0.0
      %v1594 = vmax.f32 %v1562, 0.0
      %v1595 = vlaneseq
      %v1596 = vshrl.u32 %v1595, 7
      %v1597 = vsub.s32 0, %v1596
      %v1598 = vrot.slane %v441, %v1597
      %1600 = vbcast.lane.b32.xlu0 %v1598, 256
      %v1601 = vpop.permute.xlu0 %1600
      %s1603 = sor.u32 256, 8
      %1604 = vbcast.lane.b32.xlu0 %v1598, %s1603
      %v1605 = vpop.permute.xlu0 %1604
      %v1606 = vlaneseq
      %v1607 = vshrl.u32 %v1606, 7
      %v1608 = vsub.s32 1, %v1607
      %v1609 = vrot.slane %v441, %v1608
      %1611 = vbcast.lane.b32.xlu0 %v1609, 256
      %v1612 = vpop.permute.xlu0 %1611
      %s1614 = sor.u32 256, 8
      %1615 = vbcast.lane.b32.xlu0 %v1609, %s1614
      %v1616 = vpop.permute.xlu0 %1615
      %v1617 = vlaneseq
      %v1618 = vshrl.u32 %v1617, 7
      %v1619 = vsub.s32 2, %v1618
      %v1620 = vrot.slane %v441, %v1619
      %1622 = vbcast.lane.b32.xlu0 %v1620, 256
      %v1623 = vpop.permute.xlu0 %1622
      %s1625 = sor.u32 256, 8
      %1626 = vbcast.lane.b32.xlu0 %v1620, %s1625
      %v1627 = vpop.permute.xlu0 %1626
      %v1628 = vlaneseq
      %v1629 = vshrl.u32 %v1628, 7
      %v1630 = vsub.s32 3, %v1629
      %v1631 = vrot.slane %v441, %v1630
      %1633 = vbcast.lane.b32.xlu0 %v1631, 256
      %v1634 = vpop.permute.xlu0 %1633
      %s1636 = sor.u32 256, 8
      %1637 = vbcast.lane.b32.xlu0 %v1631, %s1636
      %v1638 = vpop.permute.xlu0 %1637
      %v1639 = vlaneseq
      %v1640 = vshrl.u32 %v1639, 7
      %v1641 = vsub.s32 4, %v1640
      %v1642 = vrot.slane %v441, %v1641
      %1644 = vbcast.lane.b32.xlu0 %v1642, 256
      %v1645 = vpop.permute.xlu0 %1644
      %s1647 = sor.u32 256, 8
      %1648 = vbcast.lane.b32.xlu0 %v1642, %s1647
      %v1649 = vpop.permute.xlu0 %1648
      %v1650 = vlaneseq
      %v1651 = vshrl.u32 %v1650, 7
      %v1652 = vsub.s32 5, %v1651
      %v1653 = vrot.slane %v441, %v1652
      %1655 = vbcast.lane.b32.xlu0 %v1653, 256
      %v1656 = vpop.permute.xlu0 %1655
      %s1658 = sor.u32 256, 8
      %1659 = vbcast.lane.b32.xlu0 %v1653, %s1658
      %v1660 = vpop.permute.xlu0 %1659
      %v1661 = vlaneseq
      %v1662 = vshrl.u32 %v1661, 7
      %v1663 = vsub.s32 6, %v1662
      %v1664 = vrot.slane %v441, %v1663
      %1666 = vbcast.lane.b32.xlu0 %v1664, 256
      %v1667 = vpop.permute.xlu0 %1666
      %s1669 = sor.u32 256, 8
      %1670 = vbcast.lane.b32.xlu0 %v1664, %s1669
      %v1671 = vpop.permute.xlu0 %1670
      %v1672 = vlaneseq
      %v1673 = vshrl.u32 %v1672, 7
      %v1674 = vsub.s32 7, %v1673
      %v1675 = vrot.slane %v441, %v1674
      %1677 = vbcast.lane.b32.xlu0 %v1675, 256
      %v1678 = vpop.permute.xlu0 %1677
      %s1680 = sor.u32 256, 8
      %1681 = vbcast.lane.b32.xlu0 %v1675, %s1680
      %v1682 = vpop.permute.xlu0 %1681
      %v1683 = vlaneseq
      %v1684 = vshrl.u32 %v1683, 7
      %v1685 = vsub.s32 0, %v1684
      %v1686 = vrot.slane %v442, %v1685
      %1688 = vbcast.lane.b32.xlu0 %v1686, 256
      %v1689 = vpop.permute.xlu0 %1688
      %s1691 = sor.u32 256, 8
      %1692 = vbcast.lane.b32.xlu0 %v1686, %s1691
      %v1693 = vpop.permute.xlu0 %1692
      %v1694 = vlaneseq
      %v1695 = vshrl.u32 %v1694, 7
      %v1696 = vsub.s32 1, %v1695
      %v1697 = vrot.slane %v442, %v1696
      %1699 = vbcast.lane.b32.xlu0 %v1697, 256
      %v1700 = vpop.permute.xlu0 %1699
      %s1702 = sor.u32 256, 8
      %1703 = vbcast.lane.b32.xlu0 %v1697, %s1702
      %v1704 = vpop.permute.xlu0 %1703
      %v1705 = vlaneseq
      %v1706 = vshrl.u32 %v1705, 7
      %v1707 = vsub.s32 2, %v1706
      %v1708 = vrot.slane %v442, %v1707
      %1710 = vbcast.lane.b32.xlu0 %v1708, 256
      %v1711 = vpop.permute.xlu0 %1710
      %s1713 = sor.u32 256, 8
      %1714 = vbcast.lane.b32.xlu0 %v1708, %s1713
      %v1715 = vpop.permute.xlu0 %1714
      %v1716 = vlaneseq
      %v1717 = vshrl.u32 %v1716, 7
      %v1718 = vsub.s32 3, %v1717
      %v1719 = vrot.slane %v442, %v1718
      %1721 = vbcast.lane.b32.xlu0 %v1719, 256
      %v1722 = vpop.permute.xlu0 %1721
      %s1724 = sor.u32 256, 8
      %1725 = vbcast.lane.b32.xlu0 %v1719, %s1724
      %v1726 = vpop.permute.xlu0 %1725
      %v1727 = vlaneseq
      %v1728 = vshrl.u32 %v1727, 7
      %v1729 = vsub.s32 4, %v1728
      %v1730 = vrot.slane %v442, %v1729
      %1732 = vbcast.lane.b32.xlu0 %v1730, 256
      %v1733 = vpop.permute.xlu0 %1732
      %s1735 = sor.u32 256, 8
      %1736 = vbcast.lane.b32.xlu0 %v1730, %s1735
      %v1737 = vpop.permute.xlu0 %1736
      %v1738 = vlaneseq
      %v1739 = vshrl.u32 %v1738, 7
      %v1740 = vsub.s32 5, %v1739
      %v1741 = vrot.slane %v442, %v1740
      %1743 = vbcast.lane.b32.xlu0 %v1741, 256
      %v1744 = vpop.permute.xlu0 %1743
      %s1746 = sor.u32 256, 8
      %1747 = vbcast.lane.b32.xlu0 %v1741, %s1746
      %v1748 = vpop.permute.xlu0 %1747
      %v1749 = vlaneseq
      %v1750 = vshrl.u32 %v1749, 7
      %v1751 = vsub.s32 6, %v1750
      %v1752 = vrot.slane %v442, %v1751
      %1754 = vbcast.lane.b32.xlu0 %v1752, 256
      %v1755 = vpop.permute.xlu0 %1754
      %s1757 = sor.u32 256, 8
      %1758 = vbcast.lane.b32.xlu0 %v1752, %s1757
      %v1759 = vpop.permute.xlu0 %1758
      %v1760 = vlaneseq
      %v1761 = vshrl.u32 %v1760, 7
      %v1762 = vsub.s32 7, %v1761
      %v1763 = vrot.slane %v442, %v1762
      %1765 = vbcast.lane.b32.xlu0 %v1763, 256
      %v1766 = vpop.permute.xlu0 %1765
      %s1768 = sor.u32 256, 8
      %1769 = vbcast.lane.b32.xlu0 %v1763, %s1768
      %v1770 = vpop.permute.xlu0 %1769
      %v1771 = vsub.f32 %v1601, 1.0
      %v1772 = vsub.f32 %v1605, 1.0
      %v1773 = vsub.f32 %v1612, 1.0
      %v1774 = vsub.f32 %v1616, 1.0
      %v1775 = vsub.f32 %v1623, 1.0
      %v1776 = vsub.f32 %v1627, 1.0
      %v1777 = vsub.f32 %v1634, 1.0
      %v1778 = vsub.f32 %v1638, 1.0
      %v1779 = vsub.f32 %v1645, 1.0
      %v1780 = vsub.f32 %v1649, 1.0
      %v1781 = vsub.f32 %v1656, 1.0
      %v1782 = vsub.f32 %v1660, 1.0
      %v1783 = vsub.f32 %v1667, 1.0
      %v1784 = vsub.f32 %v1671, 1.0
      %v1785 = vsub.f32 %v1678, 1.0
      %v1786 = vsub.f32 %v1682, 1.0
      %v1787 = vsub.f32 %v1689, 1.0
      %v1788 = vsub.f32 %v1693, 1.0
      %v1789 = vsub.f32 %v1700, 1.0
      %v1790 = vsub.f32 %v1704, 1.0
      %v1791 = vsub.f32 %v1711, 1.0
      %v1792 = vsub.f32 %v1715, 1.0
      %v1793 = vsub.f32 %v1722, 1.0
      %v1794 = vsub.f32 %v1726, 1.0
      %v1795 = vsub.f32 %v1733, 1.0
      %v1796 = vsub.f32 %v1737, 1.0
      %v1797 = vsub.f32 %v1744, 1.0
      %v1798 = vsub.f32 %v1748, 1.0
      %v1799 = vsub.f32 %v1755, 1.0
      %v1800 = vsub.f32 %v1759, 1.0
      %v1801 = vsub.f32 %v1766, 1.0
      %v1802 = vsub.f32 %v1770, 1.0
      %v1803 = vmul.f32 %v1771, 1e+30
      %v1804 = vmul.f32 %v1772, 1e+30
      %v1805 = vmul.f32 %v1773, 1e+30
      %v1806 = vmul.f32 %v1774, 1e+30
      %v1807 = vmul.f32 %v1775, 1e+30
      %v1808 = vmul.f32 %v1776, 1e+30
      %v1809 = vmul.f32 %v1777, 1e+30
      %v1810 = vmul.f32 %v1778, 1e+30
      %v1811 = vmul.f32 %v1779, 1e+30
      %v1812 = vmul.f32 %v1780, 1e+30
      %v1813 = vmul.f32 %v1781, 1e+30
      %v1814 = vmul.f32 %v1782, 1e+30
      %v1815 = vmul.f32 %v1783, 1e+30
      %v1816 = vmul.f32 %v1784, 1e+30
      %v1817 = vmul.f32 %v1785, 1e+30
      %v1818 = vmul.f32 %v1786, 1e+30
      %v1819 = vmul.f32 %v1787, 1e+30
      %v1820 = vmul.f32 %v1788, 1e+30
      %v1821 = vmul.f32 %v1789, 1e+30
      %v1822 = vmul.f32 %v1790, 1e+30
      %v1823 = vmul.f32 %v1791, 1e+30
      %v1824 = vmul.f32 %v1792, 1e+30
      %v1825 = vmul.f32 %v1793, 1e+30
      %v1826 = vmul.f32 %v1794, 1e+30
      %v1827 = vmul.f32 %v1795, 1e+30
      %v1828 = vmul.f32 %v1796, 1e+30
      %v1829 = vmul.f32 %v1797, 1e+30
      %v1830 = vmul.f32 %v1798, 1e+30
      %v1831 = vmul.f32 %v1799, 1e+30
      %v1832 = vmul.f32 %v1800, 1e+30
      %v1833 = vmul.f32 %v1801, 1e+30
      %v1834 = vmul.f32 %v1802, 1e+30
      %v1835 = vadd.f32 %v1563, %v1803
      %v1836 = vadd.f32 %v1564, %v1804
      %v1837 = vadd.f32 %v1565, %v1805
      %v1838 = vadd.f32 %v1566, %v1806
      %v1839 = vadd.f32 %v1567, %v1807
      %v1840 = vadd.f32 %v1568, %v1808
      %v1841 = vadd.f32 %v1569, %v1809
      %v1842 = vadd.f32 %v1570, %v1810
      %v1843 = vadd.f32 %v1571, %v1811
      %v1844 = vadd.f32 %v1572, %v1812
      %v1845 = vadd.f32 %v1573, %v1813
      %v1846 = vadd.f32 %v1574, %v1814
      %v1847 = vadd.f32 %v1575, %v1815
      %v1848 = vadd.f32 %v1576, %v1816
      %v1849 = vadd.f32 %v1577, %v1817
      %v1850 = vadd.f32 %v1578, %v1818
      %v1851 = vadd.f32 %v1579, %v1819
      %v1852 = vadd.f32 %v1580, %v1820
      %v1853 = vadd.f32 %v1581, %v1821
      %v1854 = vadd.f32 %v1582, %v1822
      %v1855 = vadd.f32 %v1583, %v1823
      %v1856 = vadd.f32 %v1584, %v1824
      %v1857 = vadd.f32 %v1585, %v1825
      %v1858 = vadd.f32 %v1586, %v1826
      %v1859 = vadd.f32 %v1587, %v1827
      %v1860 = vadd.f32 %v1588, %v1828
      %v1861 = vadd.f32 %v1589, %v1829
      %v1862 = vadd.f32 %v1590, %v1830
      %v1863 = vadd.f32 %v1591, %v1831
      %v1864 = vadd.f32 %v1592, %v1832
      %v1865 = vadd.f32 %v1593, %v1833
      %v1866 = vadd.f32 %v1594, %v1834
      %v1867 = vsel %vm908, %v1835, -inf
      %v1868 = vsel %vm908, %v1836, -inf
      %v1869 = vmax.f32 %v1867, %v1868
      %v1870 = vrot.slane %v1869, 4
      %v1871 = vmax.f32 %v1869, %v1870
      %v1872 = vrot.slane %v1871, 2
      %v1873 = vmax.f32 %v1871, %v1872
      %v1874 = vrot.slane %v1873, 1
      %v1875 = vmax.f32 %v1873, %v1874
      %v1876 = vsel %vm908, %v1837, -inf
      %v1877 = vsel %vm908, %v1838, -inf
      %v1878 = vmax.f32 %v1876, %v1877
      %v1879 = vrot.slane %v1878, 4
      %v1880 = vmax.f32 %v1878, %v1879
      %v1881 = vrot.slane %v1880, 2
      %v1882 = vmax.f32 %v1880, %v1881
      %v1883 = vrot.slane %v1882, 1
      %v1884 = vmax.f32 %v1882, %v1883
      %v1885 = vsel %vm908, %v1839, -inf
      %v1886 = vsel %vm908, %v1840, -inf
      %v1887 = vmax.f32 %v1885, %v1886
      %v1888 = vrot.slane %v1887, 4
      %v1889 = vmax.f32 %v1887, %v1888
      %v1890 = vrot.slane %v1889, 2
      %v1891 = vmax.f32 %v1889, %v1890
      %v1892 = vrot.slane %v1891, 1
      %v1893 = vmax.f32 %v1891, %v1892
      %v1894 = vsel %vm908, %v1841, -inf
      %v1895 = vsel %vm908, %v1842, -inf
      %v1896 = vmax.f32 %v1894, %v1895
      %v1897 = vrot.slane %v1896, 4
      %v1898 = vmax.f32 %v1896, %v1897
      %v1899 = vrot.slane %v1898, 2
      %v1900 = vmax.f32 %v1898, %v1899
      %v1901 = vrot.slane %v1900, 1
      %v1902 = vmax.f32 %v1900, %v1901
      %v1903 = vsel %vm908, %v1843, -inf
      %v1904 = vsel %vm908, %v1844, -inf
      %v1905 = vmax.f32 %v1903, %v1904
      %v1906 = vrot.slane %v1905, 4
      %v1907 = vmax.f32 %v1905, %v1906
      %v1908 = vrot.slane %v1907, 2
      %v1909 = vmax.f32 %v1907, %v1908
      %v1910 = vrot.slane %v1909, 1
      %v1911 = vmax.f32 %v1909, %v1910
      %v1912 = vsel %vm908, %v1845, -inf
      %v1913 = vsel %vm908, %v1846, -inf
      %v1914 = vmax.f32 %v1912, %v1913
      %v1915 = vrot.slane %v1914, 4
      %v1916 = vmax.f32 %v1914, %v1915
      %v1917 = vrot.slane %v1916, 2
      %v1918 = vmax.f32 %v1916, %v1917
      %v1919 = vrot.slane %v1918, 1
      %v1920 = vmax.f32 %v1918, %v1919
      %v1921 = vsel %vm908, %v1847, -inf
      %v1922 = vsel %vm908, %v1848, -inf
      %v1923 = vmax.f32 %v1921, %v1922
      %v1924 = vrot.slane %v1923, 4
      %v1925 = vmax.f32 %v1923, %v1924
      %v1926 = vrot.slane %v1925, 2
      %v1927 = vmax.f32 %v1925, %v1926
      %v1928 = vrot.slane %v1927, 1
      %v1929 = vmax.f32 %v1927, %v1928
      %v1930 = vsel %vm908, %v1849, -inf
      %v1931 = vsel %vm908, %v1850, -inf
      %v1932 = vmax.f32 %v1930, %v1931
      %v1933 = vrot.slane %v1932, 4
      %v1934 = vmax.f32 %v1932, %v1933
      %v1935 = vrot.slane %v1934, 2
      %v1936 = vmax.f32 %v1934, %v1935
      %v1937 = vrot.slane %v1936, 1
      %v1938 = vmax.f32 %v1936, %v1937
      %v1939 = vsel %vm908, %v1851, -inf
      %v1940 = vsel %vm908, %v1852, -inf
      %v1941 = vmax.f32 %v1939, %v1940
      %v1942 = vrot.slane %v1941, 4
      %v1943 = vmax.f32 %v1941, %v1942
      %v1944 = vrot.slane %v1943, 2
      %v1945 = vmax.f32 %v1943, %v1944
      %v1946 = vrot.slane %v1945, 1
      %v1947 = vmax.f32 %v1945, %v1946
      %v1948 = vsel %vm908, %v1853, -inf
      %v1949 = vsel %vm908, %v1854, -inf
      %v1950 = vmax.f32 %v1948, %v1949
      %v1951 = vrot.slane %v1950, 4
      %v1952 = vmax.f32 %v1950, %v1951
      %v1953 = vrot.slane %v1952, 2
      %v1954 = vmax.f32 %v1952, %v1953
      %v1955 = vrot.slane %v1954, 1
      %v1956 = vmax.f32 %v1954, %v1955
      %v1957 = vsel %vm908, %v1855, -inf
      %v1958 = vsel %vm908, %v1856, -inf
      %v1959 = vmax.f32 %v1957, %v1958
      %v1960 = vrot.slane %v1959, 4
      %v1961 = vmax.f32 %v1959, %v1960
      %v1962 = vrot.slane %v1961, 2
      %v1963 = vmax.f32 %v1961, %v1962
      %v1964 = vrot.slane %v1963, 1
      %v1965 = vmax.f32 %v1963, %v1964
      %v1966 = vsel %vm908, %v1857, -inf
      %v1967 = vsel %vm908, %v1858, -inf
      %v1968 = vmax.f32 %v1966, %v1967
      %v1969 = vrot.slane %v1968, 4
      %v1970 = vmax.f32 %v1968, %v1969
      %v1971 = vrot.slane %v1970, 2
      %v1972 = vmax.f32 %v1970, %v1971
      %v1973 = vrot.slane %v1972, 1
      %v1974 = vmax.f32 %v1972, %v1973
      %v1975 = vsel %vm908, %v1859, -inf
      %v1976 = vsel %vm908, %v1860, -inf
      %v1977 = vmax.f32 %v1975, %v1976
      %v1978 = vrot.slane %v1977, 4
      %v1979 = vmax.f32 %v1977, %v1978
      %v1980 = vrot.slane %v1979, 2
      %v1981 = vmax.f32 %v1979, %v1980
      %v1982 = vrot.slane %v1981, 1
      %v1983 = vmax.f32 %v1981, %v1982
      %v1984 = vsel %vm908, %v1861, -inf
      %v1985 = vsel %vm908, %v1862, -inf
      %v1986 = vmax.f32 %v1984, %v1985
      %v1987 = vrot.slane %v1986, 4
      %v1988 = vmax.f32 %v1986, %v1987
      %v1989 = vrot.slane %v1988, 2
      %v1990 = vmax.f32 %v1988, %v1989
      %v1991 = vrot.slane %v1990, 1
      %v1992 = vmax.f32 %v1990, %v1991
      %v1993 = vsel %vm908, %v1863, -inf
      %v1994 = vsel %vm908, %v1864, -inf
      %v1995 = vmax.f32 %v1993, %v1994
      %v1996 = vrot.slane %v1995, 4
      %v1997 = vmax.f32 %v1995, %v1996
      %v1998 = vrot.slane %v1997, 2
      %v1999 = vmax.f32 %v1997, %v1998
      %v2000 = vrot.slane %v1999, 1
      %v2001 = vmax.f32 %v1999, %v2000
      %v2002 = vsel %vm908, %v1865, -inf
      %v2003 = vsel %vm908, %v1866, -inf
      %v2004 = vmax.f32 %v2002, %v2003
      %v2005 = vrot.slane %v2004, 4
      %v2006 = vmax.f32 %v2004, %v2005
      %v2007 = vrot.slane %v2006, 2
      %v2008 = vmax.f32 %v2006, %v2007
      %v2009 = vrot.slane %v2008, 1
      %v2010 = vmax.f32 %v2008, %v2009
      %vm2011 = vcmask 130048
      %v2012 = vsel %vm2011, %v441, 0.0
      %2013 = vadd.xlane.f32.xlu0 %v2012
      %v2014 = vpop.xlane.xlu0 %2013
      %v2015 = vsel %vm2011, %v442, 0.0
      %2016 = vadd.xlane.f32.xlu0 %v2015
      %v2017 = vpop.xlane.xlu0 %2016
      %v2018 = vmin.f32 %v2014, 1.0
      %v2019 = vmin.f32 %v2017, 1.0
      %v2022 = vrot.slane %v2018, 1
      %v2023 = vrot.slane %v2018, 2
      %v2024 = vrot.slane %v2018, 3
      %v2025 = vrot.slane %v2018, 4
      %v2026 = vrot.slane %v2018, 5
      %v2027 = vrot.slane %v2018, 6
      %v2028 = vrot.slane %v2018, 7
      %v2029 = vrot.slane %v2019, 1
      %v2030 = vrot.slane %v2019, 2
      %v2031 = vrot.slane %v2019, 3
      %v2032 = vrot.slane %v2019, 4
      %v2033 = vrot.slane %v2019, 5
      %v2034 = vrot.slane %v2019, 6
      %v2035 = vrot.slane %v2019, 7
      %v2052 = vmul.f32 %v1875, %v2018
      %v2053 = vmul.f32 %v1884, %v2022
      %v2054 = vmul.f32 %v1893, %v2023
      %v2055 = vmul.f32 %v1902, %v2024
      %v2056 = vmul.f32 %v1911, %v2025
      %v2057 = vmul.f32 %v1920, %v2026
      %v2058 = vmul.f32 %v1929, %v2027
      %v2059 = vmul.f32 %v1938, %v2028
      %v2060 = vmul.f32 %v1947, %v2019
      %v2061 = vmul.f32 %v1956, %v2029
      %v2062 = vmul.f32 %v1965, %v2030
      %v2063 = vmul.f32 %v1974, %v2031
      %v2064 = vmul.f32 %v1983, %v2032
      %v2065 = vmul.f32 %v1992, %v2033
      %v2066 = vmul.f32 %v2001, %v2034
      %v2067 = vmul.f32 %v2010, %v2035
      %v2084 = vrot.slane %v2053, 7
      %vm2085 = vcmask 1041409
      %v2086 = vsel %vm2085, %v2084, %v2052
      %v2087 = vrot.slane %v2054, 6
      %vm2088 = vcmask 1042434
      %v2089 = vsel %vm2088, %v2087, %v2086
      %v2090 = vrot.slane %v2055, 5
      %vm2091 = vcmask 1043459
      %v2092 = vsel %vm2091, %v2090, %v2089
      %v2093 = vrot.slane %v2056, 4
      %vm2094 = vcmask 1044484
      %v2095 = vsel %vm2094, %v2093, %v2092
      %v2096 = vrot.slane %v2057, 3
      %vm2097 = vcmask 1045509
      %v2098 = vsel %vm2097, %v2096, %v2095
      %v2099 = vrot.slane %v2058, 2
      %vm2100 = vcmask 1046534
      %v2101 = vsel %vm2100, %v2099, %v2098
      %v2102 = vrot.slane %v2059, 1
      %vm2103 = vcmask 1047559
      %v2104 = vsel %vm2103, %v2102, %v2101
      %v2105 = vrot.slane %v2061, 7
      %v2106 = vsel %vm2085, %v2105, %v2060
      %v2107 = vrot.slane %v2062, 6
      %v2108 = vsel %vm2088, %v2107, %v2106
      %v2109 = vrot.slane %v2063, 5
      %v2110 = vsel %vm2091, %v2109, %v2108
      %v2111 = vrot.slane %v2064, 4
      %v2112 = vsel %vm2094, %v2111, %v2110
      %v2113 = vrot.slane %v2065, 3
      %v2114 = vsel %vm2097, %v2113, %v2112
      %v2115 = vrot.slane %v2066, 2
      %v2116 = vsel %vm2100, %v2115, %v2114
      %v2117 = vrot.slane %v2067, 1
      %v2118 = vsel %vm2103, %v2117, %v2116
      %2121 = vst.msk [vmem:[%s435] sm:$0xff] %vm908, %v2104
      %2122 = vst.msk [vmem:[%s435 + $0x8] sm:$0xff] %vm908, %v2118
      %s2123 = smul.u32 2, %s23
      %p2124 = scmp.lt.s32.totalorder %s2123, 3
      %s2125 = scalar_select %p2124, %s2123, 3
      %s2126 = smul.addr %s2125, 8
      %s2127 = scalar_lea.vmem %s12, %s2126
      // Predicated region
      $region69: #{netgat_forward.3} parent=67 // pred_check
        %p2128 = pneg %p303
      $region70: #{netgat_forward.3} parent=67 // pred_check_branch
        %2130 = sbr.rel (%p2128) target = $region72
      $region71: #{netgat_forward.3} parent=67 // pred_region
        %s2131 = smul.u32 2, %s23
      $region72: #{netgat_forward.3} parent=67 // pred_fallthru
        _
    $region68: #{netgat_forward.3} parent=5 // pred_fallthru
      _
    %p2132 = scmp.le.s32.totalorder 2, %s18
    // Predicated region
    $region73: #{netgat_forward.3} parent=5 // pred_check
      %p2133 = pneg %p2132
    $region74: #{netgat_forward.3} parent=5 // pred_check_branch
      %2135 = sbr.rel (%p2133) target = $region76
    $region75: #{netgat_forward.3} parent=5 // pred_region
      %s2136 = ssub.s32 %s18, 2
      // Predicated region
      $region77: #{netgat_forward.3} parent=75 // pred_check
        %p2137 = pneg %p309
      $region78: #{netgat_forward.3} parent=75 // pred_check_branch
        %2139 = sbr.rel (%p2137) target = $region80
      $region79: #{netgat_forward.3} parent=75 // pred_region
        %s2140 = smul.u32 2, %s24
        %p2141 = scmp.lt.s32.totalorder %s2140, 3
        %s2142 = scalar_select %p2141, %s2140, 3
        %s2143 = smul.addr %s2142, 8
        %s2144 = scalar_lea.vmem %s12, %s2143
      $region80: #{netgat_forward.3} parent=75 // pred_fallthru
        _
    $region76: #{netgat_forward.3} parent=5 // pred_fallthru
      _
  $region6: #{netgat_forward.3} parent=0 // loop_footer
    %s22 = sadd.s32 1, %s18
  $region7: #{netgat_forward.3} parent=0 // loop_footer_branch
    %17 = sbr.rel target = $region3
  $region8: #{netgat_forward.3} parent=0 // loop_exit
    _

// kernel: netgat_forward.4
$region0: #{netgat_forward.4}
  #allocation0 [shape = 'u32[]', space=smem, size = 0x4, offset = 0x4, fixed_abs, tag = 'smem constant byte address 0x4 - core index']
  #allocation1 [shape = 'u32[144,128]{1,0:T(1,128)}', space=vmem, size = 0x12000, scoped, tag = 'internal scratch']
  #allocation2 [shape = 'f32[16,256]{1,0:T(8,128)}', space=vmem, size = 0x4000, scoped, tag = 'scratch operand']
  %s0 = inlined_call_operand.vmem [shape: f32[32,256], index: 0, kind: input, shape index: {}]
  %s1 = inlined_call_operand.vmem [shape: f32[2,16,16], index: 1, kind: input, shape index: {}]
  %s2 = inlined_call_operand.vmem [shape: bf16[4,256,528], index: 2, kind: input, shape index: {}]
  %s3 = inlined_call_operand.vmem [shape: f32[4,1,256], index: 3, kind: input, shape index: {}]
  %s4 = inlined_call_operand.vmem [shape: f32[32,1024], index: 4, kind: output, shape index: {}]
  %s5 = sld [smem:[#allocation0]]
  $region72: #{netgat_forward.4} parent=0
    _
  %s7 = ssub.s32 1, %s5
  %s8 = scalar_select 0, %s7, %s5
  $region1: #{netgat_forward.4} parent=0
    #allocation3 [shape = 'u8[32768]{0}', space=vmem, size = 0x8000, scoped, tag = 'output window, operand 0']
    loop: start=0, step=1, limit=10
    $region2: #{netgat_forward.4} parent=1 // loop_pre_header
      _
    $region3: #{netgat_forward.4} parent=1 // loop_header
      %s10 = sphi 0, %s14
      %p11 = scmp.ge.s32.totalorder %s10, 10
      %s17 = sphi 0, %s29
      %s18 = sphi 0, %s25
      %s19 = sphi 0, %s17
      %s20 = sphi 0, %s18
      %s21 = sphi 0, %s19
      %s22 = sphi 0, %s20
      %s32 = sphi 0, %s34
      %s35 = sphi 0, %s32
      %s36 = sphi 0, %s35
      %s52 = sphi 0, %s36
      %s58 = sphi 0, %s60
      %s61 = sphi 0, %s58
      %s62 = sphi 0, %s61
      %s78 = sphi 0, %s62
      %s84 = sphi 0, %s86
      %s87 = sphi 0, %s84
      %s88 = sphi 0, %s87
      %s104 = sphi 0, %s88
      %s110 = sphi 0, %s112
      %s113 = sphi 0, %s110
      %s114 = sphi 0, %s113
      %s130 = sphi 0, %s114
      %s138 = sphi 0, %s140
      %s141 = sphi 0, %s138
      %s142 = sphi 0, %s141
      %s158 = sphi 0, %s142
    $region4: #{netgat_forward.4} parent=1 // loop_header_branch
      %13 = sbr.rel (%p11) target = $region8
    $region5: #{netgat_forward.4} parent=1 // loop_body
      %s15 = ssub.s32 %s10, 1
      %s16 = ssub.s32 %s10, 2
      %s23 = sadd.s32 1, %s18
      %p24 = scmp.ge.s32.totalorder %s23, 4
      %s25 = scalar_select %p24, 0, %s23
      %s26 = sadd.s32 1, %s17
      %s27 = scalar_select %p24, %s26, %s17
      %p28 = scmp.ge.s32.totalorder %s27, 2
      %s29 = scalar_select %p28, 0, %s27
      %s30 = ssub.s32 %s17, %s29
      %p31 = scmp.eq.s32.totalorder %s30, 0
      %s33 = sadd.s32 %s32, 1
      %s34 = scalar_select %p31, %s32, %s33
      %p37 = pneg %p31
      %p38 = scmp.eq.s32.totalorder %s10, 7
      %p39 = por %p37, %p38
      %p40 = scmp.ne.s32.totalorder %s32, %s35
      %p41 = scmp.eq.s32.totalorder %s10, 0
      %p42 = por %p40, %p41
      %p43 = scmp.ne.s32.totalorder %s32, %s35
      %p44 = scmp.eq.s32.totalorder %s15, 7
      %p45 = por %p43, %p44
      %p46 = scmp.ne.s32.totalorder %s35, %s36
      %p47 = scmp.eq.s32.totalorder %s15, 0
      %p48 = por %p46, %p47
      %p49 = scmp.ne.s32.totalorder %s35, %s36
      %p50 = scmp.eq.s32.totalorder %s16, 7
      %p51 = por %p49, %p50
      %p53 = scmp.ne.s32.totalorder %s36, %s52
      %p54 = scmp.eq.s32.totalorder %s16, 0
      %p55 = por %p53, %p54
      %s56 = ssub.s32 %s17, %s29
      %p57 = scmp.eq.s32.totalorder %s56, 0
      %s59 = sadd.s32 %s58, 1
      %s60 = scalar_select %p57, %s58, %s59
      %p63 = pneg %p57
      %p64 = scmp.eq.s32.totalorder %s10, 7
      %p65 = por %p63, %p64
      %p66 = scmp.ne.s32.totalorder %s58, %s61
      %p67 = scmp.eq.s32.totalorder %s10, 0
      %p68 = por %p66, %p67
      %p69 = scmp.ne.s32.totalorder %s58, %s61
      %p70 = scmp.eq.s32.totalorder %s15, 7
      %p71 = por %p69, %p70
      %p72 = scmp.ne.s32.totalorder %s61, %s62
      %p73 = scmp.eq.s32.totalorder %s15, 0
      %p74 = por %p72, %p73
      %p75 = scmp.ne.s32.totalorder %s61, %s62
      %p76 = scmp.eq.s32.totalorder %s16, 7
      %p77 = por %p75, %p76
      %p79 = scmp.ne.s32.totalorder %s62, %s78
      %p80 = scmp.eq.s32.totalorder %s16, 0
      %p81 = por %p79, %p80
      %s82 = ssub.s32 %s18, %s25
      %p83 = scmp.eq.s32.totalorder %s82, 0
      %s85 = sadd.s32 %s84, 1
      %s86 = scalar_select %p83, %s84, %s85
      %p89 = pneg %p83
      %p90 = scmp.eq.s32.totalorder %s10, 7
      %p91 = por %p89, %p90
      %p92 = scmp.ne.s32.totalorder %s84, %s87
      %p93 = scmp.eq.s32.totalorder %s10, 0
      %p94 = por %p92, %p93
      %p95 = scmp.ne.s32.totalorder %s84, %s87
      %p96 = scmp.eq.s32.totalorder %s15, 7
      %p97 = por %p95, %p96
      %p98 = scmp.ne.s32.totalorder %s87, %s88
      %p99 = scmp.eq.s32.totalorder %s15, 0
      %p100 = por %p98, %p99
      %p101 = scmp.ne.s32.totalorder %s87, %s88
      %p102 = scmp.eq.s32.totalorder %s16, 7
      %p103 = por %p101, %p102
      %p105 = scmp.ne.s32.totalorder %s88, %s104
      %p106 = scmp.eq.s32.totalorder %s16, 0
      %p107 = por %p105, %p106
      %s108 = ssub.s32 %s18, %s25
      %p109 = scmp.eq.s32.totalorder %s108, 0
      %s111 = sadd.s32 %s110, 1
      %s112 = scalar_select %p109, %s110, %s111
      %p115 = pneg %p109
      %p116 = scmp.eq.s32.totalorder %s10, 7
      %p117 = por %p115, %p116
      %p118 = scmp.ne.s32.totalorder %s110, %s113
      %p119 = scmp.eq.s32.totalorder %s10, 0
      %p120 = por %p118, %p119
      %p121 = scmp.ne.s32.totalorder %s110, %s113
      %p122 = scmp.eq.s32.totalorder %s15, 7
      %p123 = por %p121, %p122
      %p124 = scmp.ne.s32.totalorder %s113, %s114
      %p125 = scmp.eq.s32.totalorder %s15, 0
      %p126 = por %p124, %p125
      %p127 = scmp.ne.s32.totalorder %s113, %s114
      %p128 = scmp.eq.s32.totalorder %s16, 7
      %p129 = por %p127, %p128
      %p131 = scmp.ne.s32.totalorder %s114, %s130
      %p132 = scmp.eq.s32.totalorder %s16, 0
      %p133 = por %p131, %p132
      %s134 = ssub.s32 %s17, %s29
      %s135 = ssub.s32 %s18, %s25
      %s136 = sor.u32 %s134, %s135
      %p137 = scmp.eq.s32.totalorder %s136, 0
      %s139 = sadd.s32 %s138, 1
      %s140 = scalar_select %p137, %s138, %s139
      %p143 = pneg %p137
      %p144 = scmp.eq.s32.totalorder %s10, 7
      %p145 = por %p143, %p144
      %p146 = scmp.ne.s32.totalorder %s138, %s141
      %p147 = scmp.eq.s32.totalorder %s10, 0
      %p148 = por %p146, %p147
      %p149 = scmp.ne.s32.totalorder %s138, %s141
      %p150 = scmp.eq.s32.totalorder %s15, 7
      %p151 = por %p149, %p150
      %p152 = scmp.ne.s32.totalorder %s141, %s142
      %p153 = scmp.eq.s32.totalorder %s15, 0
      %p154 = por %p152, %p153
      %p155 = scmp.ne.s32.totalorder %s141, %s142
      %p156 = scmp.eq.s32.totalorder %s16, 7
      %p157 = por %p155, %p156
      %p159 = scmp.ne.s32.totalorder %s142, %s158
      %p160 = scmp.eq.s32.totalorder %s16, 0
      %p161 = por %p159, %p160
      %p162 = scmp.le.s32.totalorder 1, %s10
      %p163 = scmp.lt.s32.totalorder %s10, 9
      %p164 = pnand %p162, %p163
      %p165 = pneg %p164
      // Predicated region
      $region9: #{netgat_forward.4} parent=5 // pred_check
        _
      $region10: #{netgat_forward.4} parent=5 // pred_check_branch
        %167 = sbr.rel (%p164) target = $region12
      $region11: #{netgat_forward.4} parent=5 // pred_region
        %s168 = ssub.s32 %s10, 1
      $region12: #{netgat_forward.4} parent=5 // pred_fallthru
        _
      %p169 = scmp.lt.s32.totalorder %s10, 8
      // Predicated region
      $region13: #{netgat_forward.4} parent=5 // pred_check
        %p170 = pneg %p169
      $region14: #{netgat_forward.4} parent=5 // pred_check_branch
        %172 = sbr.rel (%p170) target = $region16
      $region15: #{netgat_forward.4} parent=5 // pred_region
        // Predicated region
        $region17: #{netgat_forward.4} parent=15 // pred_check
          %p173 = pneg %p42
        $region18: #{netgat_forward.4} parent=15 // pred_check_branch
          %175 = sbr.rel (%p173) target = $region20
        $region19: #{netgat_forward.4} parent=15 // pred_region
          %s176 = smul.u32 2, %s17
          %p177 = scmp.lt.s32.totalorder %s176, 3
          %s178 = scalar_select %p177, %s176, 3
          %s179 = smul.addr %s178, 2
          %s180 = smul.addr %s179, 8
          %s181 = scalar_lea.vmem %s0, %s180
          %s182 = smul.u32 2, %s17
        $region20: #{netgat_forward.4} parent=15 // pred_fallthru
          _
        // Predicated region
        $region21: #{netgat_forward.4} parent=15 // pred_check
          %p183 = pneg %p68
        $region22: #{netgat_forward.4} parent=15 // pred_check_branch
          %185 = sbr.rel (%p183) target = $region24
        $region23: #{netgat_forward.4} parent=15 // pred_region
          %p186 = scmp.lt.s32.totalorder %s17, 1
          %s187 = scalar_select %p186, %s17, 1
          %s188 = smul.addr %s187, 2
          %s189 = smul.addr %s188, 8
          %s190 = scalar_lea.vmem %s1, %s189
        $region24: #{netgat_forward.4} parent=15 // pred_fallthru
          _
        // Predicated region
        $region25: #{netgat_forward.4} parent=15 // pred_check
          %p191 = pneg %p94
        $region26: #{netgat_forward.4} parent=15 // pred_check_branch
          %193 = sbr.rel (%p191) target = $region28
        $region27: #{netgat_forward.4} parent=15 // pred_region
          %p194 = scmp.lt.s32.totalorder %s18, 3
          %s195 = scalar_select %p194, %s18, 3
          %s196 = smul.addr %s195, 160
          %s197 = smul.addr %s196, 4
          %s198 = scalar_lea.vmem %s2, %s197
        $region28: #{netgat_forward.4} parent=15 // pred_fallthru
          _
        // Predicated region
        $region29: #{netgat_forward.4} parent=15 // pred_check
          %p199 = pneg %p120
        $region30: #{netgat_forward.4} parent=15 // pred_check_branch
          %201 = sbr.rel (%p199) target = $region32
        $region31: #{netgat_forward.4} parent=15 // pred_region
          %p202 = scmp.lt.s32.totalorder %s18, 3
          %s203 = scalar_select %p202, %s18, 3
          %s204 = smul.addr %s203, 2
          %s205 = scalar_lea.vmem %s3, %s204
        $region32: #{netgat_forward.4} parent=15 // pred_fallthru
          _
      $region16: #{netgat_forward.4} parent=5 // pred_fallthru
        _
      %p206 = scmp.le.s32.totalorder 1, %s10
      %p207 = scmp.lt.s32.totalorder %s10, 9
      %p208 = pnand %p206, %p207
      %p209 = pneg %p208
      // Predicated region
      $region33: #{netgat_forward.4} parent=5 // pred_check
        _
      $region34: #{netgat_forward.4} parent=5 // pred_check_branch
        %211 = sbr.rel (%p208) target = $region36
      $region35: #{netgat_forward.4} parent=5 // pred_region
        %s212 = ssub.s32 %s10, 1
        %s213 = smul.u32 2, %s19
        %p214 = scmp.lt.s32.totalorder %s213, 3
        %s215 = scalar_select %p214, %s213, 3
        %s216 = smul.addr %s215, 2
        %s217 = smul.addr %s216, 8
        %s218 = scalar_lea.vmem %s0, %s217
        %p219 = pneg %p48
        %p220 = pneg %p45
        %p221 = scmp.lt.s32.totalorder %s19, 1
        %s222 = scalar_select %p221, %s19, 1
        %s223 = smul.addr %s222, 2
        %s224 = smul.addr %s223, 8
        %s225 = scalar_lea.vmem %s1, %s224
        %p226 = pneg %p74
        %p227 = pneg %p71
        %p228 = scmp.lt.s32.totalorder %s20, 3
        %s229 = scalar_select %p228, %s20, 3
        %s230 = smul.addr %s229, 160
        %s231 = smul.addr %s230, 4
        %s232 = scalar_lea.vmem %s2, %s231
        %p233 = pneg %p100
        %p234 = pneg %p97
        %p235 = scmp.lt.s32.totalorder %s20, 3
        %s236 = scalar_select %p235, %s20, 3
        %s237 = smul.addr %s236, 2
        %s238 = scalar_lea.vmem %s3, %s237
        %p239 = pneg %p126
        %p240 = pneg %p123
        %p241 = pneg %p154
        %p242 = pneg %p151
        %s243 = sand.u32 %s141, 1
        %s244 = sand.u32 %s141, 1
        %s245 = smul.addr %s244, 32
        %s246 = scalar_lea.vmem [#allocation3], %s245
        %s247 = smul.u32 2, %s19
        %p248 = scmp.lt.s32.totalorder %s247, 3
        %s249 = scalar_select %p248, %s247, 3
        %s250 = smul.addr %s249, 2
        %s251 = smul.addr %s250, 8
        %s252 = scalar_lea.vmem %s0, %s251
        %s253 = smul.u32 2, %s19
        %p254 = scmp.lt.s32.totalorder %s19, 1
        %s255 = scalar_select %p254, %s19, 1
        %s256 = smul.addr %s255, 2
        %s257 = smul.addr %s256, 8
        %s258 = scalar_lea.vmem %s1, %s257
        %p259 = scmp.lt.s32.totalorder %s20, 3
        %s260 = scalar_select %p259, %s20, 3
        %s261 = smul.addr %s260, 160
        %s262 = smul.addr %s261, 4
        %s263 = scalar_lea.vmem %s2, %s262
        %p264 = scmp.lt.s32.totalorder %s20, 3
        %s265 = scalar_select %p264, %s20, 3
        %s266 = smul.addr %s265, 2
        %s267 = scalar_lea.vmem %s3, %s266
        %s268 = smul.u32 2, %s19
        %s269 = smul.u32 2, %s20
        %p271 = scmp.eq.s32.totalorder %s20, 0
        // Predicated region
        $region37: #{netgat_forward.4} parent=35 // pred_check
          %p272 = pneg %p271
        $region38: #{netgat_forward.4} parent=35 // pred_check_branch
          %274 = sbr.rel (%p272) target = $region40
        $region39: #{netgat_forward.4} parent=35 // pred_region
          %v275 = vld [vmem:[%s252] sm:$0xff]
          %v276 = vld [vmem:[%s252 + $0x8] sm:$0xff]
          %v277 = vld [vmem:[%s252 + $0x10] sm:$0xff]
          %v278 = vld [vmem:[%s252 + $0x18] sm:$0xff]
          %279 = vst [vmem:[#allocation2] sm:$0xff] %v275
          %280 = vst [vmem:[#allocation2 + $0x8] sm:$0xff] %v276
          %281 = vst [vmem:[#allocation2 + $0x10] sm:$0xff] %v277
          %282 = vst [vmem:[#allocation2 + $0x18] sm:$0xff] %v278
        $region40: #{netgat_forward.4} parent=35 // pred_fallthru
          _
        %v283 = vld [vmem:[#allocation2] sm:$0xff]
        %v284 = vld [vmem:[#allocation2 + $0x8] sm:$0xff]
        %v285 = vld [vmem:[#allocation2 + $0x10] sm:$0xff]
        %v286 = vld [vmem:[#allocation2 + $0x18] sm:$0xff]
        %v287 = vpack.c.bf16 %v285, %v283
        %v288 = vpack.c.bf16 %v286, %v284
        %v289 = vld [vmem:[%s263] sm:$0xff]
        %v290 = vld [vmem:[%s263 + $0x8] sm:$0xff]
        %v291 = vld [vmem:[%s263 + $0x10] sm:$0xf]
        %v292 = vld [vmem:[%s263 + $0x14] sm:$0xff]
        %v293 = vld [vmem:[%s263 + $0x1c] sm:$0xff]
        %v294 = vld [vmem:[%s263 + $0x24] sm:$0xf]
        %v295 = vld [vmem:[%s263 + $0x28] sm:$0xff]
        %v296 = vld [vmem:[%s263 + $0x30] sm:$0xff]
        %v297 = vld [vmem:[%s263 + $0x38] sm:$0xf]
        %v298 = vld [vmem:[%s263 + $0x3c] sm:$0xff]
        %v299 = vld [vmem:[%s263 + $0x44] sm:$0xff]
        %v300 = vld [vmem:[%s263 + $0x4c] sm:$0xf]
        %v301 = vld [vmem:[%s263 + $0x50] sm:$0xff]
        %v302 = vld [vmem:[%s263 + $0x58] sm:$0xff]
        %v303 = vld [vmem:[%s263 + $0x60] sm:$0xf]
        %v304 = vld [vmem:[%s263 + $0x64] sm:$0xff]
        %v305 = vld [vmem:[%s263 + $0x6c] sm:$0xff]
        %v306 = vld [vmem:[%s263 + $0x74] sm:$0xf]
        %v307 = vld [vmem:[%s263 + $0x78] sm:$0xff]
        %v308 = vld [vmem:[%s263 + $0x80] sm:$0xff]
        %v309 = vld [vmem:[%s263 + $0x88] sm:$0xf]
        %v310 = vld [vmem:[%s263 + $0x8c] sm:$0xff]
        %v311 = vld [vmem:[%s263 + $0x94] sm:$0xff]
        %v312 = vld [vmem:[%s263 + $0x9c] sm:$0xf]
        %v313 = vld [vmem:[%s263 + $0xa0] sm:$0xff]
        %v314 = vld [vmem:[%s263 + $0xa8] sm:$0xff]
        %v315 = vld [vmem:[%s263 + $0xb0] sm:$0xf]
        %v316 = vld [vmem:[%s263 + $0xb4] sm:$0xff]
        %v317 = vld [vmem:[%s263 + $0xbc] sm:$0xff]
        %v318 = vld [vmem:[%s263 + $0xc4] sm:$0xf]
        %v319 = vld [vmem:[%s263 + $0xc8] sm:$0xff]
        %v320 = vld [vmem:[%s263 + $0xd0] sm:$0xff]
        %v321 = vld [vmem:[%s263 + $0xd8] sm:$0xf]
        %v322 = vld [vmem:[%s263 + $0xdc] sm:$0xff]
        %v323 = vld [vmem:[%s263 + $0xe4] sm:$0xff]
        %v324 = vld [vmem:[%s263 + $0xec] sm:$0xf]
        %v325 = vld [vmem:[%s263 + $0xf0] sm:$0xff]
        %v326 = vld [vmem:[%s263 + $0xf8] sm:$0xff]
        %v327 = vld [vmem:[%s263 + $0x100] sm:$0xf]
        %v328 = vld [vmem:[%s263 + $0x104] sm:$0xff]
        %v329 = vld [vmem:[%s263 + $0x10c] sm:$0xff]
        %v330 = vld [vmem:[%s263 + $0x114] sm:$0xf]
        %v331 = vld [vmem:[%s263 + $0x118] sm:$0xff]
        %v332 = vld [vmem:[%s263 + $0x120] sm:$0xff]
        %v333 = vld [vmem:[%s263 + $0x128] sm:$0xf]
        %v334 = vld [vmem:[%s263 + $0x12c] sm:$0xff]
        %v335 = vld [vmem:[%s263 + $0x134] sm:$0xff]
        %v336 = vld [vmem:[%s263 + $0x13c] sm:$0xf]
        %v337 = vld [vmem:[%s263 + $0x140] sm:$0xff]
        %v338 = vld [vmem:[%s263 + $0x148] sm:$0xff]
        %v339 = vld [vmem:[%s263 + $0x150] sm:$0xf]
        %v340 = vld [vmem:[%s263 + $0x154] sm:$0xff]
        %v341 = vld [vmem:[%s263 + $0x15c] sm:$0xff]
        %v342 = vld [vmem:[%s263 + $0x164] sm:$0xf]
        %v343 = vld [vmem:[%s263 + $0x168] sm:$0xff]
        %v344 = vld [vmem:[%s263 + $0x170] sm:$0xff]
        %v345 = vld [vmem:[%s263 + $0x178] sm:$0xf]
        %v346 = vld [vmem:[%s263 + $0x17c] sm:$0xff]
        %v347 = vld [vmem:[%s263 + $0x184] sm:$0xff]
        %v348 = vld [vmem:[%s263 + $0x18c] sm:$0xf]
        %v349 = vld [vmem:[%s263 + $0x190] sm:$0xff]
        %v350 = vld [vmem:[%s263 + $0x198] sm:$0xff]
        %v351 = vld [vmem:[%s263 + $0x1a0] sm:$0xf]
        %v352 = vld [vmem:[%s263 + $0x1a4] sm:$0xff]
        %v353 = vld [vmem:[%s263 + $0x1ac] sm:$0xff]
        %v354 = vld [vmem:[%s263 + $0x1b4] sm:$0xf]
        %v355 = vld [vmem:[%s263 + $0x1b8] sm:$0xff]
        %v356 = vld [vmem:[%s263 + $0x1c0] sm:$0xff]
        %v357 = vld [vmem:[%s263 + $0x1c8] sm:$0xf]
        %v358 = vld [vmem:[%s263 + $0x1cc] sm:$0xff]
        %v359 = vld [vmem:[%s263 + $0x1d4] sm:$0xff]
        %v360 = vld [vmem:[%s263 + $0x1dc] sm:$0xf]
        %v361 = vld [vmem:[%s263 + $0x1e0] sm:$0xff]
        %v362 = vld [vmem:[%s263 + $0x1e8] sm:$0xff]
        %v363 = vld [vmem:[%s263 + $0x1f0] sm:$0xf]
        %v364 = vld [vmem:[%s263 + $0x1f4] sm:$0xff]
        %v365 = vld [vmem:[%s263 + $0x1fc] sm:$0xff]
        %v366 = vld [vmem:[%s263 + $0x204] sm:$0xf]
        %v367 = vld [vmem:[%s263 + $0x208] sm:$0xff]
        %v368 = vld [vmem:[%s263 + $0x210] sm:$0xff]
        %v369 = vld [vmem:[%s263 + $0x218] sm:$0xf]
        %v370 = vld [vmem:[%s263 + $0x21c] sm:$0xff]
        %v371 = vld [vmem:[%s263 + $0x224] sm:$0xff]
        %v372 = vld [vmem:[%s263 + $0x22c] sm:$0xf]
        %v373 = vld [vmem:[%s263 + $0x230] sm:$0xff]
        %v374 = vld [vmem:[%s263 + $0x238] sm:$0xff]
        %v375 = vld [vmem:[%s263 + $0x240] sm:$0xf]
        %v376 = vld [vmem:[%s263 + $0x244] sm:$0xff]
        %v377 = vld [vmem:[%s263 + $0x24c] sm:$0xff]
        %v378 = vld [vmem:[%s263 + $0x254] sm:$0xf]
        %v379 = vld [vmem:[%s263 + $0x258] sm:$0xff]
        %v380 = vld [vmem:[%s263 + $0x260] sm:$0xff]
        %v381 = vld [vmem:[%s263 + $0x268] sm:$0xf]
        %v382 = vld [vmem:[%s263 + $0x26c] sm:$0xff]
        %v383 = vld [vmem:[%s263 + $0x274] sm:$0xff]
        %v384 = vld [vmem:[%s263 + $0x27c] sm:$0xf]
        %v481 = vunpack.c.l.b16 %v289
        %v482 = vunpack.c.h.b16 %v289
        %v483 = vunpack.c.l.b16 %v290
        %v484 = vunpack.c.h.b16 %v290
        %v485 = vunpack.c.l.b16 %v291
        %v486 = vunpack.c.l.b16 %v292
        %v487 = vunpack.c.h.b16 %v292
        %v488 = vunpack.c.l.b16 %v293
        %v489 = vunpack.c.h.b16 %v293
        %v490 = vunpack.c.l.b16 %v294
        %v491 = vunpack.c.l.b16 %v295
        %v492 = vunpack.c.h.b16 %v295
        %v493 = vunpack.c.l.b16 %v296
        %v494 = vunpack.c.h.b16 %v296
        %v495 = vunpack.c.l.b16 %v297
        %v496 = vunpack.c.l.b16 %v298
        %v497 = vunpack.c.h.b16 %v298
        %v498 = vunpack.c.l.b16 %v299
        %v499 = vunpack.c.h.b16 %v299
        %v500 = vunpack.c.l.b16 %v300
        %v501 = vunpack.c.l.b16 %v301
        %v502 = vunpack.c.h.b16 %v301
        %v503 = vunpack.c.l.b16 %v302
        %v504 = vunpack.c.h.b16 %v302
        %v505 = vunpack.c.l.b16 %v303
        %v506 = vunpack.c.l.b16 %v304
        %v507 = vunpack.c.h.b16 %v304
        %v508 = vunpack.c.l.b16 %v305
        %v509 = vunpack.c.h.b16 %v305
        %v510 = vunpack.c.l.b16 %v306
        %v511 = vunpack.c.l.b16 %v307
        %v512 = vunpack.c.h.b16 %v307
        %v513 = vunpack.c.l.b16 %v308
        %v514 = vunpack.c.h.b16 %v308
        %v515 = vunpack.c.l.b16 %v309
        %v516 = vunpack.c.l.b16 %v310
        %v517 = vunpack.c.h.b16 %v310
        %v518 = vunpack.c.l.b16 %v311
        %v519 = vunpack.c.h.b16 %v311
        %v520 = vunpack.c.l.b16 %v312
        %v521 = vunpack.c.l.b16 %v313
        %v522 = vunpack.c.h.b16 %v313
        %v523 = vunpack.c.l.b16 %v314
        %v524 = vunpack.c.h.b16 %v314
        %v525 = vunpack.c.l.b16 %v315
        %v526 = vunpack.c.l.b16 %v316
        %v527 = vunpack.c.h.b16 %v316
        %v528 = vunpack.c.l.b16 %v317
        %v529 = vunpack.c.h.b16 %v317
        %v530 = vunpack.c.l.b16 %v318
        %v531 = vunpack.c.l.b16 %v319
        %v532 = vunpack.c.h.b16 %v319
        %v533 = vunpack.c.l.b16 %v320
        %v534 = vunpack.c.h.b16 %v320
        %v535 = vunpack.c.l.b16 %v321
        %v536 = vunpack.c.l.b16 %v322
        %v537 = vunpack.c.h.b16 %v322
        %v538 = vunpack.c.l.b16 %v323
        %v539 = vunpack.c.h.b16 %v323
        %v540 = vunpack.c.l.b16 %v324
        %v541 = vunpack.c.l.b16 %v325
        %v542 = vunpack.c.h.b16 %v325
        %v543 = vunpack.c.l.b16 %v326
        %v544 = vunpack.c.h.b16 %v326
        %v545 = vunpack.c.l.b16 %v327
        %v546 = vunpack.c.l.b16 %v328
        %v547 = vunpack.c.h.b16 %v328
        %v548 = vunpack.c.l.b16 %v329
        %v549 = vunpack.c.h.b16 %v329
        %v550 = vunpack.c.l.b16 %v330
        %v551 = vunpack.c.l.b16 %v331
        %v552 = vunpack.c.h.b16 %v331
        %v553 = vunpack.c.l.b16 %v332
        %v554 = vunpack.c.h.b16 %v332
        %v555 = vunpack.c.l.b16 %v333
        %v556 = vunpack.c.l.b16 %v334
        %v557 = vunpack.c.h.b16 %v334
        %v558 = vunpack.c.l.b16 %v335
        %v559 = vunpack.c.h.b16 %v335
        %v560 = vunpack.c.l.b16 %v336
        %v561 = vunpack.c.l.b16 %v337
        %v562 = vunpack.c.h.b16 %v337
        %v563 = vunpack.c.l.b16 %v338
        %v564 = vunpack.c.h.b16 %v338
        %v565 = vunpack.c.l.b16 %v339
        %v566 = vunpack.c.l.b16 %v340
        %v567 = vunpack.c.h.b16 %v340
        %v568 = vunpack.c.l.b16 %v341
        %v569 = vunpack.c.h.b16 %v341
        %v570 = vunpack.c.l.b16 %v342
        %v571 = vunpack.c.l.b16 %v343
        %v572 = vunpack.c.h.b16 %v343
        %v573 = vunpack.c.l.b16 %v344
        %v574 = vunpack.c.h.b16 %v344
        %v575 = vunpack.c.l.b16 %v345
        %v576 = vunpack.c.l.b16 %v346
        %v577 = vunpack.c.h.b16 %v346
        %v578 = vunpack.c.l.b16 %v347
        %v579 = vunpack.c.h.b16 %v347
        %v580 = vunpack.c.l.b16 %v348
        %v581 = vunpack.c.l.b16 %v349
        %v582 = vunpack.c.h.b16 %v349
        %v583 = vunpack.c.l.b16 %v350
        %v584 = vunpack.c.h.b16 %v350
        %v585 = vunpack.c.l.b16 %v351
        %v586 = vunpack.c.l.b16 %v352
        %v587 = vunpack.c.h.b16 %v352
        %v588 = vunpack.c.l.b16 %v353
        %v589 = vunpack.c.h.b16 %v353
        %v590 = vunpack.c.l.b16 %v354
        %v591 = vunpack.c.l.b16 %v355
        %v592 = vunpack.c.h.b16 %v355
        %v593 = vunpack.c.l.b16 %v356
        %v594 = vunpack.c.h.b16 %v356
        %v595 = vunpack.c.l.b16 %v357
        %v596 = vunpack.c.l.b16 %v358
        %v597 = vunpack.c.h.b16 %v358
        %v598 = vunpack.c.l.b16 %v359
        %v599 = vunpack.c.h.b16 %v359
        %v600 = vunpack.c.l.b16 %v360
        %v601 = vunpack.c.l.b16 %v361
        %v602 = vunpack.c.h.b16 %v361
        %v603 = vunpack.c.l.b16 %v362
        %v604 = vunpack.c.h.b16 %v362
        %v605 = vunpack.c.l.b16 %v363
        %v606 = vunpack.c.l.b16 %v364
        %v607 = vunpack.c.h.b16 %v364
        %v608 = vunpack.c.l.b16 %v365
        %v609 = vunpack.c.h.b16 %v365
        %v610 = vunpack.c.l.b16 %v366
        %v611 = vunpack.c.l.b16 %v367
        %v612 = vunpack.c.h.b16 %v367
        %v613 = vunpack.c.l.b16 %v368
        %v614 = vunpack.c.h.b16 %v368
        %v615 = vunpack.c.l.b16 %v369
        %v616 = vunpack.c.l.b16 %v370
        %v617 = vunpack.c.h.b16 %v370
        %v618 = vunpack.c.l.b16 %v371
        %v619 = vunpack.c.h.b16 %v371
        %v620 = vunpack.c.l.b16 %v372
        %v621 = vunpack.c.l.b16 %v373
        %v622 = vunpack.c.h.b16 %v373
        %v623 = vunpack.c.l.b16 %v374
        %v624 = vunpack.c.h.b16 %v374
        %v625 = vunpack.c.l.b16 %v375
        %v626 = vunpack.c.l.b16 %v376
        %v627 = vunpack.c.h.b16 %v376
        %v628 = vunpack.c.l.b16 %v377
        %v629 = vunpack.c.h.b16 %v377
        %v630 = vunpack.c.l.b16 %v378
        %v631 = vunpack.c.l.b16 %v379
        %v632 = vunpack.c.h.b16 %v379
        %v633 = vunpack.c.l.b16 %v380
        %v634 = vunpack.c.h.b16 %v380
        %v635 = vunpack.c.l.b16 %v381
        %v636 = vunpack.c.l.b16 %v382
        %v637 = vunpack.c.h.b16 %v382
        %v638 = vunpack.c.l.b16 %v383
        %v639 = vunpack.c.h.b16 %v383
        %v640 = vunpack.c.l.b16 %v384
        %v641 = vpack.c.b16 %v486, %v481
        %v642 = vpack.c.b16 %v487, %v482
        %v643 = vpack.c.b16 %v488, %v483
        %v644 = vpack.c.b16 %v489, %v484
        %v645 = vpack.c.b16 %v490, %v485
        %v646 = vpack.c.b16 %v496, %v491
        %v647 = vpack.c.b16 %v497, %v492
        %v648 = vpack.c.b16 %v498, %v493
        %v649 = vpack.c.b16 %v499, %v494
        %v650 = vpack.c.b16 %v500, %v495
        %v651 = vpack.c.b16 %v506, %v501
        %v652 = vpack.c.b16 %v507, %v502
        %v653 = vpack.c.b16 %v508, %v503
        %v654 = vpack.c.b16 %v509, %v504
        %v655 = vpack.c.b16 %v510, %v505
        %v656 = vpack.c.b16 %v516, %v511
        %v657 = vpack.c.b16 %v517, %v512
        %v658 = vpack.c.b16 %v518, %v513
        %v659 = vpack.c.b16 %v519, %v514
        %v660 = vpack.c.b16 %v520, %v515
        %v661 = vpack.c.b16 %v526, %v521
        %v662 = vpack.c.b16 %v527, %v522
        %v663 = vpack.c.b16 %v528, %v523
        %v664 = vpack.c.b16 %v529, %v524
        %v665 = vpack.c.b16 %v530, %v525
        %v666 = vpack.c.b16 %v536, %v531
        %v667 = vpack.c.b16 %v537, %v532
        %v668 = vpack.c.b16 %v538, %v533
        %v669 = vpack.c.b16 %v539, %v534
        %v670 = vpack.c.b16 %v540, %v535
        %v671 = vpack.c.b16 %v546, %v541
        %v672 = vpack.c.b16 %v547, %v542
        %v673 = vpack.c.b16 %v548, %v543
        %v674 = vpack.c.b16 %v549, %v544
        %v675 = vpack.c.b16 %v550, %v545
        %v676 = vpack.c.b16 %v556, %v551
        %v677 = vpack.c.b16 %v557, %v552
        %v678 = vpack.c.b16 %v558, %v553
        %v679 = vpack.c.b16 %v559, %v554
        %v680 = vpack.c.b16 %v560, %v555
        %v681 = vpack.c.b16 %v566, %v561
        %v682 = vpack.c.b16 %v567, %v562
        %v683 = vpack.c.b16 %v568, %v563
        %v684 = vpack.c.b16 %v569, %v564
        %v685 = vpack.c.b16 %v570, %v565
        %v686 = vpack.c.b16 %v576, %v571
        %v687 = vpack.c.b16 %v577, %v572
        %v688 = vpack.c.b16 %v578, %v573
        %v689 = vpack.c.b16 %v579, %v574
        %v690 = vpack.c.b16 %v580, %v575
        %v691 = vpack.c.b16 %v586, %v581
        %v692 = vpack.c.b16 %v587, %v582
        %v693 = vpack.c.b16 %v588, %v583
        %v694 = vpack.c.b16 %v589, %v584
        %v695 = vpack.c.b16 %v590, %v585
        %v696 = vpack.c.b16 %v596, %v591
        %v697 = vpack.c.b16 %v597, %v592
        %v698 = vpack.c.b16 %v598, %v593
        %v699 = vpack.c.b16 %v599, %v594
        %v700 = vpack.c.b16 %v600, %v595
        %v701 = vpack.c.b16 %v606, %v601
        %v702 = vpack.c.b16 %v607, %v602
        %v703 = vpack.c.b16 %v608, %v603
        %v704 = vpack.c.b16 %v609, %v604
        %v705 = vpack.c.b16 %v610, %v605
        %v706 = vpack.c.b16 %v616, %v611
        %v707 = vpack.c.b16 %v617, %v612
        %v708 = vpack.c.b16 %v618, %v613
        %v709 = vpack.c.b16 %v619, %v614
        %v710 = vpack.c.b16 %v620, %v615
        %v711 = vpack.c.b16 %v626, %v621
        %v712 = vpack.c.b16 %v627, %v622
        %v713 = vpack.c.b16 %v628, %v623
        %v714 = vpack.c.b16 %v629, %v624
        %v715 = vpack.c.b16 %v630, %v625
        %v716 = vpack.c.b16 %v636, %v631
        %v717 = vpack.c.b16 %v637, %v632
        %v718 = vpack.c.b16 %v638, %v633
        %v719 = vpack.c.b16 %v639, %v634
        %v720 = vpack.c.b16 %v640, %v635
        %801 = vmatprep.subr.bf16.mxu0 %v642
        %802 = vmatpush1.bf16.msra.mxu0 %v641
        %803 = vmatprep.subr.bf16.mxu0 %v647
        %804 = vmatpush1.bf16.msra.mxu0 %v646
        %805 = vmatprep.subr.bf16.mxu0 %v652
        %806 = vmatpush1.bf16.msra.mxu0 %v651
        %807 = vmatprep.subr.bf16.mxu0 %v657
        %808 = vmatpush1.bf16.msra.mxu0 %v656
        %809 = vmatprep.subr.bf16.mxu0 %v662
        %810 = vmatpush1.bf16.msra.mxu0 %v661
        %811 = vmatprep.subr.bf16.mxu0 %v667
        %812 = vmatpush1.bf16.msra.mxu0 %v666
        %813 = vmatprep.subr.bf16.mxu0 %v672
        %814 = vmatpush1.bf16.msra.mxu0 %v671
        %815 = vmatprep.subr.bf16.mxu0 %v677
        %816 = vmatpush1.bf16.msra.mxu0 %v676
        %817 = vmatprep.subr.bf16.mxu0 %v682
        %818 = vmatpush1.bf16.msra.mxu0 %v681
        %819 = vmatprep.subr.bf16.mxu0 %v687
        %820 = vmatpush1.bf16.msra.mxu0 %v686
        %821 = vmatprep.subr.bf16.mxu0 %v692
        %822 = vmatpush1.bf16.msra.mxu0 %v691
        %823 = vmatprep.subr.bf16.mxu0 %v697
        %824 = vmatpush1.bf16.msra.mxu0 %v696
        %825 = vmatprep.subr.bf16.mxu0 %v702
        %826 = vmatpush1.bf16.msra.mxu0 %v701
        %827 = vmatprep.subr.bf16.mxu0 %v707
        %828 = vmatpush1.bf16.msra.mxu0 %v706
        %829 = vmatprep.subr.bf16.mxu0 %v712
        %830 = vmatpush1.bf16.msra.mxu0 %v711
        %831 = vmatprep.subr.bf16.mxu0 %v717
        %832 = vmatpush1.bf16.msra.mxu0 %v716
        %833 = vmatprep.mubr.bf16.mxu0 %v288
        %834 = vmatmul.mubr.bf16.gmra.mrb[0].mxu0 %v287
        %v835 = vpop.f32.mrb[0].mxu0
        %v836 = vadd.f32 0.0, %v835
        %v837 = vpop.f32.mrb[0].mxu0
        %v838 = vadd.f32 0.0, %v837
        %v839 = vpop.f32.mrb[0].mxu0
        %v840 = vadd.f32 0.0, %v839
        %v841 = vpop.f32.mrb[0].mxu0
        %v842 = vadd.f32 0.0, %v841
        %843 = vdwg.mxu0
        %844 = vmatprep.subr.bf16.mxu0 %v644
        %845 = vmatpush1.bf16.msra.mxu0 %v643
        %846 = vmatprep.subr.bf16.mxu0 %v649
        %847 = vmatpush1.bf16.msra.mxu0 %v648
        %848 = vmatprep.subr.bf16.mxu0 %v654
        %849 = vmatpush1.bf16.msra.mxu0 %v653
        %850 = vmatprep.subr.bf16.mxu0 %v659
        %851 = vmatpush1.bf16.msra.mxu0 %v658
        %852 = vmatprep.subr.bf16.mxu0 %v664
        %853 = vmatpush1.bf16.msra.mxu0 %v663
        %854 = vmatprep.subr.bf16.mxu0 %v669
        %855 = vmatpush1.bf16.msra.mxu0 %v668
        %856 = vmatprep.subr.bf16.mxu0 %v674
        %857 = vmatpush1.bf16.msra.mxu0 %v673
        %858 = vmatprep.subr.bf16.mxu0 %v679
        %859 = vmatpush1.bf16.msra.mxu0 %v678
        %860 = vmatprep.subr.bf16.mxu0 %v684
        %861 = vmatpush1.bf16.msra.mxu0 %v683
        %862 = vmatprep.subr.bf16.mxu0 %v689
        %863 = vmatpush1.bf16.msra.mxu0 %v688
        %864 = vmatprep.subr.bf16.mxu0 %v694
        %865 = vmatpush1.bf16.msra.mxu0 %v693
        %866 = vmatprep.subr.bf16.mxu0 %v699
        %867 = vmatpush1.bf16.msra.mxu0 %v698
        %868 = vmatprep.subr.bf16.mxu0 %v704
        %869 = vmatpush1.bf16.msra.mxu0 %v703
        %870 = vmatprep.subr.bf16.mxu0 %v709
        %871 = vmatpush1.bf16.msra.mxu0 %v708
        %872 = vmatprep.subr.bf16.mxu0 %v714
        %873 = vmatpush1.bf16.msra.mxu0 %v713
        %874 = vmatprep.subr.bf16.mxu0 %v719
        %875 = vmatpush1.bf16.msra.mxu0 %v718
        %876 = vmatprep.mubr.bf16.mxu0 %v288
        %877 = vmatmul.mubr.bf16.gmra.mrb[0].mxu0 %v287
        %v878 = vpop.f32.mrb[0].mxu0
        %v879 = vadd.f32 0.0, %v878
        %v880 = vpop.f32.mrb[0].mxu0
        %v881 = vadd.f32 0.0, %v880
        %v882 = vpop.f32.mrb[0].mxu0
        %v883 = vadd.f32 0.0, %v882
        %v884 = vpop.f32.mrb[0].mxu0
        %v885 = vadd.f32 0.0, %v884
        %886 = vdwg.mxu0
        %887 = vmatprep.subr.bf16.mxu0 0
        %888 = vmatpush1.bf16.msra.mxu0 %v645
        %889 = vmatprep.subr.bf16.mxu0 0
        %890 = vmatpush1.bf16.msra.mxu0 %v650
        %891 = vmatprep.subr.bf16.mxu0 0
        %892 = vmatpush1.bf16.msra.mxu0 %v655
        %893 = vmatprep.subr.bf16.mxu0 0
        %894 = vmatpush1.bf16.msra.mxu0 %v660
        %895 = vmatprep.subr.bf16.mxu0 0
        %896 = vmatpush1.bf16.msra.mxu0 %v665
        %897 = vmatprep.subr.bf16.mxu0 0
        %898 = vmatpush1.bf16.msra.mxu0 %v670
        %899 = vmatprep.subr.bf16.mxu0 0
        %900 = vmatpush1.bf16.msra.mxu0 %v675
        %901 = vmatprep.subr.bf16.mxu0 0
        %902 = vmatpush1.bf16.msra.mxu0 %v680
        %903 = vmatprep.subr.bf16.mxu0 0
        %904 = vmatpush1.bf16.msra.mxu0 %v685
        %905 = vmatprep.subr.bf16.mxu0 0
        %906 = vmatpush1.bf16.msra.mxu0 %v690
        %907 = vmatprep.subr.bf16.mxu0 0
        %908 = vmatpush1.bf16.msra.mxu0 %v695
        %909 = vmatprep.subr.bf16.mxu0 0
        %910 = vmatpush1.bf16.msra.mxu0 %v700
        %911 = vmatprep.subr.bf16.mxu0 0
        %912 = vmatpush1.bf16.msra.mxu0 %v705
        %913 = vmatprep.subr.bf16.mxu0 0
        %914 = vmatpush1.bf16.msra.mxu0 %v710
        %915 = vmatprep.subr.bf16.mxu0 0
        %916 = vmatpush1.bf16.msra.mxu0 %v715
        %917 = vmatprep.subr.bf16.mxu0 0
        %918 = vmatpush1.bf16.msra.mxu0 %v720
        %919 = vmatprep.mubr.bf16.mxu0 %v288
        %920 = vmatmul.mubr.bf16.gmra.mrb[0].mxu0 %v287
        %v921 = vpop.f32.mrb[0].mxu0
        %v922 = vadd.f32 0.0, %v921
        %v923 = vpop.f32.mrb[0].mxu0
        %v924 = vpop.f32.mrb[0].mxu0
        %v925 = vadd.f32 0.0, %v924
        %v926 = vpop.f32.mrb[0].mxu0
        %927 = vdwg.mxu0
        %v928 = vld [vmem:[%s258] sm:$0xff]
        %v929 = vld [vmem:[%s258 + $0x8] sm:$0xff]
        %vm930 = vcmp.gt.f32.partialorder %v928, 0.5
        %vm931 = vcmp.gt.f32.partialorder %v929, 0.5
        %932 = vxpose.xlu0.b32.start [1/16] %v922, 128
        %933 = vxpose.xlu0.b32.cont [2/16] %v925, 128
        %934 = vxpose.xlu0.b32.cont [3/16] 0.0, 128
        %935 = vxpose.xlu0.b32.cont [4/16] 0.0, 128
        %936 = vxpose.xlu0.b32.cont [5/16] 0.0, 128
        %937 = vxpose.xlu0.b32.cont [6/16] 0.0, 128
        %938 = vxpose.xlu0.b32.cont [7/16] 0.0, 128
        %939 = vxpose.xlu0.b32.cont [8/16] 0.0, 128
        %940 = vxpose.xlu0.b32.cont [9/16] 0.0, 128
        %941 = vxpose.xlu0.b32.cont [10/16] 0.0, 128
        %942 = vxpose.xlu0.b32.cont [11/16] 0.0, 128
        %943 = vxpose.xlu0.b32.cont [12/16] 0.0, 128
        %944 = vxpose.xlu0.b32.cont [13/16] 0.0, 128
        %945 = vxpose.xlu0.b32.cont [14/16] 0.0, 128
        %946 = vxpose.xlu0.b32.cont [15/16] 0.0, 128
        %947 = vxpose.xlu0.b32.end [16/16] 0.0, 128
        %v948 = vpop.trf.xlu0
        %v949 = vpop.trf.xlu0
        %v950 = vpop.trf.xlu0
        %v951 = vpop.trf.xlu0
        %v952 = vpop.trf.xlu0
        %v953 = vpop.trf.xlu0
        %v954 = vpop.trf.xlu0
        %v955 = vpop.trf.xlu0
        %v956 = vpop.trf.xlu0
        %v957 = vpop.trf.xlu0
        %v958 = vpop.trf.xlu0
        %v959 = vpop.trf.xlu0
        %v960 = vpop.trf.xlu0
        %v961 = vpop.trf.xlu0
        %v962 = vpop.trf.xlu0
        %v963 = vpop.trf.xlu0
        %965 = vset.pattern.permute.xlu0 8
        %966 = vperm.xlu0 %965, %v922
        %v967 = vpop.permute.xlu0 %966
        %970 = vset.pattern.permute.xlu0 8
        %971 = vperm.xlu0 %970, %v925
        %v972 = vpop.permute.xlu0 %971
        %v974 = vlaneseq
        %v975 = vshrl.u32 %v974, 7
        %v976 = vsub.s32 0, %v975
        %v977 = vrot.slane %v948, %v976
        %v978 = vadd.f32 %v967, %v977
        %v979 = vadd.f32 %v972, %v977
        %vm980 = vcmp.gt.f32.partialorder %v978, 0.0
        %vm981 = vcmp.gt.f32.partialorder %v979, 0.0
        %v982 = vmul.f32 %v978, 0.2
        %v983 = vmul.f32 %v979, 0.2
        %v984 = vsel %vm980, %v978, %v982
        %v985 = vsel %vm981, %v979, %v983
        %v986 = vsel %vm930, %v984, -1e+30
        %v987 = vsel %vm931, %v985, -1e+30
        %vm988 = vcmask 130048
        %v989 = vsel %vm988, %v986, -inf
        %990 = vmax.xlane.f32.xlu0 %v989
        %v991 = vpop.xlane.xlu0 %990
        %v992 = vsel %vm988, %v987, -inf
        %993 = vmax.xlane.f32.xlu0 %v992
        %v994 = vpop.xlane.xlu0 %993
        %v995 = vsub.f32 %v986, %v991
        %v996 = vsub.f32 %v987, %v994
        %v997 = vmul.f32 %v995, 1.442695
        %v998 = vpow.pop %v997
        %v999 = vmul.f32 %v996, 1.442695
        %v1000 = vpow.pop %v999
        %v1001 = vsel %vm988, %v998, 0.0
        %1002 = vadd.xlane.f32.xlu0 %v1001
        %v1003 = vpop.xlane.xlu0 %1002
        %v1004 = vsel %vm988, %v1000, 0.0
        %1005 = vadd.xlane.f32.xlu0 %v1004
        %v1006 = vpop.xlane.xlu0 %1005
        %v1007 = vrcp.pop %v1003
        %v1008 = vrcp.pop %v1006
        %v1009 = vmul.f32 %v998, %v1007
        %v1010 = vmul.f32 %v1000, %v1008
        %v1011 = vpack.c.bf16 %v1010, %v1009
        %v1012 = vpack.c.bf16 %v840, %v836
        %v1014 = vsel %vm988, %v1011, 0
        %1016 = vmatprep.subr.bf16.mxu0 0
        %1017 = vmatpush1.bf16.msra.mxu0 %v1012
        %1018 = vmatprep.subr.bf16.mxu0 0
        %1019 = vmatpush1.bf16.msra.mxu0 0
        %1020 = vmatprep.subr.bf16.mxu0 0
        %1021 = vmatpush1.bf16.msra.mxu0 0
        %1022 = vmatprep.subr.bf16.mxu0 0
        %1023 = vmatpush1.bf16.msra.mxu0 0
        %1024 = vmatprep.subr.bf16.mxu0 0
        %1025 = vmatpush1.bf16.msra.mxu0 0
        %1026 = vmatprep.subr.bf16.mxu0 0
        %1027 = vmatpush1.bf16.msra.mxu0 0
        %1028 = vmatprep.subr.bf16.mxu0 0
        %1029 = vmatpush1.bf16.msra.mxu0 0
        %1030 = vmatprep.subr.bf16.mxu0 0
        %1031 = vmatpush1.bf16.msra.mxu0 0
        %1032 = vmatprep.subr.bf16.mxu0 0
        %1033 = vmatpush1.bf16.msra.mxu0 0
        %1034 = vmatprep.subr.bf16.mxu0 0
        %1035 = vmatpush1.bf16.msra.mxu0 0
        %1036 = vmatprep.subr.bf16.mxu0 0
        %1037 = vmatpush1.bf16.msra.mxu0 0
        %1038 = vmatprep.subr.bf16.mxu0 0
        %1039 = vmatpush1.bf16.msra.mxu0 0
        %1040 = vmatprep.subr.bf16.mxu0 0
        %1041 = vmatpush1.bf16.msra.mxu0 0
        %1042 = vmatprep.subr.bf16.mxu0 0
        %1043 = vmatpush1.bf16.msra.mxu0 0
        %1044 = vmatprep.subr.bf16.mxu0 0
        %1045 = vmatpush1.bf16.msra.mxu0 0
        %1046 = vmatprep.subr.bf16.mxu0 0
        %1047 = vmatpush1.bf16.msra.mxu0 0
        %1048 = vmatprep.mubr.bf16.mxu0 0
        %1049 = vmatmul.mubr.bf16.gmra.mrb[0].mxu0 %v1014
        %v1050 = vpop.f32.mrb[0].mxu0
        %v1051 = vadd.f32 0.0, %v1050
        %v1052 = vpop.f32.mrb[0].mxu0
        %v1053 = vpop.f32.mrb[0].mxu0
        %v1054 = vadd.f32 0.0, %v1053
        %v1055 = vpop.f32.mrb[0].mxu0
        %1056 = vdwg.mxu0
        %1057 = vset.pattern.permute.xlu0 9
        %1058 = vperm.xlu0 %1057, %v922
        %v1059 = vpop.permute.xlu0 %1058
        %1061 = vset.pattern.permute.xlu0 9
        %1062 = vperm.xlu0 %1061, %v925
        %v1063 = vpop.permute.xlu0 %1062
        %v1065 = vlaneseq
        %v1066 = vshrl.u32 %v1065, 7
        %v1067 = vsub.s32 1, %v1066
        %v1068 = vrot.slane %v948, %v1067
        %v1069 = vadd.f32 %v1059, %v1068
        %v1070 = vadd.f32 %v1063, %v1068
        %vm1071 = vcmp.gt.f32.partialorder %v1069, 0.0
        %vm1072 = vcmp.gt.f32.partialorder %v1070, 0.0
        %v1073 = vmul.f32 %v1069, 0.2
        %v1074 = vmul.f32 %v1070, 0.2
        %v1075 = vsel %vm1071, %v1069, %v1073
        %v1076 = vsel %vm1072, %v1070, %v1074
        %v1077 = vsel %vm930, %v1075, -1e+30
        %v1078 = vsel %vm931, %v1076, -1e+30
        %v1079 = vsel %vm988, %v1077, -inf
        %1080 = vmax.xlane.f32.xlu0 %v1079
        %v1081 = vpop.xlane.xlu0 %1080
        %v1082 = vsel %vm988, %v1078, -inf
        %1083 = vmax.xlane.f32.xlu0 %v1082
        %v1084 = vpop.xlane.xlu0 %1083
        %v1085 = vsub.f32 %v1077, %v1081
        %v1086 = vsub.f32 %v1078, %v1084
        %v1087 = vmul.f32 %v1085, 1.442695
        %v1088 = vpow.pop %v1087
        %v1089 = vmul.f32 %v1086, 1.442695
        %v1090 = vpow.pop %v1089
        %v1091 = vsel %vm988, %v1088, 0.0
        %1092 = vadd.xlane.f32.xlu0 %v1091
        %v1093 = vpop.xlane.xlu0 %1092
        %v1094 = vsel %vm988, %v1090, 0.0
        %1095 = vadd.xlane.f32.xlu0 %v1094
        %v1096 = vpop.xlane.xlu0 %1095
        %v1097 = vrcp.pop %v1093
        %v1098 = vrcp.pop %v1096
        %v1099 = vmul.f32 %v1088, %v1097
        %v1100 = vmul.f32 %v1090, %v1098
        %v1101 = vpack.c.bf16 %v1100, %v1099
        %1103 = vrot.lane.b32.xlu0 %v1012, 96
        %v1104 = vpop.permute.xlu0 %1103
        %v1107 = vsel %vm988, %v1101, 0
        %1109 = vmatprep.subr.bf16.mxu0 0
        %1110 = vmatpush1.bf16.msra.mxu0 %v1104
        %1111 = vmatprep.subr.bf16.mxu0 0
        %1112 = vmatpush1.bf16.msra.mxu0 0
        %1113 = vmatprep.subr.bf16.mxu0 0
        %1114 = vmatpush1.bf16.msra.mxu0 0
        %1115 = vmatprep.subr.bf16.mxu0 0
        %1116 = vmatpush1.bf16.msra.mxu0 0
        %1117 = vmatprep.subr.bf16.mxu0 0
        %1118 = vmatpush1.bf16.msra.mxu0 0
        %1119 = vmatprep.subr.bf16.mxu0 0
        %1120 = vmatpush1.bf16.msra.mxu0 0
        %1121 = vmatprep.subr.bf16.mxu0 0
        %1122 = vmatpush1.bf16.msra.mxu0 0
        %1123 = vmatprep.subr.bf16.mxu0 0
        %1124 = vmatpush1.bf16.msra.mxu0 0
        %1125 = vmatprep.subr.bf16.mxu0 0
        %1126 = vmatpush1.bf16.msra.mxu0 0
        %1127 = vmatprep.subr.bf16.mxu0 0
        %1128 = vmatpush1.bf16.msra.mxu0 0
        %1129 = vmatprep.subr.bf16.mxu0 0
        %1130 = vmatpush1.bf16.msra.mxu0 0
        %1131 = vmatprep.subr.bf16.mxu0 0
        %1132 = vmatpush1.bf16.msra.mxu0 0
        %1133 = vmatprep.subr.bf16.mxu0 0
        %1134 = vmatpush1.bf16.msra.mxu0 0
        %1135 = vmatprep.subr.bf16.mxu0 0
        %1136 = vmatpush1.bf16.msra.mxu0 0
        %1137 = vmatprep.subr.bf16.mxu0 0
        %1138 = vmatpush1.bf16.msra.mxu0 0
        %1139 = vmatprep.subr.bf16.mxu0 0
        %1140 = vmatpush1.bf16.msra.mxu0 0
        %1141 = vmatprep.mubr.bf16.mxu0 0
        %1142 = vmatmul.mubr.bf16.gmra.mrb[0].mxu0 %v1107
        %v1143 = vpop.f32.mrb[0].mxu0
        %v1144 = vadd.f32 0.0, %v1143
        %v1145 = vpop.f32.mrb[0].mxu0
        %v1146 = vpop.f32.mrb[0].mxu0
        %v1147 = vadd.f32 0.0, %v1146
        %v1148 = vpop.f32.mrb[0].mxu0
        %1149 = vdwg.mxu0
        %1150 = vset.pattern.permute.xlu0 10
        %1151 = vperm.xlu0 %1150, %v922
        %v1152 = vpop.permute.xlu0 %1151
        %1154 = vset.pattern.permute.xlu0 10
        %1155 = vperm.xlu0 %1154, %v925
        %v1156 = vpop.permute.xlu0 %1155
        %v1158 = vlaneseq
        %v1159 = vshrl.u32 %v1158, 7
        %v1160 = vsub.s32 2, %v1159
        %v1161 = vrot.slane %v948, %v1160
        %v1162 = vadd.f32 %v1152, %v1161
        %v1163 = vadd.f32 %v1156, %v1161
        %vm1164 = vcmp.gt.f32.partialorder %v1162, 0.0
        %vm1165 = vcmp.gt.f32.partialorder %v1163, 0.0
        %v1166 = vmul.f32 %v1162, 0.2
        %v1167 = vmul.f32 %v1163, 0.2
        %v1168 = vsel %vm1164, %v1162, %v1166
        %v1169 = vsel %vm1165, %v1163, %v1167
        %v1170 = vsel %vm930, %v1168, -1e+30
        %v1171 = vsel %vm931, %v1169, -1e+30
        %v1172 = vsel %vm988, %v1170, -inf
        %1173 = vmax.xlane.f32.xlu0 %v1172
        %v1174 = vpop.xlane.xlu0 %1173
        %v1175 = vsel %vm988, %v1171, -inf
        %1176 = vmax.xlane.f32.xlu0 %v1175
        %v1177 = vpop.xlane.xlu0 %1176
        %v1178 = vsub.f32 %v1170, %v1174
        %v1179 = vsub.f32 %v1171, %v1177
        %v1180 = vmul.f32 %v1178, 1.442695
        %v1181 = vpow.pop %v1180
        %v1182 = vmul.f32 %v1179, 1.442695
        %v1183 = vpow.pop %v1182
        %v1184 = vsel %vm988, %v1181, 0.0
        %1185 = vadd.xlane.f32.xlu0 %v1184
        %v1186 = vpop.xlane.xlu0 %1185
        %v1187 = vsel %vm988, %v1183, 0.0
        %1188 = vadd.xlane.f32.xlu0 %v1187
        %v1189 = vpop.xlane.xlu0 %1188
        %v1190 = vrcp.pop %v1186
        %v1191 = vrcp.pop %v1189
        %v1192 = vmul.f32 %v1181, %v1190
        %v1193 = vmul.f32 %v1183, %v1191
        %v1194 = vpack.c.bf16 %v1193, %v1192
        %1195 = vrot.lane.b32.xlu0 %v1012, 64
        %v1196 = vpop.permute.xlu0 %1195
        %v1199 = vsel %vm988, %v1194, 0
        %1201 = vmatprep.subr.bf16.mxu0 0
        %1202 = vmatpush1.bf16.msra.mxu0 %v1196
        %1203 = vmatprep.subr.bf16.mxu0 0
        %1204 = vmatpush1.bf16.msra.mxu0 0
        %1205 = vmatprep.subr.bf16.mxu0 0
        %1206 = vmatpush1.bf16.msra.mxu0 0
        %1207 = vmatprep.subr.bf16.mxu0 0
        %1208 = vmatpush1.bf16.msra.mxu0 0
        %1209 = vmatprep.subr.bf16.mxu0 0
        %1210 = vmatpush1.bf16.msra.mxu0 0
        %1211 = vmatprep.subr.bf16.mxu0 0
        %1212 = vmatpush1.bf16.msra.mxu0 0
        %1213 = vmatprep.subr.bf16.mxu0 0
        %1214 = vmatpush1.bf16.msra.mxu0 0
        %1215 = vmatprep.subr.bf16.mxu0 0
        %1216 = vmatpush1.bf16.msra.mxu0 0
        %1217 = vmatprep.subr.bf16.mxu0 0
        %1218 = vmatpush1.bf16.msra.mxu0 0
        %1219 = vmatprep.subr.bf16.mxu0 0
        %1220 = vmatpush1.bf16.msra.mxu0 0
        %1221 = vmatprep.subr.bf16.mxu0 0
        %1222 = vmatpush1.bf16.msra.mxu0 0
        %1223 = vmatprep.subr.bf16.mxu0 0
        %1224 = vmatpush1.bf16.msra.mxu0 0
        %1225 = vmatprep.subr.bf16.mxu0 0
        %1226 = vmatpush1.bf16.msra.mxu0 0
        %1227 = vmatprep.subr.bf16.mxu0 0
        %1228 = vmatpush1.bf16.msra.mxu0 0
        %1229 = vmatprep.subr.bf16.mxu0 0
        %1230 = vmatpush1.bf16.msra.mxu0 0
        %1231 = vmatprep.subr.bf16.mxu0 0
        %1232 = vmatpush1.bf16.msra.mxu0 0
        %1233 = vmatprep.mubr.bf16.mxu0 0
        %1234 = vmatmul.mubr.bf16.gmra.mrb[0].mxu0 %v1199
        %v1235 = vpop.f32.mrb[0].mxu0
        %v1236 = vadd.f32 0.0, %v1235
        %v1237 = vpop.f32.mrb[0].mxu0
        %v1238 = vpop.f32.mrb[0].mxu0
        %v1239 = vadd.f32 0.0, %v1238
        %v1240 = vpop.f32.mrb[0].mxu0
        %1241 = vdwg.mxu0
        %1242 = vset.pattern.permute.xlu0 11
        %1243 = vperm.xlu0 %1242, %v922
        %v1244 = vpop.permute.xlu0 %1243
        %1246 = vset.pattern.permute.xlu0 11
        %1247 = vperm.xlu0 %1246, %v925
        %v1248 = vpop.permute.xlu0 %1247
        %v1250 = vlaneseq
        %v1251 = vshrl.u32 %v1250, 7
        %v1252 = vsub.s32 3, %v1251
        %v1253 = vrot.slane %v948, %v1252
        %v1254 = vadd.f32 %v1244, %v1253
        %v1255 = vadd.f32 %v1248, %v1253
        %vm1256 = vcmp.gt.f32.partialorder %v1254, 0.0
        %vm1257 = vcmp.gt.f32.partialorder %v1255, 0.0
        %v1258 = vmul.f32 %v1254, 0.2
        %v1259 = vmul.f32 %v1255, 0.2
        %v1260 = vsel %vm1256, %v1254, %v1258
        %v1261 = vsel %vm1257, %v1255, %v1259
        %v1262 = vsel %vm930, %v1260, -1e+30
        %v1263 = vsel %vm931, %v1261, -1e+30
        %v1264 = vsel %vm988, %v1262, -inf
        %1265 = vmax.xlane.f32.xlu0 %v1264
        %v1266 = vpop.xlane.xlu0 %1265
        %v1267 = vsel %vm988, %v1263, -inf
        %1268 = vmax.xlane.f32.xlu0 %v1267
        %v1269 = vpop.xlane.xlu0 %1268
        %v1270 = vsub.f32 %v1262, %v1266
        %v1271 = vsub.f32 %v1263, %v1269
        %v1272 = vmul.f32 %v1270, 1.442695
        %v1273 = vpow.pop %v1272
        %v1274 = vmul.f32 %v1271, 1.442695
        %v1275 = vpow.pop %v1274
        %v1276 = vsel %vm988, %v1273, 0.0
        %1277 = vadd.xlane.f32.xlu0 %v1276
        %v1278 = vpop.xlane.xlu0 %1277
        %v1279 = vsel %vm988, %v1275, 0.0
        %1280 = vadd.xlane.f32.xlu0 %v1279
        %v1281 = vpop.xlane.xlu0 %1280
        %v1282 = vrcp.pop %v1278
        %v1283 = vrcp.pop %v1281
        %v1284 = vmul.f32 %v1273, %v1282
        %v1285 = vmul.f32 %v1275, %v1283
        %v1286 = vpack.c.bf16 %v1285, %v1284
        %1287 = vrot.lane.b32.xlu0 %v1012, 32
        %v1288 = vpop.permute.xlu0 %1287
        %v1291 = vsel %vm988, %v1286, 0
        %1293 = vmatprep.subr.bf16.mxu0 0
        %1294 = vmatpush1.bf16.msra.mxu0 %v1288
        %1295 = vmatprep.subr.bf16.mxu0 0
        %1296 = vmatpush1.bf16.msra.mxu0 0
        %1297 = vmatprep.subr.bf16.mxu0 0
        %1298 = vmatpush1.bf16.msra.mxu0 0
        %1299 = vmatprep.subr.bf16.mxu0 0
        %1300 = vmatpush1.bf16.msra.mxu0 0
        %1301 = vmatprep.subr.bf16.mxu0 0
        %1302 = vmatpush1.bf16.msra.mxu0 0
        %1303 = vmatprep.subr.bf16.mxu0 0
        %1304 = vmatpush1.bf16.msra.mxu0 0
        %1305 = vmatprep.subr.bf16.mxu0 0
        %1306 = vmatpush1.bf16.msra.mxu0 0
        %1307 = vmatprep.subr.bf16.mxu0 0
        %1308 = vmatpush1.bf16.msra.mxu0 0
        %1309 = vmatprep.subr.bf16.mxu0 0
        %1310 = vmatpush1.bf16.msra.mxu0 0
        %1311 = vmatprep.subr.bf16.mxu0 0
        %1312 = vmatpush1.bf16.msra.mxu0 0
        %1313 = vmatprep.subr.bf16.mxu0 0
        %1314 = vmatpush1.bf16.msra.mxu0 0
        %1315 = vmatprep.subr.bf16.mxu0 0
        %1316 = vmatpush1.bf16.msra.mxu0 0
        %1317 = vmatprep.subr.bf16.mxu0 0
        %1318 = vmatpush1.bf16.msra.mxu0 0
        %1319 = vmatprep.subr.bf16.mxu0 0
        %1320 = vmatpush1.bf16.msra.mxu0 0
        %1321 = vmatprep.subr.bf16.mxu0 0
        %1322 = vmatpush1.bf16.msra.mxu0 0
        %1323 = vmatprep.subr.bf16.mxu0 0
        %1324 = vmatpush1.bf16.msra.mxu0 0
        %1325 = vmatprep.mubr.bf16.mxu0 0
        %1326 = vmatmul.mubr.bf16.gmra.mrb[0].mxu0 %v1291
        %v1327 = vpop.f32.mrb[0].mxu0
        %v1328 = vadd.f32 0.0, %v1327
        %v1329 = vpop.f32.mrb[0].mxu0
        %v1330 = vpop.f32.mrb[0].mxu0
        %v1331 = vadd.f32 0.0, %v1330
        %v1332 = vpop.f32.mrb[0].mxu0
        %1333 = vdwg.mxu0
        %1334 = vset.pattern.permute.xlu0 12
        %1335 = vperm.xlu0 %1334, %v922
        %v1336 = vpop.permute.xlu0 %1335
        %1338 = vset.pattern.permute.xlu0 12
        %1339 = vperm.xlu0 %1338, %v925
        %v1340 = vpop.permute.xlu0 %1339
        %v1342 = vlaneseq
        %v1343 = vshrl.u32 %v1342, 7
        %v1344 = vsub.s32 4, %v1343
        %v1345 = vrot.slane %v948, %v1344
        %v1346 = vadd.f32 %v1336, %v1345
        %v1347 = vadd.f32 %v1340, %v1345
        %vm1348 = vcmp.gt.f32.partialorder %v1346, 0.0
        %vm1349 = vcmp.gt.f32.partialorder %v1347, 0.0
        %v1350 = vmul.f32 %v1346, 0.2
        %v1351 = vmul.f32 %v1347, 0.2
        %v1352 = vsel %vm1348, %v1346, %v1350
        %v1353 = vsel %vm1349, %v1347, %v1351
        %v1354 = vsel %vm930, %v1352, -1e+30
        %v1355 = vsel %vm931, %v1353, -1e+30
        %v1356 = vsel %vm988, %v1354, -inf
        %1357 = vmax.xlane.f32.xlu0 %v1356
        %v1358 = vpop.xlane.xlu0 %1357
        %v1359 = vsel %vm988, %v1355, -inf
        %1360 = vmax.xlane.f32.xlu0 %v1359
        %v1361 = vpop.xlane.xlu0 %1360
        %v1362 = vsub.f32 %v1354, %v1358
        %v1363 = vsub.f32 %v1355, %v1361
        %v1364 = vmul.f32 %v1362, 1.442695
        %v1365 = vpow.pop %v1364
        %v1366 = vmul.f32 %v1363, 1.442695
        %v1367 = vpow.pop %v1366
        %v1368 = vsel %vm988, %v1365, 0.0
        %1369 = vadd.xlane.f32.xlu0 %v1368
        %v1370 = vpop.xlane.xlu0 %1369
        %v1371 = vsel %vm988, %v1367, 0.0
        %1372 = vadd.xlane.f32.xlu0 %v1371
        %v1373 = vpop.xlane.xlu0 %1372
        %v1374 = vrcp.pop %v1370
        %v1375 = vrcp.pop %v1373
        %v1376 = vmul.f32 %v1365, %v1374
        %v1377 = vmul.f32 %v1367, %v1375
        %v1378 = vpack.c.bf16 %v1377, %v1376
        %v1379 = vpack.c.bf16 %v842, %v838
        %v1381 = vsel %vm988, %v1378, 0
        %1383 = vmatprep.subr.bf16.mxu0 0
        %1384 = vmatpush1.bf16.msra.mxu0 %v1379
        %1385 = vmatprep.subr.bf16.mxu0 0
        %1386 = vmatpush1.bf16.msra.mxu0 0
        %1387 = vmatprep.subr.bf16.mxu0 0
        %1388 = vmatpush1.bf16.msra.mxu0 0
        %1389 = vmatprep.subr.bf16.mxu0 0
        %1390 = vmatpush1.bf16.msra.mxu0 0
        %1391 = vmatprep.subr.bf16.mxu0 0
        %1392 = vmatpush1.bf16.msra.mxu0 0
        %1393 = vmatprep.subr.bf16.mxu0 0
        %1394 = vmatpush1.bf16.msra.mxu0 0
        %1395 = vmatprep.subr.bf16.mxu0 0
        %1396 = vmatpush1.bf16.msra.mxu0 0
        %1397 = vmatprep.subr.bf16.mxu0 0
        %1398 = vmatpush1.bf16.msra.mxu0 0
        %1399 = vmatprep.subr.bf16.mxu0 0
        %1400 = vmatpush1.bf16.msra.mxu0 0
        %1401 = vmatprep.subr.bf16.mxu0 0
        %1402 = vmatpush1.bf16.msra.mxu0 0
        %1403 = vmatprep.subr.bf16.mxu0 0
        %1404 = vmatpush1.bf16.msra.mxu0 0
        %1405 = vmatprep.subr.bf16.mxu0 0
        %1406 = vmatpush1.bf16.msra.mxu0 0
        %1407 = vmatprep.subr.bf16.mxu0 0
        %1408 = vmatpush1.bf16.msra.mxu0 0
        %1409 = vmatprep.subr.bf16.mxu0 0
        %1410 = vmatpush1.bf16.msra.mxu0 0
        %1411 = vmatprep.subr.bf16.mxu0 0
        %1412 = vmatpush1.bf16.msra.mxu0 0
        %1413 = vmatprep.subr.bf16.mxu0 0
        %1414 = vmatpush1.bf16.msra.mxu0 0
        %1415 = vmatprep.mubr.bf16.mxu0 0
        %1416 = vmatmul.mubr.bf16.gmra.mrb[0].mxu0 %v1381
        %v1417 = vpop.f32.mrb[0].mxu0
        %v1418 = vadd.f32 0.0, %v1417
        %v1419 = vpop.f32.mrb[0].mxu0
        %v1420 = vpop.f32.mrb[0].mxu0
        %v1421 = vadd.f32 0.0, %v1420
        %v1422 = vpop.f32.mrb[0].mxu0
        %1423 = vdwg.mxu0
        %1424 = vset.pattern.permute.xlu0 13
        %1425 = vperm.xlu0 %1424, %v922
        %v1426 = vpop.permute.xlu0 %1425
        %1428 = vset.pattern.permute.xlu0 13
        %1429 = vperm.xlu0 %1428, %v925
        %v1430 = vpop.permute.xlu0 %1429
        %v1432 = vlaneseq
        %v1433 = vshrl.u32 %v1432, 7
        %v1434 = vsub.s32 5, %v1433
        %v1435 = vrot.slane %v948, %v1434
        %v1436 = vadd.f32 %v1426, %v1435
        %v1437 = vadd.f32 %v1430, %v1435
        %vm1438 = vcmp.gt.f32.partialorder %v1436, 0.0
        %vm1439 = vcmp.gt.f32.partialorder %v1437, 0.0
        %v1440 = vmul.f32 %v1436, 0.2
        %v1441 = vmul.f32 %v1437, 0.2
        %v1442 = vsel %vm1438, %v1436, %v1440
        %v1443 = vsel %vm1439, %v1437, %v1441
        %v1444 = vsel %vm930, %v1442, -1e+30
        %v1445 = vsel %vm931, %v1443, -1e+30
        %v1446 = vsel %vm988, %v1444, -inf
        %1447 = vmax.xlane.f32.xlu0 %v1446
        %v1448 = vpop.xlane.xlu0 %1447
        %v1449 = vsel %vm988, %v1445, -inf
        %1450 = vmax.xlane.f32.xlu0 %v1449
        %v1451 = vpop.xlane.xlu0 %1450
        %v1452 = vsub.f32 %v1444, %v1448
        %v1453 = vsub.f32 %v1445, %v1451
        %v1454 = vmul.f32 %v1452, 1.442695
        %v1455 = vpow.pop %v1454
        %v1456 = vmul.f32 %v1453, 1.442695
        %v1457 = vpow.pop %v1456
        %v1458 = vsel %vm988, %v1455, 0.0
        %1459 = vadd.xlane.f32.xlu0 %v1458
        %v1460 = vpop.xlane.xlu0 %1459
        %v1461 = vsel %vm988, %v1457, 0.0
        %1462 = vadd.xlane.f32.xlu0 %v1461
        %v1463 = vpop.xlane.xlu0 %1462
        %v1464 = vrcp.pop %v1460
        %v1465 = vrcp.pop %v1463
        %v1466 = vmul.f32 %v1455, %v1464
        %v1467 = vmul.f32 %v1457, %v1465
        %v1468 = vpack.c.bf16 %v1467, %v1466
        %1470 = vrot.lane.b32.xlu0 %v1379, 96
        %v1471 = vpop.permute.xlu0 %1470
        %v1474 = vsel %vm988, %v1468, 0
        %1476 = vmatprep.subr.bf16.mxu0 0
        %1477 = vmatpush1.bf16.msra.mxu0 %v1471
        %1478 = vmatprep.subr.bf16.mxu0 0
        %1479 = vmatpush1.bf16.msra.mxu0 0
        %1480 = vmatprep.subr.bf16.mxu0 0
        %1481 = vmatpush1.bf16.msra.mxu0 0
        %1482 = vmatprep.subr.bf16.mxu0 0
        %1483 = vmatpush1.bf16.msra.mxu0 0
        %1484 = vmatprep.subr.bf16.mxu0 0
        %1485 = vmatpush1.bf16.msra.mxu0 0
        %1486 = vmatprep.subr.bf16.mxu0 0
        %1487 = vmatpush1.bf16.msra.mxu0 0
        %1488 = vmatprep.subr.bf16.mxu0 0
        %1489 = vmatpush1.bf16.msra.mxu0 0
        %1490 = vmatprep.subr.bf16.mxu0 0
        %1491 = vmatpush1.bf16.msra.mxu0 0
        %1492 = vmatprep.subr.bf16.mxu0 0
        %1493 = vmatpush1.bf16.msra.mxu0 0
        %1494 = vmatprep.subr.bf16.mxu0 0
        %1495 = vmatpush1.bf16.msra.mxu0 0
        %1496 = vmatprep.subr.bf16.mxu0 0
        %1497 = vmatpush1.bf16.msra.mxu0 0
        %1498 = vmatprep.subr.bf16.mxu0 0
        %1499 = vmatpush1.bf16.msra.mxu0 0
        %1500 = vmatprep.subr.bf16.mxu0 0
        %1501 = vmatpush1.bf16.msra.mxu0 0
        %1502 = vmatprep.subr.bf16.mxu0 0
        %1503 = vmatpush1.bf16.msra.mxu0 0
        %1504 = vmatprep.subr.bf16.mxu0 0
        %1505 = vmatpush1.bf16.msra.mxu0 0
        %1506 = vmatprep.subr.bf16.mxu0 0
        %1507 = vmatpush1.bf16.msra.mxu0 0
        %1508 = vmatprep.mubr.bf16.mxu0 0
        %1509 = vmatmul.mubr.bf16.gmra.mrb[0].mxu0 %v1474
        %v1510 = vpop.f32.mrb[0].mxu0
        %v1511 = vadd.f32 0.0, %v1510
        %v1512 = vpop.f32.mrb[0].mxu0
        %v1513 = vpop.f32.mrb[0].mxu0
        %v1514 = vadd.f32 0.0, %v1513
        %v1515 = vpop.f32.mrb[0].mxu0
        %1516 = vdwg.mxu0
        %1517 = vset.pattern.permute.xlu0 14
        %1518 = vperm.xlu0 %1517, %v922
        %v1519 = vpop.permute.xlu0 %1518
        %1521 = vset.pattern.permute.xlu0 14
        %1522 = vperm.xlu0 %1521, %v925
        %v1523 = vpop.permute.xlu0 %1522
        %v1525 = vlaneseq
        %v1526 = vshrl.u32 %v1525, 7
        %v1527 = vsub.s32 6, %v1526
        %v1528 = vrot.slane %v948, %v1527
        %v1529 = vadd.f32 %v1519, %v1528
        %v1530 = vadd.f32 %v1523, %v1528
        %vm1531 = vcmp.gt.f32.partialorder %v1529, 0.0
        %vm1532 = vcmp.gt.f32.partialorder %v1530, 0.0
        %v1533 = vmul.f32 %v1529, 0.2
        %v1534 = vmul.f32 %v1530, 0.2
        %v1535 = vsel %vm1531, %v1529, %v1533
        %v1536 = vsel %vm1532, %v1530, %v1534
        %v1537 = vsel %vm930, %v1535, -1e+30
        %v1538 = vsel %vm931, %v1536, -1e+30
        %v1539 = vsel %vm988, %v1537, -inf
        %1540 = vmax.xlane.f32.xlu0 %v1539
        %v1541 = vpop.xlane.xlu0 %1540
        %v1542 = vsel %vm988, %v1538, -inf
        %1543 = vmax.xlane.f32.xlu0 %v1542
        %v1544 = vpop.xlane.xlu0 %1543
        %v1545 = vsub.f32 %v1537, %v1541
        %v1546 = vsub.f32 %v1538, %v1544
        %v1547 = vmul.f32 %v1545, 1.442695
        %v1548 = vpow.pop %v1547
        %v1549 = vmul.f32 %v1546, 1.442695
        %v1550 = vpow.pop %v1549
        %v1551 = vsel %vm988, %v1548, 0.0
        %1552 = vadd.xlane.f32.xlu0 %v1551
        %v1553 = vpop.xlane.xlu0 %1552
        %v1554 = vsel %vm988, %v1550, 0.0
        %1555 = vadd.xlane.f32.xlu0 %v1554
        %v1556 = vpop.xlane.xlu0 %1555
        %v1557 = vrcp.pop %v1553
        %v1558 = vrcp.pop %v1556
        %v1559 = vmul.f32 %v1548, %v1557
        %v1560 = vmul.f32 %v1550, %v1558
        %v1561 = vpack.c.bf16 %v1560, %v1559
        %1562 = vrot.lane.b32.xlu0 %v1379, 64
        %v1563 = vpop.permute.xlu0 %1562
        %v1566 = vsel %vm988, %v1561, 0
        %1568 = vmatprep.subr.bf16.mxu0 0
        %1569 = vmatpush1.bf16.msra.mxu0 %v1563
        %1570 = vmatprep.subr.bf16.mxu0 0
        %1571 = vmatpush1.bf16.msra.mxu0 0
        %1572 = vmatprep.subr.bf16.mxu0 0
        %1573 = vmatpush1.bf16.msra.mxu0 0
        %1574 = vmatprep.subr.bf16.mxu0 0
        %1575 = vmatpush1.bf16.msra.mxu0 0
        %1576 = vmatprep.subr.bf16.mxu0 0
        %1577 = vmatpush1.bf16.msra.mxu0 0
        %1578 = vmatprep.subr.bf16.mxu0 0
        %1579 = vmatpush1.bf16.msra.mxu0 0
        %1580 = vmatprep.subr.bf16.mxu0 0
        %1581 = vmatpush1.bf16.msra.mxu0 0
        %1582 = vmatprep.subr.bf16.mxu0 0
        %1583 = vmatpush1.bf16.msra.mxu0 0
        %1584 = vmatprep.subr.bf16.mxu0 0
        %1585 = vmatpush1.bf16.msra.mxu0 0
        %1586 = vmatprep.subr.bf16.mxu0 0
        %1587 = vmatpush1.bf16.msra.mxu0 0
        %1588 = vmatprep.subr.bf16.mxu0 0
        %1589 = vmatpush1.bf16.msra.mxu0 0
        %1590 = vmatprep.subr.bf16.mxu0 0
        %1591 = vmatpush1.bf16.msra.mxu0 0
        %1592 = vmatprep.subr.bf16.mxu0 0
        %1593 = vmatpush1.bf16.msra.mxu0 0
        %1594 = vmatprep.subr.bf16.mxu0 0
        %1595 = vmatpush1.bf16.msra.mxu0 0
        %1596 = vmatprep.subr.bf16.mxu0 0
        %1597 = vmatpush1.bf16.msra.mxu0 0
        %1598 = vmatprep.subr.bf16.mxu0 0
        %1599 = vmatpush1.bf16.msra.mxu0 0
        %1600 = vmatprep.mubr.bf16.mxu0 0
        %1601 = vmatmul.mubr.bf16.gmra.mrb[0].mxu0 %v1566
        %v1602 = vpop.f32.mrb[0].mxu0
        %v1603 = vadd.f32 0.0, %v1602
        %v1604 = vpop.f32.mrb[0].mxu0
        %v1605 = vpop.f32.mrb[0].mxu0
        %v1606 = vadd.f32 0.0, %v1605
        %v1607 = vpop.f32.mrb[0].mxu0
        %1608 = vdwg.mxu0
        %1609 = vset.pattern.permute.xlu0 15
        %1610 = vperm.xlu0 %1609, %v922
        %v1611 = vpop.permute.xlu0 %1610
        %1613 = vset.pattern.permute.xlu0 15
        %1614 = vperm.xlu0 %1613, %v925
        %v1615 = vpop.permute.xlu0 %1614
        %v1617 = vlaneseq
        %v1618 = vshrl.u32 %v1617, 7
        %v1619 = vsub.s32 7, %v1618
        %v1620 = vrot.slane %v948, %v1619
        %v1621 = vadd.f32 %v1611, %v1620
        %v1622 = vadd.f32 %v1615, %v1620
        %vm1623 = vcmp.gt.f32.partialorder %v1621, 0.0
        %vm1624 = vcmp.gt.f32.partialorder %v1622, 0.0
        %v1625 = vmul.f32 %v1621, 0.2
        %v1626 = vmul.f32 %v1622, 0.2
        %v1627 = vsel %vm1623, %v1621, %v1625
        %v1628 = vsel %vm1624, %v1622, %v1626
        %v1629 = vsel %vm930, %v1627, -1e+30
        %v1630 = vsel %vm931, %v1628, -1e+30
        %v1631 = vsel %vm988, %v1629, -inf
        %1632 = vmax.xlane.f32.xlu0 %v1631
        %v1633 = vpop.xlane.xlu0 %1632
        %v1634 = vsel %vm988, %v1630, -inf
        %1635 = vmax.xlane.f32.xlu0 %v1634
        %v1636 = vpop.xlane.xlu0 %1635
        %v1637 = vsub.f32 %v1629, %v1633
        %v1638 = vsub.f32 %v1630, %v1636
        %v1639 = vmul.f32 %v1637, 1.442695
        %v1640 = vpow.pop %v1639
        %v1641 = vmul.f32 %v1638, 1.442695
        %v1642 = vpow.pop %v1641
        %v1643 = vsel %vm988, %v1640, 0.0
        %1644 = vadd.xlane.f32.xlu0 %v1643
        %v1645 = vpop.xlane.xlu0 %1644
        %v1646 = vsel %vm988, %v1642, 0.0
        %1647 = vadd.xlane.f32.xlu0 %v1646
        %v1648 = vpop.xlane.xlu0 %1647
        %v1649 = vrcp.pop %v1645
        %v1650 = vrcp.pop %v1648
        %v1651 = vmul.f32 %v1640, %v1649
        %v1652 = vmul.f32 %v1642, %v1650
        %v1653 = vpack.c.bf16 %v1652, %v1651
        %1654 = vrot.lane.b32.xlu0 %v1379, 32
        %v1655 = vpop.permute.xlu0 %1654
        %v1658 = vsel %vm988, %v1653, 0
        %1660 = vmatprep.subr.bf16.mxu0 0
        %1661 = vmatpush1.bf16.msra.mxu0 %v1655
        %1662 = vmatprep.subr.bf16.mxu0 0
        %1663 = vmatpush1.bf16.msra.mxu0 0
        %1664 = vmatprep.subr.bf16.mxu0 0
        %1665 = vmatpush1.bf16.msra.mxu0 0
        %1666 = vmatprep.subr.bf16.mxu0 0
        %1667 = vmatpush1.bf16.msra.mxu0 0
        %1668 = vmatprep.subr.bf16.mxu0 0
        %1669 = vmatpush1.bf16.msra.mxu0 0
        %1670 = vmatprep.subr.bf16.mxu0 0
        %1671 = vmatpush1.bf16.msra.mxu0 0
        %1672 = vmatprep.subr.bf16.mxu0 0
        %1673 = vmatpush1.bf16.msra.mxu0 0
        %1674 = vmatprep.subr.bf16.mxu0 0
        %1675 = vmatpush1.bf16.msra.mxu0 0
        %1676 = vmatprep.subr.bf16.mxu0 0
        %1677 = vmatpush1.bf16.msra.mxu0 0
        %1678 = vmatprep.subr.bf16.mxu0 0
        %1679 = vmatpush1.bf16.msra.mxu0 0
        %1680 = vmatprep.subr.bf16.mxu0 0
        %1681 = vmatpush1.bf16.msra.mxu0 0
        %1682 = vmatprep.subr.bf16.mxu0 0
        %1683 = vmatpush1.bf16.msra.mxu0 0
        %1684 = vmatprep.subr.bf16.mxu0 0
        %1685 = vmatpush1.bf16.msra.mxu0 0
        %1686 = vmatprep.subr.bf16.mxu0 0
        %1687 = vmatpush1.bf16.msra.mxu0 0
        %1688 = vmatprep.subr.bf16.mxu0 0
        %1689 = vmatpush1.bf16.msra.mxu0 0
        %1690 = vmatprep.subr.bf16.mxu0 0
        %1691 = vmatpush1.bf16.msra.mxu0 0
        %1692 = vmatprep.mubr.bf16.mxu0 0
        %1693 = vmatmul.mubr.bf16.gmra.mrb[0].mxu0 %v1658
        %v1694 = vpop.f32.mrb[0].mxu0
        %v1695 = vadd.f32 0.0, %v1694
        %v1696 = vpop.f32.mrb[0].mxu0
        %v1697 = vpop.f32.mrb[0].mxu0
        %v1698 = vadd.f32 0.0, %v1697
        %v1699 = vpop.f32.mrb[0].mxu0
        %1700 = vdwg.mxu0
        %1703 = vrot.lane.b32.xlu0 %v1144, 32
        %v1704 = vpop.permute.xlu0 %1703
        %1705 = vrot.lane.b32.xlu0 %v1147, 32
        %v1706 = vpop.permute.xlu0 %1705
        %1711 = vrot.lane.b32.xlu0 %v1236, 64
        %v1712 = vpop.permute.xlu0 %1711
        %1713 = vrot.lane.b32.xlu0 %v1239, 64
        %v1714 = vpop.permute.xlu0 %1713
        %1719 = vrot.lane.b32.xlu0 %v1328, 96
        %v1720 = vpop.permute.xlu0 %1719
        %1721 = vrot.lane.b32.xlu0 %v1331, 96
        %v1722 = vpop.permute.xlu0 %1721
        %1727 = vrot.lane.b32.xlu0 %v1511, 32
        %v1728 = vpop.permute.xlu0 %1727
        %1729 = vrot.lane.b32.xlu0 %v1514, 32
        %v1730 = vpop.permute.xlu0 %1729
        %1735 = vrot.lane.b32.xlu0 %v1603, 64
        %v1736 = vpop.permute.xlu0 %1735
        %1737 = vrot.lane.b32.xlu0 %v1606, 64
        %v1738 = vpop.permute.xlu0 %1737
        %1743 = vrot.lane.b32.xlu0 %v1695, 96
        %v1744 = vpop.permute.xlu0 %1743
        %1745 = vrot.lane.b32.xlu0 %v1698, 96
        %v1746 = vpop.permute.xlu0 %1745
        %vm1749 = vcmask 261120
        %v1750 = vsel %vm1749, %v1051, %v1704
        %v1751 = vsel %vm1749, %v1054, %v1706
        %vm1752 = vcmask 523264
        %v1753 = vsel %vm1752, %v1750, %v1712
        %v1754 = vsel %vm1752, %v1751, %v1714
        %vm1755 = vcmask 785408
        %v1756 = vsel %vm1755, %v1753, %v1720
        %v1757 = vsel %vm1755, %v1754, %v1722
        %v1758 = vsel %vm1749, %v1418, %v1728
        %v1759 = vsel %vm1749, %v1421, %v1730
        %v1760 = vsel %vm1752, %v1758, %v1736
        %v1761 = vsel %vm1752, %v1759, %v1738
        %v1762 = vsel %vm1755, %v1760, %v1744
        %v1763 = vsel %vm1755, %v1761, %v1746
        %v1764 = vadd.f32 %v1756, %v879
        %v1765 = vadd.f32 %v1762, %v881
        %v1766 = vadd.f32 %v1757, %v883
        %v1767 = vadd.f32 %v1763, %v885
        %v1768 = vld [vmem:[%s267] sm:$0x3]
        %v1770 = vlaneseq
        %v1771 = vshrl.u32 %v1770, 7
        %v1772 = vsub.s32 0, %v1771
        %v1773 = vrot.slane %v1768, %v1772
        %v1774 = vlaneseq
        %v1775 = vshrl.u32 %v1774, 7
        %v1776 = vsub.s32 1, %v1775
        %v1777 = vrot.slane %v1768, %v1776
        %v1780 = vadd.f32 %v1764, %v1773
        %v1781 = vadd.f32 %v1765, %v1777
        %v1782 = vadd.f32 %v1766, %v1773
        %v1783 = vadd.f32 %v1767, %v1777
        %1784 = vst [vmem:[%s246] sm:$0xff] %v1780
        %1785 = vst [vmem:[%s246 + $0x8] sm:$0xff] %v1781
        %1786 = vst [vmem:[%s246 + $0x10] sm:$0xff] %v1782
        %1787 = vst [vmem:[%s246 + $0x18] sm:$0xff] %v1783
        %v1788 = vmax.f32 %v1780, 0.0
        %v1789 = vmax.f32 %v1781, 0.0
        %v1790 = vmax.f32 %v1782, 0.0
        %v1791 = vmax.f32 %v1783, 0.0
        %1792 = vst [vmem:[#allocation2] sm:$0xff] %v1788
        %1793 = vst [vmem:[#allocation2 + $0x8] sm:$0xff] %v1789
        %1794 = vst [vmem:[#allocation2 + $0x10] sm:$0xff] %v1790
        %1795 = vst [vmem:[#allocation2 + $0x18] sm:$0xff] %v1791
        %s1796 = sand.u32 %s141, 1
        %s1797 = sand.u32 %s141, 1
        %s1798 = smul.addr %s1797, 32
        %s1799 = scalar_lea.vmem [#allocation3], %s1798
        // Predicated region
        $region41: #{netgat_forward.4} parent=35 // pred_check
          %p1800 = pneg %p151
        $region42: #{netgat_forward.4} parent=35 // pred_check_branch
          %1802 = sbr.rel (%p1800) target = $region44
        $region43: #{netgat_forward.4} parent=35 // pred_region
          %s1803 = smul.u32 2, %s19
          %s1804 = smul.u32 2, %s20
          %s1805 = smul.addr %s1803, 8
          %s1806 = sadd.s32 %s1804, %s1805
          %s1807 = smul.addr %s1806, 8
          %s1808 = scalar_lea.vmem %s4, %s1807
          // Predicated region
          $region45: #{netgat_forward.4} parent=43 // pred_check
            _
          $region46: #{netgat_forward.4} parent=43 // pred_check_branch
            %1810 = sbr.rel (0) target = $region48
          $region47: #{netgat_forward.4} parent=43 // pred_region
            // Predicated region
            $region49: #{netgat_forward.4} parent=47 // pred_check
              _
            $region50: #{netgat_forward.4} parent=47 // pred_check_branch
              %1812 = sbr.rel (0) target = $region52
            $region51: #{netgat_forward.4} parent=47 // pred_region
              loop: start=0, step=1, limit=1
              $region53: #{netgat_forward.4} parent=51 // loop_pre_header
                _
              $region54: #{netgat_forward.4} parent=51 // loop_header
                %s1814 = sphi 0, %s1818
                %p1815 = scmp.ge.s32.totalorder %s1814, 1
                %s1819 = sphi %s1799, %s1799
                %s1820 = sphi %s1808, %s1808
              $region55: #{netgat_forward.4} parent=51 // loop_header_branch
                %1817 = sbr.rel (%p1815) target = $region59
              $region56: #{netgat_forward.4} parent=51 // loop_body
                %v1821 = vld [vmem:[%s1819] sm:$0xff]
                %1822 = vst [vmem:[%s1820] sm:$0xff] %v1821
                %v1823 = vld [vmem:[%s1819 + $0x8] sm:$0xff]
                %1824 = vst [vmem:[%s1820 + $0x8] sm:$0xff] %v1823
                %v1825 = vld [vmem:[%s1819 + $0x10] sm:$0xff]
                %1826 = vst [vmem:[%s1820 + $0x40] sm:$0xff] %v1825
                %v1827 = vld [vmem:[%s1819 + $0x18] sm:$0xff]
                %1828 = vst [vmem:[%s1820 + $0x48] sm:$0xff] %v1827
              $region57: #{netgat_forward.4} parent=51 // loop_footer
                %s1818 = sadd.s32 1, %s1814
              $region58: #{netgat_forward.4} parent=51 // loop_footer_branch
                %1813 = sbr.rel target = $region54
              $region59: #{netgat_forward.4} parent=51 // loop_exit
                _
            $region52: #{netgat_forward.4} parent=47 // pred_fallthru
              _
            // Predicated region
            $region60: #{netgat_forward.4} parent=47 // pred_check
              _
            $region61: #{netgat_forward.4} parent=47 // pred_check_branch
              %1830 = sbr.rel target = $region63
            $region62: #{netgat_forward.4} parent=47 // pred_region
              _
            $region63: #{netgat_forward.4} parent=47 // pred_fallthru
              _
          $region48: #{netgat_forward.4} parent=43 // pred_fallthru
            _
          %1831 = vnop
        $region44: #{netgat_forward.4} parent=35 // pred_fallthru
          _
      $region36: #{netgat_forward.4} parent=5 // pred_fallthru
        _
      %p1832 = scmp.le.s32.totalorder 2, %s10
      // Predicated region
      $region64: #{netgat_forward.4} parent=5 // pred_check
        %p1833 = pneg %p1832
      $region65: #{netgat_forward.4} parent=5 // pred_check_branch
        %1835 = sbr.rel (%p1833) target = $region67
      $region66: #{netgat_forward.4} parent=5 // pred_region
        %s1836 = ssub.s32 %s10, 2
        // Predicated region
        $region68: #{netgat_forward.4} parent=66 // pred_check
          %p1837 = pneg %p157
        $region69: #{netgat_forward.4} parent=66 // pred_check_branch
          %1839 = sbr.rel (%p1837) target = $region71
        $region70: #{netgat_forward.4} parent=66 // pred_region
          %s1840 = sand.u32 %s142, 1
          %s1841 = sand.u32 %s142, 1
          %s1842 = smul.addr %s1841, 32
          %s1843 = scalar_lea.vmem [#allocation3], %s1842
        $region71: #{netgat_forward.4} parent=66 // pred_fallthru
          _
      $region67: #{netgat_forward.4} parent=5 // pred_fallthru
        _
    $region6: #{netgat_forward.4} parent=1 // loop_footer
      %s14 = sadd.s32 1, %s10
    $region7: #{netgat_forward.4} parent=1 // loop_footer_branch
      %9 = sbr.rel target = $region3
    $region8: #{netgat_forward.4} parent=1 // loop_exit
      _

// kernel: netgat_forward.5
$region0: #{netgat_forward.5}
  #allocation0 [shape = 'u32[]', space=smem, size = 0x4, offset = 0x4, fixed_abs, tag = 'smem constant byte address 0x4 - core index']
  #allocation1 [shape = 'u32[144,128]{1,0:T(1,128)}', space=vmem, size = 0x12000, scoped, tag = 'internal scratch']
  %s0 = inlined_call_operand.vmem [shape: f32[2,16,1024], index: 0, kind: input, shape index: {}]
  %s1 = inlined_call_operand.vmem [shape: bf16[2048,512], index: 1, kind: input, shape index: {}]
  %s2 = inlined_call_operand.vmem [shape: f32[1,512], index: 2, kind: input, shape index: {}]
  %s3 = inlined_call_operand.vmem [shape: bf16[512,256], index: 3, kind: input, shape index: {}]
  %s4 = inlined_call_operand.vmem [shape: f32[1,256], index: 4, kind: input, shape index: {}]
  %s5 = inlined_call_operand.vmem [shape: bf16[256,10], index: 5, kind: input, shape index: {}]
  %s6 = inlined_call_operand.vmem [shape: f32[1,10], index: 6, kind: input, shape index: {}]
  %s7 = inlined_call_operand.hbm [shape: f32[2,10], index: 7, kind: output, shape index: {}]
  %s8 = sld [smem:[#allocation0]]
  $region38: #{netgat_forward.5} parent=0
    _
  %s10 = ssub.s32 1, %s8
  %s11 = scalar_select 0, %s10, %s8
  $region1: #{netgat_forward.5} parent=0
    #allocation2 [shape = 'u8[1024]{0}', space=vmem, size = 0x400, scoped, tag = 'output window, operand 0, single buffered']
    #allocation3 [shape = 's32[1]{0}', space=sflag, size = 0x4, scoped, tag = 'scoped memory for netgat_forward.5']
    %12 = vsyncpa [#allocation3], 0
    // Predicated region
    $region2: #{netgat_forward.5} parent=1 // pred_check
      _
    $region3: #{netgat_forward.5} parent=1 // pred_check_branch
      %14 = sbr.rel (0) target = $region5
    $region4: #{netgat_forward.5} parent=1 // pred_region
      _
    $region5: #{netgat_forward.5} parent=1 // pred_fallthru
      _
    // Predicated region
    $region6: #{netgat_forward.5} parent=1 // pred_check
      _
    $region7: #{netgat_forward.5} parent=1 // pred_check_branch
      %16 = sbr.rel (0) target = $region9
    $region8: #{netgat_forward.5} parent=1 // pred_region
      _
    $region9: #{netgat_forward.5} parent=1 // pred_fallthru
      _
    // Predicated region
    $region10: #{netgat_forward.5} parent=1 // pred_check
      _
    $region11: #{netgat_forward.5} parent=1 // pred_check_branch
      %18 = sbr.rel (0) target = $region13
    $region12: #{netgat_forward.5} parent=1 // pred_region
      _
    $region13: #{netgat_forward.5} parent=1 // pred_fallthru
      _
    // Predicated region
    $region14: #{netgat_forward.5} parent=1 // pred_check
      _
    $region15: #{netgat_forward.5} parent=1 // pred_check_branch
      %20 = sbr.rel (0) target = $region17
    $region16: #{netgat_forward.5} parent=1 // pred_region
      _
    $region17: #{netgat_forward.5} parent=1 // pred_fallthru
      _
    // Predicated region
    $region18: #{netgat_forward.5} parent=1 // pred_check
      _
    $region19: #{netgat_forward.5} parent=1 // pred_check_branch
      %22 = sbr.rel (0) target = $region21
    $region20: #{netgat_forward.5} parent=1 // pred_region
      _
    $region21: #{netgat_forward.5} parent=1 // pred_fallthru
      _
    // Predicated region
    $region22: #{netgat_forward.5} parent=1 // pred_check
      _
    $region23: #{netgat_forward.5} parent=1 // pred_check_branch
      %24 = sbr.rel (0) target = $region25
    $region24: #{netgat_forward.5} parent=1 // pred_region
      _
    $region25: #{netgat_forward.5} parent=1 // pred_fallthru
      _
    // Predicated region
    $region26: #{netgat_forward.5} parent=1 // pred_check
      _
    $region27: #{netgat_forward.5} parent=1 // pred_check_branch
      %26 = sbr.rel (0) target = $region29
    $region28: #{netgat_forward.5} parent=1 // pred_region
      _
    $region29: #{netgat_forward.5} parent=1 // pred_fallthru
      _
    %v28 = vld [vmem:[%s0] sm:$0xff]
    %v29 = vld [vmem:[%s0 + $0x8] sm:$0xff]
    %v30 = vld [vmem:[%s0 + $0x10] sm:$0xff]
    %v31 = vld [vmem:[%s0 + $0x18] sm:$0xff]
    %v32 = vld [vmem:[%s0 + $0x20] sm:$0xff]
    %v33 = vld [vmem:[%s0 + $0x28] sm:$0xff]
    %v34 = vld [vmem:[%s0 + $0x30] sm:$0xff]
    %v35 = vld [vmem:[%s0 + $0x38] sm:$0xff]
    %v36 = vld [vmem:[%s0 + $0x40] sm:$0xff]
    %v37 = vld [vmem:[%s0 + $0x48] sm:$0xff]
    %v38 = vld [vmem:[%s0 + $0x50] sm:$0xff]
    %v39 = vld [vmem:[%s0 + $0x58] sm:$0xff]
    %v40 = vld [vmem:[%s0 + $0x60] sm:$0xff]
    %v41 = vld [vmem:[%s0 + $0x68] sm:$0xff]
    %v42 = vld [vmem:[%s0 + $0x70] sm:$0xff]
    %v43 = vld [vmem:[%s0 + $0x78] sm:$0xff]
    %v44 = vld [vmem:[%s0 + $0x80] sm:$0xff]
    %v45 = vld [vmem:[%s0 + $0x88] sm:$0xff]
    %v46 = vld [vmem:[%s0 + $0x90] sm:$0xff]
    %v47 = vld [vmem:[%s0 + $0x98] sm:$0xff]
    %v48 = vld [vmem:[%s0 + $0xa0] sm:$0xff]
    %v49 = vld [vmem:[%s0 + $0xa8] sm:$0xff]
    %v50 = vld [vmem:[%s0 + $0xb0] sm:$0xff]
    %v51 = vld [vmem:[%s0 + $0xb8] sm:$0xff]
    %v52 = vld [vmem:[%s0 + $0xc0] sm:$0xff]
    %v53 = vld [vmem:[%s0 + $0xc8] sm:$0xff]
    %v54 = vld [vmem:[%s0 + $0xd0] sm:$0xff]
    %v55 = vld [vmem:[%s0 + $0xd8] sm:$0xff]
    %v56 = vld [vmem:[%s0 + $0xe0] sm:$0xff]
    %v57 = vld [vmem:[%s0 + $0xe8] sm:$0xff]
    %v58 = vld [vmem:[%s0 + $0xf0] sm:$0xff]
    %v59 = vld [vmem:[%s0 + $0xf8] sm:$0xff]
    %v60 = vmax.f32 %v28, %v36
    %v61 = vrot.slane %v60, 4
    %v62 = vmax.f32 %v60, %v61
    %v63 = vrot.slane %v62, 2
    %v64 = vmax.f32 %v62, %v63
    %v65 = vrot.slane %v64, 1
    %v66 = vmax.f32 %v64, %v65
    %v67 = vmax.f32 %v29, %v37
    %v68 = vrot.slane %v67, 4
    %v69 = vmax.f32 %v67, %v68
    %v70 = vrot.slane %v69, 2
    %v71 = vmax.f32 %v69, %v70
    %v72 = vrot.slane %v71, 1
    %v73 = vmax.f32 %v71, %v72
    %v74 = vmax.f32 %v30, %v38
    %v75 = vrot.slane %v74, 4
    %v76 = vmax.f32 %v74, %v75
    %v77 = vrot.slane %v76, 2
    %v78 = vmax.f32 %v76, %v77
    %v79 = vrot.slane %v78, 1
    %v80 = vmax.f32 %v78, %v79
    %v81 = vmax.f32 %v31, %v39
    %v82 = vrot.slane %v81, 4
    %v83 = vmax.f32 %v81, %v82
    %v84 = vrot.slane %v83, 2
    %v85 = vmax.f32 %v83, %v84
    %v86 = vrot.slane %v85, 1
    %v87 = vmax.f32 %v85, %v86
    %v88 = vmax.f32 %v32, %v40
    %v89 = vrot.slane %v88, 4
    %v90 = vmax.f32 %v88, %v89
    %v91 = vrot.slane %v90, 2
    %v92 = vmax.f32 %v90, %v91
    %v93 = vrot.slane %v92, 1
    %v94 = vmax.f32 %v92, %v93
    %v95 = vmax.f32 %v33, %v41
    %v96 = vrot.slane %v95, 4
    %v97 = vmax.f32 %v95, %v96
    %v98 = vrot.slane %v97, 2
    %v99 = vmax.f32 %v97, %v98
    %v100 = vrot.slane %v99, 1
    %v101 = vmax.f32 %v99, %v100
    %v102 = vmax.f32 %v34, %v42
    %v103 = vrot.slane %v102, 4
    %v104 = vmax.f32 %v102, %v103
    %v105 = vrot.slane %v104, 2
    %v106 = vmax.f32 %v104, %v105
    %v107 = vrot.slane %v106, 1
    %v108 = vmax.f32 %v106, %v107
    %v109 = vmax.f32 %v35, %v43
    %v110 = vrot.slane %v109, 4
    %v111 = vmax.f32 %v109, %v110
    %v112 = vrot.slane %v111, 2
    %v113 = vmax.f32 %v111, %v112
    %v114 = vrot.slane %v113, 1
    %v115 = vmax.f32 %v113, %v114
    %v116 = vmax.f32 %v44, %v52
    %v117 = vrot.slane %v116, 4
    %v118 = vmax.f32 %v116, %v117
    %v119 = vrot.slane %v118, 2
    %v120 = vmax.f32 %v118, %v119
    %v121 = vrot.slane %v120, 1
    %v122 = vmax.f32 %v120, %v121
    %v123 = vmax.f32 %v45, %v53
    %v124 = vrot.slane %v123, 4
    %v125 = vmax.f32 %v123, %v124
    %v126 = vrot.slane %v125, 2
    %v127 = vmax.f32 %v125, %v126
    %v128 = vrot.slane %v127, 1
    %v129 = vmax.f32 %v127, %v128
    %v130 = vmax.f32 %v46, %v54
    %v131 = vrot.slane %v130, 4
    %v132 = vmax.f32 %v130, %v131
    %v133 = vrot.slane %v132, 2
    %v134 = vmax.f32 %v132, %v133
    %v135 = vrot.slane %v134, 1
    %v136 = vmax.f32 %v134, %v135
    %v137 = vmax.f32 %v47, %v55
    %v138 = vrot.slane %v137, 4
    %v139 = vmax.f32 %v137, %v138
    %v140 = vrot.slane %v139, 2
    %v141 = vmax.f32 %v139, %v140
    %v142 = vrot.slane %v141, 1
    %v143 = vmax.f32 %v141, %v142
    %v144 = vmax.f32 %v48, %v56
    %v145 = vrot.slane %v144, 4
    %v146 = vmax.f32 %v144, %v145
    %v147 = vrot.slane %v146, 2
    %v148 = vmax.f32 %v146, %v147
    %v149 = vrot.slane %v148, 1
    %v150 = vmax.f32 %v148, %v149
    %v151 = vmax.f32 %v49, %v57
    %v152 = vrot.slane %v151, 4
    %v153 = vmax.f32 %v151, %v152
    %v154 = vrot.slane %v153, 2
    %v155 = vmax.f32 %v153, %v154
    %v156 = vrot.slane %v155, 1
    %v157 = vmax.f32 %v155, %v156
    %v158 = vmax.f32 %v50, %v58
    %v159 = vrot.slane %v158, 4
    %v160 = vmax.f32 %v158, %v159
    %v161 = vrot.slane %v160, 2
    %v162 = vmax.f32 %v160, %v161
    %v163 = vrot.slane %v162, 1
    %v164 = vmax.f32 %v162, %v163
    %v165 = vmax.f32 %v51, %v59
    %v166 = vrot.slane %v165, 4
    %v167 = vmax.f32 %v165, %v166
    %v168 = vrot.slane %v167, 2
    %v169 = vmax.f32 %v167, %v168
    %v170 = vrot.slane %v169, 1
    %v171 = vmax.f32 %v169, %v170
    %v172 = vadd.f32 %v28, %v36
    %v173 = vrot.slane %v172, 4
    %v174 = vadd.f32 %v172, %v173
    %v175 = vrot.slane %v174, 2
    %v176 = vadd.f32 %v174, %v175
    %v177 = vrot.slane %v176, 1
    %v178 = vadd.f32 %v176, %v177
    %v179 = vadd.f32 %v29, %v37
    %v180 = vrot.slane %v179, 4
    %v181 = vadd.f32 %v179, %v180
    %v182 = vrot.slane %v181, 2
    %v183 = vadd.f32 %v181, %v182
    %v184 = vrot.slane %v183, 1
    %v185 = vadd.f32 %v183, %v184
    %v186 = vadd.f32 %v30, %v38
    %v187 = vrot.slane %v186, 4
    %v188 = vadd.f32 %v186, %v187
    %v189 = vrot.slane %v188, 2
    %v190 = vadd.f32 %v188, %v189
    %v191 = vrot.slane %v190, 1
    %v192 = vadd.f32 %v190, %v191
    %v193 = vadd.f32 %v31, %v39
    %v194 = vrot.slane %v193, 4
    %v195 = vadd.f32 %v193, %v194
    %v196 = vrot.slane %v195, 2
    %v197 = vadd.f32 %v195, %v196
    %v198 = vrot.slane %v197, 1
    %v199 = vadd.f32 %v197, %v198
    %v200 = vadd.f32 %v32, %v40
    %v201 = vrot.slane %v200, 4
    %v202 = vadd.f32 %v200, %v201
    %v203 = vrot.slane %v202, 2
    %v204 = vadd.f32 %v202, %v203
    %v205 = vrot.slane %v204, 1
    %v206 = vadd.f32 %v204, %v205
    %v207 = vadd.f32 %v33, %v41
    %v208 = vrot.slane %v207, 4
    %v209 = vadd.f32 %v207, %v208
    %v210 = vrot.slane %v209, 2
    %v211 = vadd.f32 %v209, %v210
    %v212 = vrot.slane %v211, 1
    %v213 = vadd.f32 %v211, %v212
    %v214 = vadd.f32 %v34, %v42
    %v215 = vrot.slane %v214, 4
    %v216 = vadd.f32 %v214, %v215
    %v217 = vrot.slane %v216, 2
    %v218 = vadd.f32 %v216, %v217
    %v219 = vrot.slane %v218, 1
    %v220 = vadd.f32 %v218, %v219
    %v221 = vadd.f32 %v35, %v43
    %v222 = vrot.slane %v221, 4
    %v223 = vadd.f32 %v221, %v222
    %v224 = vrot.slane %v223, 2
    %v225 = vadd.f32 %v223, %v224
    %v226 = vrot.slane %v225, 1
    %v227 = vadd.f32 %v225, %v226
    %v228 = vadd.f32 %v44, %v52
    %v229 = vrot.slane %v228, 4
    %v230 = vadd.f32 %v228, %v229
    %v231 = vrot.slane %v230, 2
    %v232 = vadd.f32 %v230, %v231
    %v233 = vrot.slane %v232, 1
    %v234 = vadd.f32 %v232, %v233
    %v235 = vadd.f32 %v45, %v53
    %v236 = vrot.slane %v235, 4
    %v237 = vadd.f32 %v235, %v236
    %v238 = vrot.slane %v237, 2
    %v239 = vadd.f32 %v237, %v238
    %v240 = vrot.slane %v239, 1
    %v241 = vadd.f32 %v239, %v240
    %v242 = vadd.f32 %v46, %v54
    %v243 = vrot.slane %v242, 4
    %v244 = vadd.f32 %v242, %v243
    %v245 = vrot.slane %v244, 2
    %v246 = vadd.f32 %v244, %v245
    %v247 = vrot.slane %v246, 1
    %v248 = vadd.f32 %v246, %v247
    %v249 = vadd.f32 %v47, %v55
    %v250 = vrot.slane %v249, 4
    %v251 = vadd.f32 %v249, %v250
    %v252 = vrot.slane %v251, 2
    %v253 = vadd.f32 %v251, %v252
    %v254 = vrot.slane %v253, 1
    %v255 = vadd.f32 %v253, %v254
    %v256 = vadd.f32 %v48, %v56
    %v257 = vrot.slane %v256, 4
    %v258 = vadd.f32 %v256, %v257
    %v259 = vrot.slane %v258, 2
    %v260 = vadd.f32 %v258, %v259
    %v261 = vrot.slane %v260, 1
    %v262 = vadd.f32 %v260, %v261
    %v263 = vadd.f32 %v49, %v57
    %v264 = vrot.slane %v263, 4
    %v265 = vadd.f32 %v263, %v264
    %v266 = vrot.slane %v265, 2
    %v267 = vadd.f32 %v265, %v266
    %v268 = vrot.slane %v267, 1
    %v269 = vadd.f32 %v267, %v268
    %v270 = vadd.f32 %v50, %v58
    %v271 = vrot.slane %v270, 4
    %v272 = vadd.f32 %v270, %v271
    %v273 = vrot.slane %v272, 2
    %v274 = vadd.f32 %v272, %v273
    %v275 = vrot.slane %v274, 1
    %v276 = vadd.f32 %v274, %v275
    %v277 = vadd.f32 %v51, %v59
    %v278 = vrot.slane %v277, 4
    %v279 = vadd.f32 %v277, %v278
    %v280 = vrot.slane %v279, 2
    %v281 = vadd.f32 %v279, %v280
    %v282 = vrot.slane %v281, 1
    %v283 = vadd.f32 %v281, %v282
    %v284 = vmul.f32 %v178, 0.0625
    %v285 = vmul.f32 %v185, 0.0625
    %v286 = vmul.f32 %v192, 0.0625
    %v287 = vmul.f32 %v199, 0.0625
    %v288 = vmul.f32 %v206, 0.0625
    %v289 = vmul.f32 %v213, 0.0625
    %v290 = vmul.f32 %v220, 0.0625
    %v291 = vmul.f32 %v227, 0.0625
    %v292 = vmul.f32 %v234, 0.0625
    %v293 = vmul.f32 %v241, 0.0625
    %v294 = vmul.f32 %v248, 0.0625
    %v295 = vmul.f32 %v255, 0.0625
    %v296 = vmul.f32 %v262, 0.0625
    %v297 = vmul.f32 %v269, 0.0625
    %v298 = vmul.f32 %v276, 0.0625
    %v299 = vmul.f32 %v283, 0.0625
    %vm316 = vcmask 1041409
    %v317 = vsel %vm316, %v122, %v66
    %v318 = vsel %vm316, %v129, %v73
    %v319 = vsel %vm316, %v136, %v80
    %v320 = vsel %vm316, %v143, %v87
    %v321 = vsel %vm316, %v150, %v94
    %v322 = vsel %vm316, %v157, %v101
    %v323 = vsel %vm316, %v164, %v108
    %v324 = vsel %vm316, %v171, %v115
    %v349 = vsel %vm316, %v292, %v284
    %v350 = vsel %vm316, %v293, %v285
    %v351 = vsel %vm316, %v294, %v286
    %v352 = vsel %vm316, %v295, %v287
    %v353 = vsel %vm316, %v296, %v288
    %v354 = vsel %vm316, %v297, %v289
    %v355 = vsel %vm316, %v298, %v290
    %v356 = vsel %vm316, %v299, %v291
    %v365 = vpack.c.bf16 %v317, %v317
    %v366 = vpack.c.bf16 %v318, %v318
    %v367 = vpack.c.bf16 %v319, %v319
    %v368 = vpack.c.bf16 %v320, %v320
    %v369 = vpack.c.bf16 %v321, %v321
    %v370 = vpack.c.bf16 %v322, %v322
    %v371 = vpack.c.bf16 %v323, %v323
    %v372 = vpack.c.bf16 %v324, %v324
    %v373 = vpack.c.bf16 %v349, %v349
    %v374 = vpack.c.bf16 %v350, %v350
    %v375 = vpack.c.bf16 %v351, %v351
    %v376 = vpack.c.bf16 %v352, %v352
    %v377 = vpack.c.bf16 %v353, %v353
    %v378 = vpack.c.bf16 %v354, %v354
    %v379 = vpack.c.bf16 %v355, %v355
    %v380 = vpack.c.bf16 %v356, %v356
    %v381 = vld [vmem:[%s1] sm:$0xff]
    %v382 = vld [vmem:[%s1 + $0x8] sm:$0xff]
    %v383 = vld [vmem:[%s1 + $0x10] sm:$0xff]
    %v384 = vld [vmem:[%s1 + $0x18] sm:$0xff]
    %v385 = vld [vmem:[%s1 + $0x20] sm:$0xff]
    %v386 = vld [vmem:[%s1 + $0x28] sm:$0xff]
    %v387 = vld [vmem:[%s1 + $0x30] sm:$0xff]
    %v388 = vld [vmem:[%s1 + $0x38] sm:$0xff]
    %v389 = vld [vmem:[%s1 + $0x40] sm:$0xff]
    %v390 = vld [vmem:[%s1 + $0x48] sm:$0xff]
    %v391 = vld [vmem:[%s1 + $0x50] sm:$0xff]
    %v392 = vld [vmem:[%s1 + $0x58] sm:$0xff]
    %v393 = vld [vmem:[%s1 + $0x60] sm:$0xff]
    %v394 = vld [vmem:[%s1 + $0x68] sm:$0xff]
    %v395 = vld [vmem:[%s1 + $0x70] sm:$0xff]
    %v396 = vld [vmem:[%s1 + $0x78] sm:$0xff]
    %v397 = vld [vmem:[%s1 + $0x80] sm:$0xff]
    %v398 = vld [vmem:[%s1 + $0x88] sm:$0xff]
    %v399 = vld [vmem:[%s1 + $0x90] sm:$0xff]
    %v400 = vld [vmem:[%s1 + $0x98] sm:$0xff]
    %v401 = vld [vmem:[%s1 + $0xa0] sm:$0xff]
    %v402 = vld [vmem:[%s1 + $0xa8] sm:$0xff]
    %v403 = vld [vmem:[%s1 + $0xb0] sm:$0xff]
    %v404 = vld [vmem:[%s1 + $0xb8] sm:$0xff]
    %v405 = vld [vmem:[%s1 + $0xc0] sm:$0xff]
    %v406 = vld [vmem:[%s1 + $0xc8] sm:$0xff]
    %v407 = vld [vmem:[%s1 + $0xd0] sm:$0xff]
    %v408 = vld [vmem:[%s1 + $0xd8] sm:$0xff]
    %v409 = vld [vmem:[%s1 + $0xe0] sm:$0xff]
    %v410 = vld [vmem:[%s1 + $0xe8] sm:$0xff]
    %v411 = vld [vmem:[%s1 + $0xf0] sm:$0xff]
    %v412 = vld [vmem:[%s1 + $0xf8] sm:$0xff]
    %v413 = vld [vmem:[%s1 + $0x100] sm:$0xff]
    %v414 = vld [vmem:[%s1 + $0x108] sm:$0xff]
    %v415 = vld [vmem:[%s1 + $0x110] sm:$0xff]
    %v416 = vld [vmem:[%s1 + $0x118] sm:$0xff]
    %v417 = vld [vmem:[%s1 + $0x120] sm:$0xff]
    %v418 = vld [vmem:[%s1 + $0x128] sm:$0xff]
    %v419 = vld [vmem:[%s1 + $0x130] sm:$0xff]
    %v420 = vld [vmem:[%s1 + $0x138] sm:$0xff]
    %v421 = vld [vmem:[%s1 + $0x140] sm:$0xff]
    %v422 = vld [vmem:[%s1 + $0x148] sm:$0xff]
    %v423 = vld [vmem:[%s1 + $0x150] sm:$0xff]
    %v424 = vld [vmem:[%s1 + $0x158] sm:$0xff]
    %v425 = vld [vmem:[%s1 + $0x160] sm:$0xff]
    %v426 = vld [vmem:[%s1 + $0x168] sm:$0xff]
    %v427 = vld [vmem:[%s1 + $0x170] sm:$0xff]
    %v428 = vld [vmem:[%s1 + $0x178] sm:$0xff]
    %v429 = vld [vmem:[%s1 + $0x180] sm:$0xff]
    %v430 = vld [vmem:[%s1 + $0x188] sm:$0xff]
    %v431 = vld [vmem:[%s1 + $0x190] sm:$0xff]
    %v432 = vld [vmem:[%s1 + $0x198] sm:$0xff]
    %v433 = vld [vmem:[%s1 + $0x1a0] sm:$0xff]
    %v434 = vld [vmem:[%s1 + $0x1a8] sm:$0xff]
    %v435 = vld [vmem:[%s1 + $0x1b0] sm:$0xff]
    %v436 = vld [vmem:[%s1 + $0x1b8] sm:$0xff]
    %v437 = vld [vmem:[%s1 + $0x1c0] sm:$0xff]
    %v438 = vld [vmem:[%s1 + $0x1c8] sm:$0xff]
    %v439 = vld [vmem:[%s1 + $0x1d0] sm:$0xff]
    %v440 = vld [vmem:[%s1 + $0x1d8] sm:$0xff]
    %v441 = vld [vmem:[%s1 + $0x1e0] sm:$0xff]
    %v442 = vld [vmem:[%s1 + $0x1e8] sm:$0xff]
    %v443 = vld [vmem:[%s1 + $0x1f0] sm:$0xff]
    %v444 = vld [vmem:[%s1 + $0x1f8] sm:$0xff]
    %v445 = vld [vmem:[%s1 + $0x200] sm:$0xff]
    %v446 = vld [vmem:[%s1 + $0x208] sm:$0xff]
    %v447 = vld [vmem:[%s1 + $0x210] sm:$0xff]
    %v448 = vld [vmem:[%s1 + $0x218] sm:$0xff]
    %v449 = vld [vmem:[%s1 + $0x220] sm:$0xff]
    %v450 = vld [vmem:[%s1 + $0x228] sm:$0xff]
    %v451 = vld [vmem:[%s1 + $0x230] sm:$0xff]
    %v452 = vld [vmem:[%s1 + $0x238] sm:$0xff]
    %v453 = vld [vmem:[%s1 + $0x240] sm:$0xff]
    %v454 = vld [vmem:[%s1 + $0x248] sm:$0xff]
    %v455 = vld [vmem:[%s1 + $0x250] sm:$0xff]
    %v456 = vld [vmem:[%s1 + $0x258] sm:$0xff]
    %v457 = vld [vmem:[%s1 + $0x260] sm:$0xff]
    %v458 = vld [vmem:[%s1 + $0x268] sm:$0xff]
    %v459 = vld [vmem:[%s1 + $0x270] sm:$0xff]
    %v460 = vld [vmem:[%s1 + $0x278] sm:$0xff]
    %v461 = vld [vmem:[%s1 + $0x280] sm:$0xff]
    %v462 = vld [vmem:[%s1 + $0x288] sm:$0xff]
    %v463 = vld [vmem:[%s1 + $0x290] sm:$0xff]
    %v464 = vld [vmem:[%s1 + $0x298] sm:$0xff]
    %v465 = vld [vmem:[%s1 + $0x2a0] sm:$0xff]
    %v466 = vld [vmem:[%s1 + $0x2a8] sm:$0xff]
    %v467 = vld [vmem:[%s1 + $0x2b0] sm:$0xff]
    %v468 = vld [vmem:[%s1 + $0x2b8] sm:$0xff]
    %v469 = vld [vmem:[%s1 + $0x2c0] sm:$0xff]
    %v470 = vld [vmem:[%s1 + $0x2c8] sm:$0xff]
    %v471 = vld [vmem:[%s1 + $0x2d0] sm:$0xff]
    %v472 = vld [vmem:[%s1 + $0x2d8] sm:$0xff]
    %v473 = vld [vmem:[%s1 + $0x2e0] sm:$0xff]
    %v474 = vld [vmem:[%s1 + $0x2e8] sm:$0xff]
    %v475 = vld [vmem:[%s1 + $0x2f0] sm:$0xff]
    %v476 = vld [vmem:[%s1 + $0x2f8] sm:$0xff]
    %v477 = vld [vmem:[%s1 + $0x300] sm:$0xff]
    %v478 = vld [vmem:[%s1 + $0x308] sm:$0xff]
    %v479 = vld [vmem:[%s1 + $0x310] sm:$0xff]
    %v480 = vld [vmem:[%s1 + $0x318] sm:$0xff]
    %v481 = vld [vmem:[%s1 + $0x320] sm:$0xff]
    %v482 = vld [vmem:[%s1 + $0x328] sm:$0xff]
    %v483 = vld [vmem:[%s1 + $0x330] sm:$0xff]
    %v484 = vld [vmem:[%s1 + $0x338] sm:$0xff]
    %v485 = vld [vmem:[%s1 + $0x340] sm:$0xff]
    %v486 = vld [vmem:[%s1 + $0x348] sm:$0xff]
    %v487 = vld [vmem:[%s1 + $0x350] sm:$0xff]
    %v488 = vld [vmem:[%s1 + $0x358] sm:$0xff]
    %v489 = vld [vmem:[%s1 + $0x360] sm:$0xff]
    %v490 = vld [vmem:[%s1 + $0x368] sm:$0xff]
    %v491 = vld [vmem:[%s1 + $0x370] sm:$0xff]
    %v492 = vld [vmem:[%s1 + $0x378] sm:$0xff]
    %v493 = vld [vmem:[%s1 + $0x380] sm:$0xff]
    %v494 = vld [vmem:[%s1 + $0x388] sm:$0xff]
    %v495 = vld [vmem:[%s1 + $0x390] sm:$0xff]
    %v496 = vld [vmem:[%s1 + $0x398] sm:$0xff]
    %v497 = vld [vmem:[%s1 + $0x3a0] sm:$0xff]
    %v498 = vld [vmem:[%s1 + $0x3a8] sm:$0xff]
    %v499 = vld [vmem:[%s1 + $0x3b0] sm:$0xff]
    %v500 = vld [vmem:[%s1 + $0x3b8] sm:$0xff]
    %v501 = vld [vmem:[%s1 + $0x3c0] sm:$0xff]
    %v502 = vld [vmem:[%s1 + $0x3c8] sm:$0xff]
    %v503 = vld [vmem:[%s1 + $0x3d0] sm:$0xff]
    %v504 = vld [vmem:[%s1 + $0x3d8] sm:$0xff]
    %v505 = vld [vmem:[%s1 + $0x3e0] sm:$0xff]
    %v506 = vld [vmem:[%s1 + $0x3e8] sm:$0xff]
    %v507 = vld [vmem:[%s1 + $0x3f0] sm:$0xff]
    %v508 = vld [vmem:[%s1 + $0x3f8] sm:$0xff]
    %v509 = vld [vmem:[%s1 + $0x400] sm:$0xff]
    %v510 = vld [vmem:[%s1 + $0x408] sm:$0xff]
    %v511 = vld [vmem:[%s1 + $0x410] sm:$0xff]
    %v512 = vld [vmem:[%s1 + $0x418] sm:$0xff]
    %v513 = vld [vmem:[%s1 + $0x420] sm:$0xff]
    %v514 = vld [vmem:[%s1 + $0x428] sm:$0xff]
    %v515 = vld [vmem:[%s1 + $0x430] sm:$0xff]
    %v516 = vld [vmem:[%s1 + $0x438] sm:$0xff]
    %v517 = vld [vmem:[%s1 + $0x440] sm:$0xff]
    %v518 = vld [vmem:[%s1 + $0x448] sm:$0xff]
    %v519 = vld [vmem:[%s1 + $0x450] sm:$0xff]
    %v520 = vld [vmem:[%s1 + $0x458] sm:$0xff]
    %v521 = vld [vmem:[%s1 + $0x460] sm:$0xff]
    %v522 = vld [vmem:[%s1 + $0x468] sm:$0xff]
    %v523 = vld [vmem:[%s1 + $0x470] sm:$0xff]
    %v524 = vld [vmem:[%s1 + $0x478] sm:$0xff]
    %v525 = vld [vmem:[%s1 + $0x480] sm:$0xff]
    %v526 = vld [vmem:[%s1 + $0x488] sm:$0xff]
    %v527 = vld [vmem:[%s1 + $0x490] sm:$0xff]
    %v528 = vld [vmem:[%s1 + $0x498] sm:$0xff]
    %v529 = vld [vmem:[%s1 + $0x4a0] sm:$0xff]
    %v530 = vld [vmem:[%s1 + $0x4a8] sm:$0xff]
    %v531 = vld [vmem:[%s1 + $0x4b0] sm:$0xff]
    %v532 = vld [vmem:[%s1 + $0x4b8] sm:$0xff]
    %v533 = vld [vmem:[%s1 + $0x4c0] sm:$0xff]
    %v534 = vld [vmem:[%s1 + $0x4c8] sm:$0xff]
    %v535 = vld [vmem:[%s1 + $0x4d0] sm:$0xff]
    %v536 = vld [vmem:[%s1 + $0x4d8] sm:$0xff]
    %v537 = vld [vmem:[%s1 + $0x4e0] sm:$0xff]
    %v538 = vld [vmem:[%s1 + $0x4e8] sm:$0xff]
    %v539 = vld [vmem:[%s1 + $0x4f0] sm:$0xff]
    %v540 = vld [vmem:[%s1 + $0x4f8] sm:$0xff]
    %v541 = vld [vmem:[%s1 + $0x500] sm:$0xff]
    %v542 = vld [vmem:[%s1 + $0x508] sm:$0xff]
    %v543 = vld [vmem:[%s1 + $0x510] sm:$0xff]
    %v544 = vld [vmem:[%s1 + $0x518] sm:$0xff]
    %v545 = vld [vmem:[%s1 + $0x520] sm:$0xff]
    %v546 = vld [vmem:[%s1 + $0x528] sm:$0xff]
    %v547 = vld [vmem:[%s1 + $0x530] sm:$0xff]
    %v548 = vld [vmem:[%s1 + $0x538] sm:$0xff]
    %v549 = vld [vmem:[%s1 + $0x540] sm:$0xff]
    %v550 = vld [vmem:[%s1 + $0x548] sm:$0xff]
    %v551 = vld [vmem:[%s1 + $0x550] sm:$0xff]
    %v552 = vld [vmem:[%s1 + $0x558] sm:$0xff]
    %v553 = vld [vmem:[%s1 + $0x560] sm:$0xff]
    %v554 = vld [vmem:[%s1 + $0x568] sm:$0xff]
    %v555 = vld [vmem:[%s1 + $0x570] sm:$0xff]
    %v556 = vld [vmem:[%s1 + $0x578] sm:$0xff]
    %v557 = vld [vmem:[%s1 + $0x580] sm:$0xff]
    %v558 = vld [vmem:[%s1 + $0x588] sm:$0xff]
    %v559 = vld [vmem:[%s1 + $0x590] sm:$0xff]
    %v560 = vld [vmem:[%s1 + $0x598] sm:$0xff]
    %v561 = vld [vmem:[%s1 + $0x5a0] sm:$0xff]
    %v562 = vld [vmem:[%s1 + $0x5a8] sm:$0xff]
    %v563 = vld [vmem:[%s1 + $0x5b0] sm:$0xff]
    %v564 = vld [vmem:[%s1 + $0x5b8] sm:$0xff]
    %v565 = vld [vmem:[%s1 + $0x5c0] sm:$0xff]
    %v566 = vld [vmem:[%s1 + $0x5c8] sm:$0xff]
    %v567 = vld [vmem:[%s1 + $0x5d0] sm:$0xff]
    %v568 = vld [vmem:[%s1 + $0x5d8] sm:$0xff]
    %v569 = vld [vmem:[%s1 + $0x5e0] sm:$0xff]
    %v570 = vld [vmem:[%s1 + $0x5e8] sm:$0xff]
    %v571 = vld [vmem:[%s1 + $0x5f0] sm:$0xff]
    %v572 = vld [vmem:[%s1 + $0x5f8] sm:$0xff]
    %v573 = vld [vmem:[%s1 + $0x600] sm:$0xff]
    %v574 = vld [vmem:[%s1 + $0x608] sm:$0xff]
    %v575 = vld [vmem:[%s1 + $0x610] sm:$0xff]
    %v576 = vld [vmem:[%s1 + $0x618] sm:$0xff]
    %v577 = vld [vmem:[%s1 + $0x620] sm:$0xff]
    %v578 = vld [vmem:[%s1 + $0x628] sm:$0xff]
    %v579 = vld [vmem:[%s1 + $0x630] sm:$0xff]
    %v580 = vld [vmem:[%s1 + $0x638] sm:$0xff]
    %v581 = vld [vmem:[%s1 + $0x640] sm:$0xff]
    %v582 = vld [vmem:[%s1 + $0x648] sm:$0xff]
    %v583 = vld [vmem:[%s1 + $0x650] sm:$0xff]
    %v584 = vld [vmem:[%s1 + $0x658] sm:$0xff]
    %v585 = vld [vmem:[%s1 + $0x660] sm:$0xff]
    %v586 = vld [vmem:[%s1 + $0x668] sm:$0xff]
    %v587 = vld [vmem:[%s1 + $0x670] sm:$0xff]
    %v588 = vld [vmem:[%s1 + $0x678] sm:$0xff]
    %v589 = vld [vmem:[%s1 + $0x680] sm:$0xff]
    %v590 = vld [vmem:[%s1 + $0x688] sm:$0xff]
    %v591 = vld [vmem:[%s1 + $0x690] sm:$0xff]
    %v592 = vld [vmem:[%s1 + $0x698] sm:$0xff]
    %v593 = vld [vmem:[%s1 + $0x6a0] sm:$0xff]
    %v594 = vld [vmem:[%s1 + $0x6a8] sm:$0xff]
    %v595 = vld [vmem:[%s1 + $0x6b0] sm:$0xff]
    %v596 = vld [vmem:[%s1 + $0x6b8] sm:$0xff]
    %v597 = vld [vmem:[%s1 + $0x6c0] sm:$0xff]
    %v598 = vld [vmem:[%s1 + $0x6c8] sm:$0xff]
    %v599 = vld [vmem:[%s1 + $0x6d0] sm:$0xff]
    %v600 = vld [vmem:[%s1 + $0x6d8] sm:$0xff]
    %v601 = vld [vmem:[%s1 + $0x6e0] sm:$0xff]
    %v602 = vld [vmem:[%s1 + $0x6e8] sm:$0xff]
    %v603 = vld [vmem:[%s1 + $0x6f0] sm:$0xff]
    %v604 = vld [vmem:[%s1 + $0x6f8] sm:$0xff]
    %v605 = vld [vmem:[%s1 + $0x700] sm:$0xff]
    %v606 = vld [vmem:[%s1 + $0x708] sm:$0xff]
    %v607 = vld [vmem:[%s1 + $0x710] sm:$0xff]
    %v608 = vld [vmem:[%s1 + $0x718] sm:$0xff]
    %v609 = vld [vmem:[%s1 + $0x720] sm:$0xff]
    %v610 = vld [vmem:[%s1 + $0x728] sm:$0xff]
    %v611 = vld [vmem:[%s1 + $0x730] sm:$0xff]
    %v612 = vld [vmem:[%s1 + $0x738] sm:$0xff]
    %v613 = vld [vmem:[%s1 + $0x740] sm:$0xff]
    %v614 = vld [vmem:[%s1 + $0x748] sm:$0xff]
    %v615 = vld [vmem:[%s1 + $0x750] sm:$0xff]
    %v616 = vld [vmem:[%s1 + $0x758] sm:$0xff]
    %v617 = vld [vmem:[%s1 + $0x760] sm:$0xff]
    %v618 = vld [vmem:[%s1 + $0x768] sm:$0xff]
    %v619 = vld [vmem:[%s1 + $0x770] sm:$0xff]
    %v620 = vld [vmem:[%s1 + $0x778] sm:$0xff]
    %v621 = vld [vmem:[%s1 + $0x780] sm:$0xff]
    %v622 = vld [vmem:[%s1 + $0x788] sm:$0xff]
    %v623 = vld [vmem:[%s1 + $0x790] sm:$0xff]
    %v624 = vld [vmem:[%s1 + $0x798] sm:$0xff]
    %v625 = vld [vmem:[%s1 + $0x7a0] sm:$0xff]
    %v626 = vld [vmem:[%s1 + $0x7a8] sm:$0xff]
    %v627 = vld [vmem:[%s1 + $0x7b0] sm:$0xff]
    %v628 = vld [vmem:[%s1 + $0x7b8] sm:$0xff]
    %v629 = vld [vmem:[%s1 + $0x7c0] sm:$0xff]
    %v630 = vld [vmem:[%s1 + $0x7c8] sm:$0xff]
    %v631 = vld [vmem:[%s1 + $0x7d0] sm:$0xff]
    %v632 = vld [vmem:[%s1 + $0x7d8] sm:$0xff]
    %v633 = vld [vmem:[%s1 + $0x7e0] sm:$0xff]
    %v634 = vld [vmem:[%s1 + $0x7e8] sm:$0xff]
    %v635 = vld [vmem:[%s1 + $0x7f0] sm:$0xff]
    %v636 = vld [vmem:[%s1 + $0x7f8] sm:$0xff]
    %v637 = vld [vmem:[%s1 + $0x800] sm:$0xff]
    %v638 = vld [vmem:[%s1 + $0x808] sm:$0xff]
    %v639 = vld [vmem:[%s1 + $0x810] sm:$0xff]
    %v640 = vld [vmem:[%s1 + $0x818] sm:$0xff]
    %v641 = vld [vmem:[%s1 + $0x820] sm:$0xff]
    %v642 = vld [vmem:[%s1 + $0x828] sm:$0xff]
    %v643 = vld [vmem:[%s1 + $0x830] sm:$0xff]
    %v644 = vld [vmem:[%s1 + $0x838] sm:$0xff]
    %v645 = vld [vmem:[%s1 + $0x840] sm:$0xff]
    %v646 = vld [vmem:[%s1 + $0x848] sm:$0xff]
    %v647 = vld [vmem:[%s1 + $0x850] sm:$0xff]
    %v648 = vld [vmem:[%s1 + $0x858] sm:$0xff]
    %v649 = vld [vmem:[%s1 + $0x860] sm:$0xff]
    %v650 = vld [vmem:[%s1 + $0x868] sm:$0xff]
    %v651 = vld [vmem:[%s1 + $0x870] sm:$0xff]
    %v652 = vld [vmem:[%s1 + $0x878] sm:$0xff]
    %v653 = vld [vmem:[%s1 + $0x880] sm:$0xff]
    %v654 = vld [vmem:[%s1 + $0x888] sm:$0xff]
    %v655 = vld [vmem:[%s1 + $0x890] sm:$0xff]
    %v656 = vld [vmem:[%s1 + $0x898] sm:$0xff]
    %v657 = vld [vmem:[%s1 + $0x8a0] sm:$0xff]
    %v658 = vld [vmem:[%s1 + $0x8a8] sm:$0xff]
    %v659 = vld [vmem:[%s1 + $0x8b0] sm:$0xff]
    %v660 = vld [vmem:[%s1 + $0x8b8] sm:$0xff]
    %v661 = vld [vmem:[%s1 + $0x8c0] sm:$0xff]
    %v662 = vld [vmem:[%s1 + $0x8c8] sm:$0xff]
    %v663 = vld [vmem:[%s1 + $0x8d0] sm:$0xff]
    %v664 = vld [vmem:[%s1 + $0x8d8] sm:$0xff]
    %v665 = vld [vmem:[%s1 + $0x8e0] sm:$0xff]
    %v666 = vld [vmem:[%s1 + $0x8e8] sm:$0xff]
    %v667 = vld [vmem:[%s1 + $0x8f0] sm:$0xff]
    %v668 = vld [vmem:[%s1 + $0x8f8] sm:$0xff]
    %v669 = vld [vmem:[%s1 + $0x900] sm:$0xff]
    %v670 = vld [vmem:[%s1 + $0x908] sm:$0xff]
    %v671 = vld [vmem:[%s1 + $0x910] sm:$0xff]
    %v672 = vld [vmem:[%s1 + $0x918] sm:$0xff]
    %v673 = vld [vmem:[%s1 + $0x920] sm:$0xff]
    %v674 = vld [vmem:[%s1 + $0x928] sm:$0xff]
    %v675 = vld [vmem:[%s1 + $0x930] sm:$0xff]
    %v676 = vld [vmem:[%s1 + $0x938] sm:$0xff]
    %v677 = vld [vmem:[%s1 + $0x940] sm:$0xff]
    %v678 = vld [vmem:[%s1 + $0x948] sm:$0xff]
    %v679 = vld [vmem:[%s1 + $0x950] sm:$0xff]
    %v680 = vld [vmem:[%s1 + $0x958] sm:$0xff]
    %v681 = vld [vmem:[%s1 + $0x960] sm:$0xff]
    %v682 = vld [vmem:[%s1 + $0x968] sm:$0xff]
    %v683 = vld [vmem:[%s1 + $0x970] sm:$0xff]
    %v684 = vld [vmem:[%s1 + $0x978] sm:$0xff]
    %v685 = vld [vmem:[%s1 + $0x980] sm:$0xff]
    %v686 = vld [vmem:[%s1 + $0x988] sm:$0xff]
    %v687 = vld [vmem:[%s1 + $0x990] sm:$0xff]
    %v688 = vld [vmem:[%s1 + $0x998] sm:$0xff]
    %v689 = vld [vmem:[%s1 + $0x9a0] sm:$0xff]
    %v690 = vld [vmem:[%s1 + $0x9a8] sm:$0xff]
    %v691 = vld [vmem:[%s1 + $0x9b0] sm:$0xff]
    %v692 = vld [vmem:[%s1 + $0x9b8] sm:$0xff]
    %v693 = vld [vmem:[%s1 + $0x9c0] sm:$0xff]
    %v694 = vld [vmem:[%s1 + $0x9c8] sm:$0xff]
    %v695 = vld [vmem:[%s1 + $0x9d0] sm:$0xff]
    %v696 = vld [vmem:[%s1 + $0x9d8] sm:$0xff]
    %v697 = vld [vmem:[%s1 + $0x9e0] sm:$0xff]
    %v698 = vld [vmem:[%s1 + $0x9e8] sm:$0xff]
    %v699 = vld [vmem:[%s1 + $0x9f0] sm:$0xff]
    %v700 = vld [vmem:[%s1 + $0x9f8] sm:$0xff]
    %v701 = vld [vmem:[%s1 + $0xa00] sm:$0xff]
    %v702 = vld [vmem:[%s1 + $0xa08] sm:$0xff]
    %v703 = vld [vmem:[%s1 + $0xa10] sm:$0xff]
    %v704 = vld [vmem:[%s1 + $0xa18] sm:$0xff]
    %v705 = vld [vmem:[%s1 + $0xa20] sm:$0xff]
    %v706 = vld [vmem:[%s1 + $0xa28] sm:$0xff]
    %v707 = vld [vmem:[%s1 + $0xa30] sm:$0xff]
    %v708 = vld [vmem:[%s1 + $0xa38] sm:$0xff]
    %v709 = vld [vmem:[%s1 + $0xa40] sm:$0xff]
    %v710 = vld [vmem:[%s1 + $0xa48] sm:$0xff]
    %v711 = vld [vmem:[%s1 + $0xa50] sm:$0xff]
    %v712 = vld [vmem:[%s1 + $0xa58] sm:$0xff]
    %v713 = vld [vmem:[%s1 + $0xa60] sm:$0xff]
    %v714 = vld [vmem:[%s1 + $0xa68] sm:$0xff]
    %v715 = vld [vmem:[%s1 + $0xa70] sm:$0xff]
    %v716 = vld [vmem:[%s1 + $0xa78] sm:$0xff]
    %v717 = vld [vmem:[%s1 + $0xa80] sm:$0xff]
    %v718 = vld [vmem:[%s1 + $0xa88] sm:$0xff]
    %v719 = vld [vmem:[%s1 + $0xa90] sm:$0xff]
    %v720 = vld [vmem:[%s1 + $0xa98] sm:$0xff]
    %v721 = vld [vmem:[%s1 + $0xaa0] sm:$0xff]
    %v722 = vld [vmem:[%s1 + $0xaa8] sm:$0xff]
    %v723 = vld [vmem:[%s1 + $0xab0] sm:$0xff]
    %v724 = vld [vmem:[%s1 + $0xab8] sm:$0xff]
    %v725 = vld [vmem:[%s1 + $0xac0] sm:$0xff]
    %v726 = vld [vmem:[%s1 + $0xac8] sm:$0xff]
    %v727 = vld [vmem:[%s1 + $0xad0] sm:$0xff]
    %v728 = vld [vmem:[%s1 + $0xad8] sm:$0xff]
    %v729 = vld [vmem:[%s1 + $0xae0] sm:$0xff]
    %v730 = vld [vmem:[%s1 + $0xae8] sm:$0xff]
    %v731 = vld [vmem:[%s1 + $0xaf0] sm:$0xff]
    %v732 = vld [vmem:[%s1 + $0xaf8] sm:$0xff]
    %v733 = vld [vmem:[%s1 + $0xb00] sm:$0xff]
    %v734 = vld [vmem:[%s1 + $0xb08] sm:$0xff]
    %v735 = vld [vmem:[%s1 + $0xb10] sm:$0xff]
    %v736 = vld [vmem:[%s1 + $0xb18] sm:$0xff]
    %v737 = vld [vmem:[%s1 + $0xb20] sm:$0xff]
    %v738 = vld [vmem:[%s1 + $0xb28] sm:$0xff]
    %v739 = vld [vmem:[%s1 + $0xb30] sm:$0xff]
    %v740 = vld [vmem:[%s1 + $0xb38] sm:$0xff]
    %v741 = vld [vmem:[%s1 + $0xb40] sm:$0xff]
    %v742 = vld [vmem:[%s1 + $0xb48] sm:$0xff]
    %v743 = vld [vmem:[%s1 + $0xb50] sm:$0xff]
    %v744 = vld [vmem:[%s1 + $0xb58] sm:$0xff]
    %v745 = vld [vmem:[%s1 + $0xb60] sm:$0xff]
    %v746 = vld [vmem:[%s1 + $0xb68] sm:$0xff]
    %v747 = vld [vmem:[%s1 + $0xb70] sm:$0xff]
    %v748 = vld [vmem:[%s1 + $0xb78] sm:$0xff]
    %v749 = vld [vmem:[%s1 + $0xb80] sm:$0xff]
    %v750 = vld [vmem:[%s1 + $0xb88] sm:$0xff]
    %v751 = vld [vmem:[%s1 + $0xb90] sm:$0xff]
    %v752 = vld [vmem:[%s1 + $0xb98] sm:$0xff]
    %v753 = vld [vmem:[%s1 + $0xba0] sm:$0xff]
    %v754 = vld [vmem:[%s1 + $0xba8] sm:$0xff]
    %v755 = vld [vmem:[%s1 + $0xbb0] sm:$0xff]
    %v756 = vld [vmem:[%s1 + $0xbb8] sm:$0xff]
    %v757 = vld [vmem:[%s1 + $0xbc0] sm:$0xff]
    %v758 = vld [vmem:[%s1 + $0xbc8] sm:$0xff]
    %v759 = vld [vmem:[%s1 + $0xbd0] sm:$0xff]
    %v760 = vld [vmem:[%s1 + $0xbd8] sm:$0xff]
    %v761 = vld [vmem:[%s1 + $0xbe0] sm:$0xff]
    %v762 = vld [vmem:[%s1 + $0xbe8] sm:$0xff]
    %v763 = vld [vmem:[%s1 + $0xbf0] sm:$0xff]
    %v764 = vld [vmem:[%s1 + $0xbf8] sm:$0xff]
    %v765 = vld [vmem:[%s1 + $0xc00] sm:$0xff]
    %v766 = vld [vmem:[%s1 + $0xc08] sm:$0xff]
    %v767 = vld [vmem:[%s1 + $0xc10] sm:$0xff]
    %v768 = vld [vmem:[%s1 + $0xc18] sm:$0xff]
    %v769 = vld [vmem:[%s1 + $0xc20] sm:$0xff]
    %v770 = vld [vmem:[%s1 + $0xc28] sm:$0xff]
    %v771 = vld [vmem:[%s1 + $0xc30] sm:$0xff]
    %v772 = vld [vmem:[%s1 + $0xc38] sm:$0xff]
    %v773 = vld [vmem:[%s1 + $0xc40] sm:$0xff]
    %v774 = vld [vmem:[%s1 + $0xc48] sm:$0xff]
    %v775 = vld [vmem:[%s1 + $0xc50] sm:$0xff]
    %v776 = vld [vmem:[%s1 + $0xc58] sm:$0xff]
    %v777 = vld [vmem:[%s1 + $0xc60] sm:$0xff]
    %v778 = vld [vmem:[%s1 + $0xc68] sm:$0xff]
    %v779 = vld [vmem:[%s1 + $0xc70] sm:$0xff]
    %v780 = vld [vmem:[%s1 + $0xc78] sm:$0xff]
    %v781 = vld [vmem:[%s1 + $0xc80] sm:$0xff]
    %v782 = vld [vmem:[%s1 + $0xc88] sm:$0xff]
    %v783 = vld [vmem:[%s1 + $0xc90] sm:$0xff]
    %v784 = vld [vmem:[%s1 + $0xc98] sm:$0xff]
    %v785 = vld [vmem:[%s1 + $0xca0] sm:$0xff]
    %v786 = vld [vmem:[%s1 + $0xca8] sm:$0xff]
    %v787 = vld [vmem:[%s1 + $0xcb0] sm:$0xff]
    %v788 = vld [vmem:[%s1 + $0xcb8] sm:$0xff]
    %v789 = vld [vmem:[%s1 + $0xcc0] sm:$0xff]
    %v790 = vld [vmem:[%s1 + $0xcc8] sm:$0xff]
    %v791 = vld [vmem:[%s1 + $0xcd0] sm:$0xff]
    %v792 = vld [vmem:[%s1 + $0xcd8] sm:$0xff]
    %v793 = vld [vmem:[%s1 + $0xce0] sm:$0xff]
    %v794 = vld [vmem:[%s1 + $0xce8] sm:$0xff]
    %v795 = vld [vmem:[%s1 + $0xcf0] sm:$0xff]
    %v796 = vld [vmem:[%s1 + $0xcf8] sm:$0xff]
    %v797 = vld [vmem:[%s1 + $0xd00] sm:$0xff]
    %v798 = vld [vmem:[%s1 + $0xd08] sm:$0xff]
    %v799 = vld [vmem:[%s1 + $0xd10] sm:$0xff]
    %v800 = vld [vmem:[%s1 + $0xd18] sm:$0xff]
    %v801 = vld [vmem:[%s1 + $0xd20] sm:$0xff]
    %v802 = vld [vmem:[%s1 + $0xd28] sm:$0xff]
    %v803 = vld [vmem:[%s1 + $0xd30] sm:$0xff]
    %v804 = vld [vmem:[%s1 + $0xd38] sm:$0xff]
    %v805 = vld [vmem:[%s1 + $0xd40] sm:$0xff]
    %v806 = vld [vmem:[%s1 + $0xd48] sm:$0xff]
    %v807 = vld [vmem:[%s1 + $0xd50] sm:$0xff]
    %v808 = vld [vmem:[%s1 + $0xd58] sm:$0xff]
    %v809 = vld [vmem:[%s1 + $0xd60] sm:$0xff]
    %v810 = vld [vmem:[%s1 + $0xd68] sm:$0xff]
    %v811 = vld [vmem:[%s1 + $0xd70] sm:$0xff]
    %v812 = vld [vmem:[%s1 + $0xd78] sm:$0xff]
    %v813 = vld [vmem:[%s1 + $0xd80] sm:$0xff]
    %v814 = vld [vmem:[%s1 + $0xd88] sm:$0xff]
    %v815 = vld [vmem:[%s1 + $0xd90] sm:$0xff]
    %v816 = vld [vmem:[%s1 + $0xd98] sm:$0xff]
    %v817 = vld [vmem:[%s1 + $0xda0] sm:$0xff]
    %v818 = vld [vmem:[%s1 + $0xda8] sm:$0xff]
    %v819 = vld [vmem:[%s1 + $0xdb0] sm:$0xff]
    %v820 = vld [vmem:[%s1 + $0xdb8] sm:$0xff]
    %v821 = vld [vmem:[%s1 + $0xdc0] sm:$0xff]
    %v822 = vld [vmem:[%s1 + $0xdc8] sm:$0xff]
    %v823 = vld [vmem:[%s1 + $0xdd0] sm:$0xff]
    %v824 = vld [vmem:[%s1 + $0xdd8] sm:$0xff]
    %v825 = vld [vmem:[%s1 + $0xde0] sm:$0xff]
    %v826 = vld [vmem:[%s1 + $0xde8] sm:$0xff]
    %v827 = vld [vmem:[%s1 + $0xdf0] sm:$0xff]
    %v828 = vld [vmem:[%s1 + $0xdf8] sm:$0xff]
    %v829 = vld [vmem:[%s1 + $0xe00] sm:$0xff]
    %v830 = vld [vmem:[%s1 + $0xe08] sm:$0xff]
    %v831 = vld [vmem:[%s1 + $0xe10] sm:$0xff]
    %v832 = vld [vmem:[%s1 + $0xe18] sm:$0xff]
    %v833 = vld [vmem:[%s1 + $0xe20] sm:$0xff]
    %v834 = vld [vmem:[%s1 + $0xe28] sm:$0xff]
    %v835 = vld [vmem:[%s1 + $0xe30] sm:$0xff]
    %v836 = vld [vmem:[%s1 + $0xe38] sm:$0xff]
    %v837 = vld [vmem:[%s1 + $0xe40] sm:$0xff]
    %v838 = vld [vmem:[%s1 + $0xe48] sm:$0xff]
    %v839 = vld [vmem:[%s1 + $0xe50] sm:$0xff]
    %v840 = vld [vmem:[%s1 + $0xe58] sm:$0xff]
    %v841 = vld [vmem:[%s1 + $0xe60] sm:$0xff]
    %v842 = vld [vmem:[%s1 + $0xe68] sm:$0xff]
    %v843 = vld [vmem:[%s1 + $0xe70] sm:$0xff]
    %v844 = vld [vmem:[%s1 + $0xe78] sm:$0xff]
    %v845 = vld [vmem:[%s1 + $0xe80] sm:$0xff]
    %v846 = vld [vmem:[%s1 + $0xe88] sm:$0xff]
    %v847 = vld [vmem:[%s1 + $0xe90] sm:$0xff]
    %v848 = vld [vmem:[%s1 + $0xe98] sm:$0xff]
    %v849 = vld [vmem:[%s1 + $0xea0] sm:$0xff]
    %v850 = vld [vmem:[%s1 + $0xea8] sm:$0xff]
    %v851 = vld [vmem:[%s1 + $0xeb0] sm:$0xff]
    %v852 = vld [vmem:[%s1 + $0xeb8] sm:$0xff]
    %v853 = vld [vmem:[%s1 + $0xec0] sm:$0xff]
    %v854 = vld [vmem:[%s1 + $0xec8] sm:$0xff]
    %v855 = vld [vmem:[%s1 + $0xed0] sm:$0xff]
    %v856 = vld [vmem:[%s1 + $0xed8] sm:$0xff]
    %v857 = vld [vmem:[%s1 + $0xee0] sm:$0xff]
    %v858 = vld [vmem:[%s1 + $0xee8] sm:$0xff]
    %v859 = vld [vmem:[%s1 + $0xef0] sm:$0xff]
    %v860 = vld [vmem:[%s1 + $0xef8] sm:$0xff]
    %v861 = vld [vmem:[%s1 + $0xf00] sm:$0xff]
    %v862 = vld [vmem:[%s1 + $0xf08] sm:$0xff]
    %v863 = vld [vmem:[%s1 + $0xf10] sm:$0xff]
    %v864 = vld [vmem:[%s1 + $0xf18] sm:$0xff]
    %v865 = vld [vmem:[%s1 + $0xf20] sm:$0xff]
    %v866 = vld [vmem:[%s1 + $0xf28] sm:$0xff]
    %v867 = vld [vmem:[%s1 + $0xf30] sm:$0xff]
    %v868 = vld [vmem:[%s1 + $0xf38] sm:$0xff]
    %v869 = vld [vmem:[%s1 + $0xf40] sm:$0xff]
    %v870 = vld [vmem:[%s1 + $0xf48] sm:$0xff]
    %v871 = vld [vmem:[%s1 + $0xf50] sm:$0xff]
    %v872 = vld [vmem:[%s1 + $0xf58] sm:$0xff]
    %v873 = vld [vmem:[%s1 + $0xf60] sm:$0xff]
    %v874 = vld [vmem:[%s1 + $0xf68] sm:$0xff]
    %v875 = vld [vmem:[%s1 + $0xf70] sm:$0xff]
    %v876 = vld [vmem:[%s1 + $0xf78] sm:$0xff]
    %v877 = vld [vmem:[%s1 + $0xf80] sm:$0xff]
    %v878 = vld [vmem:[%s1 + $0xf88] sm:$0xff]
    %v879 = vld [vmem:[%s1 + $0xf90] sm:$0xff]
    %v880 = vld [vmem:[%s1 + $0xf98] sm:$0xff]
    %v881 = vld [vmem:[%s1 + $0xfa0] sm:$0xff]
    %v882 = vld [vmem:[%s1 + $0xfa8] sm:$0xff]
    %v883 = vld [vmem:[%s1 + $0xfb0] sm:$0xff]
    %v884 = vld [vmem:[%s1 + $0xfb8] sm:$0xff]
    %v885 = vld [vmem:[%s1 + $0xfc0] sm:$0xff]
    %v886 = vld [vmem:[%s1 + $0xfc8] sm:$0xff]
    %v887 = vld [vmem:[%s1 + $0xfd0] sm:$0xff]
    %v888 = vld [vmem:[%s1 + $0xfd8] sm:$0xff]
    %v889 = vld [vmem:[%s1 + $0xfe0] sm:$0xff]
    %v890 = vld [vmem:[%s1 + $0xfe8] sm:$0xff]
    %v891 = vld [vmem:[%s1 + $0xff0] sm:$0xff]
    %v892 = vld [vmem:[%s1 + $0xff8] sm:$0xff]
    %v893 = vld [vmem:[%s2] sm:$0xf]
    %v895 = vlaneseq
    %v896 = vshrl.u32 %v895, 7
    %v897 = vsub.s32 0, %v896
    %v898 = vrot.slane %v893, %v897
    %v899 = vlaneseq
    %v900 = vshrl.u32 %v899, 7
    %v901 = vsub.s32 1, %v900
    %v902 = vrot.slane %v893, %v901
    %v903 = vlaneseq
    %v904 = vshrl.u32 %v903, 7
    %v905 = vsub.s32 2, %v904
    %v906 = vrot.slane %v893, %v905
    %v907 = vlaneseq
    %v908 = vshrl.u32 %v907, 7
    %v909 = vsub.s32 3, %v908
    %v910 = vrot.slane %v893, %v909
    %v1427 = vunpack.c.l.b16 %v381
    %v1428 = vunpack.c.h.b16 %v381
    %v1429 = vunpack.c.l.b16 %v382
    %v1430 = vunpack.c.h.b16 %v382
    %v1431 = vunpack.c.l.b16 %v383
    %v1432 = vunpack.c.h.b16 %v383
    %v1433 = vunpack.c.l.b16 %v384
    %v1434 = vunpack.c.h.b16 %v384
    %v1435 = vunpack.c.l.b16 %v385
    %v1436 = vunpack.c.h.b16 %v385
    %v1437 = vunpack.c.l.b16 %v386
    %v1438 = vunpack.c.h.b16 %v386
    %v1439 = vunpack.c.l.b16 %v387
    %v1440 = vunpack.c.h.b16 %v387
    %v1441 = vunpack.c.l.b16 %v388
    %v1442 = vunpack.c.h.b16 %v388
    %v1443 = vunpack.c.l.b16 %v389
    %v1444 = vunpack.c.h.b16 %v389
    %v1445 = vunpack.c.l.b16 %v390
    %v1446 = vunpack.c.h.b16 %v390
    %v1447 = vunpack.c.l.b16 %v391
    %v1448 = vunpack.c.h.b16 %v391
    %v1449 = vunpack.c.l.b16 %v392
    %v1450 = vunpack.c.h.b16 %v392
    %v1451 = vunpack.c.l.b16 %v393
    %v1452 = vunpack.c.h.b16 %v393
    %v1453 = vunpack.c.l.b16 %v394
    %v1454 = vunpack.c.h.b16 %v394
    %v1455 = vunpack.c.l.b16 %v395
    %v1456 = vunpack.c.h.b16 %v395
    %v1457 = vunpack.c.l.b16 %v396
    %v1458 = vunpack.c.h.b16 %v396
    %v1459 = vunpack.c.l.b16 %v397
    %v1460 = vunpack.c.h.b16 %v397
    %v1461 = vunpack.c.l.b16 %v398
    %v1462 = vunpack.c.h.b16 %v398
    %v1463 = vunpack.c.l.b16 %v399
    %v1464 = vunpack.c.h.b16 %v399
    %v1465 = vunpack.c.l.b16 %v400
    %v1466 = vunpack.c.h.b16 %v400
    %v1467 = vunpack.c.l.b16 %v401
    %v1468 = vunpack.c.h.b16 %v401
    %v1469 = vunpack.c.l.b16 %v402
    %v1470 = vunpack.c.h.b16 %v402
    %v1471 = vunpack.c.l.b16 %v403
    %v1472 = vunpack.c.h.b16 %v403
    %v1473 = vunpack.c.l.b16 %v404
    %v1474 = vunpack.c.h.b16 %v404
    %v1475 = vunpack.c.l.b16 %v405
    %v1476 = vunpack.c.h.b16 %v405
    %v1477 = vunpack.c.l.b16 %v406
    %v1478 = vunpack.c.h.b16 %v406
    %v1479 = vunpack.c.l.b16 %v407
    %v1480 = vunpack.c.h.b16 %v407
    %v1481 = vunpack.c.l.b16 %v408
    %v1482 = vunpack.c.h.b16 %v408
    %v1483 = vunpack.c.l.b16 %v409
    %v1484 = vunpack.c.h.b16 %v409
    %v1485 = vunpack.c.l.b16 %v410
    %v1486 = vunpack.c.h.b16 %v410
    %v1487 = vunpack.c.l.b16 %v411
    %v1488 = vunpack.c.h.b16 %v411
    %v1489 = vunpack.c.l.b16 %v412
    %v1490 = vunpack.c.h.b16 %v412
    %v1491 = vunpack.c.l.b16 %v413
    %v1492 = vunpack.c.h.b16 %v413
    %v1493 = vunpack.c.l.b16 %v414
    %v1494 = vunpack.c.h.b16 %v414
    %v1495 = vunpack.c.l.b16 %v415
    %v1496 = vunpack.c.h.b16 %v415
    %v1497 = vunpack.c.l.b16 %v416
    %v1498 = vunpack.c.h.b16 %v416
    %v1499 = vunpack.c.l.b16 %v417
    %v1500 = vunpack.c.h.b16 %v417
    %v1501 = vunpack.c.l.b16 %v418
    %v1502 = vunpack.c.h.b16 %v418
    %v1503 = vunpack.c.l.b16 %v419
    %v1504 = vunpack.c.h.b16 %v419
    %v1505 = vunpack.c.l.b16 %v420
    %v1506 = vunpack.c.h.b16 %v420
    %v1507 = vunpack.c.l.b16 %v421
    %v1508 = vunpack.c.h.b16 %v421
    %v1509 = vunpack.c.l.b16 %v422
    %v1510 = vunpack.c.h.b16 %v422
    %v1511 = vunpack.c.l.b16 %v423
    %v1512 = vunpack.c.h.b16 %v423
    %v1513 = vunpack.c.l.b16 %v424
    %v1514 = vunpack.c.h.b16 %v424
    %v1515 = vunpack.c.l.b16 %v425
    %v1516 = vunpack.c.h.b16 %v425
    %v1517 = vunpack.c.l.b16 %v426
    %v1518 = vunpack.c.h.b16 %v426
    %v1519 = vunpack.c.l.b16 %v427
    %v1520 = vunpack.c.h.b16 %v427
    %v1521 = vunpack.c.l.b16 %v428
    %v1522 = vunpack.c.h.b16 %v428
    %v1523 = vunpack.c.l.b16 %v429
    %v1524 = vunpack.c.h.b16 %v429
    %v1525 = vunpack.c.l.b16 %v430
    %v1526 = vunpack.c.h.b16 %v430
    %v1527 = vunpack.c.l.b16 %v431
    %v1528 = vunpack.c.h.b16 %v431
    %v1529 = vunpack.c.l.b16 %v432
    %v1530 = vunpack.c.h.b16 %v432
    %v1531 = vunpack.c.l.b16 %v433
    %v1532 = vunpack.c.h.b16 %v433
    %v1533 = vunpack.c.l.b16 %v434
    %v1534 = vunpack.c.h.b16 %v434
    %v1535 = vunpack.c.l.b16 %v435
    %v1536 = vunpack.c.h.b16 %v435
    %v1537 = vunpack.c.l.b16 %v436
    %v1538 = vunpack.c.h.b16 %v436
    %v1539 = vunpack.c.l.b16 %v437
    %v1540 = vunpack.c.h.b16 %v437
    %v1541 = vunpack.c.l.b16 %v438
    %v1542 = vunpack.c.h.b16 %v438
    %v1543 = vunpack.c.l.b16 %v439
    %v1544 = vunpack.c.h.b16 %v439
    %v1545 = vunpack.c.l.b16 %v440
    %v1546 = vunpack.c.h.b16 %v440
    %v1547 = vunpack.c.l.b16 %v441
    %v1548 = vunpack.c.h.b16 %v441
    %v1549 = vunpack.c.l.b16 %v442
    %v1550 = vunpack.c.h.b16 %v442
    %v1551 = vunpack.c.l.b16 %v443
    %v1552 = vunpack.c.h.b16 %v443
    %v1553 = vunpack.c.l.b16 %v444
    %v1554 = vunpack.c.h.b16 %v444
    %v1555 = vunpack.c.l.b16 %v445
    %v1556 = vunpack.c.h.b16 %v445
    %v1557 = vunpack.c.l.b16 %v446
    %v1558 = vunpack.c.h.b16 %v446
    %v1559 = vunpack.c.l.b16 %v447
    %v1560 = vunpack.c.h.b16 %v447
    %v1561 = vunpack.c.l.b16 %v448
    %v1562 = vunpack.c.h.b16 %v448
    %v1563 = vunpack.c.l.b16 %v449
    %v1564 = vunpack.c.h.b16 %v449
    %v1565 = vunpack.c.l.b16 %v450
    %v1566 = vunpack.c.h.b16 %v450
    %v1567 = vunpack.c.l.b16 %v451
    %v1568 = vunpack.c.h.b16 %v451
    %v1569 = vunpack.c.l.b16 %v452
    %v1570 = vunpack.c.h.b16 %v452
    %v1571 = vunpack.c.l.b16 %v453
    %v1572 = vunpack.c.h.b16 %v453
    %v1573 = vunpack.c.l.b16 %v454
    %v1574 = vunpack.c.h.b16 %v454
    %v1575 = vunpack.c.l.b16 %v455
    %v1576 = vunpack.c.h.b16 %v455
    %v1577 = vunpack.c.l.b16 %v456
    %v1578 = vunpack.c.h.b16 %v456
    %v1579 = vunpack.c.l.b16 %v457
    %v1580 = vunpack.c.h.b16 %v457
    %v1581 = vunpack.c.l.b16 %v458
    %v1582 = vunpack.c.h.b16 %v458
    %v1583 = vunpack.c.l.b16 %v459
    %v1584 = vunpack.c.h.b16 %v459
    %v1585 = vunpack.c.l.b16 %v460
    %v1586 = vunpack.c.h.b16 %v460
    %v1587 = vunpack.c.l.b16 %v461
    %v1588 = vunpack.c.h.b16 %v461
    %v1589 = vunpack.c.l.b16 %v462
    %v1590 = vunpack.c.h.b16 %v462
    %v1591 = vunpack.c.l.b16 %v463
    %v1592 = vunpack.c.h.b16 %v463
    %v1593 = vunpack.c.l.b16 %v464
    %v1594 = vunpack.c.h.b16 %v464
    %v1595 = vunpack.c.l.b16 %v465
    %v1596 = vunpack.c.h.b16 %v465
    %v1597 = vunpack.c.l.b16 %v466
    %v1598 = vunpack.c.h.b16 %v466
    %v1599 = vunpack.c.l.b16 %v467
    %v1600 = vunpack.c.h.b16 %v467
    %v1601 = vunpack.c.l.b16 %v468
    %v1602 = vunpack.c.h.b16 %v468
    %v1603 = vunpack.c.l.b16 %v469
    %v1604 = vunpack.c.h.b16 %v469
    %v1605 = vunpack.c.l.b16 %v470
    %v1606 = vunpack.c.h.b16 %v470
    %v1607 = vunpack.c.l.b16 %v471
    %v1608 = vunpack.c.h.b16 %v471
    %v1609 = vunpack.c.l.b16 %v472
    %v1610 = vunpack.c.h.b16 %v472
    %v1611 = vunpack.c.l.b16 %v473
    %v1612 = vunpack.c.h.b16 %v473
    %v1613 = vunpack.c.l.b16 %v474
    %v1614 = vunpack.c.h.b16 %v474
    %v1615 = vunpack.c.l.b16 %v475
    %v1616 = vunpack.c.h.b16 %v475
    %v1617 = vunpack.c.l.b16 %v476
    %v1618 = vunpack.c.h.b16 %v476
    %v1619 = vunpack.c.l.b16 %v477
    %v1620 = vunpack.c.h.b16 %v477
    %v1621 = vunpack.c.l.b16 %v478
    %v1622 = vunpack.c.h.b16 %v478
    %v1623 = vunpack.c.l.b16 %v479
    %v1624 = vunpack.c.h.b16 %v479
    %v1625 = vunpack.c.l.b16 %v480
    %v1626 = vunpack.c.h.b16 %v480
    %v1627 = vunpack.c.l.b16 %v481
    %v1628 = vunpack.c.h.b16 %v481
    %v1629 = vunpack.c.l.b16 %v482
    %v1630 = vunpack.c.h.b16 %v482
    %v1631 = vunpack.c.l.b16 %v483
    %v1632 = vunpack.c.h.b16 %v483
    %v1633 = vunpack.c.l.b16 %v484
    %v1634 = vunpack.c.h.b16 %v484
    %v1635 = vunpack.c.l.b16 %v485
    %v1636 = vunpack.c.h.b16 %v485
    %v1637 = vunpack.c.l.b16 %v486
    %v1638 = vunpack.c.h.b16 %v486
    %v1639 = vunpack.c.l.b16 %v487
    %v1640 = vunpack.c.h.b16 %v487
    %v1641 = vunpack.c.l.b16 %v488
    %v1642 = vunpack.c.h.b16 %v488
    %v1643 = vunpack.c.l.b16 %v489
    %v1644 = vunpack.c.h.b16 %v489
    %v1645 = vunpack.c.l.b16 %v490
    %v1646 = vunpack.c.h.b16 %v490
    %v1647 = vunpack.c.l.b16 %v491
    %v1648 = vunpack.c.h.b16 %v491
    %v1649 = vunpack.c.l.b16 %v492
    %v1650 = vunpack.c.h.b16 %v492
    %v1651 = vunpack.c.l.b16 %v493
    %v1652 = vunpack.c.h.b16 %v493
    %v1653 = vunpack.c.l.b16 %v494
    %v1654 = vunpack.c.h.b16 %v494
    %v1655 = vunpack.c.l.b16 %v495
    %v1656 = vunpack.c.h.b16 %v495
    %v1657 = vunpack.c.l.b16 %v496
    %v1658 = vunpack.c.h.b16 %v496
    %v1659 = vunpack.c.l.b16 %v497
    %v1660 = vunpack.c.h.b16 %v497
    %v1661 = vunpack.c.l.b16 %v498
    %v1662 = vunpack.c.h.b16 %v498
    %v1663 = vunpack.c.l.b16 %v499
    %v1664 = vunpack.c.h.b16 %v499
    %v1665 = vunpack.c.l.b16 %v500
    %v1666 = vunpack.c.h.b16 %v500
    %v1667 = vunpack.c.l.b16 %v501
    %v1668 = vunpack.c.h.b16 %v501
    %v1669 = vunpack.c.l.b16 %v502
    %v1670 = vunpack.c.h.b16 %v502
    %v1671 = vunpack.c.l.b16 %v503
    %v1672 = vunpack.c.h.b16 %v503
    %v1673 = vunpack.c.l.b16 %v504
    %v1674 = vunpack.c.h.b16 %v504
    %v1675 = vunpack.c.l.b16 %v505
    %v1676 = vunpack.c.h.b16 %v505
    %v1677 = vunpack.c.l.b16 %v506
    %v1678 = vunpack.c.h.b16 %v506
    %v1679 = vunpack.c.l.b16 %v507
    %v1680 = vunpack.c.h.b16 %v507
    %v1681 = vunpack.c.l.b16 %v508
    %v1682 = vunpack.c.h.b16 %v508
    %v1683 = vunpack.c.l.b16 %v509
    %v1684 = vunpack.c.h.b16 %v509
    %v1685 = vunpack.c.l.b16 %v510
    %v1686 = vunpack.c.h.b16 %v510
    %v1687 = vunpack.c.l.b16 %v511
    %v1688 = vunpack.c.h.b16 %v511
    %v1689 = vunpack.c.l.b16 %v512
    %v1690 = vunpack.c.h.b16 %v512
    %v1691 = vunpack.c.l.b16 %v513
    %v1692 = vunpack.c.h.b16 %v513
    %v1693 = vunpack.c.l.b16 %v514
    %v1694 = vunpack.c.h.b16 %v514
    %v1695 = vunpack.c.l.b16 %v515
    %v1696 = vunpack.c.h.b16 %v515
    %v1697 = vunpack.c.l.b16 %v516
    %v1698 = vunpack.c.h.b16 %v516
    %v1699 = vunpack.c.l.b16 %v517
    %v1700 = vunpack.c.h.b16 %v517
    %v1701 = vunpack.c.l.b16 %v518
    %v1702 = vunpack.c.h.b16 %v518
    %v1703 = vunpack.c.l.b16 %v519
    %v1704 = vunpack.c.h.b16 %v519
    %v1705 = vunpack.c.l.b16 %v520
    %v1706 = vunpack.c.h.b16 %v520
    %v1707 = vunpack.c.l.b16 %v521
    %v1708 = vunpack.c.h.b16 %v521
    %v1709 = vunpack.c.l.b16 %v522
    %v1710 = vunpack.c.h.b16 %v522
    %v1711 = vunpack.c.l.b16 %v523
    %v1712 = vunpack.c.h.b16 %v523
    %v1713 = vunpack.c.l.b16 %v524
    %v1714 = vunpack.c.h.b16 %v524
    %v1715 = vunpack.c.l.b16 %v525
    %v1716 = vunpack.c.h.b16 %v525
    %v1717 = vunpack.c.l.b16 %v526
    %v1718 = vunpack.c.h.b16 %v526
    %v1719 = vunpack.c.l.b16 %v527
    %v1720 = vunpack.c.h.b16 %v527
    %v1721 = vunpack.c.l.b16 %v528
    %v1722 = vunpack.c.h.b16 %v528
    %v1723 = vunpack.c.l.b16 %v529
    %v1724 = vunpack.c.h.b16 %v529
    %v1725 = vunpack.c.l.b16 %v530
    %v1726 = vunpack.c.h.b16 %v530
    %v1727 = vunpack.c.l.b16 %v531
    %v1728 = vunpack.c.h.b16 %v531
    %v1729 = vunpack.c.l.b16 %v532
    %v1730 = vunpack.c.h.b16 %v532
    %v1731 = vunpack.c.l.b16 %v533
    %v1732 = vunpack.c.h.b16 %v533
    %v1733 = vunpack.c.l.b16 %v534
    %v1734 = vunpack.c.h.b16 %v534
    %v1735 = vunpack.c.l.b16 %v535
    %v1736 = vunpack.c.h.b16 %v535
    %v1737 = vunpack.c.l.b16 %v536
    %v1738 = vunpack.c.h.b16 %v536
    %v1739 = vunpack.c.l.b16 %v537
    %v1740 = vunpack.c.h.b16 %v537
    %v1741 = vunpack.c.l.b16 %v538
    %v1742 = vunpack.c.h.b16 %v538
    %v1743 = vunpack.c.l.b16 %v539
    %v1744 = vunpack.c.h.b16 %v539
    %v1745 = vunpack.c.l.b16 %v540
    %v1746 = vunpack.c.h.b16 %v540
    %v1747 = vunpack.c.l.b16 %v541
    %v1748 = vunpack.c.h.b16 %v541
    %v1749 = vunpack.c.l.b16 %v542
    %v1750 = vunpack.c.h.b16 %v542
    %v1751 = vunpack.c.l.b16 %v543
    %v1752 = vunpack.c.h.b16 %v543
    %v1753 = vunpack.c.l.b16 %v544
    %v1754 = vunpack.c.h.b16 %v544
    %v1755 = vunpack.c.l.b16 %v545
    %v1756 = vunpack.c.h.b16 %v545
    %v1757 = vunpack.c.l.b16 %v546
    %v1758 = vunpack.c.h.b16 %v546
    %v1759 = vunpack.c.l.b16 %v547
    %v1760 = vunpack.c.h.b16 %v547
    %v1761 = vunpack.c.l.b16 %v548
    %v1762 = vunpack.c.h.b16 %v548
    %v1763 = vunpack.c.l.b16 %v549
    %v1764 = vunpack.c.h.b16 %v549
    %v1765 = vunpack.c.l.b16 %v550
    %v1766 = vunpack.c.h.b16 %v550
    %v1767 = vunpack.c.l.b16 %v551
    %v1768 = vunpack.c.h.b16 %v551
    %v1769 = vunpack.c.l.b16 %v552
    %v1770 = vunpack.c.h.b16 %v552
    %v1771 = vunpack.c.l.b16 %v553
    %v1772 = vunpack.c.h.b16 %v553
    %v1773 = vunpack.c.l.b16 %v554
    %v1774 = vunpack.c.h.b16 %v554
    %v1775 = vunpack.c.l.b16 %v555
    %v1776 = vunpack.c.h.b16 %v555
    %v1777 = vunpack.c.l.b16 %v556
    %v1778 = vunpack.c.h.b16 %v556
    %v1779 = vunpack.c.l.b16 %v557
    %v1780 = vunpack.c.h.b16 %v557
    %v1781 = vunpack.c.l.b16 %v558
    %v1782 = vunpack.c.h.b16 %v558
    %v1783 = vunpack.c.l.b16 %v559
    %v1784 = vunpack.c.h.b16 %v559
    %v1785 = vunpack.c.l.b16 %v560
    %v1786 = vunpack.c.h.b16 %v560
    %v1787 = vunpack.c.l.b16 %v561
    %v1788 = vunpack.c.h.b16 %v561
    %v1789 = vunpack.c.l.b16 %v562
    %v1790 = vunpack.c.h.b16 %v562
    %v1791 = vunpack.c.l.b16 %v563
    %v1792 = vunpack.c.h.b16 %v563
    %v1793 = vunpack.c.l.b16 %v564
    %v1794 = vunpack.c.h.b16 %v564
    %v1795 = vunpack.c.l.b16 %v565
    %v1796 = vunpack.c.h.b16 %v565
    %v1797 = vunpack.c.l.b16 %v566
    %v1798 = vunpack.c.h.b16 %v566
    %v1799 = vunpack.c.l.b16 %v567
    %v1800 = vunpack.c.h.b16 %v567
    %v1801 = vunpack.c.l.b16 %v568
    %v1802 = vunpack.c.h.b16 %v568
    %v1803 = vunpack.c.l.b16 %v569
    %v1804 = vunpack.c.h.b16 %v569
    %v1805 = vunpack.c.l.b16 %v570
    %v1806 = vunpack.c.h.b16 %v570
    %v1807 = vunpack.c.l.b16 %v571
    %v1808 = vunpack.c.h.b16 %v571
    %v1809 = vunpack.c.l.b16 %v572
    %v1810 = vunpack.c.h.b16 %v572
    %v1811 = vunpack.c.l.b16 %v573
    %v1812 = vunpack.c.h.b16 %v573
    %v1813 = vunpack.c.l.b16 %v574
    %v1814 = vunpack.c.h.b16 %v574
    %v1815 = vunpack.c.l.b16 %v575
    %v1816 = vunpack.c.h.b16 %v575
    %v1817 = vunpack.c.l.b16 %v576
    %v1818 = vunpack.c.h.b16 %v576
    %v1819 = vunpack.c.l.b16 %v577
    %v1820 = vunpack.c.h.b16 %v577
    %v1821 = vunpack.c.l.b16 %v578
    %v1822 = vunpack.c.h.b16 %v578
    %v1823 = vunpack.c.l.b16 %v579
    %v1824 = vunpack.c.h.b16 %v579
    %v1825 = vunpack.c.l.b16 %v580
    %v1826 = vunpack.c.h.b16 %v580
    %v1827 = vunpack.c.l.b16 %v581
    %v1828 = vunpack.c.h.b16 %v581
    %v1829 = vunpack.c.l.b16 %v582
    %v1830 = vunpack.c.h.b16 %v582
    %v1831 = vunpack.c.l.b16 %v583
    %v1832 = vunpack.c.h.b16 %v583
    %v1833 = vunpack.c.l.b16 %v584
    %v1834 = vunpack.c.h.b16 %v584
    %v1835 = vunpack.c.l.b16 %v585
    %v1836 = vunpack.c.h.b16 %v585
    %v1837 = vunpack.c.l.b16 %v586
    %v1838 = vunpack.c.h.b16 %v586
    %v1839 = vunpack.c.l.b16 %v587
    %v1840 = vunpack.c.h.b16 %v587
    %v1841 = vunpack.c.l.b16 %v588
    %v1842 = vunpack.c.h.b16 %v588
    %v1843 = vunpack.c.l.b16 %v589
    %v1844 = vunpack.c.h.b16 %v589
    %v1845 = vunpack.c.l.b16 %v590
    %v1846 = vunpack.c.h.b16 %v590
    %v1847 = vunpack.c.l.b16 %v591
    %v1848 = vunpack.c.h.b16 %v591
    %v1849 = vunpack.c.l.b16 %v592
    %v1850 = vunpack.c.h.b16 %v592
    %v1851 = vunpack.c.l.b16 %v593
    %v1852 = vunpack.c.h.b16 %v593
    %v1853 = vunpack.c.l.b16 %v594
    %v1854 = vunpack.c.h.b16 %v594
    %v1855 = vunpack.c.l.b16 %v595
    %v1856 = vunpack.c.h.b16 %v595
    %v1857 = vunpack.c.l.b16 %v596
    %v1858 = vunpack.c.h.b16 %v596
    %v1859 = vunpack.c.l.b16 %v597
    %v1860 = vunpack.c.h.b16 %v597
    %v1861 = vunpack.c.l.b16 %v598
    %v1862 = vunpack.c.h.b16 %v598
    %v1863 = vunpack.c.l.b16 %v599
    %v1864 = vunpack.c.h.b16 %v599
    %v1865 = vunpack.c.l.b16 %v600
    %v1866 = vunpack.c.h.b16 %v600
    %v1867 = vunpack.c.l.b16 %v601
    %v1868 = vunpack.c.h.b16 %v601
    %v1869 = vunpack.c.l.b16 %v602
    %v1870 = vunpack.c.h.b16 %v602
    %v1871 = vunpack.c.l.b16 %v603
    %v1872 = vunpack.c.h.b16 %v603
    %v1873 = vunpack.c.l.b16 %v604
    %v1874 = vunpack.c.h.b16 %v604
    %v1875 = vunpack.c.l.b16 %v605
    %v1876 = vunpack.c.h.b16 %v605
    %v1877 = vunpack.c.l.b16 %v606
    %v1878 = vunpack.c.h.b16 %v606
    %v1879 = vunpack.c.l.b16 %v607
    %v1880 = vunpack.c.h.b16 %v607
    %v1881 = vunpack.c.l.b16 %v608
    %v1882 = vunpack.c.h.b16 %v608
    %v1883 = vunpack.c.l.b16 %v609
    %v1884 = vunpack.c.h.b16 %v609
    %v1885 = vunpack.c.l.b16 %v610
    %v1886 = vunpack.c.h.b16 %v610
    %v1887 = vunpack.c.l.b16 %v611
    %v1888 = vunpack.c.h.b16 %v611
    %v1889 = vunpack.c.l.b16 %v612
    %v1890 = vunpack.c.h.b16 %v612
    %v1891 = vunpack.c.l.b16 %v613
    %v1892 = vunpack.c.h.b16 %v613
    %v1893 = vunpack.c.l.b16 %v614
    %v1894 = vunpack.c.h.b16 %v614
    %v1895 = vunpack.c.l.b16 %v615
    %v1896 = vunpack.c.h.b16 %v615
    %v1897 = vunpack.c.l.b16 %v616
    %v1898 = vunpack.c.h.b16 %v616
    %v1899 = vunpack.c.l.b16 %v617
    %v1900 = vunpack.c.h.b16 %v617
    %v1901 = vunpack.c.l.b16 %v618
    %v1902 = vunpack.c.h.b16 %v618
    %v1903 = vunpack.c.l.b16 %v619
    %v1904 = vunpack.c.h.b16 %v619
    %v1905 = vunpack.c.l.b16 %v620
    %v1906 = vunpack.c.h.b16 %v620
    %v1907 = vunpack.c.l.b16 %v621
    %v1908 = vunpack.c.h.b16 %v621
    %v1909 = vunpack.c.l.b16 %v622
    %v1910 = vunpack.c.h.b16 %v622
    %v1911 = vunpack.c.l.b16 %v623
    %v1912 = vunpack.c.h.b16 %v623
    %v1913 = vunpack.c.l.b16 %v624
    %v1914 = vunpack.c.h.b16 %v624
    %v1915 = vunpack.c.l.b16 %v625
    %v1916 = vunpack.c.h.b16 %v625
    %v1917 = vunpack.c.l.b16 %v626
    %v1918 = vunpack.c.h.b16 %v626
    %v1919 = vunpack.c.l.b16 %v627
    %v1920 = vunpack.c.h.b16 %v627
    %v1921 = vunpack.c.l.b16 %v628
    %v1922 = vunpack.c.h.b16 %v628
    %v1923 = vunpack.c.l.b16 %v629
    %v1924 = vunpack.c.h.b16 %v629
    %v1925 = vunpack.c.l.b16 %v630
    %v1926 = vunpack.c.h.b16 %v630
    %v1927 = vunpack.c.l.b16 %v631
    %v1928 = vunpack.c.h.b16 %v631
    %v1929 = vunpack.c.l.b16 %v632
    %v1930 = vunpack.c.h.b16 %v632
    %v1931 = vunpack.c.l.b16 %v633
    %v1932 = vunpack.c.h.b16 %v633
    %v1933 = vunpack.c.l.b16 %v634
    %v1934 = vunpack.c.h.b16 %v634
    %v1935 = vunpack.c.l.b16 %v635
    %v1936 = vunpack.c.h.b16 %v635
    %v1937 = vunpack.c.l.b16 %v636
    %v1938 = vunpack.c.h.b16 %v636
    %v1939 = vunpack.c.l.b16 %v637
    %v1940 = vunpack.c.h.b16 %v637
    %v1941 = vunpack.c.l.b16 %v638
    %v1942 = vunpack.c.h.b16 %v638
    %v1943 = vunpack.c.l.b16 %v639
    %v1944 = vunpack.c.h.b16 %v639
    %v1945 = vunpack.c.l.b16 %v640
    %v1946 = vunpack.c.h.b16 %v640
    %v1947 = vunpack.c.l.b16 %v641
    %v1948 = vunpack.c.h.b16 %v641
    %v1949 = vunpack.c.l.b16 %v642
    %v1950 = vunpack.c.h.b16 %v642
    %v1951 = vunpack.c.l.b16 %v643
    %v1952 = vunpack.c.h.b16 %v643
    %v1953 = vunpack.c.l.b16 %v644
    %v1954 = vunpack.c.h.b16 %v644
    %v1955 = vunpack.c.l.b16 %v645
    %v1956 = vunpack.c.h.b16 %v645
    %v1957 = vunpack.c.l.b16 %v646
    %v1958 = vunpack.c.h.b16 %v646
    %v1959 = vunpack.c.l.b16 %v647
    %v1960 = vunpack.c.h.b16 %v647
    %v1961 = vunpack.c.l.b16 %v648
    %v1962 = vunpack.c.h.b16 %v648
    %v1963 = vunpack.c.l.b16 %v649
    %v1964 = vunpack.c.h.b16 %v649
    %v1965 = vunpack.c.l.b16 %v650
    %v1966 = vunpack.c.h.b16 %v650
    %v1967 = vunpack.c.l.b16 %v651
    %v1968 = vunpack.c.h.b16 %v651
    %v1969 = vunpack.c.l.b16 %v652
    %v1970 = vunpack.c.h.b16 %v652
    %v1971 = vunpack.c.l.b16 %v653
    %v1972 = vunpack.c.h.b16 %v653
    %v1973 = vunpack.c.l.b16 %v654
    %v1974 = vunpack.c.h.b16 %v654
    %v1975 = vunpack.c.l.b16 %v655
    %v1976 = vunpack.c.h.b16 %v655
    %v1977 = vunpack.c.l.b16 %v656
    %v1978 = vunpack.c.h.b16 %v656
    %v1979 = vunpack.c.l.b16 %v657
    %v1980 = vunpack.c.h.b16 %v657
    %v1981 = vunpack.c.l.b16 %v658
    %v1982 = vunpack.c.h.b16 %v658
    %v1983 = vunpack.c.l.b16 %v659
    %v1984 = vunpack.c.h.b16 %v659
    %v1985 = vunpack.c.l.b16 %v660
    %v1986 = vunpack.c.h.b16 %v660
    %v1987 = vunpack.c.l.b16 %v661
    %v1988 = vunpack.c.h.b16 %v661
    %v1989 = vunpack.c.l.b16 %v662
    %v1990 = vunpack.c.h.b16 %v662
    %v1991 = vunpack.c.l.b16 %v663
    %v1992 = vunpack.c.h.b16 %v663
    %v1993 = vunpack.c.l.b16 %v664
    %v1994 = vunpack.c.h.b16 %v664
    %v1995 = vunpack.c.l.b16 %v665
    %v1996 = vunpack.c.h.b16 %v665
    %v1997 = vunpack.c.l.b16 %v666
    %v1998 = vunpack.c.h.b16 %v666
    %v1999 = vunpack.c.l.b16 %v667
    %v2000 = vunpack.c.h.b16 %v667
    %v2001 = vunpack.c.l.b16 %v668
    %v2002 = vunpack.c.h.b16 %v668
    %v2003 = vunpack.c.l.b16 %v669
    %v2004 = vunpack.c.h.b16 %v669
    %v2005 = vunpack.c.l.b16 %v670
    %v2006 = vunpack.c.h.b16 %v670
    %v2007 = vunpack.c.l.b16 %v671
    %v2008 = vunpack.c.h.b16 %v671
    %v2009 = vunpack.c.l.b16 %v672
    %v2010 = vunpack.c.h.b16 %v672
    %v2011 = vunpack.c.l.b16 %v673
    %v2012 = vunpack.c.h.b16 %v673
    %v2013 = vunpack.c.l.b16 %v674
    %v2014 = vunpack.c.h.b16 %v674
    %v2015 = vunpack.c.l.b16 %v675
    %v2016 = vunpack.c.h.b16 %v675
    %v2017 = vunpack.c.l.b16 %v676
    %v2018 = vunpack.c.h.b16 %v676
    %v2019 = vunpack.c.l.b16 %v677
    %v2020 = vunpack.c.h.b16 %v677
    %v2021 = vunpack.c.l.b16 %v678
    %v2022 = vunpack.c.h.b16 %v678
    %v2023 = vunpack.c.l.b16 %v679
    %v2024 = vunpack.c.h.b16 %v679
    %v2025 = vunpack.c.l.b16 %v680
    %v2026 = vunpack.c.h.b16 %v680
    %v2027 = vunpack.c.l.b16 %v681
    %v2028 = vunpack.c.h.b16 %v681
    %v2029 = vunpack.c.l.b16 %v682
    %v2030 = vunpack.c.h.b16 %v682
    %v2031 = vunpack.c.l.b16 %v683
    %v2032 = vunpack.c.h.b16 %v683
    %v2033 = vunpack.c.l.b16 %v684
    %v2034 = vunpack.c.h.b16 %v684
    %v2035 = vunpack.c.l.b16 %v685
    %v2036 = vunpack.c.h.b16 %v685
    %v2037 = vunpack.c.l.b16 %v686
    %v2038 = vunpack.c.h.b16 %v686
    %v2039 = vunpack.c.l.b16 %v687
    %v2040 = vunpack.c.h.b16 %v687
    %v2041 = vunpack.c.l.b16 %v688
    %v2042 = vunpack.c.h.b16 %v688
    %v2043 = vunpack.c.l.b16 %v689
    %v2044 = vunpack.c.h.b16 %v689
    %v2045 = vunpack.c.l.b16 %v690
    %v2046 = vunpack.c.h.b16 %v690
    %v2047 = vunpack.c.l.b16 %v691
    %v2048 = vunpack.c.h.b16 %v691
    %v2049 = vunpack.c.l.b16 %v692
    %v2050 = vunpack.c.h.b16 %v692
    %v2051 = vunpack.c.l.b16 %v693
    %v2052 = vunpack.c.h.b16 %v693
    %v2053 = vunpack.c.l.b16 %v694
    %v2054 = vunpack.c.h.b16 %v694
    %v2055 = vunpack.c.l.b16 %v695
    %v2056 = vunpack.c.h.b16 %v695
    %v2057 = vunpack.c.l.b16 %v696
    %v2058 = vunpack.c.h.b16 %v696
    %v2059 = vunpack.c.l.b16 %v697
    %v2060 = vunpack.c.h.b16 %v697
    %v2061 = vunpack.c.l.b16 %v698
    %v2062 = vunpack.c.h.b16 %v698
    %v2063 = vunpack.c.l.b16 %v699
    %v2064 = vunpack.c.h.b16 %v699
    %v2065 = vunpack.c.l.b16 %v700
    %v2066 = vunpack.c.h.b16 %v700
    %v2067 = vunpack.c.l.b16 %v701
    %v2068 = vunpack.c.h.b16 %v701
    %v2069 = vunpack.c.l.b16 %v702
    %v2070 = vunpack.c.h.b16 %v702
    %v2071 = vunpack.c.l.b16 %v703
    %v2072 = vunpack.c.h.b16 %v703
    %v2073 = vunpack.c.l.b16 %v704
    %v2074 = vunpack.c.h.b16 %v704
    %v2075 = vunpack.c.l.b16 %v705
    %v2076 = vunpack.c.h.b16 %v705
    %v2077 = vunpack.c.l.b16 %v706
    %v2078 = vunpack.c.h.b16 %v706
    %v2079 = vunpack.c.l.b16 %v707
    %v2080 = vunpack.c.h.b16 %v707
    %v2081 = vunpack.c.l.b16 %v708
    %v2082 = vunpack.c.h.b16 %v708
    %v2083 = vunpack.c.l.b16 %v709
    %v2084 = vunpack.c.h.b16 %v709
    %v2085 = vunpack.c.l.b16 %v710
    %v2086 = vunpack.c.h.b16 %v710
    %v2087 = vunpack.c.l.b16 %v711
    %v2088 = vunpack.c.h.b16 %v711
    %v2089 = vunpack.c.l.b16 %v712
    %v2090 = vunpack.c.h.b16 %v712
    %v2091 = vunpack.c.l.b16 %v713
    %v2092 = vunpack.c.h.b16 %v713
    %v2093 = vunpack.c.l.b16 %v714
    %v2094 = vunpack.c.h.b16 %v714
    %v2095 = vunpack.c.l.b16 %v715
    %v2096 = vunpack.c.h.b16 %v715
    %v2097 = vunpack.c.l.b16 %v716
    %v2098 = vunpack.c.h.b16 %v716
    %v2099 = vunpack.c.l.b16 %v717
    %v2100 = vunpack.c.h.b16 %v717
    %v2101 = vunpack.c.l.b16 %v718
    %v2102 = vunpack.c.h.b16 %v718
    %v2103 = vunpack.c.l.b16 %v719
    %v2104 = vunpack.c.h.b16 %v719
    %v2105 = vunpack.c.l.b16 %v720
    %v2106 = vunpack.c.h.b16 %v720
    %v2107 = vunpack.c.l.b16 %v721
    %v2108 = vunpack.c.h.b16 %v721
    %v2109 = vunpack.c.l.b16 %v722
    %v2110 = vunpack.c.h.b16 %v722
    %v2111 = vunpack.c.l.b16 %v723
    %v2112 = vunpack.c.h.b16 %v723
    %v2113 = vunpack.c.l.b16 %v724
    %v2114 = vunpack.c.h.b16 %v724
    %v2115 = vunpack.c.l.b16 %v725
    %v2116 = vunpack.c.h.b16 %v725
    %v2117 = vunpack.c.l.b16 %v726
    %v2118 = vunpack.c.h.b16 %v726
    %v2119 = vunpack.c.l.b16 %v727
    %v2120 = vunpack.c.h.b16 %v727
    %v2121 = vunpack.c.l.b16 %v728
    %v2122 = vunpack.c.h.b16 %v728
    %v2123 = vunpack.c.l.b16 %v729
    %v2124 = vunpack.c.h.b16 %v729
    %v2125 = vunpack.c.l.b16 %v730
    %v2126 = vunpack.c.h.b16 %v730
    %v2127 = vunpack.c.l.b16 %v731
    %v2128 = vunpack.c.h.b16 %v731
    %v2129 = vunpack.c.l.b16 %v732
    %v2130 = vunpack.c.h.b16 %v732
    %v2131 = vunpack.c.l.b16 %v733
    %v2132 = vunpack.c.h.b16 %v733
    %v2133 = vunpack.c.l.b16 %v734
    %v2134 = vunpack.c.h.b16 %v734
    %v2135 = vunpack.c.l.b16 %v735
    %v2136 = vunpack.c.h.b16 %v735
    %v2137 = vunpack.c.l.b16 %v736
    %v2138 = vunpack.c.h.b16 %v736
    %v2139 = vunpack.c.l.b16 %v737
    %v2140 = vunpack.c.h.b16 %v737
    %v2141 = vunpack.c.l.b16 %v738
    %v2142 = vunpack.c.h.b16 %v738
    %v2143 = vunpack.c.l.b16 %v739
    %v2144 = vunpack.c.h.b16 %v739
    %v2145 = vunpack.c.l.b16 %v740
    %v2146 = vunpack.c.h.b16 %v740
    %v2147 = vunpack.c.l.b16 %v741
    %v2148 = vunpack.c.h.b16 %v741
    %v2149 = vunpack.c.l.b16 %v742
    %v2150 = vunpack.c.h.b16 %v742
    %v2151 = vunpack.c.l.b16 %v743
    %v2152 = vunpack.c.h.b16 %v743
    %v2153 = vunpack.c.l.b16 %v744
    %v2154 = vunpack.c.h.b16 %v744
    %v2155 = vunpack.c.l.b16 %v745
    %v2156 = vunpack.c.h.b16 %v745
    %v2157 = vunpack.c.l.b16 %v746
    %v2158 = vunpack.c.h.b16 %v746
    %v2159 = vunpack.c.l.b16 %v747
    %v2160 = vunpack.c.h.b16 %v747
    %v2161 = vunpack.c.l.b16 %v748
    %v2162 = vunpack.c.h.b16 %v748
    %v2163 = vunpack.c.l.b16 %v749
    %v2164 = vunpack.c.h.b16 %v749
    %v2165 = vunpack.c.l.b16 %v750
    %v2166 = vunpack.c.h.b16 %v750
    %v2167 = vunpack.c.l.b16 %v751
    %v2168 = vunpack.c.h.b16 %v751
    %v2169 = vunpack.c.l.b16 %v752
    %v2170 = vunpack.c.h.b16 %v752
    %v2171 = vunpack.c.l.b16 %v753
    %v2172 = vunpack.c.h.b16 %v753
    %v2173 = vunpack.c.l.b16 %v754
    %v2174 = vunpack.c.h.b16 %v754
    %v2175 = vunpack.c.l.b16 %v755
    %v2176 = vunpack.c.h.b16 %v755
    %v2177 = vunpack.c.l.b16 %v756
    %v2178 = vunpack.c.h.b16 %v756
    %v2179 = vunpack.c.l.b16 %v757
    %v2180 = vunpack.c.h.b16 %v757
    %v2181 = vunpack.c.l.b16 %v758
    %v2182 = vunpack.c.h.b16 %v758
    %v2183 = vunpack.c.l.b16 %v759
    %v2184 = vunpack.c.h.b16 %v759
    %v2185 = vunpack.c.l.b16 %v760
    %v2186 = vunpack.c.h.b16 %v760
    %v2187 = vunpack.c.l.b16 %v761
    %v2188 = vunpack.c.h.b16 %v761
    %v2189 = vunpack.c.l.b16 %v762
    %v2190 = vunpack.c.h.b16 %v762
    %v2191 = vunpack.c.l.b16 %v763
    %v2192 = vunpack.c.h.b16 %v763
    %v2193 = vunpack.c.l.b16 %v764
    %v2194 = vunpack.c.h.b16 %v764
    %v2195 = vunpack.c.l.b16 %v765
    %v2196 = vunpack.c.h.b16 %v765
    %v2197 = vunpack.c.l.b16 %v766
    %v2198 = vunpack.c.h.b16 %v766
    %v2199 = vunpack.c.l.b16 %v767
    %v2200 = vunpack.c.h.b16 %v767
    %v2201 = vunpack.c.l.b16 %v768
    %v2202 = vunpack.c.h.b16 %v768
    %v2203 = vunpack.c.l.b16 %v769
    %v2204 = vunpack.c.h.b16 %v769
    %v2205 = vunpack.c.l.b16 %v770
    %v2206 = vunpack.c.h.b16 %v770
    %v2207 = vunpack.c.l.b16 %v771
    %v2208 = vunpack.c.h.b16 %v771
    %v2209 = vunpack.c.l.b16 %v772
    %v2210 = vunpack.c.h.b16 %v772
    %v2211 = vunpack.c.l.b16 %v773
    %v2212 = vunpack.c.h.b16 %v773
    %v2213 = vunpack.c.l.b16 %v774
    %v2214 = vunpack.c.h.b16 %v774
    %v2215 = vunpack.c.l.b16 %v775
    %v2216 = vunpack.c.h.b16 %v775
    %v2217 = vunpack.c.l.b16 %v776
    %v2218 = vunpack.c.h.b16 %v776
    %v2219 = vunpack.c.l.b16 %v777
    %v2220 = vunpack.c.h.b16 %v777
    %v2221 = vunpack.c.l.b16 %v778
    %v2222 = vunpack.c.h.b16 %v778
    %v2223 = vunpack.c.l.b16 %v779
    %v2224 = vunpack.c.h.b16 %v779
    %v2225 = vunpack.c.l.b16 %v780
    %v2226 = vunpack.c.h.b16 %v780
    %v2227 = vunpack.c.l.b16 %v781
    %v2228 = vunpack.c.h.b16 %v781
    %v2229 = vunpack.c.l.b16 %v782
    %v2230 = vunpack.c.h.b16 %v782
    %v2231 = vunpack.c.l.b16 %v783
    %v2232 = vunpack.c.h.b16 %v783
    %v2233 = vunpack.c.l.b16 %v784
    %v2234 = vunpack.c.h.b16 %v784
    %v2235 = vunpack.c.l.b16 %v785
    %v2236 = vunpack.c.h.b16 %v785
    %v2237 = vunpack.c.l.b16 %v786
    %v2238 = vunpack.c.h.b16 %v786
    %v2239 = vunpack.c.l.b16 %v787
    %v2240 = vunpack.c.h.b16 %v787
    %v2241 = vunpack.c.l.b16 %v788
    %v2242 = vunpack.c.h.b16 %v788
    %v2243 = vunpack.c.l.b16 %v789
    %v2244 = vunpack.c.h.b16 %v789
    %v2245 = vunpack.c.l.b16 %v790
    %v2246 = vunpack.c.h.b16 %v790
    %v2247 = vunpack.c.l.b16 %v791
    %v2248 = vunpack.c.h.b16 %v791
    %v2249 = vunpack.c.l.b16 %v792
    %v2250 = vunpack.c.h.b16 %v792
    %v2251 = vunpack.c.l.b16 %v793
    %v2252 = vunpack.c.h.b16 %v793
    %v2253 = vunpack.c.l.b16 %v794
    %v2254 = vunpack.c.h.b16 %v794
    %v2255 = vunpack.c.l.b16 %v795
    %v2256 = vunpack.c.h.b16 %v795
    %v2257 = vunpack.c.l.b16 %v796
    %v2258 = vunpack.c.h.b16 %v796
    %v2259 = vunpack.c.l.b16 %v797
    %v2260 = vunpack.c.h.b16 %v797
    %v2261 = vunpack.c.l.b16 %v798
    %v2262 = vunpack.c.h.b16 %v798
    %v2263 = vunpack.c.l.b16 %v799
    %v2264 = vunpack.c.h.b16 %v799
    %v2265 = vunpack.c.l.b16 %v800
    %v2266 = vunpack.c.h.b16 %v800
    %v2267 = vunpack.c.l.b16 %v801
    %v2268 = vunpack.c.h.b16 %v801
    %v2269 = vunpack.c.l.b16 %v802
    %v2270 = vunpack.c.h.b16 %v802
    %v2271 = vunpack.c.l.b16 %v803
    %v2272 = vunpack.c.h.b16 %v803
    %v2273 = vunpack.c.l.b16 %v804
    %v2274 = vunpack.c.h.b16 %v804
    %v2275 = vunpack.c.l.b16 %v805
    %v2276 = vunpack.c.h.b16 %v805
    %v2277 = vunpack.c.l.b16 %v806
    %v2278 = vunpack.c.h.b16 %v806
    %v2279 = vunpack.c.l.b16 %v807
    %v2280 = vunpack.c.h.b16 %v807
    %v2281 = vunpack.c.l.b16 %v808
    %v2282 = vunpack.c.h.b16 %v808
    %v2283 = vunpack.c.l.b16 %v809
    %v2284 = vunpack.c.h.b16 %v809
    %v2285 = vunpack.c.l.b16 %v810
    %v2286 = vunpack.c.h.b16 %v810
    %v2287 = vunpack.c.l.b16 %v811
    %v2288 = vunpack.c.h.b16 %v811
    %v2289 = vunpack.c.l.b16 %v812
    %v2290 = vunpack.c.h.b16 %v812
    %v2291 = vunpack.c.l.b16 %v813
    %v2292 = vunpack.c.h.b16 %v813
    %v2293 = vunpack.c.l.b16 %v814
    %v2294 = vunpack.c.h.b16 %v814
    %v2295 = vunpack.c.l.b16 %v815
    %v2296 = vunpack.c.h.b16 %v815
    %v2297 = vunpack.c.l.b16 %v816
    %v2298 = vunpack.c.h.b16 %v816
    %v2299 = vunpack.c.l.b16 %v817
    %v2300 = vunpack.c.h.b16 %v817
    %v2301 = vunpack.c.l.b16 %v818
    %v2302 = vunpack.c.h.b16 %v818
    %v2303 = vunpack.c.l.b16 %v819
    %v2304 = vunpack.c.h.b16 %v819
    %v2305 = vunpack.c.l.b16 %v820
    %v2306 = vunpack.c.h.b16 %v820
    %v2307 = vunpack.c.l.b16 %v821
    %v2308 = vunpack.c.h.b16 %v821
    %v2309 = vunpack.c.l.b16 %v822
    %v2310 = vunpack.c.h.b16 %v822
    %v2311 = vunpack.c.l.b16 %v823
    %v2312 = vunpack.c.h.b16 %v823
    %v2313 = vunpack.c.l.b16 %v824
    %v2314 = vunpack.c.h.b16 %v824
    %v2315 = vunpack.c.l.b16 %v825
    %v2316 = vunpack.c.h.b16 %v825
    %v2317 = vunpack.c.l.b16 %v826
    %v2318 = vunpack.c.h.b16 %v826
    %v2319 = vunpack.c.l.b16 %v827
    %v2320 = vunpack.c.h.b16 %v827
    %v2321 = vunpack.c.l.b16 %v828
    %v2322 = vunpack.c.h.b16 %v828
    %v2323 = vunpack.c.l.b16 %v829
    %v2324 = vunpack.c.h.b16 %v829
    %v2325 = vunpack.c.l.b16 %v830
    %v2326 = vunpack.c.h.b16 %v830
    %v2327 = vunpack.c.l.b16 %v831
    %v2328 = vunpack.c.h.b16 %v831
    %v2329 = vunpack.c.l.b16 %v832
    %v2330 = vunpack.c.h.b16 %v832
    %v2331 = vunpack.c.l.b16 %v833
    %v2332 = vunpack.c.h.b16 %v833
    %v2333 = vunpack.c.l.b16 %v834
    %v2334 = vunpack.c.h.b16 %v834
    %v2335 = vunpack.c.l.b16 %v835
    %v2336 = vunpack.c.h.b16 %v835
    %v2337 = vunpack.c.l.b16 %v836
    %v2338 = vunpack.c.h.b16 %v836
    %v2339 = vunpack.c.l.b16 %v837
    %v2340 = vunpack.c.h.b16 %v837
    %v2341 = vunpack.c.l.b16 %v838
    %v2342 = vunpack.c.h.b16 %v838
    %v2343 = vunpack.c.l.b16 %v839
    %v2344 = vunpack.c.h.b16 %v839
    %v2345 = vunpack.c.l.b16 %v840
    %v2346 = vunpack.c.h.b16 %v840
    %v2347 = vunpack.c.l.b16 %v841
    %v2348 = vunpack.c.h.b16 %v841
    %v2349 = vunpack.c.l.b16 %v842
    %v2350 = vunpack.c.h.b16 %v842
    %v2351 = vunpack.c.l.b16 %v843
    %v2352 = vunpack.c.h.b16 %v843
    %v2353 = vunpack.c.l.b16 %v844
    %v2354 = vunpack.c.h.b16 %v844
    %v2355 = vunpack.c.l.b16 %v845
    %v2356 = vunpack.c.h.b16 %v845
    %v2357 = vunpack.c.l.b16 %v846
    %v2358 = vunpack.c.h.b16 %v846
    %v2359 = vunpack.c.l.b16 %v847
    %v2360 = vunpack.c.h.b16 %v847
    %v2361 = vunpack.c.l.b16 %v848
    %v2362 = vunpack.c.h.b16 %v848
    %v2363 = vunpack.c.l.b16 %v849
    %v2364 = vunpack.c.h.b16 %v849
    %v2365 = vunpack.c.l.b16 %v850
    %v2366 = vunpack.c.h.b16 %v850
    %v2367 = vunpack.c.l.b16 %v851
    %v2368 = vunpack.c.h.b16 %v851
    %v2369 = vunpack.c.l.b16 %v852
    %v2370 = vunpack.c.h.b16 %v852
    %v2371 = vunpack.c.l.b16 %v853
    %v2372 = vunpack.c.h.b16 %v853
    %v2373 = vunpack.c.l.b16 %v854
    %v2374 = vunpack.c.h.b16 %v854
    %v2375 = vunpack.c.l.b16 %v855
    %v2376 = vunpack.c.h.b16 %v855
    %v2377 = vunpack.c.l.b16 %v856
    %v2378 = vunpack.c.h.b16 %v856
    %v2379 = vunpack.c.l.b16 %v857
    %v2380 = vunpack.c.h.b16 %v857
    %v2381 = vunpack.c.l.b16 %v858
    %v2382 = vunpack.c.h.b16 %v858
    %v2383 = vunpack.c.l.b16 %v859
    %v2384 = vunpack.c.h.b16 %v859
    %v2385 = vunpack.c.l.b16 %v860
    %v2386 = vunpack.c.h.b16 %v860
    %v2387 = vunpack.c.l.b16 %v861
    %v2388 = vunpack.c.h.b16 %v861
    %v2389 = vunpack.c.l.b16 %v862
    %v2390 = vunpack.c.h.b16 %v862
    %v2391 = vunpack.c.l.b16 %v863
    %v2392 = vunpack.c.h.b16 %v863
    %v2393 = vunpack.c.l.b16 %v864
    %v2394 = vunpack.c.h.b16 %v864
    %v2395 = vunpack.c.l.b16 %v865
    %v2396 = vunpack.c.h.b16 %v865
    %v2397 = vunpack.c.l.b16 %v866
    %v2398 = vunpack.c.h.b16 %v866
    %v2399 = vunpack.c.l.b16 %v867
    %v2400 = vunpack.c.h.b16 %v867
    %v2401 = vunpack.c.l.b16 %v868
    %v2402 = vunpack.c.h.b16 %v868
    %v2403 = vunpack.c.l.b16 %v869
    %v2404 = vunpack.c.h.b16 %v869
    %v2405 = vunpack.c.l.b16 %v870
    %v2406 = vunpack.c.h.b16 %v870
    %v2407 = vunpack.c.l.b16 %v871
    %v2408 = vunpack.c.h.b16 %v871
    %v2409 = vunpack.c.l.b16 %v872
    %v2410 = vunpack.c.h.b16 %v872
    %v2411 = vunpack.c.l.b16 %v873
    %v2412 = vunpack.c.h.b16 %v873
    %v2413 = vunpack.c.l.b16 %v874
    %v2414 = vunpack.c.h.b16 %v874
    %v2415 = vunpack.c.l.b16 %v875
    %v2416 = vunpack.c.h.b16 %v875
    %v2417 = vunpack.c.l.b16 %v876
    %v2418 = vunpack.c.h.b16 %v876
    %v2419 = vunpack.c.l.b16 %v877
    %v2420 = vunpack.c.h.b16 %v877
    %v2421 = vunpack.c.l.b16 %v878
    %v2422 = vunpack.c.h.b16 %v878
    %v2423 = vunpack.c.l.b16 %v879
    %v2424 = vunpack.c.h.b16 %v879
    %v2425 = vunpack.c.l.b16 %v880
    %v2426 = vunpack.c.h.b16 %v880
    %v2427 = vunpack.c.l.b16 %v881
    %v2428 = vunpack.c.h.b16 %v881
    %v2429 = vunpack.c.l.b16 %v882
    %v2430 = vunpack.c.h.b16 %v882
    %v2431 = vunpack.c.l.b16 %v883
    %v2432 = vunpack.c.h.b16 %v883
    %v2433 = vunpack.c.l.b16 %v884
    %v2434 = vunpack.c.h.b16 %v884
    %v2435 = vunpack.c.l.b16 %v885
    %v2436 = vunpack.c.h.b16 %v885
    %v2437 = vunpack.c.l.b16 %v886
    %v2438 = vunpack.c.h.b16 %v886
    %v2439 = vunpack.c.l.b16 %v887
    %v2440 = vunpack.c.h.b16 %v887
    %v2441 = vunpack.c.l.b16 %v888
    %v2442 = vunpack.c.h.b16 %v888
    %v2443 = vunpack.c.l.b16 %v889
    %v2444 = vunpack.c.h.b16 %v889
    %v2445 = vunpack.c.l.b16 %v890
    %v2446 = vunpack.c.h.b16 %v890
    %v2447 = vunpack.c.l.b16 %v891
    %v2448 = vunpack.c.h.b16 %v891
    %v2449 = vunpack.c.l.b16 %v892
    %v2450 = vunpack.c.h.b16 %v892
    %v2451 = vpack.c.b16 %v1431, %v1427
    %v2452 = vpack.c.b16 %v1432, %v1428
    %v2453 = vpack.c.b16 %v1433, %v1429
    %v2454 = vpack.c.b16 %v1434, %v1430
    %v2455 = vpack.c.b16 %v1439, %v1435
    %v2456 = vpack.c.b16 %v1440, %v1436
    %v2457 = vpack.c.b16 %v1441, %v1437
    %v2458 = vpack.c.b16 %v1442, %v1438
    %v2459 = vpack.c.b16 %v1447, %v1443
    %v2460 = vpack.c.b16 %v1448, %v1444
    %v2461 = vpack.c.b16 %v1449, %v1445
    %v2462 = vpack.c.b16 %v1450, %v1446
    %v2463 = vpack.c.b16 %v1455, %v1451
    %v2464 = vpack.c.b16 %v1456, %v1452
    %v2465 = vpack.c.b16 %v1457, %v1453
    %v2466 = vpack.c.b16 %v1458, %v1454
    %v2467 = vpack.c.b16 %v1463, %v1459
    %v2468 = vpack.c.b16 %v1464, %v1460
    %v2469 = vpack.c.b16 %v1465, %v1461
    %v2470 = vpack.c.b16 %v1466, %v1462
    %v2471 = vpack.c.b16 %v1471, %v1467
    %v2472 = vpack.c.b16 %v1472, %v1468
    %v2473 = vpack.c.b16 %v1473, %v1469
    %v2474 = vpack.c.b16 %v1474, %v1470
    %v2475 = vpack.c.b16 %v1479, %v1475
    %v2476 = vpack.c.b16 %v1480, %v1476
    %v2477 = vpack.c.b16 %v1481, %v1477
    %v2478 = vpack.c.b16 %v1482, %v1478
    %v2479 = vpack.c.b16 %v1487, %v1483
    %v2480 = vpack.c.b16 %v1488, %v1484
    %v2481 = vpack.c.b16 %v1489, %v1485
    %v2482 = vpack.c.b16 %v1490, %v1486
    %v2483 = vpack.c.b16 %v1495, %v1491
    %v2484 = vpack.c.b16 %v1496, %v1492
    %v2485 = vpack.c.b16 %v1497, %v1493
    %v2486 = vpack.c.b16 %v1498, %v1494
    %v2487 = vpack.c.b16 %v1503, %v1499
    %v2488 = vpack.c.b16 %v1504, %v1500
    %v2489 = vpack.c.b16 %v1505, %v1501
    %v2490 = vpack.c.b16 %v1506, %v1502
    %v2491 = vpack.c.b16 %v1511, %v1507
    %v2492 = vpack.c.b16 %v1512, %v1508
    %v2493 = vpack.c.b16 %v1513, %v1509
    %v2494 = vpack.c.b16 %v1514, %v1510
    %v2495 = vpack.c.b16 %v1519, %v1515
    %v2496 = vpack.c.b16 %v1520, %v1516
    %v2497 = vpack.c.b16 %v1521, %v1517
    %v2498 = vpack.c.b16 %v1522, %v1518
    %v2499 = vpack.c.b16 %v1527, %v1523
    %v2500 = vpack.c.b16 %v1528, %v1524
    %v2501 = vpack.c.b16 %v1529, %v1525
    %v2502 = vpack.c.b16 %v1530, %v1526
    %v2503 = vpack.c.b16 %v1535, %v1531
    %v2504 = vpack.c.b16 %v1536, %v1532
    %v2505 = vpack.c.b16 %v1537, %v1533
    %v2506 = vpack.c.b16 %v1538, %v1534
    %v2507 = vpack.c.b16 %v1543, %v1539
    %v2508 = vpack.c.b16 %v1544, %v1540
    %v2509 = vpack.c.b16 %v1545, %v1541
    %v2510 = vpack.c.b16 %v1546, %v1542
    %v2511 = vpack.c.b16 %v1551, %v1547
    %v2512 = vpack.c.b16 %v1552, %v1548
    %v2513 = vpack.c.b16 %v1553, %v1549
    %v2514 = vpack.c.b16 %v1554, %v1550
    %v2515 = vpack.c.b16 %v1559, %v1555
    %v2516 = vpack.c.b16 %v1560, %v1556
    %v2517 = vpack.c.b16 %v1561, %v1557
    %v2518 = vpack.c.b16 %v1562, %v1558
    %v2519 = vpack.c.b16 %v1567, %v1563
    %v2520 = vpack.c.b16 %v1568, %v1564
    %v2521 = vpack.c.b16 %v1569, %v1565
    %v2522 = vpack.c.b16 %v1570, %v1566
    %v2523 = vpack.c.b16 %v1575, %v1571
    %v2524 = vpack.c.b16 %v1576, %v1572
    %v2525 = vpack.c.b16 %v1577, %v1573
    %v2526 = vpack.c.b16 %v1578, %v1574
    %v2527 = vpack.c.b16 %v1583, %v1579
    %v2528 = vpack.c.b16 %v1584, %v1580
    %v2529 = vpack.c.b16 %v1585, %v1581
    %v2530 = vpack.c.b16 %v1586, %v1582
    %v2531 = vpack.c.b16 %v1591, %v1587
    %v2532 = vpack.c.b16 %v1592, %v1588
    %v2533 = vpack.c.b16 %v1593, %v1589
    %v2534 = vpack.c.b16 %v1594, %v1590
    %v2535 = vpack.c.b16 %v1599, %v1595
    %v2536 = vpack.c.b16 %v1600, %v1596
    %v2537 = vpack.c.b16 %v1601, %v1597
    %v2538 = vpack.c.b16 %v1602, %v1598
    %v2539 = vpack.c.b16 %v1607, %v1603
    %v2540 = vpack.c.b16 %v1608, %v1604
    %v2541 = vpack.c.b16 %v1609, %v1605
    %v2542 = vpack.c.b16 %v1610, %v1606
    %v2543 = vpack.c.b16 %v1615, %v1611
    %v2544 = vpack.c.b16 %v1616, %v1612
    %v2545 = vpack.c.b16 %v1617, %v1613
    %v2546 = vpack.c.b16 %v1618, %v1614
    %v2547 = vpack.c.b16 %v1623, %v1619
    %v2548 = vpack.c.b16 %v1624, %v1620
    %v2549 = vpack.c.b16 %v1625, %v1621
    %v2550 = vpack.c.b16 %v1626, %v1622
    %v2551 = vpack.c.b16 %v1631, %v1627
    %v2552 = vpack.c.b16 %v1632, %v1628
    %v2553 = vpack.c.b16 %v1633, %v1629
    %v2554 = vpack.c.b16 %v1634, %v1630
    %v2555 = vpack.c.b16 %v1639, %v1635
    %v2556 = vpack.c.b16 %v1640, %v1636
    %v2557 = vpack.c.b16 %v1641, %v1637
    %v2558 = vpack.c.b16 %v1642, %v1638
    %v2559 = vpack.c.b16 %v1647, %v1643
    %v2560 = vpack.c.b16 %v1648, %v1644
    %v2561 = vpack.c.b16 %v1649, %v1645
    %v2562 = vpack.c.b16 %v1650, %v1646
    %v2563 = vpack.c.b16 %v1655, %v1651
    %v2564 = vpack.c.b16 %v1656, %v1652
    %v2565 = vpack.c.b16 %v1657, %v1653
    %v2566 = vpack.c.b16 %v1658, %v1654
    %v2567 = vpack.c.b16 %v1663, %v1659
    %v2568 = vpack.c.b16 %v1664, %v1660
    %v2569 = vpack.c.b16 %v1665, %v1661
    %v2570 = vpack.c.b16 %v1666, %v1662
    %v2571 = vpack.c.b16 %v1671, %v1667
    %v2572 = vpack.c.b16 %v1672, %v1668
    %v2573 = vpack.c.b16 %v1673, %v1669
    %v2574 = vpack.c.b16 %v1674, %v1670
    %v2575 = vpack.c.b16 %v1679, %v1675
    %v2576 = vpack.c.b16 %v1680, %v1676
    %v2577 = vpack.c.b16 %v1681, %v1677
    %v2578 = vpack.c.b16 %v1682, %v1678
    %v2579 = vpack.c.b16 %v1687, %v1683
    %v2580 = vpack.c.b16 %v1688, %v1684
    %v2581 = vpack.c.b16 %v1689, %v1685
    %v2582 = vpack.c.b16 %v1690, %v1686
    %v2583 = vpack.c.b16 %v1695, %v1691
    %v2584 = vpack.c.b16 %v1696, %v1692
    %v2585 = vpack.c.b16 %v1697, %v1693
    %v2586 = vpack.c.b16 %v1698, %v1694
    %v2587 = vpack.c.b16 %v1703, %v1699
    %v2588 = vpack.c.b16 %v1704, %v1700
    %v2589 = vpack.c.b16 %v1705, %v1701
    %v2590 = vpack.c.b16 %v1706, %v1702
    %v2591 = vpack.c.b16 %v1711, %v1707
    %v2592 = vpack.c.b16 %v1712, %v1708
    %v2593 = vpack.c.b16 %v1713, %v1709
    %v2594 = vpack.c.b16 %v1714, %v1710
    %v2595 = vpack.c.b16 %v1719, %v1715
    %v2596 = vpack.c.b16 %v1720, %v1716
    %v2597 = vpack.c.b16 %v1721, %v1717
    %v2598 = vpack.c.b16 %v1722, %v1718
    %v2599 = vpack.c.b16 %v1727, %v1723
    %v2600 = vpack.c.b16 %v1728, %v1724
    %v2601 = vpack.c.b16 %v1729, %v1725
    %v2602 = vpack.c.b16 %v1730, %v1726
    %v2603 = vpack.c.b16 %v1735, %v1731
    %v2604 = vpack.c.b16 %v1736, %v1732
    %v2605 = vpack.c.b16 %v1737, %v1733
    %v2606 = vpack.c.b16 %v1738, %v1734
    %v2607 = vpack.c.b16 %v1743, %v1739
    %v2608 = vpack.c.b16 %v1744, %v1740
    %v2609 = vpack.c.b16 %v1745, %v1741
    %v2610 = vpack.c.b16 %v1746, %v1742
    %v2611 = vpack.c.b16 %v1751, %v1747
    %v2612 = vpack.c.b16 %v1752, %v1748
    %v2613 = vpack.c.b16 %v1753, %v1749
    %v2614 = vpack.c.b16 %v1754, %v1750
    %v2615 = vpack.c.b16 %v1759, %v1755
    %v2616 = vpack.c.b16 %v1760, %v1756
    %v2617 = vpack.c.b16 %v1761, %v1757
    %v2618 = vpack.c.b16 %v1762, %v1758
    %v2619 = vpack.c.b16 %v1767, %v1763
    %v2620 = vpack.c.b16 %v1768, %v1764
    %v2621 = vpack.c.b16 %v1769, %v1765
    %v2622 = vpack.c.b16 %v1770, %v1766
    %v2623 = vpack.c.b16 %v1775, %v1771
    %v2624 = vpack.c.b16 %v1776, %v1772
    %v2625 = vpack.c.b16 %v1777, %v1773
    %v2626 = vpack.c.b16 %v1778, %v1774
    %v2627 = vpack.c.b16 %v1783, %v1779
    %v2628 = vpack.c.b16 %v1784, %v1780
    %v2629 = vpack.c.b16 %v1785, %v1781
    %v2630 = vpack.c.b16 %v1786, %v1782
    %v2631 = vpack.c.b16 %v1791, %v1787
    %v2632 = vpack.c.b16 %v1792, %v1788
    %v2633 = vpack.c.b16 %v1793, %v1789
    %v2634 = vpack.c.b16 %v1794, %v1790
    %v2635 = vpack.c.b16 %v1799, %v1795
    %v2636 = vpack.c.b16 %v1800, %v1796
    %v2637 = vpack.c.b16 %v1801, %v1797
    %v2638 = vpack.c.b16 %v1802, %v1798
    %v2639 = vpack.c.b16 %v1807, %v1803
    %v2640 = vpack.c.b16 %v1808, %v1804
    %v2641 = vpack.c.b16 %v1809, %v1805
    %v2642 = vpack.c.b16 %v1810, %v1806
    %v2643 = vpack.c.b16 %v1815, %v1811
    %v2644 = vpack.c.b16 %v1816, %v1812
    %v2645 = vpack.c.b16 %v1817, %v1813
    %v2646 = vpack.c.b16 %v1818, %v1814
    %v2647 = vpack.c.b16 %v1823, %v1819
    %v2648 = vpack.c.b16 %v1824, %v1820
    %v2649 = vpack.c.b16 %v1825, %v1821
    %v2650 = vpack.c.b16 %v1826, %v1822
    %v2651 = vpack.c.b16 %v1831, %v1827
    %v2652 = vpack.c.b16 %v1832, %v1828
    %v2653 = vpack.c.b16 %v1833, %v1829
    %v2654 = vpack.c.b16 %v1834, %v1830
    %v2655 = vpack.c.b16 %v1839, %v1835
    %v2656 = vpack.c.b16 %v1840, %v1836
    %v2657 = vpack.c.b16 %v1841, %v1837
    %v2658 = vpack.c.b16 %v1842, %v1838
    %v2659 = vpack.c.b16 %v1847, %v1843
    %v2660 = vpack.c.b16 %v1848, %v1844
    %v2661 = vpack.c.b16 %v1849, %v1845
    %v2662 = vpack.c.b16 %v1850, %v1846
    %v2663 = vpack.c.b16 %v1855, %v1851
    %v2664 = vpack.c.b16 %v1856, %v1852
    %v2665 = vpack.c.b16 %v1857, %v1853
    %v2666 = vpack.c.b16 %v1858, %v1854
    %v2667 = vpack.c.b16 %v1863, %v1859
    %v2668 = vpack.c.b16 %v1864, %v1860
    %v2669 = vpack.c.b16 %v1865, %v1861
    %v2670 = vpack.c.b16 %v1866, %v1862
    %v2671 = vpack.c.b16 %v1871, %v1867
    %v2672 = vpack.c.b16 %v1872, %v1868
    %v2673 = vpack.c.b16 %v1873, %v1869
    %v2674 = vpack.c.b16 %v1874, %v1870
    %v2675 = vpack.c.b16 %v1879, %v1875
    %v2676 = vpack.c.b16 %v1880, %v1876
    %v2677 = vpack.c.b16 %v1881, %v1877
    %v2678 = vpack.c.b16 %v1882, %v1878
    %v2679 = vpack.c.b16 %v1887, %v1883
    %v2680 = vpack.c.b16 %v1888, %v1884
    %v2681 = vpack.c.b16 %v1889, %v1885
    %v2682 = vpack.c.b16 %v1890, %v1886
    %v2683 = vpack.c.b16 %v1895, %v1891
    %v2684 = vpack.c.b16 %v1896, %v1892
    %v2685 = vpack.c.b16 %v1897, %v1893
    %v2686 = vpack.c.b16 %v1898, %v1894
    %v2687 = vpack.c.b16 %v1903, %v1899
    %v2688 = vpack.c.b16 %v1904, %v1900
    %v2689 = vpack.c.b16 %v1905, %v1901
    %v2690 = vpack.c.b16 %v1906, %v1902
    %v2691 = vpack.c.b16 %v1911, %v1907
    %v2692 = vpack.c.b16 %v1912, %v1908
    %v2693 = vpack.c.b16 %v1913, %v1909
    %v2694 = vpack.c.b16 %v1914, %v1910
    %v2695 = vpack.c.b16 %v1919, %v1915
    %v2696 = vpack.c.b16 %v1920, %v1916
    %v2697 = vpack.c.b16 %v1921, %v1917
    %v2698 = vpack.c.b16 %v1922, %v1918
    %v2699 = vpack.c.b16 %v1927, %v1923
    %v2700 = vpack.c.b16 %v1928, %v1924
    %v2701 = vpack.c.b16 %v1929, %v1925
    %v2702 = vpack.c.b16 %v1930, %v1926
    %v2703 = vpack.c.b16 %v1935, %v1931
    %v2704 = vpack.c.b16 %v1936, %v1932
    %v2705 = vpack.c.b16 %v1937, %v1933
    %v2706 = vpack.c.b16 %v1938, %v1934
    %v2707 = vpack.c.b16 %v1943, %v1939
    %v2708 = vpack.c.b16 %v1944, %v1940
    %v2709 = vpack.c.b16 %v1945, %v1941
    %v2710 = vpack.c.b16 %v1946, %v1942
    %v2711 = vpack.c.b16 %v1951, %v1947
    %v2712 = vpack.c.b16 %v1952, %v1948
    %v2713 = vpack.c.b16 %v1953, %v1949
    %v2714 = vpack.c.b16 %v1954, %v1950
    %v2715 = vpack.c.b16 %v1959, %v1955
    %v2716 = vpack.c.b16 %v1960, %v1956
    %v2717 = vpack.c.b16 %v1961, %v1957
    %v2718 = vpack.c.b16 %v1962, %v1958
    %v2719 = vpack.c.b16 %v1967, %v1963
    %v2720 = vpack.c.b16 %v1968, %v1964
    %v2721 = vpack.c.b16 %v1969, %v1965
    %v2722 = vpack.c.b16 %v1970, %v1966
    %v2723 = vpack.c.b16 %v1975, %v1971
    %v2724 = vpack.c.b16 %v1976, %v1972
    %v2725 = vpack.c.b16 %v1977, %v1973
    %v2726 = vpack.c.b16 %v1978, %v1974
    %v2727 = vpack.c.b16 %v1983, %v1979
    %v2728 = vpack.c.b16 %v1984, %v1980
    %v2729 = vpack.c.b16 %v1985, %v1981
    %v2730 = vpack.c.b16 %v1986, %v1982
    %v2731 = vpack.c.b16 %v1991, %v1987
    %v2732 = vpack.c.b16 %v1992, %v1988
    %v2733 = vpack.c.b16 %v1993, %v1989
    %v2734 = vpack.c.b16 %v1994, %v1990
    %v2735 = vpack.c.b16 %v1999, %v1995
    %v2736 = vpack.c.b16 %v2000, %v1996
    %v2737 = vpack.c.b16 %v2001, %v1997
    %v2738 = vpack.c.b16 %v2002, %v1998
    %v2739 = vpack.c.b16 %v2007, %v2003
    %v2740 = vpack.c.b16 %v2008, %v2004
    %v2741 = vpack.c.b16 %v2009, %v2005
    %v2742 = vpack.c.b16 %v2010, %v2006
    %v2743 = vpack.c.b16 %v2015, %v2011
    %v2744 = vpack.c.b16 %v2016, %v2012
    %v2745 = vpack.c.b16 %v2017, %v2013
    %v2746 = vpack.c.b16 %v2018, %v2014
    %v2747 = vpack.c.b16 %v2023, %v2019
    %v2748 = vpack.c.b16 %v2024, %v2020
    %v2749 = vpack.c.b16 %v2025, %v2021
    %v2750 = vpack.c.b16 %v2026, %v2022
    %v2751 = vpack.c.b16 %v2031, %v2027
    %v2752 = vpack.c.b16 %v2032, %v2028
    %v2753 = vpack.c.b16 %v2033, %v2029
    %v2754 = vpack.c.b16 %v2034, %v2030
    %v2755 = vpack.c.b16 %v2039, %v2035
    %v2756 = vpack.c.b16 %v2040, %v2036
    %v2757 = vpack.c.b16 %v2041, %v2037
    %v2758 = vpack.c.b16 %v2042, %v2038
    %v2759 = vpack.c.b16 %v2047, %v2043
    %v2760 = vpack.c.b16 %v2048, %v2044
    %v2761 = vpack.c.b16 %v2049, %v2045
    %v2762 = vpack.c.b16 %v2050, %v2046
    %v2763 = vpack.c.b16 %v2055, %v2051
    %v2764 = vpack.c.b16 %v2056, %v2052
    %v2765 = vpack.c.b16 %v2057, %v2053
    %v2766 = vpack.c.b16 %v2058, %v2054
    %v2767 = vpack.c.b16 %v2063, %v2059
    %v2768 = vpack.c.b16 %v2064, %v2060
    %v2769 = vpack.c.b16 %v2065, %v2061
    %v2770 = vpack.c.b16 %v2066, %v2062
    %v2771 = vpack.c.b16 %v2071, %v2067
    %v2772 = vpack.c.b16 %v2072, %v2068
    %v2773 = vpack.c.b16 %v2073, %v2069
    %v2774 = vpack.c.b16 %v2074, %v2070
    %v2775 = vpack.c.b16 %v2079, %v2075
    %v2776 = vpack.c.b16 %v2080, %v2076
    %v2777 = vpack.c.b16 %v2081, %v2077
    %v2778 = vpack.c.b16 %v2082, %v2078
    %v2779 = vpack.c.b16 %v2087, %v2083
    %v2780 = vpack.c.b16 %v2088, %v2084
    %v2781 = vpack.c.b16 %v2089, %v2085
    %v2782 = vpack.c.b16 %v2090, %v2086
    %v2783 = vpack.c.b16 %v2095, %v2091
    %v2784 = vpack.c.b16 %v2096, %v2092
    %v2785 = vpack.c.b16 %v2097, %v2093
    %v2786 = vpack.c.b16 %v2098, %v2094
    %v2787 = vpack.c.b16 %v2103, %v2099
    %v2788 = vpack.c.b16 %v2104, %v2100
    %v2789 = vpack.c.b16 %v2105, %v2101
    %v2790 = vpack.c.b16 %v2106, %v2102
    %v2791 = vpack.c.b16 %v2111, %v2107
    %v2792 = vpack.c.b16 %v2112, %v2108
    %v2793 = vpack.c.b16 %v2113, %v2109
    %v2794 = vpack.c.b16 %v2114, %v2110
    %v2795 = vpack.c.b16 %v2119, %v2115
    %v2796 = vpack.c.b16 %v2120, %v2116
    %v2797 = vpack.c.b16 %v2121, %v2117
    %v2798 = vpack.c.b16 %v2122, %v2118
    %v2799 = vpack.c.b16 %v2127, %v2123
    %v2800 = vpack.c.b16 %v2128, %v2124
    %v2801 = vpack.c.b16 %v2129, %v2125
    %v2802 = vpack.c.b16 %v2130, %v2126
    %v2803 = vpack.c.b16 %v2135, %v2131
    %v2804 = vpack.c.b16 %v2136, %v2132
    %v2805 = vpack.c.b16 %v2137, %v2133
    %v2806 = vpack.c.b16 %v2138, %v2134
    %v2807 = vpack.c.b16 %v2143, %v2139
    %v2808 = vpack.c.b16 %v2144, %v2140
    %v2809 = vpack.c.b16 %v2145, %v2141
    %v2810 = vpack.c.b16 %v2146, %v2142
    %v2811 = vpack.c.b16 %v2151, %v2147
    %v2812 = vpack.c.b16 %v2152, %v2148
    %v2813 = vpack.c.b16 %v2153, %v2149
    %v2814 = vpack.c.b16 %v2154, %v2150
    %v2815 = vpack.c.b16 %v2159, %v2155
    %v2816 = vpack.c.b16 %v2160, %v2156
    %v2817 = vpack.c.b16 %v2161, %v2157
    %v2818 = vpack.c.b16 %v2162, %v2158
    %v2819 = vpack.c.b16 %v2167, %v2163
    %v2820 = vpack.c.b16 %v2168, %v2164
    %v2821 = vpack.c.b16 %v2169, %v2165
    %v2822 = vpack.c.b16 %v2170, %v2166
    %v2823 = vpack.c.b16 %v2175, %v2171
    %v2824 = vpack.c.b16 %v2176, %v2172
    %v2825 = vpack.c.b16 %v2177, %v2173
    %v2826 = vpack.c.b16 %v2178, %v2174
    %v2827 = vpack.c.b16 %v2183, %v2179
    %v2828 = vpack.c.b16 %v2184, %v2180
    %v2829 = vpack.c.b16 %v2185, %v2181
    %v2830 = vpack.c.b16 %v2186, %v2182
    %v2831 = vpack.c.b16 %v2191, %v2187
    %v2832 = vpack.c.b16 %v2192, %v2188
    %v2833 = vpack.c.b16 %v2193, %v2189
    %v2834 = vpack.c.b16 %v2194, %v2190
    %v2835 = vpack.c.b16 %v2199, %v2195
    %v2836 = vpack.c.b16 %v2200, %v2196
    %v2837 = vpack.c.b16 %v2201, %v2197
    %v2838 = vpack.c.b16 %v2202, %v2198
    %v2839 = vpack.c.b16 %v2207, %v2203
    %v2840 = vpack.c.b16 %v2208, %v2204
    %v2841 = vpack.c.b16 %v2209, %v2205
    %v2842 = vpack.c.b16 %v2210, %v2206
    %v2843 = vpack.c.b16 %v2215, %v2211
    %v2844 = vpack.c.b16 %v2216, %v2212
    %v2845 = vpack.c.b16 %v2217, %v2213
    %v2846 = vpack.c.b16 %v2218, %v2214
    %v2847 = vpack.c.b16 %v2223, %v2219
    %v2848 = vpack.c.b16 %v2224, %v2220
    %v2849 = vpack.c.b16 %v2225, %v2221
    %v2850 = vpack.c.b16 %v2226, %v2222
    %v2851 = vpack.c.b16 %v2231, %v2227
    %v2852 = vpack.c.b16 %v2232, %v2228
    %v2853 = vpack.c.b16 %v2233, %v2229
    %v2854 = vpack.c.b16 %v2234, %v2230
    %v2855 = vpack.c.b16 %v2239, %v2235
    %v2856 = vpack.c.b16 %v2240, %v2236
    %v2857 = vpack.c.b16 %v2241, %v2237
    %v2858 = vpack.c.b16 %v2242, %v2238
    %v2859 = vpack.c.b16 %v2247, %v2243
    %v2860 = vpack.c.b16 %v2248, %v2244
    %v2861 = vpack.c.b16 %v2249, %v2245
    %v2862 = vpack.c.b16 %v2250, %v2246
    %v2863 = vpack.c.b16 %v2255, %v2251
    %v2864 = vpack.c.b16 %v2256, %v2252
    %v2865 = vpack.c.b16 %v2257, %v2253
    %v2866 = vpack.c.b16 %v2258, %v2254
    %v2867 = vpack.c.b16 %v2263, %v2259
    %v2868 = vpack.c.b16 %v2264, %v2260
    %v2869 = vpack.c.b16 %v2265, %v2261
    %v2870 = vpack.c.b16 %v2266, %v2262
    %v2871 = vpack.c.b16 %v2271, %v2267
    %v2872 = vpack.c.b16 %v2272, %v2268
    %v2873 = vpack.c.b16 %v2273, %v2269
    %v2874 = vpack.c.b16 %v2274, %v2270
    %v2875 = vpack.c.b16 %v2279, %v2275
    %v2876 = vpack.c.b16 %v2280, %v2276
    %v2877 = vpack.c.b16 %v2281, %v2277
    %v2878 = vpack.c.b16 %v2282, %v2278
    %v2879 = vpack.c.b16 %v2287, %v2283
    %v2880 = vpack.c.b16 %v2288, %v2284
    %v2881 = vpack.c.b16 %v2289, %v2285
    %v2882 = vpack.c.b16 %v2290, %v2286
    %v2883 = vpack.c.b16 %v2295, %v2291
    %v2884 = vpack.c.b16 %v2296, %v2292
    %v2885 = vpack.c.b16 %v2297, %v2293
    %v2886 = vpack.c.b16 %v2298, %v2294
    %v2887 = vpack.c.b16 %v2303, %v2299
    %v2888 = vpack.c.b16 %v2304, %v2300
    %v2889 = vpack.c.b16 %v2305, %v2301
    %v2890 = vpack.c.b16 %v2306, %v2302
    %v2891 = vpack.c.b16 %v2311, %v2307
    %v2892 = vpack.c.b16 %v2312, %v2308
    %v2893 = vpack.c.b16 %v2313, %v2309
    %v2894 = vpack.c.b16 %v2314, %v2310
    %v2895 = vpack.c.b16 %v2319, %v2315
    %v2896 = vpack.c.b16 %v2320, %v2316
    %v2897 = vpack.c.b16 %v2321, %v2317
    %v2898 = vpack.c.b16 %v2322, %v2318
    %v2899 = vpack.c.b16 %v2327, %v2323
    %v2900 = vpack.c.b16 %v2328, %v2324
    %v2901 = vpack.c.b16 %v2329, %v2325
    %v2902 = vpack.c.b16 %v2330, %v2326
    %v2903 = vpack.c.b16 %v2335, %v2331
    %v2904 = vpack.c.b16 %v2336, %v2332
    %v2905 = vpack.c.b16 %v2337, %v2333
    %v2906 = vpack.c.b16 %v2338, %v2334
    %v2907 = vpack.c.b16 %v2343, %v2339
    %v2908 = vpack.c.b16 %v2344, %v2340
    %v2909 = vpack.c.b16 %v2345, %v2341
    %v2910 = vpack.c.b16 %v2346, %v2342
    %v2911 = vpack.c.b16 %v2351, %v2347
    %v2912 = vpack.c.b16 %v2352, %v2348
    %v2913 = vpack.c.b16 %v2353, %v2349
    %v2914 = vpack.c.b16 %v2354, %v2350
    %v2915 = vpack.c.b16 %v2359, %v2355
    %v2916 = vpack.c.b16 %v2360, %v2356
    %v2917 = vpack.c.b16 %v2361, %v2357
    %v2918 = vpack.c.b16 %v2362, %v2358
    %v2919 = vpack.c.b16 %v2367, %v2363
    %v2920 = vpack.c.b16 %v2368, %v2364
    %v2921 = vpack.c.b16 %v2369, %v2365
    %v2922 = vpack.c.b16 %v2370, %v2366
    %v2923 = vpack.c.b16 %v2375, %v2371
    %v2924 = vpack.c.b16 %v2376, %v2372
    %v2925 = vpack.c.b16 %v2377, %v2373
    %v2926 = vpack.c.b16 %v2378, %v2374
    %v2927 = vpack.c.b16 %v2383, %v2379
    %v2928 = vpack.c.b16 %v2384, %v2380
    %v2929 = vpack.c.b16 %v2385, %v2381
    %v2930 = vpack.c.b16 %v2386, %v2382
    %v2931 = vpack.c.b16 %v2391, %v2387
    %v2932 = vpack.c.b16 %v2392, %v2388
    %v2933 = vpack.c.b16 %v2393, %v2389
    %v2934 = vpack.c.b16 %v2394, %v2390
    %v2935 = vpack.c.b16 %v2399, %v2395
    %v2936 = vpack.c.b16 %v2400, %v2396
    %v2937 = vpack.c.b16 %v2401, %v2397
    %v2938 = vpack.c.b16 %v2402, %v2398
    %v2939 = vpack.c.b16 %v2407, %v2403
    %v2940 = vpack.c.b16 %v2408, %v2404
    %v2941 = vpack.c.b16 %v2409, %v2405
    %v2942 = vpack.c.b16 %v2410, %v2406
    %v2943 = vpack.c.b16 %v2415, %v2411
    %v2944 = vpack.c.b16 %v2416, %v2412
    %v2945 = vpack.c.b16 %v2417, %v2413
    %v2946 = vpack.c.b16 %v2418, %v2414
    %v2947 = vpack.c.b16 %v2423, %v2419
    %v2948 = vpack.c.b16 %v2424, %v2420
    %v2949 = vpack.c.b16 %v2425, %v2421
    %v2950 = vpack.c.b16 %v2426, %v2422
    %v2951 = vpack.c.b16 %v2431, %v2427
    %v2952 = vpack.c.b16 %v2432, %v2428
    %v2953 = vpack.c.b16 %v2433, %v2429
    %v2954 = vpack.c.b16 %v2434, %v2430
    %v2955 = vpack.c.b16 %v2439, %v2435
    %v2956 = vpack.c.b16 %v2440, %v2436
    %v2957 = vpack.c.b16 %v2441, %v2437
    %v2958 = vpack.c.b16 %v2442, %v2438
    %v2959 = vpack.c.b16 %v2447, %v2443
    %v2960 = vpack.c.b16 %v2448, %v2444
    %v2961 = vpack.c.b16 %v2449, %v2445
    %v2962 = vpack.c.b16 %v2450, %v2446
    %3475 = vmatprep.subr.bf16.mxu0 %v2452
    %3476 = vmatpush1.bf16.msra.mxu0 %v2451
    %3477 = vmatprep.subr.bf16.mxu0 %v2456
    %3478 = vmatpush1.bf16.msra.mxu0 %v2455
    %3479 = vmatprep.subr.bf16.mxu0 %v2460
    %3480 = vmatpush1.bf16.msra.mxu0 %v2459
    %3481 = vmatprep.subr.bf16.mxu0 %v2464
    %3482 = vmatpush1.bf16.msra.mxu0 %v2463
    %3483 = vmatprep.subr.bf16.mxu0 %v2468
    %3484 = vmatpush1.bf16.msra.mxu0 %v2467
    %3485 = vmatprep.subr.bf16.mxu0 %v2472
    %3486 = vmatpush1.bf16.msra.mxu0 %v2471
    %3487 = vmatprep.subr.bf16.mxu0 %v2476
    %3488 = vmatpush1.bf16.msra.mxu0 %v2475
    %3489 = vmatprep.subr.bf16.mxu0 %v2480
    %3490 = vmatpush1.bf16.msra.mxu0 %v2479
    %3491 = vmatprep.subr.bf16.mxu0 %v2484
    %3492 = vmatpush1.bf16.msra.mxu0 %v2483
    %3493 = vmatprep.subr.bf16.mxu0 %v2488
    %3494 = vmatpush1.bf16.msra.mxu0 %v2487
    %3495 = vmatprep.subr.bf16.mxu0 %v2492
    %3496 = vmatpush1.bf16.msra.mxu0 %v2491
    %3497 = vmatprep.subr.bf16.mxu0 %v2496
    %3498 = vmatpush1.bf16.msra.mxu0 %v2495
    %3499 = vmatprep.subr.bf16.mxu0 %v2500
    %3500 = vmatpush1.bf16.msra.mxu0 %v2499
    %3501 = vmatprep.subr.bf16.mxu0 %v2504
    %3502 = vmatpush1.bf16.msra.mxu0 %v2503
    %3503 = vmatprep.subr.bf16.mxu0 %v2508
    %3504 = vmatpush1.bf16.msra.mxu0 %v2507
    %3505 = vmatprep.subr.bf16.mxu0 %v2512
    %3506 = vmatpush1.bf16.msra.mxu0 %v2511
    %3507 = vmatprep.mubr.bf16.mxu0 %v366
    %3508 = vmatmul.mubr.bf16.gmra.mrb[0].mxu0 %v365
    %v3509 = vpop.f32.mrb[0].mxu0
    %v3510 = vadd.f32 %v898, %v3509
    %v3511 = vpop.f32.mrb[0].mxu0
    %v3512 = vadd.f32 %v902, %v3511
    %v3513 = vpop.f32.mrb[0].mxu0
    %v3514 = vpop.f32.mrb[0].mxu0
    %3515 = vdwg.mxu0
    %3516 = vmatprep.subr.bf16.mxu0 %v2516
    %3517 = vmatpush1.bf16.msra.mxu0 %v2515
    %3518 = vmatprep.subr.bf16.mxu0 %v2520
    %3519 = vmatpush1.bf16.msra.mxu0 %v2519
    %3520 = vmatprep.subr.bf16.mxu0 %v2524
    %3521 = vmatpush1.bf16.msra.mxu0 %v2523
    %3522 = vmatprep.subr.bf16.mxu0 %v2528
    %3523 = vmatpush1.bf16.msra.mxu0 %v2527
    %3524 = vmatprep.subr.bf16.mxu0 %v2532
    %3525 = vmatpush1.bf16.msra.mxu0 %v2531
    %3526 = vmatprep.subr.bf16.mxu0 %v2536
    %3527 = vmatpush1.bf16.msra.mxu0 %v2535
    %3528 = vmatprep.subr.bf16.mxu0 %v2540
    %3529 = vmatpush1.bf16.msra.mxu0 %v2539
    %3530 = vmatprep.subr.bf16.mxu0 %v2544
    %3531 = vmatpush1.bf16.msra.mxu0 %v2543
    %3532 = vmatprep.subr.bf16.mxu0 %v2548
    %3533 = vmatpush1.bf16.msra.mxu0 %v2547
    %3534 = vmatprep.subr.bf16.mxu0 %v2552
    %3535 = vmatpush1.bf16.msra.mxu0 %v2551
    %3536 = vmatprep.subr.bf16.mxu0 %v2556
    %3537 = vmatpush1.bf16.msra.mxu0 %v2555
    %3538 = vmatprep.subr.bf16.mxu0 %v2560
    %3539 = vmatpush1.bf16.msra.mxu0 %v2559
    %3540 = vmatprep.subr.bf16.mxu0 %v2564
    %3541 = vmatpush1.bf16.msra.mxu0 %v2563
    %3542 = vmatprep.subr.bf16.mxu0 %v2568
    %3543 = vmatpush1.bf16.msra.mxu0 %v2567
    %3544 = vmatprep.subr.bf16.mxu0 %v2572
    %3545 = vmatpush1.bf16.msra.mxu0 %v2571
    %3546 = vmatprep.subr.bf16.mxu0 %v2576
    %3547 = vmatpush1.bf16.msra.mxu0 %v2575
    %3548 = vmatprep.mubr.bf16.mxu0 %v368
    %3549 = vmatmul.mubr.bf16.gmra.mrb[0].mxu0 %v367
    %v3550 = vpop.f32.mrb[0].mxu0
    %v3551 = vadd.f32 %v3510, %v3550
    %v3552 = vpop.f32.mrb[0].mxu0
    %v3553 = vadd.f32 %v3512, %v3552
    %v3554 = vpop.f32.mrb[0].mxu0
    %v3555 = vpop.f32.mrb[0].mxu0
    %3556 = vdwg.mxu0
    %3557 = vmatprep.subr.bf16.mxu0 %v2580
    %3558 = vmatpush1.bf16.msra.mxu0 %v2579
    %3559 = vmatprep.subr.bf16.mxu0 %v2584
    %3560 = vmatpush1.bf16.msra.mxu0 %v2583
    %3561 = vmatprep.subr.bf16.mxu0 %v2588
    %3562 = vmatpush1.bf16.msra.mxu0 %v2587
    %3563 = vmatprep.subr.bf16.mxu0 %v2592
    %3564 = vmatpush1.bf16.msra.mxu0 %v2591
    %3565 = vmatprep.subr.bf16.mxu0 %v2596
    %3566 = vmatpush1.bf16.msra.mxu0 %v2595
    %3567 = vmatprep.subr.bf16.mxu0 %v2600
    %3568 = vmatpush1.bf16.msra.mxu0 %v2599
    %3569 = vmatprep.subr.bf16.mxu0 %v2604
    %3570 = vmatpush1.bf16.msra.mxu0 %v2603
    %3571 = vmatprep.subr.bf16.mxu0 %v2608
    %3572 = vmatpush1.bf16.msra.mxu0 %v2607
    %3573 = vmatprep.subr.bf16.mxu0 %v2612
    %3574 = vmatpush1.bf16.msra.mxu0 %v2611
    %3575 = vmatprep.subr.bf16.mxu0 %v2616
    %3576 = vmatpush1.bf16.msra.mxu0 %v2615
    %3577 = vmatprep.subr.bf16.mxu0 %v2620
    %3578 = vmatpush1.bf16.msra.mxu0 %v2619
    %3579 = vmatprep.subr.bf16.mxu0 %v2624
    %3580 = vmatpush1.bf16.msra.mxu0 %v2623
    %3581 = vmatprep.subr.bf16.mxu0 %v2628
    %3582 = vmatpush1.bf16.msra.mxu0 %v2627
    %3583 = vmatprep.subr.bf16.mxu0 %v2632
    %3584 = vmatpush1.bf16.msra.mxu0 %v2631
    %3585 = vmatprep.subr.bf16.mxu0 %v2636
    %3586 = vmatpush1.bf16.msra.mxu0 %v2635
    %3587 = vmatprep.subr.bf16.mxu0 %v2640
    %3588 = vmatpush1.bf16.msra.mxu0 %v2639
    %3589 = vmatprep.mubr.bf16.mxu0 %v370
    %3590 = vmatmul.mubr.bf16.gmra.mrb[0].mxu0 %v369
    %v3591 = vpop.f32.mrb[0].mxu0
    %v3592 = vadd.f32 %v3551, %v3591
    %v3593 = vpop.f32.mrb[0].mxu0
    %v3594 = vadd.f32 %v3553, %v3593
    %v3595 = vpop.f32.mrb[0].mxu0
    %v3596 = vpop.f32.mrb[0].mxu0
    %3597 = vdwg.mxu0
    %3598 = vmatprep.subr.bf16.mxu0 %v2644
    %3599 = vmatpush1.bf16.msra.mxu0 %v2643
    %3600 = vmatprep.subr.bf16.mxu0 %v2648
    %3601 = vmatpush1.bf16.msra.mxu0 %v2647
    %3602 = vmatprep.subr.bf16.mxu0 %v2652
    %3603 = vmatpush1.bf16.msra.mxu0 %v2651
    %3604 = vmatprep.subr.bf16.mxu0 %v2656
    %3605 = vmatpush1.bf16.msra.mxu0 %v2655
    %3606 = vmatprep.subr.bf16.mxu0 %v2660
    %3607 = vmatpush1.bf16.msra.mxu0 %v2659
    %3608 = vmatprep.subr.bf16.mxu0 %v2664
    %3609 = vmatpush1.bf16.msra.mxu0 %v2663
    %3610 = vmatprep.subr.bf16.mxu0 %v2668
    %3611 = vmatpush1.bf16.msra.mxu0 %v2667
    %3612 = vmatprep.subr.bf16.mxu0 %v2672
    %3613 = vmatpush1.bf16.msra.mxu0 %v2671
    %3614 = vmatprep.subr.bf16.mxu0 %v2676
    %3615 = vmatpush1.bf16.msra.mxu0 %v2675
    %3616 = vmatprep.subr.bf16.mxu0 %v2680
    %3617 = vmatpush1.bf16.msra.mxu0 %v2679
    %3618 = vmatprep.subr.bf16.mxu0 %v2684
    %3619 = vmatpush1.bf16.msra.mxu0 %v2683
    %3620 = vmatprep.subr.bf16.mxu0 %v2688
    %3621 = vmatpush1.bf16.msra.mxu0 %v2687
    %3622 = vmatprep.subr.bf16.mxu0 %v2692
    %3623 = vmatpush1.bf16.msra.mxu0 %v2691
    %3624 = vmatprep.subr.bf16.mxu0 %v2696
    %3625 = vmatpush1.bf16.msra.mxu0 %v2695
    %3626 = vmatprep.subr.bf16.mxu0 %v2700
    %3627 = vmatpush1.bf16.msra.mxu0 %v2699
    %3628 = vmatprep.subr.bf16.mxu0 %v2704
    %3629 = vmatpush1.bf16.msra.mxu0 %v2703
    %3630 = vmatprep.mubr.bf16.mxu0 %v372
    %3631 = vmatmul.mubr.bf16.gmra.mrb[0].mxu0 %v371
    %v3632 = vpop.f32.mrb[0].mxu0
    %v3633 = vadd.f32 %v3592, %v3632
    %v3634 = vpop.f32.mrb[0].mxu0
    %v3635 = vadd.f32 %v3594, %v3634
    %v3636 = vpop.f32.mrb[0].mxu0
    %v3637 = vpop.f32.mrb[0].mxu0
    %3638 = vdwg.mxu0
    %3639 = vmatprep.subr.bf16.mxu0 %v2708
    %3640 = vmatpush1.bf16.msra.mxu0 %v2707
    %3641 = vmatprep.subr.bf16.mxu0 %v2712
    %3642 = vmatpush1.bf16.msra.mxu0 %v2711
    %3643 = vmatprep.subr.bf16.mxu0 %v2716
    %3644 = vmatpush1.bf16.msra.mxu0 %v2715
    %3645 = vmatprep.subr.bf16.mxu0 %v2720
    %3646 = vmatpush1.bf16.msra.mxu0 %v2719
    %3647 = vmatprep.subr.bf16.mxu0 %v2724
    %3648 = vmatpush1.bf16.msra.mxu0 %v2723
    %3649 = vmatprep.subr.bf16.mxu0 %v2728
    %3650 = vmatpush1.bf16.msra.mxu0 %v2727
    %3651 = vmatprep.subr.bf16.mxu0 %v2732
    %3652 = vmatpush1.bf16.msra.mxu0 %v2731
    %3653 = vmatprep.subr.bf16.mxu0 %v2736
    %3654 = vmatpush1.bf16.msra.mxu0 %v2735
    %3655 = vmatprep.subr.bf16.mxu0 %v2740
    %3656 = vmatpush1.bf16.msra.mxu0 %v2739
    %3657 = vmatprep.subr.bf16.mxu0 %v2744
    %3658 = vmatpush1.bf16.msra.mxu0 %v2743
    %3659 = vmatprep.subr.bf16.mxu0 %v2748
    %3660 = vmatpush1.bf16.msra.mxu0 %v2747
    %3661 = vmatprep.subr.bf16.mxu0 %v2752
    %3662 = vmatpush1.bf16.msra.mxu0 %v2751
    %3663 = vmatprep.subr.bf16.mxu0 %v2756
    %3664 = vmatpush1.bf16.msra.mxu0 %v2755
    %3665 = vmatprep.subr.bf16.mxu0 %v2760
    %3666 = vmatpush1.bf16.msra.mxu0 %v2759
    %3667 = vmatprep.subr.bf16.mxu0 %v2764
    %3668 = vmatpush1.bf16.msra.mxu0 %v2763
    %3669 = vmatprep.subr.bf16.mxu0 %v2768
    %3670 = vmatpush1.bf16.msra.mxu0 %v2767
    %3671 = vmatprep.mubr.bf16.mxu0 %v374
    %3672 = vmatmul.mubr.bf16.gmra.mrb[0].mxu0 %v373
    %v3673 = vpop.f32.mrb[0].mxu0
    %v3674 = vadd.f32 %v3633, %v3673
    %v3675 = vpop.f32.mrb[0].mxu0
    %v3676 = vadd.f32 %v3635, %v3675
    %v3677 = vpop.f32.mrb[0].mxu0
    %v3678 = vpop.f32.mrb[0].mxu0
    %3679 = vdwg.mxu0
    %3680 = vmatprep.subr.bf16.mxu0 %v2772
    %3681 = vmatpush1.bf16.msra.mxu0 %v2771
    %3682 = vmatprep.subr.bf16.mxu0 %v2776
    %3683 = vmatpush1.bf16.msra.mxu0 %v2775
    %3684 = vmatprep.subr.bf16.mxu0 %v2780
    %3685 = vmatpush1.bf16.msra.mxu0 %v2779
    %3686 = vmatprep.subr.bf16.mxu0 %v2784
    %3687 = vmatpush1.bf16.msra.mxu0 %v2783
    %3688 = vmatprep.subr.bf16.mxu0 %v2788
    %3689 = vmatpush1.bf16.msra.mxu0 %v2787
    %3690 = vmatprep.subr.bf16.mxu0 %v2792
    %3691 = vmatpush1.bf16.msra.mxu0 %v2791
    %3692 = vmatprep.subr.bf16.mxu0 %v2796
    %3693 = vmatpush1.bf16.msra.mxu0 %v2795
    %3694 = vmatprep.subr.bf16.mxu0 %v2800
    %3695 = vmatpush1.bf16.msra.mxu0 %v2799
    %3696 = vmatprep.subr.bf16.mxu0 %v2804
    %3697 = vmatpush1.bf16.msra.mxu0 %v2803
    %3698 = vmatprep.subr.bf16.mxu0 %v2808
    %3699 = vmatpush1.bf16.msra.mxu0 %v2807
    %3700 = vmatprep.subr.bf16.mxu0 %v2812
    %3701 = vmatpush1.bf16.msra.mxu0 %v2811
    %3702 = vmatprep.subr.bf16.mxu0 %v2816
    %3703 = vmatpush1.bf16.msra.mxu0 %v2815
    %3704 = vmatprep.subr.bf16.mxu0 %v2820
    %3705 = vmatpush1.bf16.msra.mxu0 %v2819
    %3706 = vmatprep.subr.bf16.mxu0 %v2824
    %3707 = vmatpush1.bf16.msra.mxu0 %v2823
    %3708 = vmatprep.subr.bf16.mxu0 %v2828
    %3709 = vmatpush1.bf16.msra.mxu0 %v2827
    %3710 = vmatprep.subr.bf16.mxu0 %v2832
    %3711 = vmatpush1.bf16.msra.mxu0 %v2831
    %3712 = vmatprep.mubr.bf16.mxu0 %v376
    %3713 = vmatmul.mubr.bf16.gmra.mrb[0].mxu0 %v375
    %v3714 = vpop.f32.mrb[0].mxu0
    %v3715 = vadd.f32 %v3674, %v3714
    %v3716 = vpop.f32.mrb[0].mxu0
    %v3717 = vadd.f32 %v3676, %v3716
    %v3718 = vpop.f32.mrb[0].mxu0
    %v3719 = vpop.f32.mrb[0].mxu0
    %3720 = vdwg.mxu0
    %3721 = vmatprep.subr.bf16.mxu0 %v2836
    %3722 = vmatpush1.bf16.msra.mxu0 %v2835
    %3723 = vmatprep.subr.bf16.mxu0 %v2840
    %3724 = vmatpush1.bf16.msra.mxu0 %v2839
    %3725 = vmatprep.subr.bf16.mxu0 %v2844
    %3726 = vmatpush1.bf16.msra.mxu0 %v2843
    %3727 = vmatprep.subr.bf16.mxu0 %v2848
    %3728 = vmatpush1.bf16.msra.mxu0 %v2847
    %3729 = vmatprep.subr.bf16.mxu0 %v2852
    %3730 = vmatpush1.bf16.msra.mxu0 %v2851
    %3731 = vmatprep.subr.bf16.mxu0 %v2856
    %3732 = vmatpush1.bf16.msra.mxu0 %v2855
    %3733 = vmatprep.subr.bf16.mxu0 %v2860
    %3734 = vmatpush1.bf16.msra.mxu0 %v2859
    %3735 = vmatprep.subr.bf16.mxu0 %v2864
    %3736 = vmatpush1.bf16.msra.mxu0 %v2863
    %3737 = vmatprep.subr.bf16.mxu0 %v2868
    %3738 = vmatpush1.bf16.msra.mxu0 %v2867
    %3739 = vmatprep.subr.bf16.mxu0 %v2872
    %3740 = vmatpush1.bf16.msra.mxu0 %v2871
    %3741 = vmatprep.subr.bf16.mxu0 %v2876
    %3742 = vmatpush1.bf16.msra.mxu0 %v2875
    %3743 = vmatprep.subr.bf16.mxu0 %v2880
    %3744 = vmatpush1.bf16.msra.mxu0 %v2879
    %3745 = vmatprep.subr.bf16.mxu0 %v2884
    %3746 = vmatpush1.bf16.msra.mxu0 %v2883
    %3747 = vmatprep.subr.bf16.mxu0 %v2888
    %3748 = vmatpush1.bf16.msra.mxu0 %v2887
    %3749 = vmatprep.subr.bf16.mxu0 %v2892
    %3750 = vmatpush1.bf16.msra.mxu0 %v2891
    %3751 = vmatprep.subr.bf16.mxu0 %v2896
    %3752 = vmatpush1.bf16.msra.mxu0 %v2895
    %3753 = vmatprep.mubr.bf16.mxu0 %v378
    %3754 = vmatmul.mubr.bf16.gmra.mrb[0].mxu0 %v377
    %v3755 = vpop.f32.mrb[0].mxu0
    %v3756 = vadd.f32 %v3715, %v3755
    %v3757 = vpop.f32.mrb[0].mxu0
    %v3758 = vadd.f32 %v3717, %v3757
    %v3759 = vpop.f32.mrb[0].mxu0
    %v3760 = vpop.f32.mrb[0].mxu0
    %3761 = vdwg.mxu0
    %3762 = vmatprep.subr.bf16.mxu0 %v2900
    %3763 = vmatpush1.bf16.msra.mxu0 %v2899
    %3764 = vmatprep.subr.bf16.mxu0 %v2904
    %3765 = vmatpush1.bf16.msra.mxu0 %v2903
    %3766 = vmatprep.subr.bf16.mxu0 %v2908
    %3767 = vmatpush1.bf16.msra.mxu0 %v2907
    %3768 = vmatprep.subr.bf16.mxu0 %v2912
    %3769 = vmatpush1.bf16.msra.mxu0 %v2911
    %3770 = vmatprep.subr.bf16.mxu0 %v2916
    %3771 = vmatpush1.bf16.msra.mxu0 %v2915
    %3772 = vmatprep.subr.bf16.mxu0 %v2920
    %3773 = vmatpush1.bf16.msra.mxu0 %v2919
    %3774 = vmatprep.subr.bf16.mxu0 %v2924
    %3775 = vmatpush1.bf16.msra.mxu0 %v2923
    %3776 = vmatprep.subr.bf16.mxu0 %v2928
    %3777 = vmatpush1.bf16.msra.mxu0 %v2927
    %3778 = vmatprep.subr.bf16.mxu0 %v2932
    %3779 = vmatpush1.bf16.msra.mxu0 %v2931
    %3780 = vmatprep.subr.bf16.mxu0 %v2936
    %3781 = vmatpush1.bf16.msra.mxu0 %v2935
    %3782 = vmatprep.subr.bf16.mxu0 %v2940
    %3783 = vmatpush1.bf16.msra.mxu0 %v2939
    %3784 = vmatprep.subr.bf16.mxu0 %v2944
    %3785 = vmatpush1.bf16.msra.mxu0 %v2943
    %3786 = vmatprep.subr.bf16.mxu0 %v2948
    %3787 = vmatpush1.bf16.msra.mxu0 %v2947
    %3788 = vmatprep.subr.bf16.mxu0 %v2952
    %3789 = vmatpush1.bf16.msra.mxu0 %v2951
    %3790 = vmatprep.subr.bf16.mxu0 %v2956
    %3791 = vmatpush1.bf16.msra.mxu0 %v2955
    %3792 = vmatprep.subr.bf16.mxu0 %v2960
    %3793 = vmatpush1.bf16.msra.mxu0 %v2959
    %3794 = vmatprep.mubr.bf16.mxu0 %v380
    %3795 = vmatmul.mubr.bf16.gmra.mrb[0].mxu0 %v379
    %v3796 = vpop.f32.mrb[0].mxu0
    %v3797 = vadd.f32 %v3756, %v3796
    %v3798 = vpop.f32.mrb[0].mxu0
    %v3799 = vadd.f32 %v3758, %v3798
    %v3800 = vpop.f32.mrb[0].mxu0
    %v3801 = vpop.f32.mrb[0].mxu0
    %3802 = vdwg.mxu0
    %3803 = vmatprep.subr.bf16.mxu0 %v2454
    %3804 = vmatpush1.bf16.msra.mxu0 %v2453
    %3805 = vmatprep.subr.bf16.mxu0 %v2458
    %3806 = vmatpush1.bf16.msra.mxu0 %v2457
    %3807 = vmatprep.subr.bf16.mxu0 %v2462
    %3808 = vmatpush1.bf16.msra.mxu0 %v2461
    %3809 = vmatprep.subr.bf16.mxu0 %v2466
    %3810 = vmatpush1.bf16.msra.mxu0 %v2465
    %3811 = vmatprep.subr.bf16.mxu0 %v2470
    %3812 = vmatpush1.bf16.msra.mxu0 %v2469
    %3813 = vmatprep.subr.bf16.mxu0 %v2474
    %3814 = vmatpush1.bf16.msra.mxu0 %v2473
    %3815 = vmatprep.subr.bf16.mxu0 %v2478
    %3816 = vmatpush1.bf16.msra.mxu0 %v2477
    %3817 = vmatprep.subr.bf16.mxu0 %v2482
    %3818 = vmatpush1.bf16.msra.mxu0 %v2481
    %3819 = vmatprep.subr.bf16.mxu0 %v2486
    %3820 = vmatpush1.bf16.msra.mxu0 %v2485
    %3821 = vmatprep.subr.bf16.mxu0 %v2490
    %3822 = vmatpush1.bf16.msra.mxu0 %v2489
    %3823 = vmatprep.subr.bf16.mxu0 %v2494
    %3824 = vmatpush1.bf16.msra.mxu0 %v2493
    %3825 = vmatprep.subr.bf16.mxu0 %v2498
    %3826 = vmatpush1.bf16.msra.mxu0 %v2497
    %3827 = vmatprep.subr.bf16.mxu0 %v2502
    %3828 = vmatpush1.bf16.msra.mxu0 %v2501
    %3829 = vmatprep.subr.bf16.mxu0 %v2506
    %3830 = vmatpush1.bf16.msra.mxu0 %v2505
    %3831 = vmatprep.subr.bf16.mxu0 %v2510
    %3832 = vmatpush1.bf16.msra.mxu0 %v2509
    %3833 = vmatprep.subr.bf16.mxu0 %v2514
    %3834 = vmatpush1.bf16.msra.mxu0 %v2513
    %3835 = vmatprep.mubr.bf16.mxu0 %v366
    %3836 = vmatmul.mubr.bf16.gmra.mrb[0].mxu0 %v365
    %v3837 = vpop.f32.mrb[0].mxu0
    %v3838 = vadd.f32 %v906, %v3837
    %v3839 = vpop.f32.mrb[0].mxu0
    %v3840 = vadd.f32 %v910, %v3839
    %v3841 = vpop.f32.mrb[0].mxu0
    %v3842 = vpop.f32.mrb[0].mxu0
    %3843 = vdwg.mxu0
    %3844 = vmatprep.subr.bf16.mxu0 %v2518
    %3845 = vmatpush1.bf16.msra.mxu0 %v2517
    %3846 = vmatprep.subr.bf16.mxu0 %v2522
    %3847 = vmatpush1.bf16.msra.mxu0 %v2521
    %3848 = vmatprep.subr.bf16.mxu0 %v2526
    %3849 = vmatpush1.bf16.msra.mxu0 %v2525
    %3850 = vmatprep.subr.bf16.mxu0 %v2530
    %3851 = vmatpush1.bf16.msra.mxu0 %v2529
    %3852 = vmatprep.subr.bf16.mxu0 %v2534
    %3853 = vmatpush1.bf16.msra.mxu0 %v2533
    %3854 = vmatprep.subr.bf16.mxu0 %v2538
    %3855 = vmatpush1.bf16.msra.mxu0 %v2537
    %3856 = vmatprep.subr.bf16.mxu0 %v2542
    %3857 = vmatpush1.bf16.msra.mxu0 %v2541
    %3858 = vmatprep.subr.bf16.mxu0 %v2546
    %3859 = vmatpush1.bf16.msra.mxu0 %v2545
    %3860 = vmatprep.subr.bf16.mxu0 %v2550
    %3861 = vmatpush1.bf16.msra.mxu0 %v2549
    %3862 = vmatprep.subr.bf16.mxu0 %v2554
    %3863 = vmatpush1.bf16.msra.mxu0 %v2553
    %3864 = vmatprep.subr.bf16.mxu0 %v2558
    %3865 = vmatpush1.bf16.msra.mxu0 %v2557
    %3866 = vmatprep.subr.bf16.mxu0 %v2562
    %3867 = vmatpush1.bf16.msra.mxu0 %v2561
    %3868 = vmatprep.subr.bf16.mxu0 %v2566
    %3869 = vmatpush1.bf16.msra.mxu0 %v2565
    %3870 = vmatprep.subr.bf16.mxu0 %v2570
    %3871 = vmatpush1.bf16.msra.mxu0 %v2569
    %3872 = vmatprep.subr.bf16.mxu0 %v2574
    %3873 = vmatpush1.bf16.msra.mxu0 %v2573
    %3874 = vmatprep.subr.bf16.mxu0 %v2578
    %3875 = vmatpush1.bf16.msra.mxu0 %v2577
    %3876 = vmatprep.mubr.bf16.mxu0 %v368
    %3877 = vmatmul.mubr.bf16.gmra.mrb[0].mxu0 %v367
    %v3878 = vpop.f32.mrb[0].mxu0
    %v3879 = vadd.f32 %v3838, %v3878
    %v3880 = vpop.f32.mrb[0].mxu0
    %v3881 = vadd.f32 %v3840, %v3880
    %v3882 = vpop.f32.mrb[0].mxu0
    %v3883 = vpop.f32.mrb[0].mxu0
    %3884 = vdwg.mxu0
    %3885 = vmatprep.subr.bf16.mxu0 %v2582
    %3886 = vmatpush1.bf16.msra.mxu0 %v2581
    %3887 = vmatprep.subr.bf16.mxu0 %v2586
    %3888 = vmatpush1.bf16.msra.mxu0 %v2585
    %3889 = vmatprep.subr.bf16.mxu0 %v2590
    %3890 = vmatpush1.bf16.msra.mxu0 %v2589
    %3891 = vmatprep.subr.bf16.mxu0 %v2594
    %3892 = vmatpush1.bf16.msra.mxu0 %v2593
    %3893 = vmatprep.subr.bf16.mxu0 %v2598
    %3894 = vmatpush1.bf16.msra.mxu0 %v2597
    %3895 = vmatprep.subr.bf16.mxu0 %v2602
    %3896 = vmatpush1.bf16.msra.mxu0 %v2601
    %3897 = vmatprep.subr.bf16.mxu0 %v2606
    %3898 = vmatpush1.bf16.msra.mxu0 %v2605
    %3899 = vmatprep.subr.bf16.mxu0 %v2610
    %3900 = vmatpush1.bf16.msra.mxu0 %v2609
    %3901 = vmatprep.subr.bf16.mxu0 %v2614
    %3902 = vmatpush1.bf16.msra.mxu0 %v2613
    %3903 = vmatprep.subr.bf16.mxu0 %v2618
    %3904 = vmatpush1.bf16.msra.mxu0 %v2617
    %3905 = vmatprep.subr.bf16.mxu0 %v2622
    %3906 = vmatpush1.bf16.msra.mxu0 %v2621
    %3907 = vmatprep.subr.bf16.mxu0 %v2626
    %3908 = vmatpush1.bf16.msra.mxu0 %v2625
    %3909 = vmatprep.subr.bf16.mxu0 %v2630
    %3910 = vmatpush1.bf16.msra.mxu0 %v2629
    %3911 = vmatprep.subr.bf16.mxu0 %v2634
    %3912 = vmatpush1.bf16.msra.mxu0 %v2633
    %3913 = vmatprep.subr.bf16.mxu0 %v2638
    %3914 = vmatpush1.bf16.msra.mxu0 %v2637
    %3915 = vmatprep.subr.bf16.mxu0 %v2642
    %3916 = vmatpush1.bf16.msra.mxu0 %v2641
    %3917 = vmatprep.mubr.bf16.mxu0 %v370
    %3918 = vmatmul.mubr.bf16.gmra.mrb[0].mxu0 %v369
    %v3919 = vpop.f32.mrb[0].mxu0
    %v3920 = vadd.f32 %v3879, %v3919
    %v3921 = vpop.f32.mrb[0].mxu0
    %v3922 = vadd.f32 %v3881, %v3921
    %v3923 = vpop.f32.mrb[0].mxu0
    %v3924 = vpop.f32.mrb[0].mxu0
    %3925 = vdwg.mxu0
    %3926 = vmatprep.subr.bf16.mxu0 %v2646
    %3927 = vmatpush1.bf16.msra.mxu0 %v2645
    %3928 = vmatprep.subr.bf16.mxu0 %v2650
    %3929 = vmatpush1.bf16.msra.mxu0 %v2649
    %3930 = vmatprep.subr.bf16.mxu0 %v2654
    %3931 = vmatpush1.bf16.msra.mxu0 %v2653
    %3932 = vmatprep.subr.bf16.mxu0 %v2658
    %3933 = vmatpush1.bf16.msra.mxu0 %v2657
    %3934 = vmatprep.subr.bf16.mxu0 %v2662
    %3935 = vmatpush1.bf16.msra.mxu0 %v2661
    %3936 = vmatprep.subr.bf16.mxu0 %v2666
    %3937 = vmatpush1.bf16.msra.mxu0 %v2665
    %3938 = vmatprep.subr.bf16.mxu0 %v2670
    %3939 = vmatpush1.bf16.msra.mxu0 %v2669
    %3940 = vmatprep.subr.bf16.mxu0 %v2674
    %3941 = vmatpush1.bf16.msra.mxu0 %v2673
    %3942 = vmatprep.subr.bf16.mxu0 %v2678
    %3943 = vmatpush1.bf16.msra.mxu0 %v2677
    %3944 = vmatprep.subr.bf16.mxu0 %v2682
    %3945 = vmatpush1.bf16.msra.mxu0 %v2681
    %3946 = vmatprep.subr.bf16.mxu0 %v2686
    %3947 = vmatpush1.bf16.msra.mxu0 %v2685
    %3948 = vmatprep.subr.bf16.mxu0 %v2690
    %3949 = vmatpush1.bf16.msra.mxu0 %v2689
    %3950 = vmatprep.subr.bf16.mxu0 %v2694
    %3951 = vmatpush1.bf16.msra.mxu0 %v2693
    %3952 = vmatprep.subr.bf16.mxu0 %v2698
    %3953 = vmatpush1.bf16.msra.mxu0 %v2697
    %3954 = vmatprep.subr.bf16.mxu0 %v2702
    %3955 = vmatpush1.bf16.msra.mxu0 %v2701
    %3956 = vmatprep.subr.bf16.mxu0 %v2706
    %3957 = vmatpush1.bf16.msra.mxu0 %v2705
    %3958 = vmatprep.mubr.bf16.mxu0 %v372
    %3959 = vmatmul.mubr.bf16.gmra.mrb[0].mxu0 %v371
    %v3960 = vpop.f32.mrb[0].mxu0
    %v3961 = vadd.f32 %v3920, %v3960
    %v3962 = vpop.f32.mrb[0].mxu0
    %v3963 = vadd.f32 %v3922, %v3962
    %v3964 = vpop.f32.mrb[0].mxu0
    %v3965 = vpop.f32.mrb[0].mxu0
    %3966 = vdwg.mxu0
    %3967 = vmatprep.subr.bf16.mxu0 %v2710
    %3968 = vmatpush1.bf16.msra.mxu0 %v2709
    %3969 = vmatprep.subr.bf16.mxu0 %v2714
    %3970 = vmatpush1.bf16.msra.mxu0 %v2713
    %3971 = vmatprep.subr.bf16.mxu0 %v2718
    %3972 = vmatpush1.bf16.msra.mxu0 %v2717
    %3973 = vmatprep.subr.bf16.mxu0 %v2722
    %3974 = vmatpush1.bf16.msra.mxu0 %v2721
    %3975 = vmatprep.subr.bf16.mxu0 %v2726
    %3976 = vmatpush1.bf16.msra.mxu0 %v2725
    %3977 = vmatprep.subr.bf16.mxu0 %v2730
    %3978 = vmatpush1.bf16.msra.mxu0 %v2729
    %3979 = vmatprep.subr.bf16.mxu0 %v2734
    %3980 = vmatpush1.bf16.msra.mxu0 %v2733
    %3981 = vmatprep.subr.bf16.mxu0 %v2738
    %3982 = vmatpush1.bf16.msra.mxu0 %v2737
    %3983 = vmatprep.subr.bf16.mxu0 %v2742
    %3984 = vmatpush1.bf16.msra.mxu0 %v2741
    %3985 = vmatprep.subr.bf16.mxu0 %v2746
    %3986 = vmatpush1.bf16.msra.mxu0 %v2745
    %3987 = vmatprep.subr.bf16.mxu0 %v2750
    %3988 = vmatpush1.bf16.msra.mxu0 %v2749
    %3989 = vmatprep.subr.bf16.mxu0 %v2754
    %3990 = vmatpush1.bf16.msra.mxu0 %v2753
    %3991 = vmatprep.subr.bf16.mxu0 %v2758
    %3992 = vmatpush1.bf16.msra.mxu0 %v2757
    %3993 = vmatprep.subr.bf16.mxu0 %v2762
    %3994 = vmatpush1.bf16.msra.mxu0 %v2761
    %3995 = vmatprep.subr.bf16.mxu0 %v2766
    %3996 = vmatpush1.bf16.msra.mxu0 %v2765
    %3997 = vmatprep.subr.bf16.mxu0 %v2770
    %3998 = vmatpush1.bf16.msra.mxu0 %v2769
    %3999 = vmatprep.mubr.bf16.mxu0 %v374
    %4000 = vmatmul.mubr.bf16.gmra.mrb[0].mxu0 %v373
    %v4001 = vpop.f32.mrb[0].mxu0
    %v4002 = vadd.f32 %v3961, %v4001
    %v4003 = vpop.f32.mrb[0].mxu0
    %v4004 = vadd.f32 %v3963, %v4003
    %v4005 = vpop.f32.mrb[0].mxu0
    %v4006 = vpop.f32.mrb[0].mxu0
    %4007 = vdwg.mxu0
    %4008 = vmatprep.subr.bf16.mxu0 %v2774
    %4009 = vmatpush1.bf16.msra.mxu0 %v2773
    %4010 = vmatprep.subr.bf16.mxu0 %v2778
    %4011 = vmatpush1.bf16.msra.mxu0 %v2777
    %4012 = vmatprep.subr.bf16.mxu0 %v2782
    %4013 = vmatpush1.bf16.msra.mxu0 %v2781
    %4014 = vmatprep.subr.bf16.mxu0 %v2786
    %4015 = vmatpush1.bf16.msra.mxu0 %v2785
    %4016 = vmatprep.subr.bf16.mxu0 %v2790
    %4017 = vmatpush1.bf16.msra.mxu0 %v2789
    %4018 = vmatprep.subr.bf16.mxu0 %v2794
    %4019 = vmatpush1.bf16.msra.mxu0 %v2793
    %4020 = vmatprep.subr.bf16.mxu0 %v2798
    %4021 = vmatpush1.bf16.msra.mxu0 %v2797
    %4022 = vmatprep.subr.bf16.mxu0 %v2802
    %4023 = vmatpush1.bf16.msra.mxu0 %v2801
    %4024 = vmatprep.subr.bf16.mxu0 %v2806
    %4025 = vmatpush1.bf16.msra.mxu0 %v2805
    %4026 = vmatprep.subr.bf16.mxu0 %v2810
    %4027 = vmatpush1.bf16.msra.mxu0 %v2809
    %4028 = vmatprep.subr.bf16.mxu0 %v2814
    %4029 = vmatpush1.bf16.msra.mxu0 %v2813
    %4030 = vmatprep.subr.bf16.mxu0 %v2818
    %4031 = vmatpush1.bf16.msra.mxu0 %v2817
    %4032 = vmatprep.subr.bf16.mxu0 %v2822
    %4033 = vmatpush1.bf16.msra.mxu0 %v2821
    %4034 = vmatprep.subr.bf16.mxu0 %v2826
    %4035 = vmatpush1.bf16.msra.mxu0 %v2825
    %4036 = vmatprep.subr.bf16.mxu0 %v2830
    %4037 = vmatpush1.bf16.msra.mxu0 %v2829
    %4038 = vmatprep.subr.bf16.mxu0 %v2834
    %4039 = vmatpush1.bf16.msra.mxu0 %v2833
    %4040 = vmatprep.mubr.bf16.mxu0 %v376
    %4041 = vmatmul.mubr.bf16.gmra.mrb[0].mxu0 %v375
    %v4042 = vpop.f32.mrb[0].mxu0
    %v4043 = vadd.f32 %v4002, %v4042
    %v4044 = vpop.f32.mrb[0].mxu0
    %v4045 = vadd.f32 %v4004, %v4044
    %v4046 = vpop.f32.mrb[0].mxu0
    %v4047 = vpop.f32.mrb[0].mxu0
    %4048 = vdwg.mxu0
    %4049 = vmatprep.subr.bf16.mxu0 %v2838
    %4050 = vmatpush1.bf16.msra.mxu0 %v2837
    %4051 = vmatprep.subr.bf16.mxu0 %v2842
    %4052 = vmatpush1.bf16.msra.mxu0 %v2841
    %4053 = vmatprep.subr.bf16.mxu0 %v2846
    %4054 = vmatpush1.bf16.msra.mxu0 %v2845
    %4055 = vmatprep.subr.bf16.mxu0 %v2850
    %4056 = vmatpush1.bf16.msra.mxu0 %v2849
    %4057 = vmatprep.subr.bf16.mxu0 %v2854
    %4058 = vmatpush1.bf16.msra.mxu0 %v2853
    %4059 = vmatprep.subr.bf16.mxu0 %v2858
    %4060 = vmatpush1.bf16.msra.mxu0 %v2857
    %4061 = vmatprep.subr.bf16.mxu0 %v2862
    %4062 = vmatpush1.bf16.msra.mxu0 %v2861
    %4063 = vmatprep.subr.bf16.mxu0 %v2866
    %4064 = vmatpush1.bf16.msra.mxu0 %v2865
    %4065 = vmatprep.subr.bf16.mxu0 %v2870
    %4066 = vmatpush1.bf16.msra.mxu0 %v2869
    %4067 = vmatprep.subr.bf16.mxu0 %v2874
    %4068 = vmatpush1.bf16.msra.mxu0 %v2873
    %4069 = vmatprep.subr.bf16.mxu0 %v2878
    %4070 = vmatpush1.bf16.msra.mxu0 %v2877
    %4071 = vmatprep.subr.bf16.mxu0 %v2882
    %4072 = vmatpush1.bf16.msra.mxu0 %v2881
    %4073 = vmatprep.subr.bf16.mxu0 %v2886
    %4074 = vmatpush1.bf16.msra.mxu0 %v2885
    %4075 = vmatprep.subr.bf16.mxu0 %v2890
    %4076 = vmatpush1.bf16.msra.mxu0 %v2889
    %4077 = vmatprep.subr.bf16.mxu0 %v2894
    %4078 = vmatpush1.bf16.msra.mxu0 %v2893
    %4079 = vmatprep.subr.bf16.mxu0 %v2898
    %4080 = vmatpush1.bf16.msra.mxu0 %v2897
    %4081 = vmatprep.mubr.bf16.mxu0 %v378
    %4082 = vmatmul.mubr.bf16.gmra.mrb[0].mxu0 %v377
    %v4083 = vpop.f32.mrb[0].mxu0
    %v4084 = vadd.f32 %v4043, %v4083
    %v4085 = vpop.f32.mrb[0].mxu0
    %v4086 = vadd.f32 %v4045, %v4085
    %v4087 = vpop.f32.mrb[0].mxu0
    %v4088 = vpop.f32.mrb[0].mxu0
    %4089 = vdwg.mxu0
    %4090 = vmatprep.subr.bf16.mxu0 %v2902
    %4091 = vmatpush1.bf16.msra.mxu0 %v2901
    %4092 = vmatprep.subr.bf16.mxu0 %v2906
    %4093 = vmatpush1.bf16.msra.mxu0 %v2905
    %4094 = vmatprep.subr.bf16.mxu0 %v2910
    %4095 = vmatpush1.bf16.msra.mxu0 %v2909
    %4096 = vmatprep.subr.bf16.mxu0 %v2914
    %4097 = vmatpush1.bf16.msra.mxu0 %v2913
    %4098 = vmatprep.subr.bf16.mxu0 %v2918
    %4099 = vmatpush1.bf16.msra.mxu0 %v2917
    %4100 = vmatprep.subr.bf16.mxu0 %v2922
    %4101 = vmatpush1.bf16.msra.mxu0 %v2921
    %4102 = vmatprep.subr.bf16.mxu0 %v2926
    %4103 = vmatpush1.bf16.msra.mxu0 %v2925
    %4104 = vmatprep.subr.bf16.mxu0 %v2930
    %4105 = vmatpush1.bf16.msra.mxu0 %v2929
    %4106 = vmatprep.subr.bf16.mxu0 %v2934
    %4107 = vmatpush1.bf16.msra.mxu0 %v2933
    %4108 = vmatprep.subr.bf16.mxu0 %v2938
    %4109 = vmatpush1.bf16.msra.mxu0 %v2937
    %4110 = vmatprep.subr.bf16.mxu0 %v2942
    %4111 = vmatpush1.bf16.msra.mxu0 %v2941
    %4112 = vmatprep.subr.bf16.mxu0 %v2946
    %4113 = vmatpush1.bf16.msra.mxu0 %v2945
    %4114 = vmatprep.subr.bf16.mxu0 %v2950
    %4115 = vmatpush1.bf16.msra.mxu0 %v2949
    %4116 = vmatprep.subr.bf16.mxu0 %v2954
    %4117 = vmatpush1.bf16.msra.mxu0 %v2953
    %4118 = vmatprep.subr.bf16.mxu0 %v2958
    %4119 = vmatpush1.bf16.msra.mxu0 %v2957
    %4120 = vmatprep.subr.bf16.mxu0 %v2962
    %4121 = vmatpush1.bf16.msra.mxu0 %v2961
    %4122 = vmatprep.mubr.bf16.mxu0 %v380
    %4123 = vmatmul.mubr.bf16.gmra.mrb[0].mxu0 %v379
    %v4124 = vpop.f32.mrb[0].mxu0
    %v4125 = vadd.f32 %v4084, %v4124
    %v4126 = vpop.f32.mrb[0].mxu0
    %v4127 = vadd.f32 %v4086, %v4126
    %v4128 = vpop.f32.mrb[0].mxu0
    %v4129 = vpop.f32.mrb[0].mxu0
    %4130 = vdwg.mxu0
    %v4131 = vpack.c.bf16 %v3797, %v3797
    %v4132 = vpack.c.bf16 %v3799, %v3799
    %v4133 = vpack.c.bf16 %v4125, %v4125
    %v4134 = vpack.c.bf16 %v4127, %v4127
    %v4135 = vld [vmem:[%s3] sm:$0xff]
    %v4136 = vld [vmem:[%s3 + $0x8] sm:$0xff]
    %v4137 = vld [vmem:[%s3 + $0x10] sm:$0xff]
    %v4138 = vld [vmem:[%s3 + $0x18] sm:$0xff]
    %v4139 = vld [vmem:[%s3 + $0x20] sm:$0xff]
    %v4140 = vld [vmem:[%s3 + $0x28] sm:$0xff]
    %v4141 = vld [vmem:[%s3 + $0x30] sm:$0xff]
    %v4142 = vld [vmem:[%s3 + $0x38] sm:$0xff]
    %v4143 = vld [vmem:[%s3 + $0x40] sm:$0xff]
    %v4144 = vld [vmem:[%s3 + $0x48] sm:$0xff]
    %v4145 = vld [vmem:[%s3 + $0x50] sm:$0xff]
    %v4146 = vld [vmem:[%s3 + $0x58] sm:$0xff]
    %v4147 = vld [vmem:[%s3 + $0x60] sm:$0xff]
    %v4148 = vld [vmem:[%s3 + $0x68] sm:$0xff]
    %v4149 = vld [vmem:[%s3 + $0x70] sm:$0xff]
    %v4150 = vld [vmem:[%s3 + $0x78] sm:$0xff]
    %v4151 = vld [vmem:[%s3 + $0x80] sm:$0xff]
    %v4152 = vld [vmem:[%s3 + $0x88] sm:$0xff]
    %v4153 = vld [vmem:[%s3 + $0x90] sm:$0xff]
    %v4154 = vld [vmem:[%s3 + $0x98] sm:$0xff]
    %v4155 = vld [vmem:[%s3 + $0xa0] sm:$0xff]
    %v4156 = vld [vmem:[%s3 + $0xa8] sm:$0xff]
    %v4157 = vld [vmem:[%s3 + $0xb0] sm:$0xff]
    %v4158 = vld [vmem:[%s3 + $0xb8] sm:$0xff]
    %v4159 = vld [vmem:[%s3 + $0xc0] sm:$0xff]
    %v4160 = vld [vmem:[%s3 + $0xc8] sm:$0xff]
    %v4161 = vld [vmem:[%s3 + $0xd0] sm:$0xff]
    %v4162 = vld [vmem:[%s3 + $0xd8] sm:$0xff]
    %v4163 = vld [vmem:[%s3 + $0xe0] sm:$0xff]
    %v4164 = vld [vmem:[%s3 + $0xe8] sm:$0xff]
    %v4165 = vld [vmem:[%s3 + $0xf0] sm:$0xff]
    %v4166 = vld [vmem:[%s3 + $0xf8] sm:$0xff]
    %v4167 = vld [vmem:[%s3 + $0x100] sm:$0xff]
    %v4168 = vld [vmem:[%s3 + $0x108] sm:$0xff]
    %v4169 = vld [vmem:[%s3 + $0x110] sm:$0xff]
    %v4170 = vld [vmem:[%s3 + $0x118] sm:$0xff]
    %v4171 = vld [vmem:[%s3 + $0x120] sm:$0xff]
    %v4172 = vld [vmem:[%s3 + $0x128] sm:$0xff]
    %v4173 = vld [vmem:[%s3 + $0x130] sm:$0xff]
    %v4174 = vld [vmem:[%s3 + $0x138] sm:$0xff]
    %v4175 = vld [vmem:[%s3 + $0x140] sm:$0xff]
    %v4176 = vld [vmem:[%s3 + $0x148] sm:$0xff]
    %v4177 = vld [vmem:[%s3 + $0x150] sm:$0xff]
    %v4178 = vld [vmem:[%s3 + $0x158] sm:$0xff]
    %v4179 = vld [vmem:[%s3 + $0x160] sm:$0xff]
    %v4180 = vld [vmem:[%s3 + $0x168] sm:$0xff]
    %v4181 = vld [vmem:[%s3 + $0x170] sm:$0xff]
    %v4182 = vld [vmem:[%s3 + $0x178] sm:$0xff]
    %v4183 = vld [vmem:[%s3 + $0x180] sm:$0xff]
    %v4184 = vld [vmem:[%s3 + $0x188] sm:$0xff]
    %v4185 = vld [vmem:[%s3 + $0x190] sm:$0xff]
    %v4186 = vld [vmem:[%s3 + $0x198] sm:$0xff]
    %v4187 = vld [vmem:[%s3 + $0x1a0] sm:$0xff]
    %v4188 = vld [vmem:[%s3 + $0x1a8] sm:$0xff]
    %v4189 = vld [vmem:[%s3 + $0x1b0] sm:$0xff]
    %v4190 = vld [vmem:[%s3 + $0x1b8] sm:$0xff]
    %v4191 = vld [vmem:[%s3 + $0x1c0] sm:$0xff]
    %v4192 = vld [vmem:[%s3 + $0x1c8] sm:$0xff]
    %v4193 = vld [vmem:[%s3 + $0x1d0] sm:$0xff]
    %v4194 = vld [vmem:[%s3 + $0x1d8] sm:$0xff]
    %v4195 = vld [vmem:[%s3 + $0x1e0] sm:$0xff]
    %v4196 = vld [vmem:[%s3 + $0x1e8] sm:$0xff]
    %v4197 = vld [vmem:[%s3 + $0x1f0] sm:$0xff]
    %v4198 = vld [vmem:[%s3 + $0x1f8] sm:$0xff]
    %v4199 = vld [vmem:[%s4] sm:$0x3]
    %v4201 = vlaneseq
    %v4202 = vshrl.u32 %v4201, 7
    %v4203 = vsub.s32 0, %v4202
    %v4204 = vrot.slane %v4199, %v4203
    %v4205 = vlaneseq
    %v4206 = vshrl.u32 %v4205, 7
    %v4207 = vsub.s32 1, %v4206
    %v4208 = vrot.slane %v4199, %v4207
    %v4275 = vunpack.c.l.b16 %v4135
    %v4276 = vunpack.c.h.b16 %v4135
    %v4277 = vunpack.c.l.b16 %v4136
    %v4278 = vunpack.c.h.b16 %v4136
    %v4279 = vunpack.c.l.b16 %v4137
    %v4280 = vunpack.c.h.b16 %v4137
    %v4281 = vunpack.c.l.b16 %v4138
    %v4282 = vunpack.c.h.b16 %v4138
    %v4283 = vunpack.c.l.b16 %v4139
    %v4284 = vunpack.c.h.b16 %v4139
    %v4285 = vunpack.c.l.b16 %v4140
    %v4286 = vunpack.c.h.b16 %v4140
    %v4287 = vunpack.c.l.b16 %v4141
    %v4288 = vunpack.c.h.b16 %v4141
    %v4289 = vunpack.c.l.b16 %v4142
    %v4290 = vunpack.c.h.b16 %v4142
    %v4291 = vunpack.c.l.b16 %v4143
    %v4292 = vunpack.c.h.b16 %v4143
    %v4293 = vunpack.c.l.b16 %v4144
    %v4294 = vunpack.c.h.b16 %v4144
    %v4295 = vunpack.c.l.b16 %v4145
    %v4296 = vunpack.c.h.b16 %v4145
    %v4297 = vunpack.c.l.b16 %v4146
    %v4298 = vunpack.c.h.b16 %v4146
    %v4299 = vunpack.c.l.b16 %v4147
    %v4300 = vunpack.c.h.b16 %v4147
    %v4301 = vunpack.c.l.b16 %v4148
    %v4302 = vunpack.c.h.b16 %v4148
    %v4303 = vunpack.c.l.b16 %v4149
    %v4304 = vunpack.c.h.b16 %v4149
    %v4305 = vunpack.c.l.b16 %v4150
    %v4306 = vunpack.c.h.b16 %v4150
    %v4307 = vunpack.c.l.b16 %v4151
    %v4308 = vunpack.c.h.b16 %v4151
    %v4309 = vunpack.c.l.b16 %v4152
    %v4310 = vunpack.c.h.b16 %v4152
    %v4311 = vunpack.c.l.b16 %v4153
    %v4312 = vunpack.c.h.b16 %v4153
    %v4313 = vunpack.c.l.b16 %v4154
    %v4314 = vunpack.c.h.b16 %v4154
    %v4315 = vunpack.c.l.b16 %v4155
    %v4316 = vunpack.c.h.b16 %v4155
    %v4317 = vunpack.c.l.b16 %v4156
    %v4318 = vunpack.c.h.b16 %v4156
    %v4319 = vunpack.c.l.b16 %v4157
    %v4320 = vunpack.c.h.b16 %v4157
    %v4321 = vunpack.c.l.b16 %v4158
    %v4322 = vunpack.c.h.b16 %v4158
    %v4323 = vunpack.c.l.b16 %v4159
    %v4324 = vunpack.c.h.b16 %v4159
    %v4325 = vunpack.c.l.b16 %v4160
    %v4326 = vunpack.c.h.b16 %v4160
    %v4327 = vunpack.c.l.b16 %v4161
    %v4328 = vunpack.c.h.b16 %v4161
    %v4329 = vunpack.c.l.b16 %v4162
    %v4330 = vunpack.c.h.b16 %v4162
    %v4331 = vunpack.c.l.b16 %v4163
    %v4332 = vunpack.c.h.b16 %v4163
    %v4333 = vunpack.c.l.b16 %v4164
    %v4334 = vunpack.c.h.b16 %v4164
    %v4335 = vunpack.c.l.b16 %v4165
    %v4336 = vunpack.c.h.b16 %v4165
    %v4337 = vunpack.c.l.b16 %v4166
    %v4338 = vunpack.c.h.b16 %v4166
    %v4339 = vunpack.c.l.b16 %v4167
    %v4340 = vunpack.c.h.b16 %v4167
    %v4341 = vunpack.c.l.b16 %v4168
    %v4342 = vunpack.c.h.b16 %v4168
    %v4343 = vunpack.c.l.b16 %v4169
    %v4344 = vunpack.c.h.b16 %v4169
    %v4345 = vunpack.c.l.b16 %v4170
    %v4346 = vunpack.c.h.b16 %v4170
    %v4347 = vunpack.c.l.b16 %v4171
    %v4348 = vunpack.c.h.b16 %v4171
    %v4349 = vunpack.c.l.b16 %v4172
    %v4350 = vunpack.c.h.b16 %v4172
    %v4351 = vunpack.c.l.b16 %v4173
    %v4352 = vunpack.c.h.b16 %v4173
    %v4353 = vunpack.c.l.b16 %v4174
    %v4354 = vunpack.c.h.b16 %v4174
    %v4355 = vunpack.c.l.b16 %v4175
    %v4356 = vunpack.c.h.b16 %v4175
    %v4357 = vunpack.c.l.b16 %v4176
    %v4358 = vunpack.c.h.b16 %v4176
    %v4359 = vunpack.c.l.b16 %v4177
    %v4360 = vunpack.c.h.b16 %v4177
    %v4361 = vunpack.c.l.b16 %v4178
    %v4362 = vunpack.c.h.b16 %v4178
    %v4363 = vunpack.c.l.b16 %v4179
    %v4364 = vunpack.c.h.b16 %v4179
    %v4365 = vunpack.c.l.b16 %v4180
    %v4366 = vunpack.c.h.b16 %v4180
    %v4367 = vunpack.c.l.b16 %v4181
    %v4368 = vunpack.c.h.b16 %v4181
    %v4369 = vunpack.c.l.b16 %v4182
    %v4370 = vunpack.c.h.b16 %v4182
    %v4371 = vunpack.c.l.b16 %v4183
    %v4372 = vunpack.c.h.b16 %v4183
    %v4373 = vunpack.c.l.b16 %v4184
    %v4374 = vunpack.c.h.b16 %v4184
    %v4375 = vunpack.c.l.b16 %v4185
    %v4376 = vunpack.c.h.b16 %v4185
    %v4377 = vunpack.c.l.b16 %v4186
    %v4378 = vunpack.c.h.b16 %v4186
    %v4379 = vunpack.c.l.b16 %v4187
    %v4380 = vunpack.c.h.b16 %v4187
    %v4381 = vunpack.c.l.b16 %v4188
    %v4382 = vunpack.c.h.b16 %v4188
    %v4383 = vunpack.c.l.b16 %v4189
    %v4384 = vunpack.c.h.b16 %v4189
    %v4385 = vunpack.c.l.b16 %v4190
    %v4386 = vunpack.c.h.b16 %v4190
    %v4387 = vunpack.c.l.b16 %v4191
    %v4388 = vunpack.c.h.b16 %v4191
    %v4389 = vunpack.c.l.b16 %v4192
    %v4390 = vunpack.c.h.b16 %v4192
    %v4391 = vunpack.c.l.b16 %v4193
    %v4392 = vunpack.c.h.b16 %v4193
    %v4393 = vunpack.c.l.b16 %v4194
    %v4394 = vunpack.c.h.b16 %v4194
    %v4395 = vunpack.c.l.b16 %v4195
    %v4396 = vunpack.c.h.b16 %v4195
    %v4397 = vunpack.c.l.b16 %v4196
    %v4398 = vunpack.c.h.b16 %v4196
    %v4399 = vunpack.c.l.b16 %v4197
    %v4400 = vunpack.c.h.b16 %v4197
    %v4401 = vunpack.c.l.b16 %v4198
    %v4402 = vunpack.c.h.b16 %v4198
    %v4403 = vpack.c.b16 %v4277, %v4275
    %v4404 = vpack.c.b16 %v4278, %v4276
    %v4405 = vpack.c.b16 %v4281, %v4279
    %v4406 = vpack.c.b16 %v4282, %v4280
    %v4407 = vpack.c.b16 %v4285, %v4283
    %v4408 = vpack.c.b16 %v4286, %v4284
    %v4409 = vpack.c.b16 %v4289, %v4287
    %v4410 = vpack.c.b16 %v4290, %v4288
    %v4411 = vpack.c.b16 %v4293, %v4291
    %v4412 = vpack.c.b16 %v4294, %v4292
    %v4413 = vpack.c.b16 %v4297, %v4295
    %v4414 = vpack.c.b16 %v4298, %v4296
    %v4415 = vpack.c.b16 %v4301, %v4299
    %v4416 = vpack.c.b16 %v4302, %v4300
    %v4417 = vpack.c.b16 %v4305, %v4303
    %v4418 = vpack.c.b16 %v4306, %v4304
    %v4419 = vpack.c.b16 %v4309, %v4307
    %v4420 = vpack.c.b16 %v4310, %v4308
    %v4421 = vpack.c.b16 %v4313, %v4311
    %v4422 = vpack.c.b16 %v4314, %v4312
    %v4423 = vpack.c.b16 %v4317, %v4315
    %v4424 = vpack.c.b16 %v4318, %v4316
    %v4425 = vpack.c.b16 %v4321, %v4319
    %v4426 = vpack.c.b16 %v4322, %v4320
    %v4427 = vpack.c.b16 %v4325, %v4323
    %v4428 = vpack.c.b16 %v4326, %v4324
    %v4429 = vpack.c.b16 %v4329, %v4327
    %v4430 = vpack.c.b16 %v4330, %v4328
    %v4431 = vpack.c.b16 %v4333, %v4331
    %v4432 = vpack.c.b16 %v4334, %v4332
    %v4433 = vpack.c.b16 %v4337, %v4335
    %v4434 = vpack.c.b16 %v4338, %v4336
    %v4435 = vpack.c.b16 %v4341, %v4339
    %v4436 = vpack.c.b16 %v4342, %v4340
    %v4437 = vpack.c.b16 %v4345, %v4343
    %v4438 = vpack.c.b16 %v4346, %v4344
    %v4439 = vpack.c.b16 %v4349, %v4347
    %v4440 = vpack.c.b16 %v4350, %v4348
    %v4441 = vpack.c.b16 %v4353, %v4351
    %v4442 = vpack.c.b16 %v4354, %v4352
    %v4443 = vpack.c.b16 %v4357, %v4355
    %v4444 = vpack.c.b16 %v4358, %v4356
    %v4445 = vpack.c.b16 %v4361, %v4359
    %v4446 = vpack.c.b16 %v4362, %v4360
    %v4447 = vpack.c.b16 %v4365, %v4363
    %v4448 = vpack.c.b16 %v4366, %v4364
    %v4449 = vpack.c.b16 %v4369, %v4367
    %v4450 = vpack.c.b16 %v4370, %v4368
    %v4451 = vpack.c.b16 %v4373, %v4371
    %v4452 = vpack.c.b16 %v4374, %v4372
    %v4453 = vpack.c.b16 %v4377, %v4375
    %v4454 = vpack.c.b16 %v4378, %v4376
    %v4455 = vpack.c.b16 %v4381, %v4379
    %v4456 = vpack.c.b16 %v4382, %v4380
    %v4457 = vpack.c.b16 %v4385, %v4383
    %v4458 = vpack.c.b16 %v4386, %v4384
    %v4459 = vpack.c.b16 %v4389, %v4387
    %v4460 = vpack.c.b16 %v4390, %v4388
    %v4461 = vpack.c.b16 %v4393, %v4391
    %v4462 = vpack.c.b16 %v4394, %v4392
    %v4463 = vpack.c.b16 %v4397, %v4395
    %v4464 = vpack.c.b16 %v4398, %v4396
    %v4465 = vpack.c.b16 %v4401, %v4399
    %v4466 = vpack.c.b16 %v4402, %v4400
    %4531 = vmatprep.subr.bf16.mxu0 %v4404
    %4532 = vmatpush1.bf16.msra.mxu0 %v4403
    %4533 = vmatprep.subr.bf16.mxu0 %v4406
    %4534 = vmatpush1.bf16.msra.mxu0 %v4405
    %4535 = vmatprep.subr.bf16.mxu0 %v4408
    %4536 = vmatpush1.bf16.msra.mxu0 %v4407
    %4537 = vmatprep.subr.bf16.mxu0 %v4410
    %4538 = vmatpush1.bf16.msra.mxu0 %v4409
    %4539 = vmatprep.subr.bf16.mxu0 %v4412
    %4540 = vmatpush1.bf16.msra.mxu0 %v4411
    %4541 = vmatprep.subr.bf16.mxu0 %v4414
    %4542 = vmatpush1.bf16.msra.mxu0 %v4413
    %4543 = vmatprep.subr.bf16.mxu0 %v4416
    %4544 = vmatpush1.bf16.msra.mxu0 %v4415
    %4545 = vmatprep.subr.bf16.mxu0 %v4418
    %4546 = vmatpush1.bf16.msra.mxu0 %v4417
    %4547 = vmatprep.subr.bf16.mxu0 %v4420
    %4548 = vmatpush1.bf16.msra.mxu0 %v4419
    %4549 = vmatprep.subr.bf16.mxu0 %v4422
    %4550 = vmatpush1.bf16.msra.mxu0 %v4421
    %4551 = vmatprep.subr.bf16.mxu0 %v4424
    %4552 = vmatpush1.bf16.msra.mxu0 %v4423
    %4553 = vmatprep.subr.bf16.mxu0 %v4426
    %4554 = vmatpush1.bf16.msra.mxu0 %v4425
    %4555 = vmatprep.subr.bf16.mxu0 %v4428
    %4556 = vmatpush1.bf16.msra.mxu0 %v4427
    %4557 = vmatprep.subr.bf16.mxu0 %v4430
    %4558 = vmatpush1.bf16.msra.mxu0 %v4429
    %4559 = vmatprep.subr.bf16.mxu0 %v4432
    %4560 = vmatpush1.bf16.msra.mxu0 %v4431
    %4561 = vmatprep.subr.bf16.mxu0 %v4434
    %4562 = vmatpush1.bf16.msra.mxu0 %v4433
    %4563 = vmatprep.mubr.bf16.mxu0 %v4132
    %4564 = vmatmul.mubr.bf16.gmra.mrb[0].mxu0 %v4131
    %v4565 = vpop.f32.mrb[0].mxu0
    %v4566 = vadd.f32 %v4204, %v4565
    %v4567 = vpop.f32.mrb[0].mxu0
    %v4568 = vadd.f32 %v4208, %v4567
    %v4569 = vpop.f32.mrb[0].mxu0
    %v4570 = vpop.f32.mrb[0].mxu0
    %4571 = vdwg.mxu0
    %4572 = vmatprep.subr.bf16.mxu0 %v4436
    %4573 = vmatpush1.bf16.msra.mxu0 %v4435
    %4574 = vmatprep.subr.bf16.mxu0 %v4438
    %4575 = vmatpush1.bf16.msra.mxu0 %v4437
    %4576 = vmatprep.subr.bf16.mxu0 %v4440
    %4577 = vmatpush1.bf16.msra.mxu0 %v4439
    %4578 = vmatprep.subr.bf16.mxu0 %v4442
    %4579 = vmatpush1.bf16.msra.mxu0 %v4441
    %4580 = vmatprep.subr.bf16.mxu0 %v4444
    %4581 = vmatpush1.bf16.msra.mxu0 %v4443
    %4582 = vmatprep.subr.bf16.mxu0 %v4446
    %4583 = vmatpush1.bf16.msra.mxu0 %v4445
    %4584 = vmatprep.subr.bf16.mxu0 %v4448
    %4585 = vmatpush1.bf16.msra.mxu0 %v4447
    %4586 = vmatprep.subr.bf16.mxu0 %v4450
    %4587 = vmatpush1.bf16.msra.mxu0 %v4449
    %4588 = vmatprep.subr.bf16.mxu0 %v4452
    %4589 = vmatpush1.bf16.msra.mxu0 %v4451
    %4590 = vmatprep.subr.bf16.mxu0 %v4454
    %4591 = vmatpush1.bf16.msra.mxu0 %v4453
    %4592 = vmatprep.subr.bf16.mxu0 %v4456
    %4593 = vmatpush1.bf16.msra.mxu0 %v4455
    %4594 = vmatprep.subr.bf16.mxu0 %v4458
    %4595 = vmatpush1.bf16.msra.mxu0 %v4457
    %4596 = vmatprep.subr.bf16.mxu0 %v4460
    %4597 = vmatpush1.bf16.msra.mxu0 %v4459
    %4598 = vmatprep.subr.bf16.mxu0 %v4462
    %4599 = vmatpush1.bf16.msra.mxu0 %v4461
    %4600 = vmatprep.subr.bf16.mxu0 %v4464
    %4601 = vmatpush1.bf16.msra.mxu0 %v4463
    %4602 = vmatprep.subr.bf16.mxu0 %v4466
    %4603 = vmatpush1.bf16.msra.mxu0 %v4465
    %4604 = vmatprep.mubr.bf16.mxu0 %v4134
    %4605 = vmatmul.mubr.bf16.gmra.mrb[0].mxu0 %v4133
    %v4606 = vpop.f32.mrb[0].mxu0
    %v4607 = vadd.f32 %v4566, %v4606
    %v4608 = vpop.f32.mrb[0].mxu0
    %v4609 = vadd.f32 %v4568, %v4608
    %v4610 = vpop.f32.mrb[0].mxu0
    %v4611 = vpop.f32.mrb[0].mxu0
    %4612 = vdwg.mxu0
    %v4613 = vpack.c.bf16 %v4607, %v4607
    %v4614 = vpack.c.bf16 %v4609, %v4609
    %v4615 = vld [vmem:[%s5] sm:$0xf]
    %v4616 = vld [vmem:[%s5 + $0x4] sm:$0xf]
    %v4617 = vld [vmem:[%s5 + $0x8] sm:$0xf]
    %v4618 = vld [vmem:[%s5 + $0xc] sm:$0xf]
    %v4619 = vld [vmem:[%s5 + $0x10] sm:$0xf]
    %v4620 = vld [vmem:[%s5 + $0x14] sm:$0xf]
    %v4621 = vld [vmem:[%s5 + $0x18] sm:$0xf]
    %v4622 = vld [vmem:[%s5 + $0x1c] sm:$0xf]
    %v4623 = vld [vmem:[%s5 + $0x20] sm:$0xf]
    %v4624 = vld [vmem:[%s5 + $0x24] sm:$0xf]
    %v4625 = vld [vmem:[%s5 + $0x28] sm:$0xf]
    %v4626 = vld [vmem:[%s5 + $0x2c] sm:$0xf]
    %v4627 = vld [vmem:[%s5 + $0x30] sm:$0xf]
    %v4628 = vld [vmem:[%s5 + $0x34] sm:$0xf]
    %v4629 = vld [vmem:[%s5 + $0x38] sm:$0xf]
    %v4630 = vld [vmem:[%s5 + $0x3c] sm:$0xf]
    %v4631 = vld [vmem:[%s5 + $0x40] sm:$0xf]
    %v4632 = vld [vmem:[%s5 + $0x44] sm:$0xf]
    %v4633 = vld [vmem:[%s5 + $0x48] sm:$0xf]
    %v4634 = vld [vmem:[%s5 + $0x4c] sm:$0xf]
    %v4635 = vld [vmem:[%s5 + $0x50] sm:$0xf]
    %v4636 = vld [vmem:[%s5 + $0x54] sm:$0xf]
    %v4637 = vld [vmem:[%s5 + $0x58] sm:$0xf]
    %v4638 = vld [vmem:[%s5 + $0x5c] sm:$0xf]
    %v4639 = vld [vmem:[%s5 + $0x60] sm:$0xf]
    %v4640 = vld [vmem:[%s5 + $0x64] sm:$0xf]
    %v4641 = vld [vmem:[%s5 + $0x68] sm:$0xf]
    %v4642 = vld [vmem:[%s5 + $0x6c] sm:$0xf]
    %v4643 = vld [vmem:[%s5 + $0x70] sm:$0xf]
    %v4644 = vld [vmem:[%s5 + $0x74] sm:$0xf]
    %v4645 = vld [vmem:[%s5 + $0x78] sm:$0xf]
    %v4646 = vld [vmem:[%s5 + $0x7c] sm:$0xf]
    %v4647 = vld [vmem:[%s6] sm:$0x1]
    %v4649 = vlaneseq
    %v4650 = vshrl.u32 %v4649, 7
    %v4651 = vsub.s32 0, %v4650
    %v4652 = vrot.slane %v4647, %v4651
    %v4686 = vunpack.c.l.b16 %v4615
    %v4687 = vunpack.c.l.b16 %v4616
    %v4688 = vunpack.c.l.b16 %v4617
    %v4689 = vunpack.c.l.b16 %v4618
    %v4690 = vunpack.c.l.b16 %v4619
    %v4691 = vunpack.c.l.b16 %v4620
    %v4692 = vunpack.c.l.b16 %v4621
    %v4693 = vunpack.c.l.b16 %v4622
    %v4694 = vunpack.c.l.b16 %v4623
    %v4695 = vunpack.c.l.b16 %v4624
    %v4696 = vunpack.c.l.b16 %v4625
    %v4697 = vunpack.c.l.b16 %v4626
    %v4698 = vunpack.c.l.b16 %v4627
    %v4699 = vunpack.c.l.b16 %v4628
    %v4700 = vunpack.c.l.b16 %v4629
    %v4701 = vunpack.c.l.b16 %v4630
    %v4702 = vunpack.c.l.b16 %v4631
    %v4703 = vunpack.c.l.b16 %v4632
    %v4704 = vunpack.c.l.b16 %v4633
    %v4705 = vunpack.c.l.b16 %v4634
    %v4706 = vunpack.c.l.b16 %v4635
    %v4707 = vunpack.c.l.b16 %v4636
    %v4708 = vunpack.c.l.b16 %v4637
    %v4709 = vunpack.c.l.b16 %v4638
    %v4710 = vunpack.c.l.b16 %v4639
    %v4711 = vunpack.c.l.b16 %v4640
    %v4712 = vunpack.c.l.b16 %v4641
    %v4713 = vunpack.c.l.b16 %v4642
    %v4714 = vunpack.c.l.b16 %v4643
    %v4715 = vunpack.c.l.b16 %v4644
    %v4716 = vunpack.c.l.b16 %v4645
    %v4717 = vunpack.c.l.b16 %v4646
    %v4718 = vpack.c.b16 %v4687, %v4686
    %v4719 = vpack.c.b16 %v4689, %v4688
    %v4720 = vpack.c.b16 %v4691, %v4690
    %v4721 = vpack.c.b16 %v4693, %v4692
    %v4722 = vpack.c.b16 %v4695, %v4694
    %v4723 = vpack.c.b16 %v4697, %v4696
    %v4724 = vpack.c.b16 %v4699, %v4698
    %v4725 = vpack.c.b16 %v4701, %v4700
    %v4726 = vpack.c.b16 %v4703, %v4702
    %v4727 = vpack.c.b16 %v4705, %v4704
    %v4728 = vpack.c.b16 %v4707, %v4706
    %v4729 = vpack.c.b16 %v4709, %v4708
    %v4730 = vpack.c.b16 %v4711, %v4710
    %v4731 = vpack.c.b16 %v4713, %v4712
    %v4732 = vpack.c.b16 %v4715, %v4714
    %v4733 = vpack.c.b16 %v4717, %v4716
    %4750 = vmatprep.subr.bf16.mxu0 0
    %4751 = vmatpush1.bf16.msra.mxu0 %v4718
    %4752 = vmatprep.subr.bf16.mxu0 0
    %4753 = vmatpush1.bf16.msra.mxu0 %v4719
    %4754 = vmatprep.subr.bf16.mxu0 0
    %4755 = vmatpush1.bf16.msra.mxu0 %v4720
    %4756 = vmatprep.subr.bf16.mxu0 0
    %4757 = vmatpush1.bf16.msra.mxu0 %v4721
    %4758 = vmatprep.subr.bf16.mxu0 0
    %4759 = vmatpush1.bf16.msra.mxu0 %v4722
    %4760 = vmatprep.subr.bf16.mxu0 0
    %4761 = vmatpush1.bf16.msra.mxu0 %v4723
    %4762 = vmatprep.subr.bf16.mxu0 0
    %4763 = vmatpush1.bf16.msra.mxu0 %v4724
    %4764 = vmatprep.subr.bf16.mxu0 0
    %4765 = vmatpush1.bf16.msra.mxu0 %v4725
    %4766 = vmatprep.subr.bf16.mxu0 0
    %4767 = vmatpush1.bf16.msra.mxu0 %v4726
    %4768 = vmatprep.subr.bf16.mxu0 0
    %4769 = vmatpush1.bf16.msra.mxu0 %v4727
    %4770 = vmatprep.subr.bf16.mxu0 0
    %4771 = vmatpush1.bf16.msra.mxu0 %v4728
    %4772 = vmatprep.subr.bf16.mxu0 0
    %4773 = vmatpush1.bf16.msra.mxu0 %v4729
    %4774 = vmatprep.subr.bf16.mxu0 0
    %4775 = vmatpush1.bf16.msra.mxu0 %v4730
    %4776 = vmatprep.subr.bf16.mxu0 0
    %4777 = vmatpush1.bf16.msra.mxu0 %v4731
    %4778 = vmatprep.subr.bf16.mxu0 0
    %4779 = vmatpush1.bf16.msra.mxu0 %v4732
    %4780 = vmatprep.subr.bf16.mxu0 0
    %4781 = vmatpush1.bf16.msra.mxu0 %v4733
    %4782 = vmatprep.mubr.bf16.mxu0 %v4614
    %4783 = vmatmul.mubr.bf16.gmra.mrb[0].mxu0 %v4613
    %v4784 = vpop.f32.mrb[0].mxu0
    %v4785 = vadd.f32 %v4652, %v4784
    %v4786 = vpop.f32.mrb[0].mxu0
    %v4787 = vpop.f32.mrb[0].mxu0
    %v4788 = vpop.f32.mrb[0].mxu0
    %4789 = vdwg.mxu0
    %vm4790 = vcmask 74752
    %v4791 = vsel %vm4790, %v4785, -inf
    %4792 = vmax.xlane.f32.xlu0 %v4791
    %v4793 = vpop.xlane.xlu0 %4792
    %v4794 = vsub.f32 %v4785, %v4793
    %v4795 = vmul.f32 %v4794, 1.442695
    %v4796 = vpow.pop %v4795
    %v4797 = vsel %vm4790, %v4796, 0.0
    %4798 = vadd.xlane.f32.xlu0 %v4797
    %v4799 = vpop.xlane.xlu0 %4798
    %v4800 = vlog2.pop %v4799
    %v4801 = vmul.f32 %v4800, 0.6931472
    %v4802 = vsub.f32 %v4794, %v4801
    %4803 = vst.msk [vmem:[#allocation2] sm:$0x3] %vm4790, %v4802
    // Predicated region
    $region30: #{netgat_forward.5} parent=1 // pred_check
      _
    $region31: #{netgat_forward.5} parent=1 // pred_check_branch
      %4805 = sbr.rel (0) target = $region33
    $region32: #{netgat_forward.5} parent=1 // pred_region
      %s4807 = ssub.s32 32, 32
      %4808 = vsyncadd [#allocation3], %s4807
      %s4810 = sshll.u32 [#allocation2], 4
      %s4811 = int_to_ptr.vmem [resolvable:$true] %s4810
      %4813 = dma.vmem_to_hbm [thread:$0]  %s4811, 32, %s7, [#allocation3]
    $region33: #{netgat_forward.5} parent=1 // pred_fallthru
      _
    // Predicated region
    $region34: #{netgat_forward.5} parent=1 // pred_check
      _
    $region35: #{netgat_forward.5} parent=1 // pred_check_branch
      %4815 = sbr.rel (0) target = $region37
    $region36: #{netgat_forward.5} parent=1 // pred_region
      %4816 = dma.done [#allocation3], 32
    $region37: #{netgat_forward.5} parent=1 // pred_fallthru
      _
    %4817 = vsyncpa [#allocation3], 1

</llo_original>
